<compile_context>
chip_gen: v7x
topology: tpu7x:2x2x1
jax: 0.10.0
libtpu: 0.0.40
codegen_flags: <defaults>
</compile_context>

<pallas_src>
import functools

import jax
import jax.numpy as jnp
from jax.experimental import pallas as pl
from jax.experimental.pallas import tpu as pltpu

D = 1536       # hidden dim (Embed(1536, 1536))
NC = 4         # number of candidates (x.view(B, 4, -1))
TEMP = 0.07    # temperature
NORM_EPS = 1e-24   # intentional deviation: guards exactly-zero rows (ref -> inf/nan)


# --------------------------- Fused kernel ---------------------------------- #
# grid axis e selects which Embed this step runs ('0' at e=0, '2' at e=1); the
# NCE epilogue runs under pl.when(e == 1) using the feats_t stashed at e=0.
def fused_kernel(ans_ref, rat_ref, x_ref, w_ref, b_ref, o_ref, ft_sc, fs_sc,
                 *, temp, batch):
    e = pl.program_id(0)

    # ---- Embed pass: (B*4, D) bf16 @ (D, D) bf16 -> f32, bias, L2-normalize ----
    y = jnp.dot(x_ref[...], w_ref[...], preferred_element_type=jnp.float32)
    y = y + b_ref[...]
    inv = jax.lax.rsqrt(jnp.sum(y * y, axis=-1, keepdims=True) + NORM_EPS)
    feats = y * inv                                    # (B*NC, D) f32, unit rows

    @pl.when(e == 0)
    def _():
        # stash feats_t (embeds['0'](qr2a)) in f32 VMEM scratch; init stats row.
        for b in range(batch):
            ft_sc[b] = feats[b * NC:(b + 1) * NC, :]
        o_ref[...] = jnp.zeros_like(o_ref)

    @pl.when(e == 1)
    def _():
        for b in range(batch):
            fs_sc[b] = feats[b * NC:(b + 1) * NC, :]
        ft = ft_sc[...]            # (B, NC, D) f32 == embeds['0'](features_qr2a)
        fs = fs_sc[...]            # (B, NC, D) f32 == embeds['2'](features_qa2r)

        # labels from SMEM scalars -> (B,1) int columns + (B,NC) one-hots
        idx4 = jax.lax.broadcasted_iota(jnp.int32, (batch, NC), 1)
        rowb = jax.lax.broadcasted_iota(jnp.int32, (batch, 1), 0)
        ans_col = jnp.zeros((batch, 1), jnp.int32)
        rat_col = jnp.zeros((batch, 1), jnp.int32)
        for b in range(batch):                       # tiny: B selects on (B,1)
            ans_col = ans_col + jnp.where(rowb == b, ans_ref[b], 0)
            rat_col = rat_col + jnp.where(rowb == b, rat_ref[b], 0)
        ans_oh = (idx4 == ans_col).astype(jnp.float32)   # (B, NC)
        rat_oh = (idx4 == rat_col).astype(jnp.float32)   # (B, NC)

        # gather feats_x[b, label[b]] via one-hot contraction over candidates
        z_s = jnp.sum(rat_oh[:, :, None] * fs, axis=1)   # (B, D)
        z_t = jnp.sum(ans_oh[:, :, None] * ft, axis=1)   # (B, D)

        # torch.bmm(feats, z[:, :, None]).squeeze(-1)
        logits_s = jnp.sum(ft * z_s[:, None, :], axis=-1)   # (B, NC)
        logits_t = jnp.sum(fs * z_t[:, None, :], axis=-1)   # (B, NC)

        inv_temp = 1.0 / temp

        def stats(logits, lab_oh, lab_col):
            ls = logits * inv_temp
            m = jnp.max(ls, axis=-1, keepdims=True)
            ex = jnp.exp(ls - m)
            denom = jnp.sum(ex, axis=-1, keepdims=True)
            lse = m + jnp.log(denom)                                 # (B, 1)
            picked = jnp.sum(lab_oh * ls, axis=-1, keepdims=True)    # (B, 1)
            ce = lse - picked                                        # per-sample CE
            p = ex / denom                                           # exact softmax
            pmax = jnp.max(p, axis=-1, keepdims=True)                # (B, 1)
            # first argmax index (matches torch argmax semantics)
            am = jnp.min(jnp.where(p >= pmax, idx4, NC), axis=-1, keepdims=True)
            acc = (am == lab_col).astype(jnp.float32)                # (B, 1)
            return ce, pmax, acc

        ce_s, pmax_s, acc_s = stats(logits_s, ans_oh, ans_col)   # loss_s vs answer
        ce_t, pmax_t, acc_t = stats(logits_t, rat_oh, rat_col)   # loss_t vs rationale

        def bmean(v):                                    # batch mean -> (1, 1)
            return jnp.mean(v, axis=0, keepdims=True)

        means = [bmean(ce_s + ce_t),   # loss
                 bmean(ce_t),          # nce_t
                 bmean(pmax_t),        # ncep_t
                 bmean(acc_t),         # nceacc_t
                 bmean(ce_s),          # nce_s
                 bmean(pmax_s),        # ncep_s
                 bmean(acc_s)]         # nceacc_s

        cols = jax.lax.broadcasted_iota(jnp.int32, (1, 128), 1)
        row = jnp.zeros((1, 128), jnp.float32)
        for j, v in enumerate(means):
            row = row + jnp.where(cols == j, v, 0.0)
        o_ref[...] = row                                 # lane-dense unmasked vst


def infonce_fused(ans, rat, x2, w2, b2, *, temp):
    # ans/rat: (B,) int32 (scalar-prefetch/SMEM); x2: (2, B*4, D) bf16;
    # w2: (2, D, D) bf16 pre-transposed; b2: (2, 1, D) f32 -> (1, 128) f32 stats.
    B = ans.shape[0]
    M = B * NC
    kernel = functools.partial(fused_kernel, temp=temp, batch=B)
    return pl.pallas_call(
        kernel,
        out_shape=jax.ShapeDtypeStruct((1, 128), jnp.float32),
        grid_spec=pltpu.PrefetchScalarGridSpec(
            num_scalar_prefetch=2,
            grid=(2,),
            in_specs=[
                pl.BlockSpec((None, M, D), lambda e, ans, rat: (e, 0, 0)),
                pl.BlockSpec((None, D, D), lambda e, ans, rat: (e, 0, 0)),
                pl.BlockSpec((None, 1, D), lambda e, ans, rat: (e, 0, 0)),
            ],
            out_specs=pl.BlockSpec((1, 128), lambda e, ans, rat: (0, 0)),
            scratch_shapes=[
                pltpu.VMEM((B, NC, D), jnp.float32),   # feats_t (persists e0->e1)
                pltpu.VMEM((B, NC, D), jnp.float32),   # feats_s (local to e1)
            ],
        ),
        compiler_params=pltpu.CompilerParams(
            # e=1 depends on e=0 through scratch -> must be sequential.
            dimension_semantics=("arbitrary",),
        ),
    )(ans, rat, x2, w2, b2)


# ------------------------------- Wrapper ------------------------------------ #
def init_params(key):
    k0, k1, k2, k3 = jax.random.split(key, 4)
    scale = 0.02
    # weights stored pre-transposed (D_in, D_out), stacked [embed '0', embed '2'],
    # in bf16 so the dominant HBM weight DMA is already half-sized.
    w = jnp.stack([
        jax.random.normal(k0, (D, D), jnp.float32),
        jax.random.normal(k2, (D, D), jnp.float32),
    ]) * scale
    b = jnp.stack([
        jax.random.normal(k1, (1, D), jnp.float32),
        jax.random.normal(k3, (1, D), jnp.float32),
    ]) * scale
    return {"w": w.astype(jnp.bfloat16),   # (2, D, D)
            "b": b.astype(jnp.float32)}    # (2, 1, D)


@jax.jit
def infonce_emb_loss_2(params, feats_qr2a, answer_label, feats_qa2r,
                       rationale_label):
    B = answer_label.shape[0]
    # single fused XLA op: stack the two Embed inputs + cast to bf16 (halves
    # the x HBM read feeding the kernel's MXU operands).
    x2 = jnp.stack([
        feats_qr2a.reshape(B * NC, D),
        feats_qa2r.reshape(B * NC, D),
    ]).astype(jnp.bfloat16)                                   # (2, B*4, D)

    stats = infonce_fused(
        answer_label.astype(jnp.int32),
        rationale_label.astype(jnp.int32),
        x2, params["w"], params["b"], temp=TEMP)              # (1, 128)

    loss = stats[0, 0]
    metrics = {
        "nce_t": stats[0, 1], "ncep_t": stats[0, 2], "nceacc_t": stats[0, 3],
        "nce_s": stats[0, 4], "ncep_s": stats[0, 5], "nceacc_s": stats[0, 6],
    }
    return loss, metrics


if __name__ == "__main__":
    key = jax.random.PRNGKey(0)
    kp, kf1, kf2, kl1, kl2 = jax.random.split(key, 5)

    B = 2
    params = init_params(kp)
    feats_qr2a = jax.random.normal(kf1, (B, NC, D), jnp.float32)
    feats_qa2r = jax.random.normal(kf2, (B, NC, D), jnp.float32)
    answer_label = jax.random.randint(kl1, (B,), 0, NC, jnp.int32)
    rationale_label = jax.random.randint(kl2, (B,), 0, NC, jnp.int32)

    loss, metrics = infonce_emb_loss_2(
        params, feats_qr2a, answer_label, feats_qa2r, rationale_label
    )
    jax.block_until_ready((loss, metrics))
    print("KERNEL_OK")
</pallas_src>

<mosaic_0001>
module attributes {stable_mosaic.version = 11 : i64} {
  func.func @fused_kernel(%arg0: i32, %arg1: memref<2xi32, #tpu.memory_space<smem>>, %arg2: memref<2xi32, #tpu.memory_space<smem>>, %arg3: memref<1x8x1536xbf16, #tpu.memory_space<vmem>>, %arg4: memref<1x1536x1536xbf16, #tpu.memory_space<vmem>>, %arg5: memref<1x1x1536xf32, #tpu.memory_space<vmem>>, %arg6: memref<1x128xf32, #tpu.memory_space<vmem>>, %arg7: memref<2x4x1536xf32, #tpu.memory_space<vmem>>, %arg8: memref<2x4x1536xf32, #tpu.memory_space<vmem>>) attributes {dimension_semantics = [#tpu.dimension_semantics<arbitrary>], iteration_bounds = array<i64: 2>, scalar_prefetch = 2 : i64, scratch_operands = 2 : i64, tpu.core_type = #tpu.core_type<tc>, window_params = [{transform_indices = @transform_0, window_bounds = array<i64: 1, 8, 1536>}, {transform_indices = @transform_1, window_bounds = array<i64: 1, 1536, 1536>}, {transform_indices = @transform_2, window_bounds = array<i64: 1, 1, 1536>}, {pipeline_mode = #tpu.pipeline_mode<synchronous>, transform_indices = @transform_3, window_bounds = array<i64: 1, 128>}]} {
    %c0 = arith.constant 0 : index
    %c0_0 = arith.constant 0 : index
    %c0_1 = arith.constant 0 : index
    %0 = vector.load %arg3[%c0, %c0_0, %c0_1] : memref<1x8x1536xbf16, #tpu.memory_space<vmem>>, vector<1x8x1536xbf16>
    %1 = vector.shape_cast %0 : vector<1x8x1536xbf16> to vector<8x1536xbf16>
    %c0_2 = arith.constant 0 : index
    %c0_3 = arith.constant 0 : index
    %c0_4 = arith.constant 0 : index
    %2 = vector.load %arg4[%c0_2, %c0_3, %c0_4] : memref<1x1536x1536xbf16, #tpu.memory_space<vmem>>, vector<1x1536x1536xbf16>
    %3 = vector.shape_cast %2 : vector<1x1536x1536xbf16> to vector<1536x1536xbf16>
    %cst = arith.constant dense<0.000000e+00> : vector<8x1536xf32>
    %4 = tpu.matmul %1, %3, %cst {dimension_numbers = #tpu.dot_dimension_numbers<[1], [0], [0], [1], [0, 0, 1, 1], [], []>} : vector<8x1536xbf16>, vector<1536x1536xbf16>, vector<8x1536xf32> -> vector<8x1536xf32>
    %c0_5 = arith.constant 0 : index
    %c0_6 = arith.constant 0 : index
    %c0_7 = arith.constant 0 : index
    %5 = vector.load %arg5[%c0_5, %c0_6, %c0_7] : memref<1x1x1536xf32, #tpu.memory_space<vmem>>, vector<1x1x1536xf32>
    %6 = vector.shape_cast %5 : vector<1x1x1536xf32> to vector<1x1536xf32>
    %7 = vector.broadcast %6 : vector<1x1536xf32> to vector<8x1536xf32>
    %8 = arith.addf %4, %7 : vector<8x1536xf32>
    %9 = arith.mulf %8, %8 : vector<8x1536xf32>
    %cst_8 = arith.constant dense<0.000000e+00> : vector<8xf32>
    %10 = vector.multi_reduction <add>, %9, %cst_8 [1] : vector<8x1536xf32> to vector<8xf32>
    %11 = vector.shape_cast %10 : vector<8xf32> to vector<8x1xf32>
    %cst_9 = arith.constant 1.000000e-24 : f32
    %12 = vector.broadcast %cst_9 : f32 to vector<8x1xf32>
    %13 = arith.addf %11, %12 : vector<8x1xf32>
    %14 = math.rsqrt %13 : vector<8x1xf32>
    %15 = vector.broadcast %14 : vector<8x1xf32> to vector<8x1536xf32>
    %16 = arith.mulf %8, %15 : vector<8x1536xf32>
    %c0_i32 = arith.constant 0 : i32
    %17 = arith.cmpi eq, %arg0, %c0_i32 : i32
    %18 = arith.extui %17 : i1 to i32
    %c0_i32_10 = arith.constant 0 : i32
    %19 = arith.cmpi ne, %18, %c0_i32_10 : i32
    scf.if %19 {
      %23 = vector.extract_strided_slice %16 {offsets = [0, 0], sizes = [4, 1536], strides = [1, 1]} : vector<8x1536xf32> to vector<4x1536xf32>
      %c0_12 = arith.constant 0 : index
      %c0_13 = arith.constant 0 : index
      %c0_14 = arith.constant 0 : index
      %24 = vector.load %arg7[%c0_12, %c0_13, %c0_14] : memref<2x4x1536xf32, #tpu.memory_space<vmem>>, vector<1x4x1536xf32>
      %25 = vector.shape_cast %24 : vector<1x4x1536xf32> to vector<4x1536xf32>
      %26 = vector.shape_cast %23 : vector<4x1536xf32> to vector<1x4x1536xf32>
      tpu.vector_store %arg7[%c0_12, %c0_13, %c0_14], %26 {strides = array<i32>} : memref<2x4x1536xf32, #tpu.memory_space<vmem>>, vector<1x4x1536xf32>,
      %27 = vector.extract_strided_slice %16 {offsets = [4, 0], sizes = [4, 1536], strides = [1, 1]} : vector<8x1536xf32> to vector<4x1536xf32>
      %c1 = arith.constant 1 : index
      %c0_15 = arith.constant 0 : index
      %c0_16 = arith.constant 0 : index
      %28 = vector.load %arg7[%c1, %c0_15, %c0_16] : memref<2x4x1536xf32, #tpu.memory_space<vmem>>, vector<1x4x1536xf32>
      %29 = vector.shape_cast %28 : vector<1x4x1536xf32> to vector<4x1536xf32>
      %30 = vector.shape_cast %27 : vector<4x1536xf32> to vector<1x4x1536xf32>
      tpu.vector_store %arg7[%c1, %c0_15, %c0_16], %30 {strides = array<i32>} : memref<2x4x1536xf32, #tpu.memory_space<vmem>>, vector<1x4x1536xf32>,
      %cst_17 = arith.constant 0.000000e+00 : f32
      %31 = vector.broadcast %cst_17 : f32 to vector<1x128xf32>
      %c0_18 = arith.constant 0 : index
      %c0_19 = arith.constant 0 : index
      %32 = vector.load %arg6[%c0_18, %c0_19] : memref<1x128xf32, #tpu.memory_space<vmem>>, vector<1x128xf32>
      tpu.vector_store %arg6[%c0_18, %c0_19], %31 {strides = array<i32>} : memref<1x128xf32, #tpu.memory_space<vmem>>, vector<1x128xf32>,
    } else {
    }
    %c1_i32 = arith.constant 1 : i32
    %20 = arith.cmpi eq, %arg0, %c1_i32 : i32
    %21 = arith.extui %20 : i1 to i32
    %c0_i32_11 = arith.constant 0 : i32
    %22 = arith.cmpi ne, %21, %c0_i32_11 : i32
    scf.if %22 {
      %23 = vector.extract_strided_slice %16 {offsets = [0, 0], sizes = [4, 1536], strides = [1, 1]} : vector<8x1536xf32> to vector<4x1536xf32>
      %c0_12 = arith.constant 0 : index
      %c0_13 = arith.constant 0 : index
      %c0_14 = arith.constant 0 : index
      %24 = vector.load %arg8[%c0_12, %c0_13, %c0_14] : memref<2x4x1536xf32, #tpu.memory_space<vmem>>, vector<1x4x1536xf32>
      %25 = vector.shape_cast %24 : vector<1x4x1536xf32> to vector<4x1536xf32>
      %26 = vector.shape_cast %23 : vector<4x1536xf32> to vector<1x4x1536xf32>
      tpu.vector_store %arg8[%c0_12, %c0_13, %c0_14], %26 {strides = array<i32>} : memref<2x4x1536xf32, #tpu.memory_space<vmem>>, vector<1x4x1536xf32>,
      %27 = vector.extract_strided_slice %16 {offsets = [4, 0], sizes = [4, 1536], strides = [1, 1]} : vector<8x1536xf32> to vector<4x1536xf32>
      %c1 = arith.constant 1 : index
      %c0_15 = arith.constant 0 : index
      %c0_16 = arith.constant 0 : index
      %28 = vector.load %arg8[%c1, %c0_15, %c0_16] : memref<2x4x1536xf32, #tpu.memory_space<vmem>>, vector<1x4x1536xf32>
      %29 = vector.shape_cast %28 : vector<1x4x1536xf32> to vector<4x1536xf32>
      %30 = vector.shape_cast %27 : vector<4x1536xf32> to vector<1x4x1536xf32>
      tpu.vector_store %arg8[%c1, %c0_15, %c0_16], %30 {strides = array<i32>} : memref<2x4x1536xf32, #tpu.memory_space<vmem>>, vector<1x4x1536xf32>,
      %c0_17 = arith.constant 0 : index
      %c0_18 = arith.constant 0 : index
      %c0_19 = arith.constant 0 : index
      %31 = vector.load %arg7[%c0_17, %c0_18, %c0_19] : memref<2x4x1536xf32, #tpu.memory_space<vmem>>, vector<2x4x1536xf32>
      %c0_20 = arith.constant 0 : index
      %c0_21 = arith.constant 0 : index
      %c0_22 = arith.constant 0 : index
      %32 = vector.load %arg8[%c0_20, %c0_21, %c0_22] : memref<2x4x1536xf32, #tpu.memory_space<vmem>>, vector<2x4x1536xf32>
      %33 = tpu.iota {dimensions = array<i32: 1>} : vector<2x4xi32>
      %34 = tpu.iota {dimensions = array<i32: 0>} : vector<2x1xi32>
      %c0_i32_23 = arith.constant 0 : i32
      %35 = vector.broadcast %c0_i32_23 : i32 to vector<2x1xi32>
      %c0_i32_24 = arith.constant 0 : i32
      %36 = vector.broadcast %c0_i32_24 : i32 to vector<2x1xi32>
      %c0_i32_25 = arith.constant 0 : i32
      %37 = vector.broadcast %c0_i32_25 : i32 to vector<2x1xi32>
      %38 = arith.cmpi eq, %34, %37 : vector<2x1xi32>
      %c0_26 = arith.constant 0 : index
      %39 = memref.load %arg1[%c0_26] : memref<2xi32, #tpu.memory_space<smem>>
      %c0_i32_27 = arith.constant 0 : i32
      %40 = vector.broadcast %39 : i32 to vector<2x1xi32>
      %41 = vector.broadcast %c0_i32_27 : i32 to vector<2x1xi32>
      %42 = arith.select %38, %40, %41 : vector<2x1xi1>, vector<2x1xi32>
      %43 = arith.addi %35, %42 : vector<2x1xi32>
      %c0_i32_28 = arith.constant 0 : i32
      %44 = vector.broadcast %c0_i32_28 : i32 to vector<2x1xi32>
      %45 = arith.cmpi eq, %34, %44 : vector<2x1xi32>
      %c0_29 = arith.constant 0 : index
      %46 = memref.load %arg2[%c0_29] : memref<2xi32, #tpu.memory_space<smem>>
      %c0_i32_30 = arith.constant 0 : i32
      %47 = vector.broadcast %46 : i32 to vector<2x1xi32>
      %48 = vector.broadcast %c0_i32_30 : i32 to vector<2x1xi32>
      %49 = arith.select %45, %47, %48 : vector<2x1xi1>, vector<2x1xi32>
      %50 = arith.addi %36, %49 : vector<2x1xi32>
      %c1_i32_31 = arith.constant 1 : i32
      %51 = vector.broadcast %c1_i32_31 : i32 to vector<2x1xi32>
      %52 = arith.cmpi eq, %34, %51 : vector<2x1xi32>
      %c1_32 = arith.constant 1 : index
      %53 = memref.load %arg1[%c1_32] : memref<2xi32, #tpu.memory_space<smem>>
      %c0_i32_33 = arith.constant 0 : i32
      %54 = vector.broadcast %53 : i32 to vector<2x1xi32>
      %55 = vector.broadcast %c0_i32_33 : i32 to vector<2x1xi32>
      %56 = arith.select %52, %54, %55 : vector<2x1xi1>, vector<2x1xi32>
      %57 = arith.addi %43, %56 : vector<2x1xi32>
      %c1_i32_34 = arith.constant 1 : i32
      %58 = vector.broadcast %c1_i32_34 : i32 to vector<2x1xi32>
      %59 = arith.cmpi eq, %34, %58 : vector<2x1xi32>
      %c1_35 = arith.constant 1 : index
      %60 = memref.load %arg2[%c1_35] : memref<2xi32, #tpu.memory_space<smem>>
      %c0_i32_36 = arith.constant 0 : i32
      %61 = vector.broadcast %60 : i32 to vector<2x1xi32>
      %62 = vector.broadcast %c0_i32_36 : i32 to vector<2x1xi32>
      %63 = arith.select %59, %61, %62 : vector<2x1xi1>, vector<2x1xi32>
      %64 = arith.addi %50, %63 : vector<2x1xi32>
      %65 = vector.broadcast %57 : vector<2x1xi32> to vector<2x4xi32>
      %66 = arith.cmpi eq, %33, %65 : vector<2x4xi32>
      %67 = arith.extui %66 : vector<2x4xi1> to vector<2x4xi32>
      %68 = arith.sitofp %67 : vector<2x4xi32> to vector<2x4xf32>
      %69 = vector.broadcast %64 : vector<2x1xi32> to vector<2x4xi32>
      %70 = arith.cmpi eq, %33, %69 : vector<2x4xi32>
      %71 = arith.extui %70 : vector<2x4xi1> to vector<2x4xi32>
      %72 = arith.sitofp %71 : vector<2x4xi32> to vector<2x4xf32>
      %73 = vector.shape_cast %72 : vector<2x4xf32> to vector<2x4x1xf32>
      %74 = vector.broadcast %73 : vector<2x4x1xf32> to vector<2x4x1536xf32>
      %75 = arith.mulf %74, %32 : vector<2x4x1536xf32>
      %cst_37 = arith.constant dense<0.000000e+00> : vector<2x1536xf32>
      %76 = vector.multi_reduction <add>, %75, %cst_37 [1] : vector<2x4x1536xf32> to vector<2x1536xf32>
      %77 = vector.shape_cast %68 : vector<2x4xf32> to vector<2x4x1xf32>
      %78 = vector.broadcast %77 : vector<2x4x1xf32> to vector<2x4x1536xf32>
      %79 = arith.mulf %78, %31 : vector<2x4x1536xf32>
      %cst_38 = arith.constant dense<0.000000e+00> : vector<2x1536xf32>
      %80 = vector.multi_reduction <add>, %79, %cst_38 [1] : vector<2x4x1536xf32> to vector<2x1536xf32>
      %81 = vector.shape_cast %76 : vector<2x1536xf32> to vector<2x1x1536xf32>
      %82 = vector.broadcast %81 : vector<2x1x1536xf32> to vector<2x4x1536xf32>
      %83 = arith.mulf %31, %82 : vector<2x4x1536xf32>
      %cst_39 = arith.constant dense<0.000000e+00> : vector<2x4xf32>
      %84 = vector.multi_reduction <add>, %83, %cst_39 [2] : vector<2x4x1536xf32> to vector<2x4xf32>
      %85 = vector.shape_cast %80 : vector<2x1536xf32> to vector<2x1x1536xf32>
      %86 = vector.broadcast %85 : vector<2x1x1536xf32> to vector<2x4x1536xf32>
      %87 = arith.mulf %32, %86 : vector<2x4x1536xf32>
      %cst_40 = arith.constant dense<0.000000e+00> : vector<2x4xf32>
      %88 = vector.multi_reduction <add>, %87, %cst_40 [2] : vector<2x4x1536xf32> to vector<2x4xf32>
      %cst_41 = arith.constant 14.2857141 : f32
      %89 = vector.broadcast %cst_41 : f32 to vector<2x4xf32>
      %90 = arith.mulf %84, %89 : vector<2x4xf32>
      %cst_42 = arith.constant dense<0xFF800000> : vector<2xf32>
      %91 = vector.multi_reduction <maximumf>, %90, %cst_42 [1] : vector<2x4xf32> to vector<2xf32>
      %92 = vector.shape_cast %91 : vector<2xf32> to vector<2x1xf32>
      %93 = vector.broadcast %92 : vector<2x1xf32> to vector<2x4xf32>
      %94 = arith.subf %90, %93 : vector<2x4xf32>
      %95 = math.exp %94 : vector<2x4xf32>
      %cst_43 = arith.constant dense<0.000000e+00> : vector<2xf32>
      %96 = vector.multi_reduction <add>, %95, %cst_43 [1] : vector<2x4xf32> to vector<2xf32>
      %97 = vector.shape_cast %96 : vector<2xf32> to vector<2x1xf32>
      %98 = math.log %97 : vector<2x1xf32>
      %99 = arith.addf %92, %98 : vector<2x1xf32>
      %100 = arith.mulf %68, %90 : vector<2x4xf32>
      %cst_44 = arith.constant dense<0.000000e+00> : vector<2xf32>
      %101 = vector.multi_reduction <add>, %100, %cst_44 [1] : vector<2x4xf32> to vector<2xf32>
      %102 = vector.shape_cast %101 : vector<2xf32> to vector<2x1xf32>
      %103 = arith.subf %99, %102 : vector<2x1xf32>
      %104 = vector.broadcast %97 : vector<2x1xf32> to vector<2x4xf32>
      %105 = arith.divf %95, %104 : vector<2x4xf32>
      %cst_45 = arith.constant dense<0xFF800000> : vector<2xf32>
      %106 = vector.multi_reduction <maximumf>, %105, %cst_45 [1] : vector<2x4xf32> to vector<2xf32>
      %107 = vector.shape_cast %106 : vector<2xf32> to vector<2x1xf32>
      %108 = vector.broadcast %107 : vector<2x1xf32> to vector<2x4xf32>
      %109 = arith.cmpf oge, %105, %108 : vector<2x4xf32>
      %c4_i32 = arith.constant 4 : i32
      %110 = vector.broadcast %c4_i32 : i32 to vector<2x4xi32>
      %111 = arith.select %109, %33, %110 : vector<2x4xi1>, vector<2x4xi32>
      %cst_46 = arith.constant dense<2147483647> : vector<2xi32>
      %112 = vector.multi_reduction <minsi>, %111, %cst_46 [1] : vector<2x4xi32> to vector<2xi32>
      %113 = vector.shape_cast %112 : vector<2xi32> to vector<2x1xi32>
      %114 = arith.cmpi eq, %113, %57 : vector<2x1xi32>
      %115 = arith.extui %114 : vector<2x1xi1> to vector<2x1xi32>
      %116 = arith.sitofp %115 : vector<2x1xi32> to vector<2x1xf32>
      %cst_47 = arith.constant 14.2857141 : f32
      %117 = vector.broadcast %cst_47 : f32 to vector<2x4xf32>
      %118 = arith.mulf %88, %117 : vector<2x4xf32>
      %cst_48 = arith.constant dense<0xFF800000> : vector<2xf32>
      %119 = vector.multi_reduction <maximumf>, %118, %cst_48 [1] : vector<2x4xf32> to vector<2xf32>
      %120 = vector.shape_cast %119 : vector<2xf32> to vector<2x1xf32>
      %121 = vector.broadcast %120 : vector<2x1xf32> to vector<2x4xf32>
      %122 = arith.subf %118, %121 : vector<2x4xf32>
      %123 = math.exp %122 : vector<2x4xf32>
      %cst_49 = arith.constant dense<0.000000e+00> : vector<2xf32>
      %124 = vector.multi_reduction <add>, %123, %cst_49 [1] : vector<2x4xf32> to vector<2xf32>
      %125 = vector.shape_cast %124 : vector<2xf32> to vector<2x1xf32>
      %126 = math.log %125 : vector<2x1xf32>
      %127 = arith.addf %120, %126 : vector<2x1xf32>
      %128 = arith.mulf %72, %118 : vector<2x4xf32>
      %cst_50 = arith.constant dense<0.000000e+00> : vector<2xf32>
      %129 = vector.multi_reduction <add>, %128, %cst_50 [1] : vector<2x4xf32> to vector<2xf32>
      %130 = vector.shape_cast %129 : vector<2xf32> to vector<2x1xf32>
      %131 = arith.subf %127, %130 : vector<2x1xf32>
      %132 = vector.broadcast %125 : vector<2x1xf32> to vector<2x4xf32>
      %133 = arith.divf %123, %132 : vector<2x4xf32>
      %cst_51 = arith.constant dense<0xFF800000> : vector<2xf32>
      %134 = vector.multi_reduction <maximumf>, %133, %cst_51 [1] : vector<2x4xf32> to vector<2xf32>
      %135 = vector.shape_cast %134 : vector<2xf32> to vector<2x1xf32>
      %136 = vector.broadcast %135 : vector<2x1xf32> to vector<2x4xf32>
      %137 = arith.cmpf oge, %133, %136 : vector<2x4xf32>
      %c4_i32_52 = arith.constant 4 : i32
      %138 = vector.broadcast %c4_i32_52 : i32 to vector<2x4xi32>
      %139 = arith.select %137, %33, %138 : vector<2x4xi1>, vector<2x4xi32>
      %cst_53 = arith.constant dense<2147483647> : vector<2xi32>
      %140 = vector.multi_reduction <minsi>, %139, %cst_53 [1] : vector<2x4xi32> to vector<2xi32>
      %141 = vector.shape_cast %140 : vector<2xi32> to vector<2x1xi32>
      %142 = arith.cmpi eq, %141, %64 : vector<2x1xi32>
      %143 = arith.extui %142 : vector<2x1xi1> to vector<2x1xi32>
      %144 = arith.sitofp %143 : vector<2x1xi32> to vector<2x1xf32>
      %145 = arith.addf %103, %131 : vector<2x1xf32>
      %cst_54 = arith.constant dense<0.000000e+00> : vector<1xf32>
      %146 = vector.multi_reduction <add>, %145, %cst_54 [0] : vector<2x1xf32> to vector<1xf32>
      %147 = vector.shape_cast %146 : vector<1xf32> to vector<1x1xf32>
      %cst_55 = arith.constant 2.000000e+00 : f32
      %148 = vector.broadcast %cst_55 : f32 to vector<1x1xf32>
      %149 = arith.divf %147, %148 : vector<1x1xf32>
      %cst_56 = arith.constant dense<0.000000e+00> : vector<1xf32>
      %150 = vector.multi_reduction <add>, %131, %cst_56 [0] : vector<2x1xf32> to vector<1xf32>
      %151 = vector.shape_cast %150 : vector<1xf32> to vector<1x1xf32>
      %cst_57 = arith.constant 2.000000e+00 : f32
      %152 = vector.broadcast %cst_57 : f32 to vector<1x1xf32>
      %153 = arith.divf %151, %152 : vector<1x1xf32>
      %cst_58 = arith.constant dense<0.000000e+00> : vector<1xf32>
      %154 = vector.multi_reduction <add>, %135, %cst_58 [0] : vector<2x1xf32> to vector<1xf32>
      %155 = vector.shape_cast %154 : vector<1xf32> to vector<1x1xf32>
      %cst_59 = arith.constant 2.000000e+00 : f32
      %156 = vector.broadcast %cst_59 : f32 to vector<1x1xf32>
      %157 = arith.divf %155, %156 : vector<1x1xf32>
      %cst_60 = arith.constant dense<0.000000e+00> : vector<1xf32>
      %158 = vector.multi_reduction <add>, %144, %cst_60 [0] : vector<2x1xf32> to vector<1xf32>
      %159 = vector.shape_cast %158 : vector<1xf32> to vector<1x1xf32>
      %cst_61 = arith.constant 2.000000e+00 : f32
      %160 = vector.broadcast %cst_61 : f32 to vector<1x1xf32>
      %161 = arith.divf %159, %160 : vector<1x1xf32>
      %cst_62 = arith.constant dense<0.000000e+00> : vector<1xf32>
      %162 = vector.multi_reduction <add>, %103, %cst_62 [0] : vector<2x1xf32> to vector<1xf32>
      %163 = vector.shape_cast %162 : vector<1xf32> to vector<1x1xf32>
      %cst_63 = arith.constant 2.000000e+00 : f32
      %164 = vector.broadcast %cst_63 : f32 to vector<1x1xf32>
      %165 = arith.divf %163, %164 : vector<1x1xf32>
      %cst_64 = arith.constant dense<0.000000e+00> : vector<1xf32>
      %166 = vector.multi_reduction <add>, %107, %cst_64 [0] : vector<2x1xf32> to vector<1xf32>
      %167 = vector.shape_cast %166 : vector<1xf32> to vector<1x1xf32>
      %cst_65 = arith.constant 2.000000e+00 : f32
      %168 = vector.broadcast %cst_65 : f32 to vector<1x1xf32>
      %169 = arith.divf %167, %168 : vector<1x1xf32>
      %cst_66 = arith.constant dense<0.000000e+00> : vector<1xf32>
      %170 = vector.multi_reduction <add>, %116, %cst_66 [0] : vector<2x1xf32> to vector<1xf32>
      %171 = vector.shape_cast %170 : vector<1xf32> to vector<1x1xf32>
      %cst_67 = arith.constant 2.000000e+00 : f32
      %172 = vector.broadcast %cst_67 : f32 to vector<1x1xf32>
      %173 = arith.divf %171, %172 : vector<1x1xf32>
      %174 = tpu.iota {dimensions = array<i32: 1>} : vector<1x128xi32>
      %cst_68 = arith.constant 0.000000e+00 : f32
      %175 = vector.broadcast %cst_68 : f32 to vector<1x128xf32>
      %c0_i32_69 = arith.constant 0 : i32
      %176 = vector.broadcast %c0_i32_69 : i32 to vector<1x128xi32>
      %177 = arith.cmpi eq, %174, %176 : vector<1x128xi32>
      %cst_70 = arith.constant 0.000000e+00 : f32
      %178 = vector.shape_cast %149 : vector<1x1xf32> to vector<1x1xf32>
      %179 = vector.broadcast %178 : vector<1x1xf32> to vector<1x128xf32>
      %180 = vector.broadcast %cst_70 : f32 to vector<1x128xf32>
      %181 = arith.select %177, %179, %180 : vector<1x128xi1>, vector<1x128xf32>
      %182 = arith.addf %175, %181 : vector<1x128xf32>
      %c1_i32_71 = arith.constant 1 : i32
      %183 = vector.broadcast %c1_i32_71 : i32 to vector<1x128xi32>
      %184 = arith.cmpi eq, %174, %183 : vector<1x128xi32>
      %cst_72 = arith.constant 0.000000e+00 : f32
      %185 = vector.shape_cast %153 : vector<1x1xf32> to vector<1x1xf32>
      %186 = vector.broadcast %185 : vector<1x1xf32> to vector<1x128xf32>
      %187 = vector.broadcast %cst_72 : f32 to vector<1x128xf32>
      %188 = arith.select %184, %186, %187 : vector<1x128xi1>, vector<1x128xf32>
      %189 = arith.addf %182, %188 : vector<1x128xf32>
      %c2_i32 = arith.constant 2 : i32
      %190 = vector.broadcast %c2_i32 : i32 to vector<1x128xi32>
      %191 = arith.cmpi eq, %174, %190 : vector<1x128xi32>
      %cst_73 = arith.constant 0.000000e+00 : f32
      %192 = vector.shape_cast %157 : vector<1x1xf32> to vector<1x1xf32>
      %193 = vector.broadcast %192 : vector<1x1xf32> to vector<1x128xf32>
      %194 = vector.broadcast %cst_73 : f32 to vector<1x128xf32>
      %195 = arith.select %191, %193, %194 : vector<1x128xi1>, vector<1x128xf32>
      %196 = arith.addf %189, %195 : vector<1x128xf32>
      %c3_i32 = arith.constant 3 : i32
      %197 = vector.broadcast %c3_i32 : i32 to vector<1x128xi32>
      %198 = arith.cmpi eq, %174, %197 : vector<1x128xi32>
      %cst_74 = arith.constant 0.000000e+00 : f32
      %199 = vector.shape_cast %161 : vector<1x1xf32> to vector<1x1xf32>
      %200 = vector.broadcast %199 : vector<1x1xf32> to vector<1x128xf32>
      %201 = vector.broadcast %cst_74 : f32 to vector<1x128xf32>
      %202 = arith.select %198, %200, %201 : vector<1x128xi1>, vector<1x128xf32>
      %203 = arith.addf %196, %202 : vector<1x128xf32>
      %c4_i32_75 = arith.constant 4 : i32
      %204 = vector.broadcast %c4_i32_75 : i32 to vector<1x128xi32>
      %205 = arith.cmpi eq, %174, %204 : vector<1x128xi32>
      %cst_76 = arith.constant 0.000000e+00 : f32
      %206 = vector.shape_cast %165 : vector<1x1xf32> to vector<1x1xf32>
      %207 = vector.broadcast %206 : vector<1x1xf32> to vector<1x128xf32>
      %208 = vector.broadcast %cst_76 : f32 to vector<1x128xf32>
      %209 = arith.select %205, %207, %208 : vector<1x128xi1>, vector<1x128xf32>
      %210 = arith.addf %203, %209 : vector<1x128xf32>
      %c5_i32 = arith.constant 5 : i32
      %211 = vector.broadcast %c5_i32 : i32 to vector<1x128xi32>
      %212 = arith.cmpi eq, %174, %211 : vector<1x128xi32>
      %cst_77 = arith.constant 0.000000e+00 : f32
      %213 = vector.shape_cast %169 : vector<1x1xf32> to vector<1x1xf32>
      %214 = vector.broadcast %213 : vector<1x1xf32> to vector<1x128xf32>
      %215 = vector.broadcast %cst_77 : f32 to vector<1x128xf32>
      %216 = arith.select %212, %214, %215 : vector<1x128xi1>, vector<1x128xf32>
      %217 = arith.addf %210, %216 : vector<1x128xf32>
      %c6_i32 = arith.constant 6 : i32
      %218 = vector.broadcast %c6_i32 : i32 to vector<1x128xi32>
      %219 = arith.cmpi eq, %174, %218 : vector<1x128xi32>
      %cst_78 = arith.constant 0.000000e+00 : f32
      %220 = vector.shape_cast %173 : vector<1x1xf32> to vector<1x1xf32>
      %221 = vector.broadcast %220 : vector<1x1xf32> to vector<1x128xf32>
      %222 = vector.broadcast %cst_78 : f32 to vector<1x128xf32>
      %223 = arith.select %219, %221, %222 : vector<1x128xi1>, vector<1x128xf32>
      %224 = arith.addf %217, %223 : vector<1x128xf32>
      %c0_79 = arith.constant 0 : index
      %c0_80 = arith.constant 0 : index
      %225 = vector.load %arg6[%c0_79, %c0_80] : memref<1x128xf32, #tpu.memory_space<vmem>>, vector<1x128xf32>
      tpu.vector_store %arg6[%c0_79, %c0_80], %224 {strides = array<i32>} : memref<1x128xf32, #tpu.memory_space<vmem>>, vector<1x128xf32>,
    } else {
    }
    return
  }
  func.func @transform_0(%arg0: i32, %arg1: memref<2xi32, #tpu.memory_space<smem>>, %arg2: memref<2xi32, #tpu.memory_space<smem>>) -> (i32, i32, i32) {
    %c0_i32 = arith.constant 0 : i32
    %c0_i32_0 = arith.constant 0 : i32
    %c0_i32_1 = arith.constant 0 : i32
    return %arg0, %c0_i32, %c0_i32_0 : i32, i32, i32
  }
  func.func @transform_1(%arg0: i32, %arg1: memref<2xi32, #tpu.memory_space<smem>>, %arg2: memref<2xi32, #tpu.memory_space<smem>>) -> (i32, i32, i32) {
    %c0_i32 = arith.constant 0 : i32
    %c0_i32_0 = arith.constant 0 : i32
    %c0_i32_1 = arith.constant 0 : i32
    return %arg0, %c0_i32, %c0_i32_0 : i32, i32, i32
  }
  func.func @transform_2(%arg0: i32, %arg1: memref<2xi32, #tpu.memory_space<smem>>, %arg2: memref<2xi32, #tpu.memory_space<smem>>) -> (i32, i32, i32) {
    %c0_i32 = arith.constant 0 : i32
    %c0_i32_0 = arith.constant 0 : i32
    %c0_i32_1 = arith.constant 0 : i32
    return %arg0, %c0_i32, %c0_i32_0 : i32, i32, i32
  }
  func.func @transform_3(%arg0: i32, %arg1: memref<2xi32, #tpu.memory_space<smem>>, %arg2: memref<2xi32, #tpu.memory_space<smem>>) -> (i32, i32) {
    %c0_i32 = arith.constant 0 : i32
    %c0_i32_0 = arith.constant 0 : i32
    %c0_i32_1 = arith.constant 0 : i32
    return %c0_i32, %c0_i32_0 : i32, i32
  }
}

</mosaic_0001>

<llo_original>
// kernel: infonce_emb_loss_2.1
$region0: #{infonce_emb_loss_2.1}
  #allocation0 [shape = 'u32[]', space=smem, size = 0x4, offset = 0x4, fixed_abs, tag = 'smem constant byte address 0x4 - core index']
  #allocation1 [shape = 'u32[144,128]{1,0:T(1,128)}', space=vmem, size = 0x12000, scoped, tag = 'internal scratch']
  #allocation2 [shape = 'f32[2,4,1536]{2,1,0:T(4,128)}', space=vmem, size = 0xc000, scoped, tag = 'scratch operand']
  #allocation3 [shape = 'f32[2,4,1536]{2,1,0:T(4,128)}', space=vmem, size = 0xc000, scoped, tag = 'scratch operand']
  #allocation4 [shape = 's32[1]{0}', space=sflag, size = 0x4, scoped, tag = 'scoped memory for infonce_emb_loss_2.1']
  #allocation5 [shape = 'u8[512]{0}', space=smem, size = 0x200, scoped, tag = 'prefetched SMEM operand 0']
  #allocation6 [shape = 'u8[512]{0}', space=smem, size = 0x200, scoped, tag = 'prefetched SMEM operand 1']
  %s0 = inlined_call_operand.hbm [shape: s32[2], index: 0, kind: input, shape index: {}]
  %s1 = inlined_call_operand.hbm [shape: s32[2], index: 1, kind: input, shape index: {}]
  %s2 = inlined_call_operand.vmem [shape: bf16[2,8,1536], index: 2, kind: input, shape index: {}]
  %s3 = inlined_call_operand.hbm [shape: bf16[2,1536,1536], index: 3, kind: input, shape index: {}]
  %s4 = inlined_call_operand.hbm [shape: f32[2,1,1536], index: 4, kind: input, shape index: {}]
  %s5 = inlined_call_operand.vmem [shape: f32[1,128], index: 5, kind: output, shape index: {}]
  %s6 = sld [smem:[#allocation0]]
  $region61: #{infonce_emb_loss_2.1} parent=0
    _
  %s8 = ssub.s32 1, %s6
  %s9 = scalar_select 0, %s8, %s6
  %11 = dma.hbm_to_smem %s0, 16, [#allocation5], [#allocation4]
  %13 = dma.hbm_to_smem %s1, 16, [#allocation6], [#allocation4]
  %14 = dma.done [#allocation4], 32
  %15 = sfence
  $region1: #{infonce_emb_loss_2.1} parent=0
    #allocation7 [shape = 'u8[9437184]{0}', space=vmem, size = 0x900000, scoped, tag = 'input window, operand 3']
    #allocation8 [shape = 's32[2]{0}', space=sflag, size = 0x8, scoped, tag = 'scoped memory for infonce_emb_loss_2.1']
    #allocation9 [shape = 'u8[12288]{0}', space=vmem, size = 0x3000, scoped, tag = 'input window, operand 4']
    #allocation10 [shape = 's32[2]{0}', space=sflag, size = 0x8, scoped, tag = 'scoped memory for infonce_emb_loss_2.1']
    %16 = vsyncpa [#allocation8], 0
    %s17 = scalar_lea.sflag [#allocation8], 1
    %18 = vsyncpa %s17, 0
    %19 = vsyncpa [#allocation10], 0
    %s20 = scalar_lea.sflag [#allocation10], 1
    %21 = vsyncpa %s20, 0
    loop: start=0, step=1, limit=4
    $region2: #{infonce_emb_loss_2.1} parent=1 // loop_pre_header
      _
    $region3: #{infonce_emb_loss_2.1} parent=1 // loop_header
      %s23 = sphi 0, %s27
      %p24 = scmp.ge.s32.totalorder %s23, 4
      %s33 = sphi 0, %s35
      %s36 = sphi 0, %s33
      %s37 = sphi 0, %s36
      %s53 = sphi 0, %s37
      %s59 = sphi 0, %s61
      %s62 = sphi 0, %s59
      %s63 = sphi 0, %s62
      %s79 = sphi 0, %s63
      %s85 = sphi 0, %s87
      %s88 = sphi 0, %s85
      %s89 = sphi 0, %s88
      %s105 = sphi 0, %s89
      %s109 = sphi 0, %s109
      %s111 = sphi 0, %s109
      %s112 = sphi 0, %s111
      %s126 = sphi 0, %s112
    $region4: #{infonce_emb_loss_2.1} parent=1 // loop_header_branch
      %26 = sbr.rel (%p24) target = $region8
    $region5: #{infonce_emb_loss_2.1} parent=1 // loop_body
      %s28 = ssub.s32 %s23, 1
      %s29 = ssub.s32 %s23, 2
      %s30 = sadd.s32 %s23, 1
      %s31 = ssub.s32 %s23, %s30
      %p32 = scmp.eq.s32.totalorder %s31, 0
      %s34 = sadd.s32 %s33, 1
      %s35 = scalar_select %p32, %s33, %s34
      %p38 = pneg %p32
      %p39 = scmp.eq.s32.totalorder %s23, 1
      %p40 = por %p38, %p39
      %p41 = scmp.ne.s32.totalorder %s33, %s36
      %p42 = scmp.eq.s32.totalorder %s23, 0
      %p43 = por %p41, %p42
      %p44 = scmp.ne.s32.totalorder %s33, %s36
      %p45 = scmp.eq.s32.totalorder %s28, 1
      %p46 = por %p44, %p45
      %p47 = scmp.ne.s32.totalorder %s36, %s37
      %p48 = scmp.eq.s32.totalorder %s28, 0
      %p49 = por %p47, %p48
      %p50 = scmp.ne.s32.totalorder %s36, %s37
      %p51 = scmp.eq.s32.totalorder %s29, 1
      %p52 = por %p50, %p51
      %p54 = scmp.ne.s32.totalorder %s37, %s53
      %p55 = scmp.eq.s32.totalorder %s29, 0
      %p56 = por %p54, %p55
      %s57 = ssub.s32 %s23, %s30
      %p58 = scmp.eq.s32.totalorder %s57, 0
      %s60 = sadd.s32 %s59, 1
      %s61 = scalar_select %p58, %s59, %s60
      %p64 = pneg %p58
      %p65 = scmp.eq.s32.totalorder %s23, 1
      %p66 = por %p64, %p65
      %p67 = scmp.ne.s32.totalorder %s59, %s62
      %p68 = scmp.eq.s32.totalorder %s23, 0
      %p69 = por %p67, %p68
      %p70 = scmp.ne.s32.totalorder %s59, %s62
      %p71 = scmp.eq.s32.totalorder %s28, 1
      %p72 = por %p70, %p71
      %p73 = scmp.ne.s32.totalorder %s62, %s63
      %p74 = scmp.eq.s32.totalorder %s28, 0
      %p75 = por %p73, %p74
      %p76 = scmp.ne.s32.totalorder %s62, %s63
      %p77 = scmp.eq.s32.totalorder %s29, 1
      %p78 = por %p76, %p77
      %p80 = scmp.ne.s32.totalorder %s63, %s79
      %p81 = scmp.eq.s32.totalorder %s29, 0
      %p82 = por %p80, %p81
      %s83 = ssub.s32 %s23, %s30
      %p84 = scmp.eq.s32.totalorder %s83, 0
      %s86 = sadd.s32 %s85, 1
      %s87 = scalar_select %p84, %s85, %s86
      %p90 = pneg %p84
      %p91 = scmp.eq.s32.totalorder %s23, 1
      %p92 = por %p90, %p91
      %p93 = scmp.ne.s32.totalorder %s85, %s88
      %p94 = scmp.eq.s32.totalorder %s23, 0
      %p95 = por %p93, %p94
      %p96 = scmp.ne.s32.totalorder %s85, %s88
      %p97 = scmp.eq.s32.totalorder %s28, 1
      %p98 = por %p96, %p97
      %p99 = scmp.ne.s32.totalorder %s88, %s89
      %p100 = scmp.eq.s32.totalorder %s28, 0
      %p101 = por %p99, %p100
      %p102 = scmp.ne.s32.totalorder %s88, %s89
      %p103 = scmp.eq.s32.totalorder %s29, 1
      %p104 = por %p102, %p103
      %p106 = scmp.ne.s32.totalorder %s89, %s105
      %p107 = scmp.eq.s32.totalorder %s29, 0
      %p108 = por %p106, %p107
      %s110 = sadd.s32 %s109, 1
      %p113 = scmp.eq.s32.totalorder %s23, 1
      %p114 = scmp.ne.s32.totalorder %s109, %s111
      %p115 = scmp.eq.s32.totalorder %s23, 0
      %p116 = por %p114, %p115
      %p117 = scmp.ne.s32.totalorder %s109, %s111
      %p118 = scmp.eq.s32.totalorder %s28, 1
      %p119 = por %p117, %p118
      %p120 = scmp.ne.s32.totalorder %s111, %s112
      %p121 = scmp.eq.s32.totalorder %s28, 0
      %p122 = por %p120, %p121
      %p123 = scmp.ne.s32.totalorder %s111, %s112
      %p124 = scmp.eq.s32.totalorder %s29, 1
      %p125 = por %p123, %p124
      %p127 = scmp.ne.s32.totalorder %s112, %s126
      %p128 = scmp.eq.s32.totalorder %s29, 0
      %p129 = por %p127, %p128
      %p130 = scmp.le.s32.totalorder 1, %s23
      %p131 = scmp.lt.s32.totalorder %s23, 3
      %p132 = pnand %p130, %p131
      %p133 = pneg %p132
      // Predicated region
      $region9: #{infonce_emb_loss_2.1} parent=5 // pred_check
        _
      $region10: #{infonce_emb_loss_2.1} parent=5 // pred_check_branch
        %135 = sbr.rel (%p132) target = $region12
      $region11: #{infonce_emb_loss_2.1} parent=5 // pred_region
        %s136 = ssub.s32 %s23, 1
      $region12: #{infonce_emb_loss_2.1} parent=5 // pred_fallthru
        _
      %p137 = scmp.lt.s32.totalorder %s23, 2
      // Predicated region
      $region13: #{infonce_emb_loss_2.1} parent=5 // pred_check
        %p138 = pneg %p137
      $region14: #{infonce_emb_loss_2.1} parent=5 // pred_check_branch
        %140 = sbr.rel (%p138) target = $region16
      $region15: #{infonce_emb_loss_2.1} parent=5 // pred_region
        // Predicated region
        $region17: #{infonce_emb_loss_2.1} parent=15 // pred_check
          %p141 = pneg %p43
        $region18: #{infonce_emb_loss_2.1} parent=15 // pred_check_branch
          %143 = sbr.rel (%p141) target = $region20
        $region19: #{infonce_emb_loss_2.1} parent=15 // pred_region
          %p144 = scmp.lt.s32.totalorder %s23, 1
          %s145 = scalar_select %p144, %s23, 1
          %s146 = smul.addr %s145, 12
          %s147 = smul.addr %s146, 4
          %s148 = scalar_lea.vmem %s2, %s147
        $region20: #{infonce_emb_loss_2.1} parent=15 // pred_fallthru
          _
        // Predicated region
        $region21: #{infonce_emb_loss_2.1} parent=15 // pred_check
          %p149 = pneg %p69
        $region22: #{infonce_emb_loss_2.1} parent=15 // pred_check_branch
          %151 = sbr.rel (%p149) target = $region24
        $region23: #{infonce_emb_loss_2.1} parent=15 // pred_region
          %s152 = sand.u32 %s59, 1
          %s153 = scalar_lea.sflag [#allocation8], %s152
          %s154 = sand.u32 %s59, 1
          %s155 = smul.addr %s154, 9216
          %s156 = scalar_lea.vmem [#allocation7], %s155
          %s158 = ssub.s32 147456, 147456
          %159 = vsyncadd %s153, %s158
          %s160 = smul.addr %s23, 2304
          %s161 = smul.addr %s160, 64
          %s162 = scalar_lea.hbm %s3, %s161
          %s163 = sshll.u32 %s156, 4
          %s164 = int_to_ptr.vmem [resolvable:$true] %s163
          %169 = dma.hbm_to_vmem [thread:$0]  %s162, 147456, %s164, %s153, 768, 768, 48
        $region24: #{infonce_emb_loss_2.1} parent=15 // pred_fallthru
          _
        // Predicated region
        $region25: #{infonce_emb_loss_2.1} parent=15 // pred_check
          %p170 = pneg %p95
        $region26: #{infonce_emb_loss_2.1} parent=15 // pred_check_branch
          %172 = sbr.rel (%p170) target = $region28
        $region27: #{infonce_emb_loss_2.1} parent=15 // pred_region
          %s173 = sand.u32 %s85, 1
          %s174 = scalar_lea.sflag [#allocation10], %s173
          %s175 = sand.u32 %s85, 1
          %s176 = smul.addr %s175, 12
          %s177 = scalar_lea.vmem [#allocation9], %s176
          %s179 = ssub.s32 192, 192
          %180 = vsyncadd %s174, %s179
          %s181 = smul.addr %s23, 12
          %s182 = smul.addr %s181, 16
          %s183 = scalar_lea.hbm %s4, %s182
          %s185 = sshll.u32 %s177, 4
          %s186 = int_to_ptr.vmem [resolvable:$true] %s185
          %188 = dma.hbm_to_vmem [thread:$0]  %s183, 192, %s186, %s174
        $region28: #{infonce_emb_loss_2.1} parent=15 // pred_fallthru
          _
      $region16: #{infonce_emb_loss_2.1} parent=5 // pred_fallthru
        _
      %p189 = scmp.le.s32.totalorder 1, %s23
      %p190 = scmp.lt.s32.totalorder %s23, 3
      %p191 = pnand %p189, %p190
      %p192 = pneg %p191
      // Predicated region
      $region29: #{infonce_emb_loss_2.1} parent=5 // pred_check
        _
      $region30: #{infonce_emb_loss_2.1} parent=5 // pred_check_branch
        %194 = sbr.rel (%p191) target = $region32
      $region31: #{infonce_emb_loss_2.1} parent=5 // pred_region
        %s195 = ssub.s32 %s23, 1
        %s196 = sand.u32 %s62, 1
        %s197 = scalar_lea.sflag [#allocation8], %s196
        %s198 = sand.u32 %s62, 1
        %s199 = smul.addr %s198, 9216
        %s200 = scalar_lea.vmem [#allocation7], %s199
        // Predicated region
        $region33: #{infonce_emb_loss_2.1} parent=31 // pred_check
          %p201 = pneg %p75
        $region34: #{infonce_emb_loss_2.1} parent=31 // pred_check_branch
          %203 = sbr.rel (%p201) target = $region36
        $region35: #{infonce_emb_loss_2.1} parent=31 // pred_region
          %204 = dma.done %s197, 147456
        $region36: #{infonce_emb_loss_2.1} parent=31 // pred_fallthru
          _
        %s205 = sand.u32 %s88, 1
        %s206 = scalar_lea.sflag [#allocation10], %s205
        %s207 = sand.u32 %s88, 1
        %s208 = smul.addr %s207, 12
        %s209 = scalar_lea.vmem [#allocation9], %s208
        // Predicated region
        $region37: #{infonce_emb_loss_2.1} parent=31 // pred_check
          %p210 = pneg %p101
        $region38: #{infonce_emb_loss_2.1} parent=31 // pred_check_branch
          %212 = sbr.rel (%p210) target = $region40
        $region39: #{infonce_emb_loss_2.1} parent=31 // pred_region
          %213 = dma.done %s206, 192
        $region40: #{infonce_emb_loss_2.1} parent=31 // pred_fallthru
          _
        %p214 = scmp.lt.s32.totalorder %s28, 1
        %s215 = scalar_select %p214, %s28, 1
        %s216 = smul.addr %s215, 12
        %s217 = smul.addr %s216, 4
        %s218 = scalar_lea.vmem %s2, %s217
        %p219 = pneg %p49
        %p220 = pneg %p46
        %s221 = sand.u32 %s62, 1
        %s222 = scalar_lea.sflag [#allocation8], %s221
        %s223 = sand.u32 %s62, 1
        %s224 = smul.addr %s223, 9216
        %s225 = scalar_lea.vmem [#allocation7], %s224
        %p226 = pneg %p75
        %p227 = pneg %p72
        %s228 = sand.u32 %s88, 1
        %s229 = scalar_lea.sflag [#allocation10], %s228
        %s230 = sand.u32 %s88, 1
        %s231 = smul.addr %s230, 12
        %s232 = scalar_lea.vmem [#allocation9], %s231
        %p233 = pneg %p101
        %p234 = pneg %p98
        %p235 = pneg %p122
        %p236 = pneg %p119
        %p237 = scmp.lt.s32.totalorder %s28, 1
        %s238 = scalar_select %p237, %s28, 1
        %s239 = smul.addr %s238, 12
        %s240 = smul.addr %s239, 4
        %s241 = scalar_lea.vmem %s2, %s240
        %v242 = vld [vmem:[%s241] sm:$0xff]
        %v243 = vld [vmem:[%s241 + $0x8] sm:$0xff]
        %v244 = vld [vmem:[%s241 + $0x10] sm:$0xff]
        %v245 = vld [vmem:[%s241 + $0x18] sm:$0xff]
        %v246 = vld [vmem:[%s241 + $0x20] sm:$0xff]
        %v247 = vld [vmem:[%s241 + $0x28] sm:$0xff]
        %v248 = vld [vmem:[%s200] sm:$0xff]
        %v249 = vld [vmem:[%s200 + $0x8] sm:$0xff]
        %v250 = vld [vmem:[%s200 + $0x10] sm:$0xff]
        %v251 = vld [vmem:[%s200 + $0x18] sm:$0xff]
        %v252 = vld [vmem:[%s200 + $0x20] sm:$0xff]
        %v253 = vld [vmem:[%s200 + $0x28] sm:$0xff]
        %v254 = vld [vmem:[%s200 + $0x30] sm:$0xff]
        %v255 = vld [vmem:[%s200 + $0x38] sm:$0xff]
        %v256 = vld [vmem:[%s200 + $0x40] sm:$0xff]
        %v257 = vld [vmem:[%s200 + $0x48] sm:$0xff]
        %v258 = vld [vmem:[%s200 + $0x50] sm:$0xff]
        %v259 = vld [vmem:[%s200 + $0x58] sm:$0xff]
        %v260 = vld [vmem:[%s200 + $0x60] sm:$0xff]
        %v261 = vld [vmem:[%s200 + $0x68] sm:$0xff]
        %v262 = vld [vmem:[%s200 + $0x70] sm:$0xff]
        %v263 = vld [vmem:[%s200 + $0x78] sm:$0xff]
        %v264 = vld [vmem:[%s200 + $0x80] sm:$0xff]
        %v265 = vld [vmem:[%s200 + $0x88] sm:$0xff]
        %v266 = vld [vmem:[%s200 + $0x90] sm:$0xff]
        %v267 = vld [vmem:[%s200 + $0x98] sm:$0xff]
        %v268 = vld [vmem:[%s200 + $0xa0] sm:$0xff]
        %v269 = vld [vmem:[%s200 + $0xa8] sm:$0xff]
        %v270 = vld [vmem:[%s200 + $0xb0] sm:$0xff]
        %v271 = vld [vmem:[%s200 + $0xb8] sm:$0xff]
        %v272 = vld [vmem:[%s200 + $0xc0] sm:$0xff]
        %v273 = vld [vmem:[%s200 + $0xc8] sm:$0xff]
        %v274 = vld [vmem:[%s200 + $0xd0] sm:$0xff]
        %v275 = vld [vmem:[%s200 + $0xd8] sm:$0xff]
        %v276 = vld [vmem:[%s200 + $0xe0] sm:$0xff]
        %v277 = vld [vmem:[%s200 + $0xe8] sm:$0xff]
        %v278 = vld [vmem:[%s200 + $0xf0] sm:$0xff]
        %v279 = vld [vmem:[%s200 + $0xf8] sm:$0xff]
        %v280 = vld [vmem:[%s200 + $0x100] sm:$0xff]
        %v281 = vld [vmem:[%s200 + $0x108] sm:$0xff]
        %v282 = vld [vmem:[%s200 + $0x110] sm:$0xff]
        %v283 = vld [vmem:[%s200 + $0x118] sm:$0xff]
        %v284 = vld [vmem:[%s200 + $0x120] sm:$0xff]
        %v285 = vld [vmem:[%s200 + $0x128] sm:$0xff]
        %v286 = vld [vmem:[%s200 + $0x130] sm:$0xff]
        %v287 = vld [vmem:[%s200 + $0x138] sm:$0xff]
        %v288 = vld [vmem:[%s200 + $0x140] sm:$0xff]
        %v289 = vld [vmem:[%s200 + $0x148] sm:$0xff]
        %v290 = vld [vmem:[%s200 + $0x150] sm:$0xff]
        %v291 = vld [vmem:[%s200 + $0x158] sm:$0xff]
        %v292 = vld [vmem:[%s200 + $0x160] sm:$0xff]
        %v293 = vld [vmem:[%s200 + $0x168] sm:$0xff]
        %v294 = vld [vmem:[%s200 + $0x170] sm:$0xff]
        %v295 = vld [vmem:[%s200 + $0x178] sm:$0xff]
        %v296 = vld [vmem:[%s200 + $0x180] sm:$0xff]
        %v297 = vld [vmem:[%s200 + $0x188] sm:$0xff]
        %v298 = vld [vmem:[%s200 + $0x190] sm:$0xff]
        %v299 = vld [vmem:[%s200 + $0x198] sm:$0xff]
        %v300 = vld [vmem:[%s200 + $0x1a0] sm:$0xff]
        %v301 = vld [vmem:[%s200 + $0x1a8] sm:$0xff]
        %v302 = vld [vmem:[%s200 + $0x1b0] sm:$0xff]
        %v303 = vld [vmem:[%s200 + $0x1b8] sm:$0xff]
        %v304 = vld [vmem:[%s200 + $0x1c0] sm:$0xff]
        %v305 = vld [vmem:[%s200 + $0x1c8] sm:$0xff]
        %v306 = vld [vmem:[%s200 + $0x1d0] sm:$0xff]
        %v307 = vld [vmem:[%s200 + $0x1d8] sm:$0xff]
        %v308 = vld [vmem:[%s200 + $0x1e0] sm:$0xff]
        %v309 = vld [vmem:[%s200 + $0x1e8] sm:$0xff]
        %v310 = vld [vmem:[%s200 + $0x1f0] sm:$0xff]
        %v311 = vld [vmem:[%s200 + $0x1f8] sm:$0xff]
        %v312 = vld [vmem:[%s200 + $0x200] sm:$0xff]
        %v313 = vld [vmem:[%s200 + $0x208] sm:$0xff]
        %v314 = vld [vmem:[%s200 + $0x210] sm:$0xff]
        %v315 = vld [vmem:[%s200 + $0x218] sm:$0xff]
        %v316 = vld [vmem:[%s200 + $0x220] sm:$0xff]
        %v317 = vld [vmem:[%s200 + $0x228] sm:$0xff]
        %v318 = vld [vmem:[%s200 + $0x230] sm:$0xff]
        %v319 = vld [vmem:[%s200 + $0x238] sm:$0xff]
        %v320 = vld [vmem:[%s200 + $0x240] sm:$0xff]
        %v321 = vld [vmem:[%s200 + $0x248] sm:$0xff]
        %v322 = vld [vmem:[%s200 + $0x250] sm:$0xff]
        %v323 = vld [vmem:[%s200 + $0x258] sm:$0xff]
        %v324 = vld [vmem:[%s200 + $0x260] sm:$0xff]
        %v325 = vld [vmem:[%s200 + $0x268] sm:$0xff]
        %v326 = vld [vmem:[%s200 + $0x270] sm:$0xff]
        %v327 = vld [vmem:[%s200 + $0x278] sm:$0xff]
        %v328 = vld [vmem:[%s200 + $0x280] sm:$0xff]
        %v329 = vld [vmem:[%s200 + $0x288] sm:$0xff]
        %v330 = vld [vmem:[%s200 + $0x290] sm:$0xff]
        %v331 = vld [vmem:[%s200 + $0x298] sm:$0xff]
        %v332 = vld [vmem:[%s200 + $0x2a0] sm:$0xff]
        %v333 = vld [vmem:[%s200 + $0x2a8] sm:$0xff]
        %v334 = vld [vmem:[%s200 + $0x2b0] sm:$0xff]
        %v335 = vld [vmem:[%s200 + $0x2b8] sm:$0xff]
        %v336 = vld [vmem:[%s200 + $0x2c0] sm:$0xff]
        %v337 = vld [vmem:[%s200 + $0x2c8] sm:$0xff]
        %v338 = vld [vmem:[%s200 + $0x2d0] sm:$0xff]
        %v339 = vld [vmem:[%s200 + $0x2d8] sm:$0xff]
        %v340 = vld [vmem:[%s200 + $0x2e0] sm:$0xff]
        %v341 = vld [vmem:[%s200 + $0x2e8] sm:$0xff]
        %v342 = vld [vmem:[%s200 + $0x2f0] sm:$0xff]
        %v343 = vld [vmem:[%s200 + $0x2f8] sm:$0xff]
        %v344 = vld [vmem:[%s200 + $0x300] sm:$0xff]
        %v345 = vld [vmem:[%s200 + $0x308] sm:$0xff]
        %v346 = vld [vmem:[%s200 + $0x310] sm:$0xff]
        %v347 = vld [vmem:[%s200 + $0x318] sm:$0xff]
        %v348 = vld [vmem:[%s200 + $0x320] sm:$0xff]
        %v349 = vld [vmem:[%s200 + $0x328] sm:$0xff]
        %v350 = vld [vmem:[%s200 + $0x330] sm:$0xff]
        %v351 = vld [vmem:[%s200 + $0x338] sm:$0xff]
        %v352 = vld [vmem:[%s200 + $0x340] sm:$0xff]
        %v353 = vld [vmem:[%s200 + $0x348] sm:$0xff]
        %v354 = vld [vmem:[%s200 + $0x350] sm:$0xff]
        %v355 = vld [vmem:[%s200 + $0x358] sm:$0xff]
        %v356 = vld [vmem:[%s200 + $0x360] sm:$0xff]
        %v357 = vld [vmem:[%s200 + $0x368] sm:$0xff]
        %v358 = vld [vmem:[%s200 + $0x370] sm:$0xff]
        %v359 = vld [vmem:[%s200 + $0x378] sm:$0xff]
        %v360 = vld [vmem:[%s200 + $0x380] sm:$0xff]
        %v361 = vld [vmem:[%s200 + $0x388] sm:$0xff]
        %v362 = vld [vmem:[%s200 + $0x390] sm:$0xff]
        %v363 = vld [vmem:[%s200 + $0x398] sm:$0xff]
        %v364 = vld [vmem:[%s200 + $0x3a0] sm:$0xff]
        %v365 = vld [vmem:[%s200 + $0x3a8] sm:$0xff]
        %v366 = vld [vmem:[%s200 + $0x3b0] sm:$0xff]
        %v367 = vld [vmem:[%s200 + $0x3b8] sm:$0xff]
        %v368 = vld [vmem:[%s200 + $0x3c0] sm:$0xff]
        %v369 = vld [vmem:[%s200 + $0x3c8] sm:$0xff]
        %v370 = vld [vmem:[%s200 + $0x3d0] sm:$0xff]
        %v371 = vld [vmem:[%s200 + $0x3d8] sm:$0xff]
        %v372 = vld [vmem:[%s200 + $0x3e0] sm:$0xff]
        %v373 = vld [vmem:[%s200 + $0x3e8] sm:$0xff]
        %v374 = vld [vmem:[%s200 + $0x3f0] sm:$0xff]
        %v375 = vld [vmem:[%s200 + $0x3f8] sm:$0xff]
        %v376 = vld [vmem:[%s200 + $0x400] sm:$0xff]
        %v377 = vld [vmem:[%s200 + $0x408] sm:$0xff]
        %v378 = vld [vmem:[%s200 + $0x410] sm:$0xff]
        %v379 = vld [vmem:[%s200 + $0x418] sm:$0xff]
        %v380 = vld [vmem:[%s200 + $0x420] sm:$0xff]
        %v381 = vld [vmem:[%s200 + $0x428] sm:$0xff]
        %v382 = vld [vmem:[%s200 + $0x430] sm:$0xff]
        %v383 = vld [vmem:[%s200 + $0x438] sm:$0xff]
        %v384 = vld [vmem:[%s200 + $0x440] sm:$0xff]
        %v385 = vld [vmem:[%s200 + $0x448] sm:$0xff]
        %v386 = vld [vmem:[%s200 + $0x450] sm:$0xff]
        %v387 = vld [vmem:[%s200 + $0x458] sm:$0xff]
        %v388 = vld [vmem:[%s200 + $0x460] sm:$0xff]
        %v389 = vld [vmem:[%s200 + $0x468] sm:$0xff]
        %v390 = vld [vmem:[%s200 + $0x470] sm:$0xff]
        %v391 = vld [vmem:[%s200 + $0x478] sm:$0xff]
        %v392 = vld [vmem:[%s200 + $0x480] sm:$0xff]
        %v393 = vld [vmem:[%s200 + $0x488] sm:$0xff]
        %v394 = vld [vmem:[%s200 + $0x490] sm:$0xff]
        %v395 = vld [vmem:[%s200 + $0x498] sm:$0xff]
        %v396 = vld [vmem:[%s200 + $0x4a0] sm:$0xff]
        %v397 = vld [vmem:[%s200 + $0x4a8] sm:$0xff]
        %v398 = vld [vmem:[%s200 + $0x4b0] sm:$0xff]
        %v399 = vld [vmem:[%s200 + $0x4b8] sm:$0xff]
        %v400 = vld [vmem:[%s200 + $0x4c0] sm:$0xff]
        %v401 = vld [vmem:[%s200 + $0x4c8] sm:$0xff]
        %v402 = vld [vmem:[%s200 + $0x4d0] sm:$0xff]
        %v403 = vld [vmem:[%s200 + $0x4d8] sm:$0xff]
        %v404 = vld [vmem:[%s200 + $0x4e0] sm:$0xff]
        %v405 = vld [vmem:[%s200 + $0x4e8] sm:$0xff]
        %v406 = vld [vmem:[%s200 + $0x4f0] sm:$0xff]
        %v407 = vld [vmem:[%s200 + $0x4f8] sm:$0xff]
        %v408 = vld [vmem:[%s200 + $0x500] sm:$0xff]
        %v409 = vld [vmem:[%s200 + $0x508] sm:$0xff]
        %v410 = vld [vmem:[%s200 + $0x510] sm:$0xff]
        %v411 = vld [vmem:[%s200 + $0x518] sm:$0xff]
        %v412 = vld [vmem:[%s200 + $0x520] sm:$0xff]
        %v413 = vld [vmem:[%s200 + $0x528] sm:$0xff]
        %v414 = vld [vmem:[%s200 + $0x530] sm:$0xff]
        %v415 = vld [vmem:[%s200 + $0x538] sm:$0xff]
        %v416 = vld [vmem:[%s200 + $0x540] sm:$0xff]
        %v417 = vld [vmem:[%s200 + $0x548] sm:$0xff]
        %v418 = vld [vmem:[%s200 + $0x550] sm:$0xff]
        %v419 = vld [vmem:[%s200 + $0x558] sm:$0xff]
        %v420 = vld [vmem:[%s200 + $0x560] sm:$0xff]
        %v421 = vld [vmem:[%s200 + $0x568] sm:$0xff]
        %v422 = vld [vmem:[%s200 + $0x570] sm:$0xff]
        %v423 = vld [vmem:[%s200 + $0x578] sm:$0xff]
        %v424 = vld [vmem:[%s200 + $0x580] sm:$0xff]
        %v425 = vld [vmem:[%s200 + $0x588] sm:$0xff]
        %v426 = vld [vmem:[%s200 + $0x590] sm:$0xff]
        %v427 = vld [vmem:[%s200 + $0x598] sm:$0xff]
        %v428 = vld [vmem:[%s200 + $0x5a0] sm:$0xff]
        %v429 = vld [vmem:[%s200 + $0x5a8] sm:$0xff]
        %v430 = vld [vmem:[%s200 + $0x5b0] sm:$0xff]
        %v431 = vld [vmem:[%s200 + $0x5b8] sm:$0xff]
        %v432 = vld [vmem:[%s200 + $0x5c0] sm:$0xff]
        %v433 = vld [vmem:[%s200 + $0x5c8] sm:$0xff]
        %v434 = vld [vmem:[%s200 + $0x5d0] sm:$0xff]
        %v435 = vld [vmem:[%s200 + $0x5d8] sm:$0xff]
        %v436 = vld [vmem:[%s200 + $0x5e0] sm:$0xff]
        %v437 = vld [vmem:[%s200 + $0x5e8] sm:$0xff]
        %v438 = vld [vmem:[%s200 + $0x5f0] sm:$0xff]
        %v439 = vld [vmem:[%s200 + $0x5f8] sm:$0xff]
        %v440 = vld [vmem:[%s200 + $0x600] sm:$0xff]
        %v441 = vld [vmem:[%s200 + $0x608] sm:$0xff]
        %v442 = vld [vmem:[%s200 + $0x610] sm:$0xff]
        %v443 = vld [vmem:[%s200 + $0x618] sm:$0xff]
        %v444 = vld [vmem:[%s200 + $0x620] sm:$0xff]
        %v445 = vld [vmem:[%s200 + $0x628] sm:$0xff]
        %v446 = vld [vmem:[%s200 + $0x630] sm:$0xff]
        %v447 = vld [vmem:[%s200 + $0x638] sm:$0xff]
        %v448 = vld [vmem:[%s200 + $0x640] sm:$0xff]
        %v449 = vld [vmem:[%s200 + $0x648] sm:$0xff]
        %v450 = vld [vmem:[%s200 + $0x650] sm:$0xff]
        %v451 = vld [vmem:[%s200 + $0x658] sm:$0xff]
        %v452 = vld [vmem:[%s200 + $0x660] sm:$0xff]
        %v453 = vld [vmem:[%s200 + $0x668] sm:$0xff]
        %v454 = vld [vmem:[%s200 + $0x670] sm:$0xff]
        %v455 = vld [vmem:[%s200 + $0x678] sm:$0xff]
        %v456 = vld [vmem:[%s200 + $0x680] sm:$0xff]
        %v457 = vld [vmem:[%s200 + $0x688] sm:$0xff]
        %v458 = vld [vmem:[%s200 + $0x690] sm:$0xff]
        %v459 = vld [vmem:[%s200 + $0x698] sm:$0xff]
        %v460 = vld [vmem:[%s200 + $0x6a0] sm:$0xff]
        %v461 = vld [vmem:[%s200 + $0x6a8] sm:$0xff]
        %v462 = vld [vmem:[%s200 + $0x6b0] sm:$0xff]
        %v463 = vld [vmem:[%s200 + $0x6b8] sm:$0xff]
        %v464 = vld [vmem:[%s200 + $0x6c0] sm:$0xff]
        %v465 = vld [vmem:[%s200 + $0x6c8] sm:$0xff]
        %v466 = vld [vmem:[%s200 + $0x6d0] sm:$0xff]
        %v467 = vld [vmem:[%s200 + $0x6d8] sm:$0xff]
        %v468 = vld [vmem:[%s200 + $0x6e0] sm:$0xff]
        %v469 = vld [vmem:[%s200 + $0x6e8] sm:$0xff]
        %v470 = vld [vmem:[%s200 + $0x6f0] sm:$0xff]
        %v471 = vld [vmem:[%s200 + $0x6f8] sm:$0xff]
        %v472 = vld [vmem:[%s200 + $0x700] sm:$0xff]
        %v473 = vld [vmem:[%s200 + $0x708] sm:$0xff]
        %v474 = vld [vmem:[%s200 + $0x710] sm:$0xff]
        %v475 = vld [vmem:[%s200 + $0x718] sm:$0xff]
        %v476 = vld [vmem:[%s200 + $0x720] sm:$0xff]
        %v477 = vld [vmem:[%s200 + $0x728] sm:$0xff]
        %v478 = vld [vmem:[%s200 + $0x730] sm:$0xff]
        %v479 = vld [vmem:[%s200 + $0x738] sm:$0xff]
        %v480 = vld [vmem:[%s200 + $0x740] sm:$0xff]
        %v481 = vld [vmem:[%s200 + $0x748] sm:$0xff]
        %v482 = vld [vmem:[%s200 + $0x750] sm:$0xff]
        %v483 = vld [vmem:[%s200 + $0x758] sm:$0xff]
        %v484 = vld [vmem:[%s200 + $0x760] sm:$0xff]
        %v485 = vld [vmem:[%s200 + $0x768] sm:$0xff]
        %v486 = vld [vmem:[%s200 + $0x770] sm:$0xff]
        %v487 = vld [vmem:[%s200 + $0x778] sm:$0xff]
        %v488 = vld [vmem:[%s200 + $0x780] sm:$0xff]
        %v489 = vld [vmem:[%s200 + $0x788] sm:$0xff]
        %v490 = vld [vmem:[%s200 + $0x790] sm:$0xff]
        %v491 = vld [vmem:[%s200 + $0x798] sm:$0xff]
        %v492 = vld [vmem:[%s200 + $0x7a0] sm:$0xff]
        %v493 = vld [vmem:[%s200 + $0x7a8] sm:$0xff]
        %v494 = vld [vmem:[%s200 + $0x7b0] sm:$0xff]
        %v495 = vld [vmem:[%s200 + $0x7b8] sm:$0xff]
        %v496 = vld [vmem:[%s200 + $0x7c0] sm:$0xff]
        %v497 = vld [vmem:[%s200 + $0x7c8] sm:$0xff]
        %v498 = vld [vmem:[%s200 + $0x7d0] sm:$0xff]
        %v499 = vld [vmem:[%s200 + $0x7d8] sm:$0xff]
        %v500 = vld [vmem:[%s200 + $0x7e0] sm:$0xff]
        %v501 = vld [vmem:[%s200 + $0x7e8] sm:$0xff]
        %v502 = vld [vmem:[%s200 + $0x7f0] sm:$0xff]
        %v503 = vld [vmem:[%s200 + $0x7f8] sm:$0xff]
        %v504 = vld [vmem:[%s200 + $0x800] sm:$0xff]
        %v505 = vld [vmem:[%s200 + $0x808] sm:$0xff]
        %v506 = vld [vmem:[%s200 + $0x810] sm:$0xff]
        %v507 = vld [vmem:[%s200 + $0x818] sm:$0xff]
        %v508 = vld [vmem:[%s200 + $0x820] sm:$0xff]
        %v509 = vld [vmem:[%s200 + $0x828] sm:$0xff]
        %v510 = vld [vmem:[%s200 + $0x830] sm:$0xff]
        %v511 = vld [vmem:[%s200 + $0x838] sm:$0xff]
        %v512 = vld [vmem:[%s200 + $0x840] sm:$0xff]
        %v513 = vld [vmem:[%s200 + $0x848] sm:$0xff]
        %v514 = vld [vmem:[%s200 + $0x850] sm:$0xff]
        %v515 = vld [vmem:[%s200 + $0x858] sm:$0xff]
        %v516 = vld [vmem:[%s200 + $0x860] sm:$0xff]
        %v517 = vld [vmem:[%s200 + $0x868] sm:$0xff]
        %v518 = vld [vmem:[%s200 + $0x870] sm:$0xff]
        %v519 = vld [vmem:[%s200 + $0x878] sm:$0xff]
        %v520 = vld [vmem:[%s200 + $0x880] sm:$0xff]
        %v521 = vld [vmem:[%s200 + $0x888] sm:$0xff]
        %v522 = vld [vmem:[%s200 + $0x890] sm:$0xff]
        %v523 = vld [vmem:[%s200 + $0x898] sm:$0xff]
        %v524 = vld [vmem:[%s200 + $0x8a0] sm:$0xff]
        %v525 = vld [vmem:[%s200 + $0x8a8] sm:$0xff]
        %v526 = vld [vmem:[%s200 + $0x8b0] sm:$0xff]
        %v527 = vld [vmem:[%s200 + $0x8b8] sm:$0xff]
        %v528 = vld [vmem:[%s200 + $0x8c0] sm:$0xff]
        %v529 = vld [vmem:[%s200 + $0x8c8] sm:$0xff]
        %v530 = vld [vmem:[%s200 + $0x8d0] sm:$0xff]
        %v531 = vld [vmem:[%s200 + $0x8d8] sm:$0xff]
        %v532 = vld [vmem:[%s200 + $0x8e0] sm:$0xff]
        %v533 = vld [vmem:[%s200 + $0x8e8] sm:$0xff]
        %v534 = vld [vmem:[%s200 + $0x8f0] sm:$0xff]
        %v535 = vld [vmem:[%s200 + $0x8f8] sm:$0xff]
        %v536 = vld [vmem:[%s200 + $0x900] sm:$0xff]
        %v537 = vld [vmem:[%s200 + $0x908] sm:$0xff]
        %v538 = vld [vmem:[%s200 + $0x910] sm:$0xff]
        %v539 = vld [vmem:[%s200 + $0x918] sm:$0xff]
        %v540 = vld [vmem:[%s200 + $0x920] sm:$0xff]
        %v541 = vld [vmem:[%s200 + $0x928] sm:$0xff]
        %v542 = vld [vmem:[%s200 + $0x930] sm:$0xff]
        %v543 = vld [vmem:[%s200 + $0x938] sm:$0xff]
        %v544 = vld [vmem:[%s200 + $0x940] sm:$0xff]
        %v545 = vld [vmem:[%s200 + $0x948] sm:$0xff]
        %v546 = vld [vmem:[%s200 + $0x950] sm:$0xff]
        %v547 = vld [vmem:[%s200 + $0x958] sm:$0xff]
        %v548 = vld [vmem:[%s200 + $0x960] sm:$0xff]
        %v549 = vld [vmem:[%s200 + $0x968] sm:$0xff]
        %v550 = vld [vmem:[%s200 + $0x970] sm:$0xff]
        %v551 = vld [vmem:[%s200 + $0x978] sm:$0xff]
        %v552 = vld [vmem:[%s200 + $0x980] sm:$0xff]
        %v553 = vld [vmem:[%s200 + $0x988] sm:$0xff]
        %v554 = vld [vmem:[%s200 + $0x990] sm:$0xff]
        %v555 = vld [vmem:[%s200 + $0x998] sm:$0xff]
        %v556 = vld [vmem:[%s200 + $0x9a0] sm:$0xff]
        %v557 = vld [vmem:[%s200 + $0x9a8] sm:$0xff]
        %v558 = vld [vmem:[%s200 + $0x9b0] sm:$0xff]
        %v559 = vld [vmem:[%s200 + $0x9b8] sm:$0xff]
        %v560 = vld [vmem:[%s200 + $0x9c0] sm:$0xff]
        %v561 = vld [vmem:[%s200 + $0x9c8] sm:$0xff]
        %v562 = vld [vmem:[%s200 + $0x9d0] sm:$0xff]
        %v563 = vld [vmem:[%s200 + $0x9d8] sm:$0xff]
        %v564 = vld [vmem:[%s200 + $0x9e0] sm:$0xff]
        %v565 = vld [vmem:[%s200 + $0x9e8] sm:$0xff]
        %v566 = vld [vmem:[%s200 + $0x9f0] sm:$0xff]
        %v567 = vld [vmem:[%s200 + $0x9f8] sm:$0xff]
        %v568 = vld [vmem:[%s200 + $0xa00] sm:$0xff]
        %v569 = vld [vmem:[%s200 + $0xa08] sm:$0xff]
        %v570 = vld [vmem:[%s200 + $0xa10] sm:$0xff]
        %v571 = vld [vmem:[%s200 + $0xa18] sm:$0xff]
        %v572 = vld [vmem:[%s200 + $0xa20] sm:$0xff]
        %v573 = vld [vmem:[%s200 + $0xa28] sm:$0xff]
        %v574 = vld [vmem:[%s200 + $0xa30] sm:$0xff]
        %v575 = vld [vmem:[%s200 + $0xa38] sm:$0xff]
        %v576 = vld [vmem:[%s200 + $0xa40] sm:$0xff]
        %v577 = vld [vmem:[%s200 + $0xa48] sm:$0xff]
        %v578 = vld [vmem:[%s200 + $0xa50] sm:$0xff]
        %v579 = vld [vmem:[%s200 + $0xa58] sm:$0xff]
        %v580 = vld [vmem:[%s200 + $0xa60] sm:$0xff]
        %v581 = vld [vmem:[%s200 + $0xa68] sm:$0xff]
        %v582 = vld [vmem:[%s200 + $0xa70] sm:$0xff]
        %v583 = vld [vmem:[%s200 + $0xa78] sm:$0xff]
        %v584 = vld [vmem:[%s200 + $0xa80] sm:$0xff]
        %v585 = vld [vmem:[%s200 + $0xa88] sm:$0xff]
        %v586 = vld [vmem:[%s200 + $0xa90] sm:$0xff]
        %v587 = vld [vmem:[%s200 + $0xa98] sm:$0xff]
        %v588 = vld [vmem:[%s200 + $0xaa0] sm:$0xff]
        %v589 = vld [vmem:[%s200 + $0xaa8] sm:$0xff]
        %v590 = vld [vmem:[%s200 + $0xab0] sm:$0xff]
        %v591 = vld [vmem:[%s200 + $0xab8] sm:$0xff]
        %v592 = vld [vmem:[%s200 + $0xac0] sm:$0xff]
        %v593 = vld [vmem:[%s200 + $0xac8] sm:$0xff]
        %v594 = vld [vmem:[%s200 + $0xad0] sm:$0xff]
        %v595 = vld [vmem:[%s200 + $0xad8] sm:$0xff]
        %v596 = vld [vmem:[%s200 + $0xae0] sm:$0xff]
        %v597 = vld [vmem:[%s200 + $0xae8] sm:$0xff]
        %v598 = vld [vmem:[%s200 + $0xaf0] sm:$0xff]
        %v599 = vld [vmem:[%s200 + $0xaf8] sm:$0xff]
        %v600 = vld [vmem:[%s200 + $0xb00] sm:$0xff]
        %v601 = vld [vmem:[%s200 + $0xb08] sm:$0xff]
        %v602 = vld [vmem:[%s200 + $0xb10] sm:$0xff]
        %v603 = vld [vmem:[%s200 + $0xb18] sm:$0xff]
        %v604 = vld [vmem:[%s200 + $0xb20] sm:$0xff]
        %v605 = vld [vmem:[%s200 + $0xb28] sm:$0xff]
        %v606 = vld [vmem:[%s200 + $0xb30] sm:$0xff]
        %v607 = vld [vmem:[%s200 + $0xb38] sm:$0xff]
        %v608 = vld [vmem:[%s200 + $0xb40] sm:$0xff]
        %v609 = vld [vmem:[%s200 + $0xb48] sm:$0xff]
        %v610 = vld [vmem:[%s200 + $0xb50] sm:$0xff]
        %v611 = vld [vmem:[%s200 + $0xb58] sm:$0xff]
        %v612 = vld [vmem:[%s200 + $0xb60] sm:$0xff]
        %v613 = vld [vmem:[%s200 + $0xb68] sm:$0xff]
        %v614 = vld [vmem:[%s200 + $0xb70] sm:$0xff]
        %v615 = vld [vmem:[%s200 + $0xb78] sm:$0xff]
        %v616 = vld [vmem:[%s200 + $0xb80] sm:$0xff]
        %v617 = vld [vmem:[%s200 + $0xb88] sm:$0xff]
        %v618 = vld [vmem:[%s200 + $0xb90] sm:$0xff]
        %v619 = vld [vmem:[%s200 + $0xb98] sm:$0xff]
        %v620 = vld [vmem:[%s200 + $0xba0] sm:$0xff]
        %v621 = vld [vmem:[%s200 + $0xba8] sm:$0xff]
        %v622 = vld [vmem:[%s200 + $0xbb0] sm:$0xff]
        %v623 = vld [vmem:[%s200 + $0xbb8] sm:$0xff]
        %v624 = vld [vmem:[%s200 + $0xbc0] sm:$0xff]
        %v625 = vld [vmem:[%s200 + $0xbc8] sm:$0xff]
        %v626 = vld [vmem:[%s200 + $0xbd0] sm:$0xff]
        %v627 = vld [vmem:[%s200 + $0xbd8] sm:$0xff]
        %v628 = vld [vmem:[%s200 + $0xbe0] sm:$0xff]
        %v629 = vld [vmem:[%s200 + $0xbe8] sm:$0xff]
        %v630 = vld [vmem:[%s200 + $0xbf0] sm:$0xff]
        %v631 = vld [vmem:[%s200 + $0xbf8] sm:$0xff]
        %v632 = vld [vmem:[%s200 + $0xc00] sm:$0xff]
        %v633 = vld [vmem:[%s200 + $0xc08] sm:$0xff]
        %v634 = vld [vmem:[%s200 + $0xc10] sm:$0xff]
        %v635 = vld [vmem:[%s200 + $0xc18] sm:$0xff]
        %v636 = vld [vmem:[%s200 + $0xc20] sm:$0xff]
        %v637 = vld [vmem:[%s200 + $0xc28] sm:$0xff]
        %v638 = vld [vmem:[%s200 + $0xc30] sm:$0xff]
        %v639 = vld [vmem:[%s200 + $0xc38] sm:$0xff]
        %v640 = vld [vmem:[%s200 + $0xc40] sm:$0xff]
        %v641 = vld [vmem:[%s200 + $0xc48] sm:$0xff]
        %v642 = vld [vmem:[%s200 + $0xc50] sm:$0xff]
        %v643 = vld [vmem:[%s200 + $0xc58] sm:$0xff]
        %v644 = vld [vmem:[%s200 + $0xc60] sm:$0xff]
        %v645 = vld [vmem:[%s200 + $0xc68] sm:$0xff]
        %v646 = vld [vmem:[%s200 + $0xc70] sm:$0xff]
        %v647 = vld [vmem:[%s200 + $0xc78] sm:$0xff]
        %v648 = vld [vmem:[%s200 + $0xc80] sm:$0xff]
        %v649 = vld [vmem:[%s200 + $0xc88] sm:$0xff]
        %v650 = vld [vmem:[%s200 + $0xc90] sm:$0xff]
        %v651 = vld [vmem:[%s200 + $0xc98] sm:$0xff]
        %v652 = vld [vmem:[%s200 + $0xca0] sm:$0xff]
        %v653 = vld [vmem:[%s200 + $0xca8] sm:$0xff]
        %v654 = vld [vmem:[%s200 + $0xcb0] sm:$0xff]
        %v655 = vld [vmem:[%s200 + $0xcb8] sm:$0xff]
        %v656 = vld [vmem:[%s200 + $0xcc0] sm:$0xff]
        %v657 = vld [vmem:[%s200 + $0xcc8] sm:$0xff]
        %v658 = vld [vmem:[%s200 + $0xcd0] sm:$0xff]
        %v659 = vld [vmem:[%s200 + $0xcd8] sm:$0xff]
        %v660 = vld [vmem:[%s200 + $0xce0] sm:$0xff]
        %v661 = vld [vmem:[%s200 + $0xce8] sm:$0xff]
        %v662 = vld [vmem:[%s200 + $0xcf0] sm:$0xff]
        %v663 = vld [vmem:[%s200 + $0xcf8] sm:$0xff]
        %v664 = vld [vmem:[%s200 + $0xd00] sm:$0xff]
        %v665 = vld [vmem:[%s200 + $0xd08] sm:$0xff]
        %v666 = vld [vmem:[%s200 + $0xd10] sm:$0xff]
        %v667 = vld [vmem:[%s200 + $0xd18] sm:$0xff]
        %v668 = vld [vmem:[%s200 + $0xd20] sm:$0xff]
        %v669 = vld [vmem:[%s200 + $0xd28] sm:$0xff]
        %v670 = vld [vmem:[%s200 + $0xd30] sm:$0xff]
        %v671 = vld [vmem:[%s200 + $0xd38] sm:$0xff]
        %v672 = vld [vmem:[%s200 + $0xd40] sm:$0xff]
        %v673 = vld [vmem:[%s200 + $0xd48] sm:$0xff]
        %v674 = vld [vmem:[%s200 + $0xd50] sm:$0xff]
        %v675 = vld [vmem:[%s200 + $0xd58] sm:$0xff]
        %v676 = vld [vmem:[%s200 + $0xd60] sm:$0xff]
        %v677 = vld [vmem:[%s200 + $0xd68] sm:$0xff]
        %v678 = vld [vmem:[%s200 + $0xd70] sm:$0xff]
        %v679 = vld [vmem:[%s200 + $0xd78] sm:$0xff]
        %v680 = vld [vmem:[%s200 + $0xd80] sm:$0xff]
        %v681 = vld [vmem:[%s200 + $0xd88] sm:$0xff]
        %v682 = vld [vmem:[%s200 + $0xd90] sm:$0xff]
        %v683 = vld [vmem:[%s200 + $0xd98] sm:$0xff]
        %v684 = vld [vmem:[%s200 + $0xda0] sm:$0xff]
        %v685 = vld [vmem:[%s200 + $0xda8] sm:$0xff]
        %v686 = vld [vmem:[%s200 + $0xdb0] sm:$0xff]
        %v687 = vld [vmem:[%s200 + $0xdb8] sm:$0xff]
        %v688 = vld [vmem:[%s200 + $0xdc0] sm:$0xff]
        %v689 = vld [vmem:[%s200 + $0xdc8] sm:$0xff]
        %v690 = vld [vmem:[%s200 + $0xdd0] sm:$0xff]
        %v691 = vld [vmem:[%s200 + $0xdd8] sm:$0xff]
        %v692 = vld [vmem:[%s200 + $0xde0] sm:$0xff]
        %v693 = vld [vmem:[%s200 + $0xde8] sm:$0xff]
        %v694 = vld [vmem:[%s200 + $0xdf0] sm:$0xff]
        %v695 = vld [vmem:[%s200 + $0xdf8] sm:$0xff]
        %v696 = vld [vmem:[%s200 + $0xe00] sm:$0xff]
        %v697 = vld [vmem:[%s200 + $0xe08] sm:$0xff]
        %v698 = vld [vmem:[%s200 + $0xe10] sm:$0xff]
        %v699 = vld [vmem:[%s200 + $0xe18] sm:$0xff]
        %v700 = vld [vmem:[%s200 + $0xe20] sm:$0xff]
        %v701 = vld [vmem:[%s200 + $0xe28] sm:$0xff]
        %v702 = vld [vmem:[%s200 + $0xe30] sm:$0xff]
        %v703 = vld [vmem:[%s200 + $0xe38] sm:$0xff]
        %v704 = vld [vmem:[%s200 + $0xe40] sm:$0xff]
        %v705 = vld [vmem:[%s200 + $0xe48] sm:$0xff]
        %v706 = vld [vmem:[%s200 + $0xe50] sm:$0xff]
        %v707 = vld [vmem:[%s200 + $0xe58] sm:$0xff]
        %v708 = vld [vmem:[%s200 + $0xe60] sm:$0xff]
        %v709 = vld [vmem:[%s200 + $0xe68] sm:$0xff]
        %v710 = vld [vmem:[%s200 + $0xe70] sm:$0xff]
        %v711 = vld [vmem:[%s200 + $0xe78] sm:$0xff]
        %v712 = vld [vmem:[%s200 + $0xe80] sm:$0xff]
        %v713 = vld [vmem:[%s200 + $0xe88] sm:$0xff]
        %v714 = vld [vmem:[%s200 + $0xe90] sm:$0xff]
        %v715 = vld [vmem:[%s200 + $0xe98] sm:$0xff]
        %v716 = vld [vmem:[%s200 + $0xea0] sm:$0xff]
        %v717 = vld [vmem:[%s200 + $0xea8] sm:$0xff]
        %v718 = vld [vmem:[%s200 + $0xeb0] sm:$0xff]
        %v719 = vld [vmem:[%s200 + $0xeb8] sm:$0xff]
        %v720 = vld [vmem:[%s200 + $0xec0] sm:$0xff]
        %v721 = vld [vmem:[%s200 + $0xec8] sm:$0xff]
        %v722 = vld [vmem:[%s200 + $0xed0] sm:$0xff]
        %v723 = vld [vmem:[%s200 + $0xed8] sm:$0xff]
        %v724 = vld [vmem:[%s200 + $0xee0] sm:$0xff]
        %v725 = vld [vmem:[%s200 + $0xee8] sm:$0xff]
        %v726 = vld [vmem:[%s200 + $0xef0] sm:$0xff]
        %v727 = vld [vmem:[%s200 + $0xef8] sm:$0xff]
        %v728 = vld [vmem:[%s200 + $0xf00] sm:$0xff]
        %v729 = vld [vmem:[%s200 + $0xf08] sm:$0xff]
        %v730 = vld [vmem:[%s200 + $0xf10] sm:$0xff]
        %v731 = vld [vmem:[%s200 + $0xf18] sm:$0xff]
        %v732 = vld [vmem:[%s200 + $0xf20] sm:$0xff]
        %v733 = vld [vmem:[%s200 + $0xf28] sm:$0xff]
        %v734 = vld [vmem:[%s200 + $0xf30] sm:$0xff]
        %v735 = vld [vmem:[%s200 + $0xf38] sm:$0xff]
        %v736 = vld [vmem:[%s200 + $0xf40] sm:$0xff]
        %v737 = vld [vmem:[%s200 + $0xf48] sm:$0xff]
        %v738 = vld [vmem:[%s200 + $0xf50] sm:$0xff]
        %v739 = vld [vmem:[%s200 + $0xf58] sm:$0xff]
        %v740 = vld [vmem:[%s200 + $0xf60] sm:$0xff]
        %v741 = vld [vmem:[%s200 + $0xf68] sm:$0xff]
        %v742 = vld [vmem:[%s200 + $0xf70] sm:$0xff]
        %v743 = vld [vmem:[%s200 + $0xf78] sm:$0xff]
        %v744 = vld [vmem:[%s200 + $0xf80] sm:$0xff]
        %v745 = vld [vmem:[%s200 + $0xf88] sm:$0xff]
        %v746 = vld [vmem:[%s200 + $0xf90] sm:$0xff]
        %v747 = vld [vmem:[%s200 + $0xf98] sm:$0xff]
        %v748 = vld [vmem:[%s200 + $0xfa0] sm:$0xff]
        %v749 = vld [vmem:[%s200 + $0xfa8] sm:$0xff]
        %v750 = vld [vmem:[%s200 + $0xfb0] sm:$0xff]
        %v751 = vld [vmem:[%s200 + $0xfb8] sm:$0xff]
        %v752 = vld [vmem:[%s200 + $0xfc0] sm:$0xff]
        %v753 = vld [vmem:[%s200 + $0xfc8] sm:$0xff]
        %v754 = vld [vmem:[%s200 + $0xfd0] sm:$0xff]
        %v755 = vld [vmem:[%s200 + $0xfd8] sm:$0xff]
        %v756 = vld [vmem:[%s200 + $0xfe0] sm:$0xff]
        %v757 = vld [vmem:[%s200 + $0xfe8] sm:$0xff]
        %v758 = vld [vmem:[%s200 + $0xff0] sm:$0xff]
        %v759 = vld [vmem:[%s200 + $0xff8] sm:$0xff]
        %v760 = vld [vmem:[%s200 + $0x1000] sm:$0xff]
        %v761 = vld [vmem:[%s200 + $0x1008] sm:$0xff]
        %v762 = vld [vmem:[%s200 + $0x1010] sm:$0xff]
        %v763 = vld [vmem:[%s200 + $0x1018] sm:$0xff]
        %v764 = vld [vmem:[%s200 + $0x1020] sm:$0xff]
        %v765 = vld [vmem:[%s200 + $0x1028] sm:$0xff]
        %v766 = vld [vmem:[%s200 + $0x1030] sm:$0xff]
        %v767 = vld [vmem:[%s200 + $0x1038] sm:$0xff]
        %v768 = vld [vmem:[%s200 + $0x1040] sm:$0xff]
        %v769 = vld [vmem:[%s200 + $0x1048] sm:$0xff]
        %v770 = vld [vmem:[%s200 + $0x1050] sm:$0xff]
        %v771 = vld [vmem:[%s200 + $0x1058] sm:$0xff]
        %v772 = vld [vmem:[%s200 + $0x1060] sm:$0xff]
        %v773 = vld [vmem:[%s200 + $0x1068] sm:$0xff]
        %v774 = vld [vmem:[%s200 + $0x1070] sm:$0xff]
        %v775 = vld [vmem:[%s200 + $0x1078] sm:$0xff]
        %v776 = vld [vmem:[%s200 + $0x1080] sm:$0xff]
        %v777 = vld [vmem:[%s200 + $0x1088] sm:$0xff]
        %v778 = vld [vmem:[%s200 + $0x1090] sm:$0xff]
        %v779 = vld [vmem:[%s200 + $0x1098] sm:$0xff]
        %v780 = vld [vmem:[%s200 + $0x10a0] sm:$0xff]
        %v781 = vld [vmem:[%s200 + $0x10a8] sm:$0xff]
        %v782 = vld [vmem:[%s200 + $0x10b0] sm:$0xff]
        %v783 = vld [vmem:[%s200 + $0x10b8] sm:$0xff]
        %v784 = vld [vmem:[%s200 + $0x10c0] sm:$0xff]
        %v785 = vld [vmem:[%s200 + $0x10c8] sm:$0xff]
        %v786 = vld [vmem:[%s200 + $0x10d0] sm:$0xff]
        %v787 = vld [vmem:[%s200 + $0x10d8] sm:$0xff]
        %v788 = vld [vmem:[%s200 + $0x10e0] sm:$0xff]
        %v789 = vld [vmem:[%s200 + $0x10e8] sm:$0xff]
        %v790 = vld [vmem:[%s200 + $0x10f0] sm:$0xff]
        %v791 = vld [vmem:[%s200 + $0x10f8] sm:$0xff]
        %v792 = vld [vmem:[%s200 + $0x1100] sm:$0xff]
        %v793 = vld [vmem:[%s200 + $0x1108] sm:$0xff]
        %v794 = vld [vmem:[%s200 + $0x1110] sm:$0xff]
        %v795 = vld [vmem:[%s200 + $0x1118] sm:$0xff]
        %v796 = vld [vmem:[%s200 + $0x1120] sm:$0xff]
        %v797 = vld [vmem:[%s200 + $0x1128] sm:$0xff]
        %v798 = vld [vmem:[%s200 + $0x1130] sm:$0xff]
        %v799 = vld [vmem:[%s200 + $0x1138] sm:$0xff]
        %v800 = vld [vmem:[%s200 + $0x1140] sm:$0xff]
        %v801 = vld [vmem:[%s200 + $0x1148] sm:$0xff]
        %v802 = vld [vmem:[%s200 + $0x1150] sm:$0xff]
        %v803 = vld [vmem:[%s200 + $0x1158] sm:$0xff]
        %v804 = vld [vmem:[%s200 + $0x1160] sm:$0xff]
        %v805 = vld [vmem:[%s200 + $0x1168] sm:$0xff]
        %v806 = vld [vmem:[%s200 + $0x1170] sm:$0xff]
        %v807 = vld [vmem:[%s200 + $0x1178] sm:$0xff]
        %v808 = vld [vmem:[%s200 + $0x1180] sm:$0xff]
        %v809 = vld [vmem:[%s200 + $0x1188] sm:$0xff]
        %v810 = vld [vmem:[%s200 + $0x1190] sm:$0xff]
        %v811 = vld [vmem:[%s200 + $0x1198] sm:$0xff]
        %v812 = vld [vmem:[%s200 + $0x11a0] sm:$0xff]
        %v813 = vld [vmem:[%s200 + $0x11a8] sm:$0xff]
        %v814 = vld [vmem:[%s200 + $0x11b0] sm:$0xff]
        %v815 = vld [vmem:[%s200 + $0x11b8] sm:$0xff]
        %v816 = vld [vmem:[%s200 + $0x11c0] sm:$0xff]
        %v817 = vld [vmem:[%s200 + $0x11c8] sm:$0xff]
        %v818 = vld [vmem:[%s200 + $0x11d0] sm:$0xff]
        %v819 = vld [vmem:[%s200 + $0x11d8] sm:$0xff]
        %v820 = vld [vmem:[%s200 + $0x11e0] sm:$0xff]
        %v821 = vld [vmem:[%s200 + $0x11e8] sm:$0xff]
        %v822 = vld [vmem:[%s200 + $0x11f0] sm:$0xff]
        %v823 = vld [vmem:[%s200 + $0x11f8] sm:$0xff]
        %v824 = vld [vmem:[%s200 + $0x1200] sm:$0xff]
        %v825 = vld [vmem:[%s200 + $0x1208] sm:$0xff]
        %v826 = vld [vmem:[%s200 + $0x1210] sm:$0xff]
        %v827 = vld [vmem:[%s200 + $0x1218] sm:$0xff]
        %v828 = vld [vmem:[%s200 + $0x1220] sm:$0xff]
        %v829 = vld [vmem:[%s200 + $0x1228] sm:$0xff]
        %v830 = vld [vmem:[%s200 + $0x1230] sm:$0xff]
        %v831 = vld [vmem:[%s200 + $0x1238] sm:$0xff]
        %v832 = vld [vmem:[%s200 + $0x1240] sm:$0xff]
        %v833 = vld [vmem:[%s200 + $0x1248] sm:$0xff]
        %v834 = vld [vmem:[%s200 + $0x1250] sm:$0xff]
        %v835 = vld [vmem:[%s200 + $0x1258] sm:$0xff]
        %v836 = vld [vmem:[%s200 + $0x1260] sm:$0xff]
        %v837 = vld [vmem:[%s200 + $0x1268] sm:$0xff]
        %v838 = vld [vmem:[%s200 + $0x1270] sm:$0xff]
        %v839 = vld [vmem:[%s200 + $0x1278] sm:$0xff]
        %v840 = vld [vmem:[%s200 + $0x1280] sm:$0xff]
        %v841 = vld [vmem:[%s200 + $0x1288] sm:$0xff]
        %v842 = vld [vmem:[%s200 + $0x1290] sm:$0xff]
        %v843 = vld [vmem:[%s200 + $0x1298] sm:$0xff]
        %v844 = vld [vmem:[%s200 + $0x12a0] sm:$0xff]
        %v845 = vld [vmem:[%s200 + $0x12a8] sm:$0xff]
        %v846 = vld [vmem:[%s200 + $0x12b0] sm:$0xff]
        %v847 = vld [vmem:[%s200 + $0x12b8] sm:$0xff]
        %v848 = vld [vmem:[%s200 + $0x12c0] sm:$0xff]
        %v849 = vld [vmem:[%s200 + $0x12c8] sm:$0xff]
        %v850 = vld [vmem:[%s200 + $0x12d0] sm:$0xff]
        %v851 = vld [vmem:[%s200 + $0x12d8] sm:$0xff]
        %v852 = vld [vmem:[%s200 + $0x12e0] sm:$0xff]
        %v853 = vld [vmem:[%s200 + $0x12e8] sm:$0xff]
        %v854 = vld [vmem:[%s200 + $0x12f0] sm:$0xff]
        %v855 = vld [vmem:[%s200 + $0x12f8] sm:$0xff]
        %v856 = vld [vmem:[%s200 + $0x1300] sm:$0xff]
        %v857 = vld [vmem:[%s200 + $0x1308] sm:$0xff]
        %v858 = vld [vmem:[%s200 + $0x1310] sm:$0xff]
        %v859 = vld [vmem:[%s200 + $0x1318] sm:$0xff]
        %v860 = vld [vmem:[%s200 + $0x1320] sm:$0xff]
        %v861 = vld [vmem:[%s200 + $0x1328] sm:$0xff]
        %v862 = vld [vmem:[%s200 + $0x1330] sm:$0xff]
        %v863 = vld [vmem:[%s200 + $0x1338] sm:$0xff]
        %v864 = vld [vmem:[%s200 + $0x1340] sm:$0xff]
        %v865 = vld [vmem:[%s200 + $0x1348] sm:$0xff]
        %v866 = vld [vmem:[%s200 + $0x1350] sm:$0xff]
        %v867 = vld [vmem:[%s200 + $0x1358] sm:$0xff]
        %v868 = vld [vmem:[%s200 + $0x1360] sm:$0xff]
        %v869 = vld [vmem:[%s200 + $0x1368] sm:$0xff]
        %v870 = vld [vmem:[%s200 + $0x1370] sm:$0xff]
        %v871 = vld [vmem:[%s200 + $0x1378] sm:$0xff]
        %v872 = vld [vmem:[%s200 + $0x1380] sm:$0xff]
        %v873 = vld [vmem:[%s200 + $0x1388] sm:$0xff]
        %v874 = vld [vmem:[%s200 + $0x1390] sm:$0xff]
        %v875 = vld [vmem:[%s200 + $0x1398] sm:$0xff]
        %v876 = vld [vmem:[%s200 + $0x13a0] sm:$0xff]
        %v877 = vld [vmem:[%s200 + $0x13a8] sm:$0xff]
        %v878 = vld [vmem:[%s200 + $0x13b0] sm:$0xff]
        %v879 = vld [vmem:[%s200 + $0x13b8] sm:$0xff]
        %v880 = vld [vmem:[%s200 + $0x13c0] sm:$0xff]
        %v881 = vld [vmem:[%s200 + $0x13c8] sm:$0xff]
        %v882 = vld [vmem:[%s200 + $0x13d0] sm:$0xff]
        %v883 = vld [vmem:[%s200 + $0x13d8] sm:$0xff]
        %v884 = vld [vmem:[%s200 + $0x13e0] sm:$0xff]
        %v885 = vld [vmem:[%s200 + $0x13e8] sm:$0xff]
        %v886 = vld [vmem:[%s200 + $0x13f0] sm:$0xff]
        %v887 = vld [vmem:[%s200 + $0x13f8] sm:$0xff]
        %v888 = vld [vmem:[%s200 + $0x1400] sm:$0xff]
        %v889 = vld [vmem:[%s200 + $0x1408] sm:$0xff]
        %v890 = vld [vmem:[%s200 + $0x1410] sm:$0xff]
        %v891 = vld [vmem:[%s200 + $0x1418] sm:$0xff]
        %v892 = vld [vmem:[%s200 + $0x1420] sm:$0xff]
        %v893 = vld [vmem:[%s200 + $0x1428] sm:$0xff]
        %v894 = vld [vmem:[%s200 + $0x1430] sm:$0xff]
        %v895 = vld [vmem:[%s200 + $0x1438] sm:$0xff]
        %v896 = vld [vmem:[%s200 + $0x1440] sm:$0xff]
        %v897 = vld [vmem:[%s200 + $0x1448] sm:$0xff]
        %v898 = vld [vmem:[%s200 + $0x1450] sm:$0xff]
        %v899 = vld [vmem:[%s200 + $0x1458] sm:$0xff]
        %v900 = vld [vmem:[%s200 + $0x1460] sm:$0xff]
        %v901 = vld [vmem:[%s200 + $0x1468] sm:$0xff]
        %v902 = vld [vmem:[%s200 + $0x1470] sm:$0xff]
        %v903 = vld [vmem:[%s200 + $0x1478] sm:$0xff]
        %v904 = vld [vmem:[%s200 + $0x1480] sm:$0xff]
        %v905 = vld [vmem:[%s200 + $0x1488] sm:$0xff]
        %v906 = vld [vmem:[%s200 + $0x1490] sm:$0xff]
        %v907 = vld [vmem:[%s200 + $0x1498] sm:$0xff]
        %v908 = vld [vmem:[%s200 + $0x14a0] sm:$0xff]
        %v909 = vld [vmem:[%s200 + $0x14a8] sm:$0xff]
        %v910 = vld [vmem:[%s200 + $0x14b0] sm:$0xff]
        %v911 = vld [vmem:[%s200 + $0x14b8] sm:$0xff]
        %v912 = vld [vmem:[%s200 + $0x14c0] sm:$0xff]
        %v913 = vld [vmem:[%s200 + $0x14c8] sm:$0xff]
        %v914 = vld [vmem:[%s200 + $0x14d0] sm:$0xff]
        %v915 = vld [vmem:[%s200 + $0x14d8] sm:$0xff]
        %v916 = vld [vmem:[%s200 + $0x14e0] sm:$0xff]
        %v917 = vld [vmem:[%s200 + $0x14e8] sm:$0xff]
        %v918 = vld [vmem:[%s200 + $0x14f0] sm:$0xff]
        %v919 = vld [vmem:[%s200 + $0x14f8] sm:$0xff]
        %v920 = vld [vmem:[%s200 + $0x1500] sm:$0xff]
        %v921 = vld [vmem:[%s200 + $0x1508] sm:$0xff]
        %v922 = vld [vmem:[%s200 + $0x1510] sm:$0xff]
        %v923 = vld [vmem:[%s200 + $0x1518] sm:$0xff]
        %v924 = vld [vmem:[%s200 + $0x1520] sm:$0xff]
        %v925 = vld [vmem:[%s200 + $0x1528] sm:$0xff]
        %v926 = vld [vmem:[%s200 + $0x1530] sm:$0xff]
        %v927 = vld [vmem:[%s200 + $0x1538] sm:$0xff]
        %v928 = vld [vmem:[%s200 + $0x1540] sm:$0xff]
        %v929 = vld [vmem:[%s200 + $0x1548] sm:$0xff]
        %v930 = vld [vmem:[%s200 + $0x1550] sm:$0xff]
        %v931 = vld [vmem:[%s200 + $0x1558] sm:$0xff]
        %v932 = vld [vmem:[%s200 + $0x1560] sm:$0xff]
        %v933 = vld [vmem:[%s200 + $0x1568] sm:$0xff]
        %v934 = vld [vmem:[%s200 + $0x1570] sm:$0xff]
        %v935 = vld [vmem:[%s200 + $0x1578] sm:$0xff]
        %v936 = vld [vmem:[%s200 + $0x1580] sm:$0xff]
        %v937 = vld [vmem:[%s200 + $0x1588] sm:$0xff]
        %v938 = vld [vmem:[%s200 + $0x1590] sm:$0xff]
        %v939 = vld [vmem:[%s200 + $0x1598] sm:$0xff]
        %v940 = vld [vmem:[%s200 + $0x15a0] sm:$0xff]
        %v941 = vld [vmem:[%s200 + $0x15a8] sm:$0xff]
        %v942 = vld [vmem:[%s200 + $0x15b0] sm:$0xff]
        %v943 = vld [vmem:[%s200 + $0x15b8] sm:$0xff]
        %v944 = vld [vmem:[%s200 + $0x15c0] sm:$0xff]
        %v945 = vld [vmem:[%s200 + $0x15c8] sm:$0xff]
        %v946 = vld [vmem:[%s200 + $0x15d0] sm:$0xff]
        %v947 = vld [vmem:[%s200 + $0x15d8] sm:$0xff]
        %v948 = vld [vmem:[%s200 + $0x15e0] sm:$0xff]
        %v949 = vld [vmem:[%s200 + $0x15e8] sm:$0xff]
        %v950 = vld [vmem:[%s200 + $0x15f0] sm:$0xff]
        %v951 = vld [vmem:[%s200 + $0x15f8] sm:$0xff]
        %v952 = vld [vmem:[%s200 + $0x1600] sm:$0xff]
        %v953 = vld [vmem:[%s200 + $0x1608] sm:$0xff]
        %v954 = vld [vmem:[%s200 + $0x1610] sm:$0xff]
        %v955 = vld [vmem:[%s200 + $0x1618] sm:$0xff]
        %v956 = vld [vmem:[%s200 + $0x1620] sm:$0xff]
        %v957 = vld [vmem:[%s200 + $0x1628] sm:$0xff]
        %v958 = vld [vmem:[%s200 + $0x1630] sm:$0xff]
        %v959 = vld [vmem:[%s200 + $0x1638] sm:$0xff]
        %v960 = vld [vmem:[%s200 + $0x1640] sm:$0xff]
        %v961 = vld [vmem:[%s200 + $0x1648] sm:$0xff]
        %v962 = vld [vmem:[%s200 + $0x1650] sm:$0xff]
        %v963 = vld [vmem:[%s200 + $0x1658] sm:$0xff]
        %v964 = vld [vmem:[%s200 + $0x1660] sm:$0xff]
        %v965 = vld [vmem:[%s200 + $0x1668] sm:$0xff]
        %v966 = vld [vmem:[%s200 + $0x1670] sm:$0xff]
        %v967 = vld [vmem:[%s200 + $0x1678] sm:$0xff]
        %v968 = vld [vmem:[%s200 + $0x1680] sm:$0xff]
        %v969 = vld [vmem:[%s200 + $0x1688] sm:$0xff]
        %v970 = vld [vmem:[%s200 + $0x1690] sm:$0xff]
        %v971 = vld [vmem:[%s200 + $0x1698] sm:$0xff]
        %v972 = vld [vmem:[%s200 + $0x16a0] sm:$0xff]
        %v973 = vld [vmem:[%s200 + $0x16a8] sm:$0xff]
        %v974 = vld [vmem:[%s200 + $0x16b0] sm:$0xff]
        %v975 = vld [vmem:[%s200 + $0x16b8] sm:$0xff]
        %v976 = vld [vmem:[%s200 + $0x16c0] sm:$0xff]
        %v977 = vld [vmem:[%s200 + $0x16c8] sm:$0xff]
        %v978 = vld [vmem:[%s200 + $0x16d0] sm:$0xff]
        %v979 = vld [vmem:[%s200 + $0x16d8] sm:$0xff]
        %v980 = vld [vmem:[%s200 + $0x16e0] sm:$0xff]
        %v981 = vld [vmem:[%s200 + $0x16e8] sm:$0xff]
        %v982 = vld [vmem:[%s200 + $0x16f0] sm:$0xff]
        %v983 = vld [vmem:[%s200 + $0x16f8] sm:$0xff]
        %v984 = vld [vmem:[%s200 + $0x1700] sm:$0xff]
        %v985 = vld [vmem:[%s200 + $0x1708] sm:$0xff]
        %v986 = vld [vmem:[%s200 + $0x1710] sm:$0xff]
        %v987 = vld [vmem:[%s200 + $0x1718] sm:$0xff]
        %v988 = vld [vmem:[%s200 + $0x1720] sm:$0xff]
        %v989 = vld [vmem:[%s200 + $0x1728] sm:$0xff]
        %v990 = vld [vmem:[%s200 + $0x1730] sm:$0xff]
        %v991 = vld [vmem:[%s200 + $0x1738] sm:$0xff]
        %v992 = vld [vmem:[%s200 + $0x1740] sm:$0xff]
        %v993 = vld [vmem:[%s200 + $0x1748] sm:$0xff]
        %v994 = vld [vmem:[%s200 + $0x1750] sm:$0xff]
        %v995 = vld [vmem:[%s200 + $0x1758] sm:$0xff]
        %v996 = vld [vmem:[%s200 + $0x1760] sm:$0xff]
        %v997 = vld [vmem:[%s200 + $0x1768] sm:$0xff]
        %v998 = vld [vmem:[%s200 + $0x1770] sm:$0xff]
        %v999 = vld [vmem:[%s200 + $0x1778] sm:$0xff]
        %v1000 = vld [vmem:[%s200 + $0x1780] sm:$0xff]
        %v1001 = vld [vmem:[%s200 + $0x1788] sm:$0xff]
        %v1002 = vld [vmem:[%s200 + $0x1790] sm:$0xff]
        %v1003 = vld [vmem:[%s200 + $0x1798] sm:$0xff]
        %v1004 = vld [vmem:[%s200 + $0x17a0] sm:$0xff]
        %v1005 = vld [vmem:[%s200 + $0x17a8] sm:$0xff]
        %v1006 = vld [vmem:[%s200 + $0x17b0] sm:$0xff]
        %v1007 = vld [vmem:[%s200 + $0x17b8] sm:$0xff]
        %v1008 = vld [vmem:[%s200 + $0x17c0] sm:$0xff]
        %v1009 = vld [vmem:[%s200 + $0x17c8] sm:$0xff]
        %v1010 = vld [vmem:[%s200 + $0x17d0] sm:$0xff]
        %v1011 = vld [vmem:[%s200 + $0x17d8] sm:$0xff]
        %v1012 = vld [vmem:[%s200 + $0x17e0] sm:$0xff]
        %v1013 = vld [vmem:[%s200 + $0x17e8] sm:$0xff]
        %v1014 = vld [vmem:[%s200 + $0x17f0] sm:$0xff]
        %v1015 = vld [vmem:[%s200 + $0x17f8] sm:$0xff]
        %v1016 = vld [vmem:[%s200 + $0x1800] sm:$0xff]
        %v1017 = vld [vmem:[%s200 + $0x1808] sm:$0xff]
        %v1018 = vld [vmem:[%s200 + $0x1810] sm:$0xff]
        %v1019 = vld [vmem:[%s200 + $0x1818] sm:$0xff]
        %v1020 = vld [vmem:[%s200 + $0x1820] sm:$0xff]
        %v1021 = vld [vmem:[%s200 + $0x1828] sm:$0xff]
        %v1022 = vld [vmem:[%s200 + $0x1830] sm:$0xff]
        %v1023 = vld [vmem:[%s200 + $0x1838] sm:$0xff]
        %v1024 = vld [vmem:[%s200 + $0x1840] sm:$0xff]
        %v1025 = vld [vmem:[%s200 + $0x1848] sm:$0xff]
        %v1026 = vld [vmem:[%s200 + $0x1850] sm:$0xff]
        %v1027 = vld [vmem:[%s200 + $0x1858] sm:$0xff]
        %v1028 = vld [vmem:[%s200 + $0x1860] sm:$0xff]
        %v1029 = vld [vmem:[%s200 + $0x1868] sm:$0xff]
        %v1030 = vld [vmem:[%s200 + $0x1870] sm:$0xff]
        %v1031 = vld [vmem:[%s200 + $0x1878] sm:$0xff]
        %v1032 = vld [vmem:[%s200 + $0x1880] sm:$0xff]
        %v1033 = vld [vmem:[%s200 + $0x1888] sm:$0xff]
        %v1034 = vld [vmem:[%s200 + $0x1890] sm:$0xff]
        %v1035 = vld [vmem:[%s200 + $0x1898] sm:$0xff]
        %v1036 = vld [vmem:[%s200 + $0x18a0] sm:$0xff]
        %v1037 = vld [vmem:[%s200 + $0x18a8] sm:$0xff]
        %v1038 = vld [vmem:[%s200 + $0x18b0] sm:$0xff]
        %v1039 = vld [vmem:[%s200 + $0x18b8] sm:$0xff]
        %v1040 = vld [vmem:[%s200 + $0x18c0] sm:$0xff]
        %v1041 = vld [vmem:[%s200 + $0x18c8] sm:$0xff]
        %v1042 = vld [vmem:[%s200 + $0x18d0] sm:$0xff]
        %v1043 = vld [vmem:[%s200 + $0x18d8] sm:$0xff]
        %v1044 = vld [vmem:[%s200 + $0x18e0] sm:$0xff]
        %v1045 = vld [vmem:[%s200 + $0x18e8] sm:$0xff]
        %v1046 = vld [vmem:[%s200 + $0x18f0] sm:$0xff]
        %v1047 = vld [vmem:[%s200 + $0x18f8] sm:$0xff]
        %v1048 = vld [vmem:[%s200 + $0x1900] sm:$0xff]
        %v1049 = vld [vmem:[%s200 + $0x1908] sm:$0xff]
        %v1050 = vld [vmem:[%s200 + $0x1910] sm:$0xff]
        %v1051 = vld [vmem:[%s200 + $0x1918] sm:$0xff]
        %v1052 = vld [vmem:[%s200 + $0x1920] sm:$0xff]
        %v1053 = vld [vmem:[%s200 + $0x1928] sm:$0xff]
        %v1054 = vld [vmem:[%s200 + $0x1930] sm:$0xff]
        %v1055 = vld [vmem:[%s200 + $0x1938] sm:$0xff]
        %v1056 = vld [vmem:[%s200 + $0x1940] sm:$0xff]
        %v1057 = vld [vmem:[%s200 + $0x1948] sm:$0xff]
        %v1058 = vld [vmem:[%s200 + $0x1950] sm:$0xff]
        %v1059 = vld [vmem:[%s200 + $0x1958] sm:$0xff]
        %v1060 = vld [vmem:[%s200 + $0x1960] sm:$0xff]
        %v1061 = vld [vmem:[%s200 + $0x1968] sm:$0xff]
        %v1062 = vld [vmem:[%s200 + $0x1970] sm:$0xff]
        %v1063 = vld [vmem:[%s200 + $0x1978] sm:$0xff]
        %v1064 = vld [vmem:[%s200 + $0x1980] sm:$0xff]
        %v1065 = vld [vmem:[%s200 + $0x1988] sm:$0xff]
        %v1066 = vld [vmem:[%s200 + $0x1990] sm:$0xff]
        %v1067 = vld [vmem:[%s200 + $0x1998] sm:$0xff]
        %v1068 = vld [vmem:[%s200 + $0x19a0] sm:$0xff]
        %v1069 = vld [vmem:[%s200 + $0x19a8] sm:$0xff]
        %v1070 = vld [vmem:[%s200 + $0x19b0] sm:$0xff]
        %v1071 = vld [vmem:[%s200 + $0x19b8] sm:$0xff]
        %v1072 = vld [vmem:[%s200 + $0x19c0] sm:$0xff]
        %v1073 = vld [vmem:[%s200 + $0x19c8] sm:$0xff]
        %v1074 = vld [vmem:[%s200 + $0x19d0] sm:$0xff]
        %v1075 = vld [vmem:[%s200 + $0x19d8] sm:$0xff]
        %v1076 = vld [vmem:[%s200 + $0x19e0] sm:$0xff]
        %v1077 = vld [vmem:[%s200 + $0x19e8] sm:$0xff]
        %v1078 = vld [vmem:[%s200 + $0x19f0] sm:$0xff]
        %v1079 = vld [vmem:[%s200 + $0x19f8] sm:$0xff]
        %v1080 = vld [vmem:[%s200 + $0x1a00] sm:$0xff]
        %v1081 = vld [vmem:[%s200 + $0x1a08] sm:$0xff]
        %v1082 = vld [vmem:[%s200 + $0x1a10] sm:$0xff]
        %v1083 = vld [vmem:[%s200 + $0x1a18] sm:$0xff]
        %v1084 = vld [vmem:[%s200 + $0x1a20] sm:$0xff]
        %v1085 = vld [vmem:[%s200 + $0x1a28] sm:$0xff]
        %v1086 = vld [vmem:[%s200 + $0x1a30] sm:$0xff]
        %v1087 = vld [vmem:[%s200 + $0x1a38] sm:$0xff]
        %v1088 = vld [vmem:[%s200 + $0x1a40] sm:$0xff]
        %v1089 = vld [vmem:[%s200 + $0x1a48] sm:$0xff]
        %v1090 = vld [vmem:[%s200 + $0x1a50] sm:$0xff]
        %v1091 = vld [vmem:[%s200 + $0x1a58] sm:$0xff]
        %v1092 = vld [vmem:[%s200 + $0x1a60] sm:$0xff]
        %v1093 = vld [vmem:[%s200 + $0x1a68] sm:$0xff]
        %v1094 = vld [vmem:[%s200 + $0x1a70] sm:$0xff]
        %v1095 = vld [vmem:[%s200 + $0x1a78] sm:$0xff]
        %v1096 = vld [vmem:[%s200 + $0x1a80] sm:$0xff]
        %v1097 = vld [vmem:[%s200 + $0x1a88] sm:$0xff]
        %v1098 = vld [vmem:[%s200 + $0x1a90] sm:$0xff]
        %v1099 = vld [vmem:[%s200 + $0x1a98] sm:$0xff]
        %v1100 = vld [vmem:[%s200 + $0x1aa0] sm:$0xff]
        %v1101 = vld [vmem:[%s200 + $0x1aa8] sm:$0xff]
        %v1102 = vld [vmem:[%s200 + $0x1ab0] sm:$0xff]
        %v1103 = vld [vmem:[%s200 + $0x1ab8] sm:$0xff]
        %v1104 = vld [vmem:[%s200 + $0x1ac0] sm:$0xff]
        %v1105 = vld [vmem:[%s200 + $0x1ac8] sm:$0xff]
        %v1106 = vld [vmem:[%s200 + $0x1ad0] sm:$0xff]
        %v1107 = vld [vmem:[%s200 + $0x1ad8] sm:$0xff]
        %v1108 = vld [vmem:[%s200 + $0x1ae0] sm:$0xff]
        %v1109 = vld [vmem:[%s200 + $0x1ae8] sm:$0xff]
        %v1110 = vld [vmem:[%s200 + $0x1af0] sm:$0xff]
        %v1111 = vld [vmem:[%s200 + $0x1af8] sm:$0xff]
        %v1112 = vld [vmem:[%s200 + $0x1b00] sm:$0xff]
        %v1113 = vld [vmem:[%s200 + $0x1b08] sm:$0xff]
        %v1114 = vld [vmem:[%s200 + $0x1b10] sm:$0xff]
        %v1115 = vld [vmem:[%s200 + $0x1b18] sm:$0xff]
        %v1116 = vld [vmem:[%s200 + $0x1b20] sm:$0xff]
        %v1117 = vld [vmem:[%s200 + $0x1b28] sm:$0xff]
        %v1118 = vld [vmem:[%s200 + $0x1b30] sm:$0xff]
        %v1119 = vld [vmem:[%s200 + $0x1b38] sm:$0xff]
        %v1120 = vld [vmem:[%s200 + $0x1b40] sm:$0xff]
        %v1121 = vld [vmem:[%s200 + $0x1b48] sm:$0xff]
        %v1122 = vld [vmem:[%s200 + $0x1b50] sm:$0xff]
        %v1123 = vld [vmem:[%s200 + $0x1b58] sm:$0xff]
        %v1124 = vld [vmem:[%s200 + $0x1b60] sm:$0xff]
        %v1125 = vld [vmem:[%s200 + $0x1b68] sm:$0xff]
        %v1126 = vld [vmem:[%s200 + $0x1b70] sm:$0xff]
        %v1127 = vld [vmem:[%s200 + $0x1b78] sm:$0xff]
        %v1128 = vld [vmem:[%s200 + $0x1b80] sm:$0xff]
        %v1129 = vld [vmem:[%s200 + $0x1b88] sm:$0xff]
        %v1130 = vld [vmem:[%s200 + $0x1b90] sm:$0xff]
        %v1131 = vld [vmem:[%s200 + $0x1b98] sm:$0xff]
        %v1132 = vld [vmem:[%s200 + $0x1ba0] sm:$0xff]
        %v1133 = vld [vmem:[%s200 + $0x1ba8] sm:$0xff]
        %v1134 = vld [vmem:[%s200 + $0x1bb0] sm:$0xff]
        %v1135 = vld [vmem:[%s200 + $0x1bb8] sm:$0xff]
        %v1136 = vld [vmem:[%s200 + $0x1bc0] sm:$0xff]
        %v1137 = vld [vmem:[%s200 + $0x1bc8] sm:$0xff]
        %v1138 = vld [vmem:[%s200 + $0x1bd0] sm:$0xff]
        %v1139 = vld [vmem:[%s200 + $0x1bd8] sm:$0xff]
        %v1140 = vld [vmem:[%s200 + $0x1be0] sm:$0xff]
        %v1141 = vld [vmem:[%s200 + $0x1be8] sm:$0xff]
        %v1142 = vld [vmem:[%s200 + $0x1bf0] sm:$0xff]
        %v1143 = vld [vmem:[%s200 + $0x1bf8] sm:$0xff]
        %v1144 = vld [vmem:[%s200 + $0x1c00] sm:$0xff]
        %v1145 = vld [vmem:[%s200 + $0x1c08] sm:$0xff]
        %v1146 = vld [vmem:[%s200 + $0x1c10] sm:$0xff]
        %v1147 = vld [vmem:[%s200 + $0x1c18] sm:$0xff]
        %v1148 = vld [vmem:[%s200 + $0x1c20] sm:$0xff]
        %v1149 = vld [vmem:[%s200 + $0x1c28] sm:$0xff]
        %v1150 = vld [vmem:[%s200 + $0x1c30] sm:$0xff]
        %v1151 = vld [vmem:[%s200 + $0x1c38] sm:$0xff]
        %v1152 = vld [vmem:[%s200 + $0x1c40] sm:$0xff]
        %v1153 = vld [vmem:[%s200 + $0x1c48] sm:$0xff]
        %v1154 = vld [vmem:[%s200 + $0x1c50] sm:$0xff]
        %v1155 = vld [vmem:[%s200 + $0x1c58] sm:$0xff]
        %v1156 = vld [vmem:[%s200 + $0x1c60] sm:$0xff]
        %v1157 = vld [vmem:[%s200 + $0x1c68] sm:$0xff]
        %v1158 = vld [vmem:[%s200 + $0x1c70] sm:$0xff]
        %v1159 = vld [vmem:[%s200 + $0x1c78] sm:$0xff]
        %v1160 = vld [vmem:[%s200 + $0x1c80] sm:$0xff]
        %v1161 = vld [vmem:[%s200 + $0x1c88] sm:$0xff]
        %v1162 = vld [vmem:[%s200 + $0x1c90] sm:$0xff]
        %v1163 = vld [vmem:[%s200 + $0x1c98] sm:$0xff]
        %v1164 = vld [vmem:[%s200 + $0x1ca0] sm:$0xff]
        %v1165 = vld [vmem:[%s200 + $0x1ca8] sm:$0xff]
        %v1166 = vld [vmem:[%s200 + $0x1cb0] sm:$0xff]
        %v1167 = vld [vmem:[%s200 + $0x1cb8] sm:$0xff]
        %v1168 = vld [vmem:[%s200 + $0x1cc0] sm:$0xff]
        %v1169 = vld [vmem:[%s200 + $0x1cc8] sm:$0xff]
        %v1170 = vld [vmem:[%s200 + $0x1cd0] sm:$0xff]
        %v1171 = vld [vmem:[%s200 + $0x1cd8] sm:$0xff]
        %v1172 = vld [vmem:[%s200 + $0x1ce0] sm:$0xff]
        %v1173 = vld [vmem:[%s200 + $0x1ce8] sm:$0xff]
        %v1174 = vld [vmem:[%s200 + $0x1cf0] sm:$0xff]
        %v1175 = vld [vmem:[%s200 + $0x1cf8] sm:$0xff]
        %v1176 = vld [vmem:[%s200 + $0x1d00] sm:$0xff]
        %v1177 = vld [vmem:[%s200 + $0x1d08] sm:$0xff]
        %v1178 = vld [vmem:[%s200 + $0x1d10] sm:$0xff]
        %v1179 = vld [vmem:[%s200 + $0x1d18] sm:$0xff]
        %v1180 = vld [vmem:[%s200 + $0x1d20] sm:$0xff]
        %v1181 = vld [vmem:[%s200 + $0x1d28] sm:$0xff]
        %v1182 = vld [vmem:[%s200 + $0x1d30] sm:$0xff]
        %v1183 = vld [vmem:[%s200 + $0x1d38] sm:$0xff]
        %v1184 = vld [vmem:[%s200 + $0x1d40] sm:$0xff]
        %v1185 = vld [vmem:[%s200 + $0x1d48] sm:$0xff]
        %v1186 = vld [vmem:[%s200 + $0x1d50] sm:$0xff]
        %v1187 = vld [vmem:[%s200 + $0x1d58] sm:$0xff]
        %v1188 = vld [vmem:[%s200 + $0x1d60] sm:$0xff]
        %v1189 = vld [vmem:[%s200 + $0x1d68] sm:$0xff]
        %v1190 = vld [vmem:[%s200 + $0x1d70] sm:$0xff]
        %v1191 = vld [vmem:[%s200 + $0x1d78] sm:$0xff]
        %v1192 = vld [vmem:[%s200 + $0x1d80] sm:$0xff]
        %v1193 = vld [vmem:[%s200 + $0x1d88] sm:$0xff]
        %v1194 = vld [vmem:[%s200 + $0x1d90] sm:$0xff]
        %v1195 = vld [vmem:[%s200 + $0x1d98] sm:$0xff]
        %v1196 = vld [vmem:[%s200 + $0x1da0] sm:$0xff]
        %v1197 = vld [vmem:[%s200 + $0x1da8] sm:$0xff]
        %v1198 = vld [vmem:[%s200 + $0x1db0] sm:$0xff]
        %v1199 = vld [vmem:[%s200 + $0x1db8] sm:$0xff]
        %v1200 = vld [vmem:[%s200 + $0x1dc0] sm:$0xff]
        %v1201 = vld [vmem:[%s200 + $0x1dc8] sm:$0xff]
        %v1202 = vld [vmem:[%s200 + $0x1dd0] sm:$0xff]
        %v1203 = vld [vmem:[%s200 + $0x1dd8] sm:$0xff]
        %v1204 = vld [vmem:[%s200 + $0x1de0] sm:$0xff]
        %v1205 = vld [vmem:[%s200 + $0x1de8] sm:$0xff]
        %v1206 = vld [vmem:[%s200 + $0x1df0] sm:$0xff]
        %v1207 = vld [vmem:[%s200 + $0x1df8] sm:$0xff]
        %v1208 = vld [vmem:[%s200 + $0x1e00] sm:$0xff]
        %v1209 = vld [vmem:[%s200 + $0x1e08] sm:$0xff]
        %v1210 = vld [vmem:[%s200 + $0x1e10] sm:$0xff]
        %v1211 = vld [vmem:[%s200 + $0x1e18] sm:$0xff]
        %v1212 = vld [vmem:[%s200 + $0x1e20] sm:$0xff]
        %v1213 = vld [vmem:[%s200 + $0x1e28] sm:$0xff]
        %v1214 = vld [vmem:[%s200 + $0x1e30] sm:$0xff]
        %v1215 = vld [vmem:[%s200 + $0x1e38] sm:$0xff]
        %v1216 = vld [vmem:[%s200 + $0x1e40] sm:$0xff]
        %v1217 = vld [vmem:[%s200 + $0x1e48] sm:$0xff]
        %v1218 = vld [vmem:[%s200 + $0x1e50] sm:$0xff]
        %v1219 = vld [vmem:[%s200 + $0x1e58] sm:$0xff]
        %v1220 = vld [vmem:[%s200 + $0x1e60] sm:$0xff]
        %v1221 = vld [vmem:[%s200 + $0x1e68] sm:$0xff]
        %v1222 = vld [vmem:[%s200 + $0x1e70] sm:$0xff]
        %v1223 = vld [vmem:[%s200 + $0x1e78] sm:$0xff]
        %v1224 = vld [vmem:[%s200 + $0x1e80] sm:$0xff]
        %v1225 = vld [vmem:[%s200 + $0x1e88] sm:$0xff]
        %v1226 = vld [vmem:[%s200 + $0x1e90] sm:$0xff]
        %v1227 = vld [vmem:[%s200 + $0x1e98] sm:$0xff]
        %v1228 = vld [vmem:[%s200 + $0x1ea0] sm:$0xff]
        %v1229 = vld [vmem:[%s200 + $0x1ea8] sm:$0xff]
        %v1230 = vld [vmem:[%s200 + $0x1eb0] sm:$0xff]
        %v1231 = vld [vmem:[%s200 + $0x1eb8] sm:$0xff]
        %v1232 = vld [vmem:[%s200 + $0x1ec0] sm:$0xff]
        %v1233 = vld [vmem:[%s200 + $0x1ec8] sm:$0xff]
        %v1234 = vld [vmem:[%s200 + $0x1ed0] sm:$0xff]
        %v1235 = vld [vmem:[%s200 + $0x1ed8] sm:$0xff]
        %v1236 = vld [vmem:[%s200 + $0x1ee0] sm:$0xff]
        %v1237 = vld [vmem:[%s200 + $0x1ee8] sm:$0xff]
        %v1238 = vld [vmem:[%s200 + $0x1ef0] sm:$0xff]
        %v1239 = vld [vmem:[%s200 + $0x1ef8] sm:$0xff]
        %v1240 = vld [vmem:[%s200 + $0x1f00] sm:$0xff]
        %v1241 = vld [vmem:[%s200 + $0x1f08] sm:$0xff]
        %v1242 = vld [vmem:[%s200 + $0x1f10] sm:$0xff]
        %v1243 = vld [vmem:[%s200 + $0x1f18] sm:$0xff]
        %v1244 = vld [vmem:[%s200 + $0x1f20] sm:$0xff]
        %v1245 = vld [vmem:[%s200 + $0x1f28] sm:$0xff]
        %v1246 = vld [vmem:[%s200 + $0x1f30] sm:$0xff]
        %v1247 = vld [vmem:[%s200 + $0x1f38] sm:$0xff]
        %v1248 = vld [vmem:[%s200 + $0x1f40] sm:$0xff]
        %v1249 = vld [vmem:[%s200 + $0x1f48] sm:$0xff]
        %v1250 = vld [vmem:[%s200 + $0x1f50] sm:$0xff]
        %v1251 = vld [vmem:[%s200 + $0x1f58] sm:$0xff]
        %v1252 = vld [vmem:[%s200 + $0x1f60] sm:$0xff]
        %v1253 = vld [vmem:[%s200 + $0x1f68] sm:$0xff]
        %v1254 = vld [vmem:[%s200 + $0x1f70] sm:$0xff]
        %v1255 = vld [vmem:[%s200 + $0x1f78] sm:$0xff]
        %v1256 = vld [vmem:[%s200 + $0x1f80] sm:$0xff]
        %v1257 = vld [vmem:[%s200 + $0x1f88] sm:$0xff]
        %v1258 = vld [vmem:[%s200 + $0x1f90] sm:$0xff]
        %v1259 = vld [vmem:[%s200 + $0x1f98] sm:$0xff]
        %v1260 = vld [vmem:[%s200 + $0x1fa0] sm:$0xff]
        %v1261 = vld [vmem:[%s200 + $0x1fa8] sm:$0xff]
        %v1262 = vld [vmem:[%s200 + $0x1fb0] sm:$0xff]
        %v1263 = vld [vmem:[%s200 + $0x1fb8] sm:$0xff]
        %v1264 = vld [vmem:[%s200 + $0x1fc0] sm:$0xff]
        %v1265 = vld [vmem:[%s200 + $0x1fc8] sm:$0xff]
        %v1266 = vld [vmem:[%s200 + $0x1fd0] sm:$0xff]
        %v1267 = vld [vmem:[%s200 + $0x1fd8] sm:$0xff]
        %v1268 = vld [vmem:[%s200 + $0x1fe0] sm:$0xff]
        %v1269 = vld [vmem:[%s200 + $0x1fe8] sm:$0xff]
        %v1270 = vld [vmem:[%s200 + $0x1ff0] sm:$0xff]
        %v1271 = vld [vmem:[%s200 + $0x1ff8] sm:$0xff]
        %v1272 = vld [vmem:[%s200 + $0x2000] sm:$0xff]
        %v1273 = vld [vmem:[%s200 + $0x2008] sm:$0xff]
        %v1274 = vld [vmem:[%s200 + $0x2010] sm:$0xff]
        %v1275 = vld [vmem:[%s200 + $0x2018] sm:$0xff]
        %v1276 = vld [vmem:[%s200 + $0x2020] sm:$0xff]
        %v1277 = vld [vmem:[%s200 + $0x2028] sm:$0xff]
        %v1278 = vld [vmem:[%s200 + $0x2030] sm:$0xff]
        %v1279 = vld [vmem:[%s200 + $0x2038] sm:$0xff]
        %v1280 = vld [vmem:[%s200 + $0x2040] sm:$0xff]
        %v1281 = vld [vmem:[%s200 + $0x2048] sm:$0xff]
        %v1282 = vld [vmem:[%s200 + $0x2050] sm:$0xff]
        %v1283 = vld [vmem:[%s200 + $0x2058] sm:$0xff]
        %v1284 = vld [vmem:[%s200 + $0x2060] sm:$0xff]
        %v1285 = vld [vmem:[%s200 + $0x2068] sm:$0xff]
        %v1286 = vld [vmem:[%s200 + $0x2070] sm:$0xff]
        %v1287 = vld [vmem:[%s200 + $0x2078] sm:$0xff]
        %v1288 = vld [vmem:[%s200 + $0x2080] sm:$0xff]
        %v1289 = vld [vmem:[%s200 + $0x2088] sm:$0xff]
        %v1290 = vld [vmem:[%s200 + $0x2090] sm:$0xff]
        %v1291 = vld [vmem:[%s200 + $0x2098] sm:$0xff]
        %v1292 = vld [vmem:[%s200 + $0x20a0] sm:$0xff]
        %v1293 = vld [vmem:[%s200 + $0x20a8] sm:$0xff]
        %v1294 = vld [vmem:[%s200 + $0x20b0] sm:$0xff]
        %v1295 = vld [vmem:[%s200 + $0x20b8] sm:$0xff]
        %v1296 = vld [vmem:[%s200 + $0x20c0] sm:$0xff]
        %v1297 = vld [vmem:[%s200 + $0x20c8] sm:$0xff]
        %v1298 = vld [vmem:[%s200 + $0x20d0] sm:$0xff]
        %v1299 = vld [vmem:[%s200 + $0x20d8] sm:$0xff]
        %v1300 = vld [vmem:[%s200 + $0x20e0] sm:$0xff]
        %v1301 = vld [vmem:[%s200 + $0x20e8] sm:$0xff]
        %v1302 = vld [vmem:[%s200 + $0x20f0] sm:$0xff]
        %v1303 = vld [vmem:[%s200 + $0x20f8] sm:$0xff]
        %v1304 = vld [vmem:[%s200 + $0x2100] sm:$0xff]
        %v1305 = vld [vmem:[%s200 + $0x2108] sm:$0xff]
        %v1306 = vld [vmem:[%s200 + $0x2110] sm:$0xff]
        %v1307 = vld [vmem:[%s200 + $0x2118] sm:$0xff]
        %v1308 = vld [vmem:[%s200 + $0x2120] sm:$0xff]
        %v1309 = vld [vmem:[%s200 + $0x2128] sm:$0xff]
        %v1310 = vld [vmem:[%s200 + $0x2130] sm:$0xff]
        %v1311 = vld [vmem:[%s200 + $0x2138] sm:$0xff]
        %v1312 = vld [vmem:[%s200 + $0x2140] sm:$0xff]
        %v1313 = vld [vmem:[%s200 + $0x2148] sm:$0xff]
        %v1314 = vld [vmem:[%s200 + $0x2150] sm:$0xff]
        %v1315 = vld [vmem:[%s200 + $0x2158] sm:$0xff]
        %v1316 = vld [vmem:[%s200 + $0x2160] sm:$0xff]
        %v1317 = vld [vmem:[%s200 + $0x2168] sm:$0xff]
        %v1318 = vld [vmem:[%s200 + $0x2170] sm:$0xff]
        %v1319 = vld [vmem:[%s200 + $0x2178] sm:$0xff]
        %v1320 = vld [vmem:[%s200 + $0x2180] sm:$0xff]
        %v1321 = vld [vmem:[%s200 + $0x2188] sm:$0xff]
        %v1322 = vld [vmem:[%s200 + $0x2190] sm:$0xff]
        %v1323 = vld [vmem:[%s200 + $0x2198] sm:$0xff]
        %v1324 = vld [vmem:[%s200 + $0x21a0] sm:$0xff]
        %v1325 = vld [vmem:[%s200 + $0x21a8] sm:$0xff]
        %v1326 = vld [vmem:[%s200 + $0x21b0] sm:$0xff]
        %v1327 = vld [vmem:[%s200 + $0x21b8] sm:$0xff]
        %v1328 = vld [vmem:[%s200 + $0x21c0] sm:$0xff]
        %v1329 = vld [vmem:[%s200 + $0x21c8] sm:$0xff]
        %v1330 = vld [vmem:[%s200 + $0x21d0] sm:$0xff]
        %v1331 = vld [vmem:[%s200 + $0x21d8] sm:$0xff]
        %v1332 = vld [vmem:[%s200 + $0x21e0] sm:$0xff]
        %v1333 = vld [vmem:[%s200 + $0x21e8] sm:$0xff]
        %v1334 = vld [vmem:[%s200 + $0x21f0] sm:$0xff]
        %v1335 = vld [vmem:[%s200 + $0x21f8] sm:$0xff]
        %v1336 = vld [vmem:[%s200 + $0x2200] sm:$0xff]
        %v1337 = vld [vmem:[%s200 + $0x2208] sm:$0xff]
        %v1338 = vld [vmem:[%s200 + $0x2210] sm:$0xff]
        %v1339 = vld [vmem:[%s200 + $0x2218] sm:$0xff]
        %v1340 = vld [vmem:[%s200 + $0x2220] sm:$0xff]
        %v1341 = vld [vmem:[%s200 + $0x2228] sm:$0xff]
        %v1342 = vld [vmem:[%s200 + $0x2230] sm:$0xff]
        %v1343 = vld [vmem:[%s200 + $0x2238] sm:$0xff]
        %v1344 = vld [vmem:[%s200 + $0x2240] sm:$0xff]
        %v1345 = vld [vmem:[%s200 + $0x2248] sm:$0xff]
        %v1346 = vld [vmem:[%s200 + $0x2250] sm:$0xff]
        %v1347 = vld [vmem:[%s200 + $0x2258] sm:$0xff]
        %v1348 = vld [vmem:[%s200 + $0x2260] sm:$0xff]
        %v1349 = vld [vmem:[%s200 + $0x2268] sm:$0xff]
        %v1350 = vld [vmem:[%s200 + $0x2270] sm:$0xff]
        %v1351 = vld [vmem:[%s200 + $0x2278] sm:$0xff]
        %v1352 = vld [vmem:[%s200 + $0x2280] sm:$0xff]
        %v1353 = vld [vmem:[%s200 + $0x2288] sm:$0xff]
        %v1354 = vld [vmem:[%s200 + $0x2290] sm:$0xff]
        %v1355 = vld [vmem:[%s200 + $0x2298] sm:$0xff]
        %v1356 = vld [vmem:[%s200 + $0x22a0] sm:$0xff]
        %v1357 = vld [vmem:[%s200 + $0x22a8] sm:$0xff]
        %v1358 = vld [vmem:[%s200 + $0x22b0] sm:$0xff]
        %v1359 = vld [vmem:[%s200 + $0x22b8] sm:$0xff]
        %v1360 = vld [vmem:[%s200 + $0x22c0] sm:$0xff]
        %v1361 = vld [vmem:[%s200 + $0x22c8] sm:$0xff]
        %v1362 = vld [vmem:[%s200 + $0x22d0] sm:$0xff]
        %v1363 = vld [vmem:[%s200 + $0x22d8] sm:$0xff]
        %v1364 = vld [vmem:[%s200 + $0x22e0] sm:$0xff]
        %v1365 = vld [vmem:[%s200 + $0x22e8] sm:$0xff]
        %v1366 = vld [vmem:[%s200 + $0x22f0] sm:$0xff]
        %v1367 = vld [vmem:[%s200 + $0x22f8] sm:$0xff]
        %v1368 = vld [vmem:[%s200 + $0x2300] sm:$0xff]
        %v1369 = vld [vmem:[%s200 + $0x2308] sm:$0xff]
        %v1370 = vld [vmem:[%s200 + $0x2310] sm:$0xff]
        %v1371 = vld [vmem:[%s200 + $0x2318] sm:$0xff]
        %v1372 = vld [vmem:[%s200 + $0x2320] sm:$0xff]
        %v1373 = vld [vmem:[%s200 + $0x2328] sm:$0xff]
        %v1374 = vld [vmem:[%s200 + $0x2330] sm:$0xff]
        %v1375 = vld [vmem:[%s200 + $0x2338] sm:$0xff]
        %v1376 = vld [vmem:[%s200 + $0x2340] sm:$0xff]
        %v1377 = vld [vmem:[%s200 + $0x2348] sm:$0xff]
        %v1378 = vld [vmem:[%s200 + $0x2350] sm:$0xff]
        %v1379 = vld [vmem:[%s200 + $0x2358] sm:$0xff]
        %v1380 = vld [vmem:[%s200 + $0x2360] sm:$0xff]
        %v1381 = vld [vmem:[%s200 + $0x2368] sm:$0xff]
        %v1382 = vld [vmem:[%s200 + $0x2370] sm:$0xff]
        %v1383 = vld [vmem:[%s200 + $0x2378] sm:$0xff]
        %v1384 = vld [vmem:[%s200 + $0x2380] sm:$0xff]
        %v1385 = vld [vmem:[%s200 + $0x2388] sm:$0xff]
        %v1386 = vld [vmem:[%s200 + $0x2390] sm:$0xff]
        %v1387 = vld [vmem:[%s200 + $0x2398] sm:$0xff]
        %v1388 = vld [vmem:[%s200 + $0x23a0] sm:$0xff]
        %v1389 = vld [vmem:[%s200 + $0x23a8] sm:$0xff]
        %v1390 = vld [vmem:[%s200 + $0x23b0] sm:$0xff]
        %v1391 = vld [vmem:[%s200 + $0x23b8] sm:$0xff]
        %v1392 = vld [vmem:[%s200 + $0x23c0] sm:$0xff]
        %v1393 = vld [vmem:[%s200 + $0x23c8] sm:$0xff]
        %v1394 = vld [vmem:[%s200 + $0x23d0] sm:$0xff]
        %v1395 = vld [vmem:[%s200 + $0x23d8] sm:$0xff]
        %v1396 = vld [vmem:[%s200 + $0x23e0] sm:$0xff]
        %v1397 = vld [vmem:[%s200 + $0x23e8] sm:$0xff]
        %v1398 = vld [vmem:[%s200 + $0x23f0] sm:$0xff]
        %v1399 = vld [vmem:[%s200 + $0x23f8] sm:$0xff]
        %v1400 = vld [vmem:[%s209] sm:$0xff]
        %v1401 = vld [vmem:[%s209 + $0x8] sm:$0xf]
        %v1404 = vlaneseq
        %v1405 = vshrl.u32 %v1404, 7
        %v1406 = vsub.s32 0, %v1405
        %v1407 = vrot.slane %v1400, %v1406
        %v1408 = vlaneseq
        %v1409 = vshrl.u32 %v1408, 7
        %v1410 = vsub.s32 1, %v1409
        %v1411 = vrot.slane %v1400, %v1410
        %v1412 = vlaneseq
        %v1413 = vshrl.u32 %v1412, 7
        %v1414 = vsub.s32 2, %v1413
        %v1415 = vrot.slane %v1400, %v1414
        %v1416 = vlaneseq
        %v1417 = vshrl.u32 %v1416, 7
        %v1418 = vsub.s32 3, %v1417
        %v1419 = vrot.slane %v1400, %v1418
        %v1420 = vlaneseq
        %v1421 = vshrl.u32 %v1420, 7
        %v1422 = vsub.s32 4, %v1421
        %v1423 = vrot.slane %v1400, %v1422
        %v1424 = vlaneseq
        %v1425 = vshrl.u32 %v1424, 7
        %v1426 = vsub.s32 5, %v1425
        %v1427 = vrot.slane %v1400, %v1426
        %v1428 = vlaneseq
        %v1429 = vshrl.u32 %v1428, 7
        %v1430 = vsub.s32 6, %v1429
        %v1431 = vrot.slane %v1400, %v1430
        %v1432 = vlaneseq
        %v1433 = vshrl.u32 %v1432, 7
        %v1434 = vsub.s32 7, %v1433
        %v1435 = vrot.slane %v1400, %v1434
        %v1436 = vlaneseq
        %v1437 = vshrl.u32 %v1436, 7
        %v1438 = vsub.s32 0, %v1437
        %v1439 = vrot.slane %v1401, %v1438
        %v1440 = vlaneseq
        %v1441 = vshrl.u32 %v1440, 7
        %v1442 = vsub.s32 1, %v1441
        %v1443 = vrot.slane %v1401, %v1442
        %v1444 = vlaneseq
        %v1445 = vshrl.u32 %v1444, 7
        %v1446 = vsub.s32 2, %v1445
        %v1447 = vrot.slane %v1401, %v1446
        %v1448 = vlaneseq
        %v1449 = vshrl.u32 %v1448, 7
        %v1450 = vsub.s32 3, %v1449
        %v1451 = vrot.slane %v1401, %v1450
        %v1470 = vunpack.c.l.b16 %v242
        %v1471 = vunpack.c.h.b16 %v242
        %v1472 = vunpack.c.l.b16 %v243
        %v1473 = vunpack.c.h.b16 %v243
        %v1474 = vunpack.c.l.b16 %v244
        %v1475 = vunpack.c.h.b16 %v244
        %v1476 = vunpack.c.l.b16 %v245
        %v1477 = vunpack.c.h.b16 %v245
        %v1478 = vunpack.c.l.b16 %v246
        %v1479 = vunpack.c.h.b16 %v246
        %v1480 = vunpack.c.l.b16 %v247
        %v1481 = vunpack.c.h.b16 %v247
        %v1482 = vpack.c.b16 %v1470, %v1470
        %v1483 = vpack.c.b16 %v1471, %v1471
        %v1484 = vpack.c.b16 %v1472, %v1472
        %v1485 = vpack.c.b16 %v1473, %v1473
        %v1486 = vpack.c.b16 %v1474, %v1474
        %v1487 = vpack.c.b16 %v1475, %v1475
        %v1488 = vpack.c.b16 %v1476, %v1476
        %v1489 = vpack.c.b16 %v1477, %v1477
        %v1490 = vpack.c.b16 %v1478, %v1478
        %v1491 = vpack.c.b16 %v1479, %v1479
        %v1492 = vpack.c.b16 %v1480, %v1480
        %v1493 = vpack.c.b16 %v1481, %v1481
        %v2658 = vunpack.c.l.b16 %v248
        %v2659 = vunpack.c.h.b16 %v248
        %v2660 = vunpack.c.l.b16 %v249
        %v2661 = vunpack.c.h.b16 %v249
        %v2662 = vunpack.c.l.b16 %v250
        %v2663 = vunpack.c.h.b16 %v250
        %v2664 = vunpack.c.l.b16 %v251
        %v2665 = vunpack.c.h.b16 %v251
        %v2666 = vunpack.c.l.b16 %v252
        %v2667 = vunpack.c.h.b16 %v252
        %v2668 = vunpack.c.l.b16 %v253
        %v2669 = vunpack.c.h.b16 %v253
        %v2670 = vunpack.c.l.b16 %v254
        %v2671 = vunpack.c.h.b16 %v254
        %v2672 = vunpack.c.l.b16 %v255
        %v2673 = vunpack.c.h.b16 %v255
        %v2674 = vunpack.c.l.b16 %v256
        %v2675 = vunpack.c.h.b16 %v256
        %v2676 = vunpack.c.l.b16 %v257
        %v2677 = vunpack.c.h.b16 %v257
        %v2678 = vunpack.c.l.b16 %v258
        %v2679 = vunpack.c.h.b16 %v258
        %v2680 = vunpack.c.l.b16 %v259
        %v2681 = vunpack.c.h.b16 %v259
        %v2682 = vunpack.c.l.b16 %v260
        %v2683 = vunpack.c.h.b16 %v260
        %v2684 = vunpack.c.l.b16 %v261
        %v2685 = vunpack.c.h.b16 %v261
        %v2686 = vunpack.c.l.b16 %v262
        %v2687 = vunpack.c.h.b16 %v262
        %v2688 = vunpack.c.l.b16 %v263
        %v2689 = vunpack.c.h.b16 %v263
        %v2690 = vunpack.c.l.b16 %v264
        %v2691 = vunpack.c.h.b16 %v264
        %v2692 = vunpack.c.l.b16 %v265
        %v2693 = vunpack.c.h.b16 %v265
        %v2694 = vunpack.c.l.b16 %v266
        %v2695 = vunpack.c.h.b16 %v266
        %v2696 = vunpack.c.l.b16 %v267
        %v2697 = vunpack.c.h.b16 %v267
        %v2698 = vunpack.c.l.b16 %v268
        %v2699 = vunpack.c.h.b16 %v268
        %v2700 = vunpack.c.l.b16 %v269
        %v2701 = vunpack.c.h.b16 %v269
        %v2702 = vunpack.c.l.b16 %v270
        %v2703 = vunpack.c.h.b16 %v270
        %v2704 = vunpack.c.l.b16 %v271
        %v2705 = vunpack.c.h.b16 %v271
        %v2706 = vunpack.c.l.b16 %v272
        %v2707 = vunpack.c.h.b16 %v272
        %v2708 = vunpack.c.l.b16 %v273
        %v2709 = vunpack.c.h.b16 %v273
        %v2710 = vunpack.c.l.b16 %v274
        %v2711 = vunpack.c.h.b16 %v274
        %v2712 = vunpack.c.l.b16 %v275
        %v2713 = vunpack.c.h.b16 %v275
        %v2714 = vunpack.c.l.b16 %v276
        %v2715 = vunpack.c.h.b16 %v276
        %v2716 = vunpack.c.l.b16 %v277
        %v2717 = vunpack.c.h.b16 %v277
        %v2718 = vunpack.c.l.b16 %v278
        %v2719 = vunpack.c.h.b16 %v278
        %v2720 = vunpack.c.l.b16 %v279
        %v2721 = vunpack.c.h.b16 %v279
        %v2722 = vunpack.c.l.b16 %v280
        %v2723 = vunpack.c.h.b16 %v280
        %v2724 = vunpack.c.l.b16 %v281
        %v2725 = vunpack.c.h.b16 %v281
        %v2726 = vunpack.c.l.b16 %v282
        %v2727 = vunpack.c.h.b16 %v282
        %v2728 = vunpack.c.l.b16 %v283
        %v2729 = vunpack.c.h.b16 %v283
        %v2730 = vunpack.c.l.b16 %v284
        %v2731 = vunpack.c.h.b16 %v284
        %v2732 = vunpack.c.l.b16 %v285
        %v2733 = vunpack.c.h.b16 %v285
        %v2734 = vunpack.c.l.b16 %v286
        %v2735 = vunpack.c.h.b16 %v286
        %v2736 = vunpack.c.l.b16 %v287
        %v2737 = vunpack.c.h.b16 %v287
        %v2738 = vunpack.c.l.b16 %v288
        %v2739 = vunpack.c.h.b16 %v288
        %v2740 = vunpack.c.l.b16 %v289
        %v2741 = vunpack.c.h.b16 %v289
        %v2742 = vunpack.c.l.b16 %v290
        %v2743 = vunpack.c.h.b16 %v290
        %v2744 = vunpack.c.l.b16 %v291
        %v2745 = vunpack.c.h.b16 %v291
        %v2746 = vunpack.c.l.b16 %v292
        %v2747 = vunpack.c.h.b16 %v292
        %v2748 = vunpack.c.l.b16 %v293
        %v2749 = vunpack.c.h.b16 %v293
        %v2750 = vunpack.c.l.b16 %v294
        %v2751 = vunpack.c.h.b16 %v294
        %v2752 = vunpack.c.l.b16 %v295
        %v2753 = vunpack.c.h.b16 %v295
        %v2754 = vunpack.c.l.b16 %v296
        %v2755 = vunpack.c.h.b16 %v296
        %v2756 = vunpack.c.l.b16 %v297
        %v2757 = vunpack.c.h.b16 %v297
        %v2758 = vunpack.c.l.b16 %v298
        %v2759 = vunpack.c.h.b16 %v298
        %v2760 = vunpack.c.l.b16 %v299
        %v2761 = vunpack.c.h.b16 %v299
        %v2762 = vunpack.c.l.b16 %v300
        %v2763 = vunpack.c.h.b16 %v300
        %v2764 = vunpack.c.l.b16 %v301
        %v2765 = vunpack.c.h.b16 %v301
        %v2766 = vunpack.c.l.b16 %v302
        %v2767 = vunpack.c.h.b16 %v302
        %v2768 = vunpack.c.l.b16 %v303
        %v2769 = vunpack.c.h.b16 %v303
        %v2770 = vunpack.c.l.b16 %v304
        %v2771 = vunpack.c.h.b16 %v304
        %v2772 = vunpack.c.l.b16 %v305
        %v2773 = vunpack.c.h.b16 %v305
        %v2774 = vunpack.c.l.b16 %v306
        %v2775 = vunpack.c.h.b16 %v306
        %v2776 = vunpack.c.l.b16 %v307
        %v2777 = vunpack.c.h.b16 %v307
        %v2778 = vunpack.c.l.b16 %v308
        %v2779 = vunpack.c.h.b16 %v308
        %v2780 = vunpack.c.l.b16 %v309
        %v2781 = vunpack.c.h.b16 %v309
        %v2782 = vunpack.c.l.b16 %v310
        %v2783 = vunpack.c.h.b16 %v310
        %v2784 = vunpack.c.l.b16 %v311
        %v2785 = vunpack.c.h.b16 %v311
        %v2786 = vunpack.c.l.b16 %v312
        %v2787 = vunpack.c.h.b16 %v312
        %v2788 = vunpack.c.l.b16 %v313
        %v2789 = vunpack.c.h.b16 %v313
        %v2790 = vunpack.c.l.b16 %v314
        %v2791 = vunpack.c.h.b16 %v314
        %v2792 = vunpack.c.l.b16 %v315
        %v2793 = vunpack.c.h.b16 %v315
        %v2794 = vunpack.c.l.b16 %v316
        %v2795 = vunpack.c.h.b16 %v316
        %v2796 = vunpack.c.l.b16 %v317
        %v2797 = vunpack.c.h.b16 %v317
        %v2798 = vunpack.c.l.b16 %v318
        %v2799 = vunpack.c.h.b16 %v318
        %v2800 = vunpack.c.l.b16 %v319
        %v2801 = vunpack.c.h.b16 %v319
        %v2802 = vunpack.c.l.b16 %v320
        %v2803 = vunpack.c.h.b16 %v320
        %v2804 = vunpack.c.l.b16 %v321
        %v2805 = vunpack.c.h.b16 %v321
        %v2806 = vunpack.c.l.b16 %v322
        %v2807 = vunpack.c.h.b16 %v322
        %v2808 = vunpack.c.l.b16 %v323
        %v2809 = vunpack.c.h.b16 %v323
        %v2810 = vunpack.c.l.b16 %v324
        %v2811 = vunpack.c.h.b16 %v324
        %v2812 = vunpack.c.l.b16 %v325
        %v2813 = vunpack.c.h.b16 %v325
        %v2814 = vunpack.c.l.b16 %v326
        %v2815 = vunpack.c.h.b16 %v326
        %v2816 = vunpack.c.l.b16 %v327
        %v2817 = vunpack.c.h.b16 %v327
        %v2818 = vunpack.c.l.b16 %v328
        %v2819 = vunpack.c.h.b16 %v328
        %v2820 = vunpack.c.l.b16 %v329
        %v2821 = vunpack.c.h.b16 %v329
        %v2822 = vunpack.c.l.b16 %v330
        %v2823 = vunpack.c.h.b16 %v330
        %v2824 = vunpack.c.l.b16 %v331
        %v2825 = vunpack.c.h.b16 %v331
        %v2826 = vunpack.c.l.b16 %v332
        %v2827 = vunpack.c.h.b16 %v332
        %v2828 = vunpack.c.l.b16 %v333
        %v2829 = vunpack.c.h.b16 %v333
        %v2830 = vunpack.c.l.b16 %v334
        %v2831 = vunpack.c.h.b16 %v334
        %v2832 = vunpack.c.l.b16 %v335
        %v2833 = vunpack.c.h.b16 %v335
        %v2834 = vunpack.c.l.b16 %v336
        %v2835 = vunpack.c.h.b16 %v336
        %v2836 = vunpack.c.l.b16 %v337
        %v2837 = vunpack.c.h.b16 %v337
        %v2838 = vunpack.c.l.b16 %v338
        %v2839 = vunpack.c.h.b16 %v338
        %v2840 = vunpack.c.l.b16 %v339
        %v2841 = vunpack.c.h.b16 %v339
        %v2842 = vunpack.c.l.b16 %v340
        %v2843 = vunpack.c.h.b16 %v340
        %v2844 = vunpack.c.l.b16 %v341
        %v2845 = vunpack.c.h.b16 %v341
        %v2846 = vunpack.c.l.b16 %v342
        %v2847 = vunpack.c.h.b16 %v342
        %v2848 = vunpack.c.l.b16 %v343
        %v2849 = vunpack.c.h.b16 %v343
        %v2850 = vunpack.c.l.b16 %v344
        %v2851 = vunpack.c.h.b16 %v344
        %v2852 = vunpack.c.l.b16 %v345
        %v2853 = vunpack.c.h.b16 %v345
        %v2854 = vunpack.c.l.b16 %v346
        %v2855 = vunpack.c.h.b16 %v346
        %v2856 = vunpack.c.l.b16 %v347
        %v2857 = vunpack.c.h.b16 %v347
        %v2858 = vunpack.c.l.b16 %v348
        %v2859 = vunpack.c.h.b16 %v348
        %v2860 = vunpack.c.l.b16 %v349
        %v2861 = vunpack.c.h.b16 %v349
        %v2862 = vunpack.c.l.b16 %v350
        %v2863 = vunpack.c.h.b16 %v350
        %v2864 = vunpack.c.l.b16 %v351
        %v2865 = vunpack.c.h.b16 %v351
        %v2866 = vunpack.c.l.b16 %v352
        %v2867 = vunpack.c.h.b16 %v352
        %v2868 = vunpack.c.l.b16 %v353
        %v2869 = vunpack.c.h.b16 %v353
        %v2870 = vunpack.c.l.b16 %v354
        %v2871 = vunpack.c.h.b16 %v354
        %v2872 = vunpack.c.l.b16 %v355
        %v2873 = vunpack.c.h.b16 %v355
        %v2874 = vunpack.c.l.b16 %v356
        %v2875 = vunpack.c.h.b16 %v356
        %v2876 = vunpack.c.l.b16 %v357
        %v2877 = vunpack.c.h.b16 %v357
        %v2878 = vunpack.c.l.b16 %v358
        %v2879 = vunpack.c.h.b16 %v358
        %v2880 = vunpack.c.l.b16 %v359
        %v2881 = vunpack.c.h.b16 %v359
        %v2882 = vunpack.c.l.b16 %v360
        %v2883 = vunpack.c.h.b16 %v360
        %v2884 = vunpack.c.l.b16 %v361
        %v2885 = vunpack.c.h.b16 %v361
        %v2886 = vunpack.c.l.b16 %v362
        %v2887 = vunpack.c.h.b16 %v362
        %v2888 = vunpack.c.l.b16 %v363
        %v2889 = vunpack.c.h.b16 %v363
        %v2890 = vunpack.c.l.b16 %v364
        %v2891 = vunpack.c.h.b16 %v364
        %v2892 = vunpack.c.l.b16 %v365
        %v2893 = vunpack.c.h.b16 %v365
        %v2894 = vunpack.c.l.b16 %v366
        %v2895 = vunpack.c.h.b16 %v366
        %v2896 = vunpack.c.l.b16 %v367
        %v2897 = vunpack.c.h.b16 %v367
        %v2898 = vunpack.c.l.b16 %v368
        %v2899 = vunpack.c.h.b16 %v368
        %v2900 = vunpack.c.l.b16 %v369
        %v2901 = vunpack.c.h.b16 %v369
        %v2902 = vunpack.c.l.b16 %v370
        %v2903 = vunpack.c.h.b16 %v370
        %v2904 = vunpack.c.l.b16 %v371
        %v2905 = vunpack.c.h.b16 %v371
        %v2906 = vunpack.c.l.b16 %v372
        %v2907 = vunpack.c.h.b16 %v372
        %v2908 = vunpack.c.l.b16 %v373
        %v2909 = vunpack.c.h.b16 %v373
        %v2910 = vunpack.c.l.b16 %v374
        %v2911 = vunpack.c.h.b16 %v374
        %v2912 = vunpack.c.l.b16 %v375
        %v2913 = vunpack.c.h.b16 %v375
        %v2914 = vunpack.c.l.b16 %v376
        %v2915 = vunpack.c.h.b16 %v376
        %v2916 = vunpack.c.l.b16 %v377
        %v2917 = vunpack.c.h.b16 %v377
        %v2918 = vunpack.c.l.b16 %v378
        %v2919 = vunpack.c.h.b16 %v378
        %v2920 = vunpack.c.l.b16 %v379
        %v2921 = vunpack.c.h.b16 %v379
        %v2922 = vunpack.c.l.b16 %v380
        %v2923 = vunpack.c.h.b16 %v380
        %v2924 = vunpack.c.l.b16 %v381
        %v2925 = vunpack.c.h.b16 %v381
        %v2926 = vunpack.c.l.b16 %v382
        %v2927 = vunpack.c.h.b16 %v382
        %v2928 = vunpack.c.l.b16 %v383
        %v2929 = vunpack.c.h.b16 %v383
        %v2930 = vunpack.c.l.b16 %v384
        %v2931 = vunpack.c.h.b16 %v384
        %v2932 = vunpack.c.l.b16 %v385
        %v2933 = vunpack.c.h.b16 %v385
        %v2934 = vunpack.c.l.b16 %v386
        %v2935 = vunpack.c.h.b16 %v386
        %v2936 = vunpack.c.l.b16 %v387
        %v2937 = vunpack.c.h.b16 %v387
        %v2938 = vunpack.c.l.b16 %v388
        %v2939 = vunpack.c.h.b16 %v388
        %v2940 = vunpack.c.l.b16 %v389
        %v2941 = vunpack.c.h.b16 %v389
        %v2942 = vunpack.c.l.b16 %v390
        %v2943 = vunpack.c.h.b16 %v390
        %v2944 = vunpack.c.l.b16 %v391
        %v2945 = vunpack.c.h.b16 %v391
        %v2946 = vunpack.c.l.b16 %v392
        %v2947 = vunpack.c.h.b16 %v392
        %v2948 = vunpack.c.l.b16 %v393
        %v2949 = vunpack.c.h.b16 %v393
        %v2950 = vunpack.c.l.b16 %v394
        %v2951 = vunpack.c.h.b16 %v394
        %v2952 = vunpack.c.l.b16 %v395
        %v2953 = vunpack.c.h.b16 %v395
        %v2954 = vunpack.c.l.b16 %v396
        %v2955 = vunpack.c.h.b16 %v396
        %v2956 = vunpack.c.l.b16 %v397
        %v2957 = vunpack.c.h.b16 %v397
        %v2958 = vunpack.c.l.b16 %v398
        %v2959 = vunpack.c.h.b16 %v398
        %v2960 = vunpack.c.l.b16 %v399
        %v2961 = vunpack.c.h.b16 %v399
        %v2962 = vunpack.c.l.b16 %v400
        %v2963 = vunpack.c.h.b16 %v400
        %v2964 = vunpack.c.l.b16 %v401
        %v2965 = vunpack.c.h.b16 %v401
        %v2966 = vunpack.c.l.b16 %v402
        %v2967 = vunpack.c.h.b16 %v402
        %v2968 = vunpack.c.l.b16 %v403
        %v2969 = vunpack.c.h.b16 %v403
        %v2970 = vunpack.c.l.b16 %v404
        %v2971 = vunpack.c.h.b16 %v404
        %v2972 = vunpack.c.l.b16 %v405
        %v2973 = vunpack.c.h.b16 %v405
        %v2974 = vunpack.c.l.b16 %v406
        %v2975 = vunpack.c.h.b16 %v406
        %v2976 = vunpack.c.l.b16 %v407
        %v2977 = vunpack.c.h.b16 %v407
        %v2978 = vunpack.c.l.b16 %v408
        %v2979 = vunpack.c.h.b16 %v408
        %v2980 = vunpack.c.l.b16 %v409
        %v2981 = vunpack.c.h.b16 %v409
        %v2982 = vunpack.c.l.b16 %v410
        %v2983 = vunpack.c.h.b16 %v410
        %v2984 = vunpack.c.l.b16 %v411
        %v2985 = vunpack.c.h.b16 %v411
        %v2986 = vunpack.c.l.b16 %v412
        %v2987 = vunpack.c.h.b16 %v412
        %v2988 = vunpack.c.l.b16 %v413
        %v2989 = vunpack.c.h.b16 %v413
        %v2990 = vunpack.c.l.b16 %v414
        %v2991 = vunpack.c.h.b16 %v414
        %v2992 = vunpack.c.l.b16 %v415
        %v2993 = vunpack.c.h.b16 %v415
        %v2994 = vunpack.c.l.b16 %v416
        %v2995 = vunpack.c.h.b16 %v416
        %v2996 = vunpack.c.l.b16 %v417
        %v2997 = vunpack.c.h.b16 %v417
        %v2998 = vunpack.c.l.b16 %v418
        %v2999 = vunpack.c.h.b16 %v418
        %v3000 = vunpack.c.l.b16 %v419
        %v3001 = vunpack.c.h.b16 %v419
        %v3002 = vunpack.c.l.b16 %v420
        %v3003 = vunpack.c.h.b16 %v420
        %v3004 = vunpack.c.l.b16 %v421
        %v3005 = vunpack.c.h.b16 %v421
        %v3006 = vunpack.c.l.b16 %v422
        %v3007 = vunpack.c.h.b16 %v422
        %v3008 = vunpack.c.l.b16 %v423
        %v3009 = vunpack.c.h.b16 %v423
        %v3010 = vunpack.c.l.b16 %v424
        %v3011 = vunpack.c.h.b16 %v424
        %v3012 = vunpack.c.l.b16 %v425
        %v3013 = vunpack.c.h.b16 %v425
        %v3014 = vunpack.c.l.b16 %v426
        %v3015 = vunpack.c.h.b16 %v426
        %v3016 = vunpack.c.l.b16 %v427
        %v3017 = vunpack.c.h.b16 %v427
        %v3018 = vunpack.c.l.b16 %v428
        %v3019 = vunpack.c.h.b16 %v428
        %v3020 = vunpack.c.l.b16 %v429
        %v3021 = vunpack.c.h.b16 %v429
        %v3022 = vunpack.c.l.b16 %v430
        %v3023 = vunpack.c.h.b16 %v430
        %v3024 = vunpack.c.l.b16 %v431
        %v3025 = vunpack.c.h.b16 %v431
        %v3026 = vunpack.c.l.b16 %v432
        %v3027 = vunpack.c.h.b16 %v432
        %v3028 = vunpack.c.l.b16 %v433
        %v3029 = vunpack.c.h.b16 %v433
        %v3030 = vunpack.c.l.b16 %v434
        %v3031 = vunpack.c.h.b16 %v434
        %v3032 = vunpack.c.l.b16 %v435
        %v3033 = vunpack.c.h.b16 %v435
        %v3034 = vunpack.c.l.b16 %v436
        %v3035 = vunpack.c.h.b16 %v436
        %v3036 = vunpack.c.l.b16 %v437
        %v3037 = vunpack.c.h.b16 %v437
        %v3038 = vunpack.c.l.b16 %v438
        %v3039 = vunpack.c.h.b16 %v438
        %v3040 = vunpack.c.l.b16 %v439
        %v3041 = vunpack.c.h.b16 %v439
        %v3042 = vunpack.c.l.b16 %v440
        %v3043 = vunpack.c.h.b16 %v440
        %v3044 = vunpack.c.l.b16 %v441
        %v3045 = vunpack.c.h.b16 %v441
        %v3046 = vunpack.c.l.b16 %v442
        %v3047 = vunpack.c.h.b16 %v442
        %v3048 = vunpack.c.l.b16 %v443
        %v3049 = vunpack.c.h.b16 %v443
        %v3050 = vunpack.c.l.b16 %v444
        %v3051 = vunpack.c.h.b16 %v444
        %v3052 = vunpack.c.l.b16 %v445
        %v3053 = vunpack.c.h.b16 %v445
        %v3054 = vunpack.c.l.b16 %v446
        %v3055 = vunpack.c.h.b16 %v446
        %v3056 = vunpack.c.l.b16 %v447
        %v3057 = vunpack.c.h.b16 %v447
        %v3058 = vunpack.c.l.b16 %v448
        %v3059 = vunpack.c.h.b16 %v448
        %v3060 = vunpack.c.l.b16 %v449
        %v3061 = vunpack.c.h.b16 %v449
        %v3062 = vunpack.c.l.b16 %v450
        %v3063 = vunpack.c.h.b16 %v450
        %v3064 = vunpack.c.l.b16 %v451
        %v3065 = vunpack.c.h.b16 %v451
        %v3066 = vunpack.c.l.b16 %v452
        %v3067 = vunpack.c.h.b16 %v452
        %v3068 = vunpack.c.l.b16 %v453
        %v3069 = vunpack.c.h.b16 %v453
        %v3070 = vunpack.c.l.b16 %v454
        %v3071 = vunpack.c.h.b16 %v454
        %v3072 = vunpack.c.l.b16 %v455
        %v3073 = vunpack.c.h.b16 %v455
        %v3074 = vunpack.c.l.b16 %v456
        %v3075 = vunpack.c.h.b16 %v456
        %v3076 = vunpack.c.l.b16 %v457
        %v3077 = vunpack.c.h.b16 %v457
        %v3078 = vunpack.c.l.b16 %v458
        %v3079 = vunpack.c.h.b16 %v458
        %v3080 = vunpack.c.l.b16 %v459
        %v3081 = vunpack.c.h.b16 %v459
        %v3082 = vunpack.c.l.b16 %v460
        %v3083 = vunpack.c.h.b16 %v460
        %v3084 = vunpack.c.l.b16 %v461
        %v3085 = vunpack.c.h.b16 %v461
        %v3086 = vunpack.c.l.b16 %v462
        %v3087 = vunpack.c.h.b16 %v462
        %v3088 = vunpack.c.l.b16 %v463
        %v3089 = vunpack.c.h.b16 %v463
        %v3090 = vunpack.c.l.b16 %v464
        %v3091 = vunpack.c.h.b16 %v464
        %v3092 = vunpack.c.l.b16 %v465
        %v3093 = vunpack.c.h.b16 %v465
        %v3094 = vunpack.c.l.b16 %v466
        %v3095 = vunpack.c.h.b16 %v466
        %v3096 = vunpack.c.l.b16 %v467
        %v3097 = vunpack.c.h.b16 %v467
        %v3098 = vunpack.c.l.b16 %v468
        %v3099 = vunpack.c.h.b16 %v468
        %v3100 = vunpack.c.l.b16 %v469
        %v3101 = vunpack.c.h.b16 %v469
        %v3102 = vunpack.c.l.b16 %v470
        %v3103 = vunpack.c.h.b16 %v470
        %v3104 = vunpack.c.l.b16 %v471
        %v3105 = vunpack.c.h.b16 %v471
        %v3106 = vunpack.c.l.b16 %v472
        %v3107 = vunpack.c.h.b16 %v472
        %v3108 = vunpack.c.l.b16 %v473
        %v3109 = vunpack.c.h.b16 %v473
        %v3110 = vunpack.c.l.b16 %v474
        %v3111 = vunpack.c.h.b16 %v474
        %v3112 = vunpack.c.l.b16 %v475
        %v3113 = vunpack.c.h.b16 %v475
        %v3114 = vunpack.c.l.b16 %v476
        %v3115 = vunpack.c.h.b16 %v476
        %v3116 = vunpack.c.l.b16 %v477
        %v3117 = vunpack.c.h.b16 %v477
        %v3118 = vunpack.c.l.b16 %v478
        %v3119 = vunpack.c.h.b16 %v478
        %v3120 = vunpack.c.l.b16 %v479
        %v3121 = vunpack.c.h.b16 %v479
        %v3122 = vunpack.c.l.b16 %v480
        %v3123 = vunpack.c.h.b16 %v480
        %v3124 = vunpack.c.l.b16 %v481
        %v3125 = vunpack.c.h.b16 %v481
        %v3126 = vunpack.c.l.b16 %v482
        %v3127 = vunpack.c.h.b16 %v482
        %v3128 = vunpack.c.l.b16 %v483
        %v3129 = vunpack.c.h.b16 %v483
        %v3130 = vunpack.c.l.b16 %v484
        %v3131 = vunpack.c.h.b16 %v484
        %v3132 = vunpack.c.l.b16 %v485
        %v3133 = vunpack.c.h.b16 %v485
        %v3134 = vunpack.c.l.b16 %v486
        %v3135 = vunpack.c.h.b16 %v486
        %v3136 = vunpack.c.l.b16 %v487
        %v3137 = vunpack.c.h.b16 %v487
        %v3138 = vunpack.c.l.b16 %v488
        %v3139 = vunpack.c.h.b16 %v488
        %v3140 = vunpack.c.l.b16 %v489
        %v3141 = vunpack.c.h.b16 %v489
        %v3142 = vunpack.c.l.b16 %v490
        %v3143 = vunpack.c.h.b16 %v490
        %v3144 = vunpack.c.l.b16 %v491
        %v3145 = vunpack.c.h.b16 %v491
        %v3146 = vunpack.c.l.b16 %v492
        %v3147 = vunpack.c.h.b16 %v492
        %v3148 = vunpack.c.l.b16 %v493
        %v3149 = vunpack.c.h.b16 %v493
        %v3150 = vunpack.c.l.b16 %v494
        %v3151 = vunpack.c.h.b16 %v494
        %v3152 = vunpack.c.l.b16 %v495
        %v3153 = vunpack.c.h.b16 %v495
        %v3154 = vunpack.c.l.b16 %v496
        %v3155 = vunpack.c.h.b16 %v496
        %v3156 = vunpack.c.l.b16 %v497
        %v3157 = vunpack.c.h.b16 %v497
        %v3158 = vunpack.c.l.b16 %v498
        %v3159 = vunpack.c.h.b16 %v498
        %v3160 = vunpack.c.l.b16 %v499
        %v3161 = vunpack.c.h.b16 %v499
        %v3162 = vunpack.c.l.b16 %v500
        %v3163 = vunpack.c.h.b16 %v500
        %v3164 = vunpack.c.l.b16 %v501
        %v3165 = vunpack.c.h.b16 %v501
        %v3166 = vunpack.c.l.b16 %v502
        %v3167 = vunpack.c.h.b16 %v502
        %v3168 = vunpack.c.l.b16 %v503
        %v3169 = vunpack.c.h.b16 %v503
        %v3170 = vunpack.c.l.b16 %v504
        %v3171 = vunpack.c.h.b16 %v504
        %v3172 = vunpack.c.l.b16 %v505
        %v3173 = vunpack.c.h.b16 %v505
        %v3174 = vunpack.c.l.b16 %v506
        %v3175 = vunpack.c.h.b16 %v506
        %v3176 = vunpack.c.l.b16 %v507
        %v3177 = vunpack.c.h.b16 %v507
        %v3178 = vunpack.c.l.b16 %v508
        %v3179 = vunpack.c.h.b16 %v508
        %v3180 = vunpack.c.l.b16 %v509
        %v3181 = vunpack.c.h.b16 %v509
        %v3182 = vunpack.c.l.b16 %v510
        %v3183 = vunpack.c.h.b16 %v510
        %v3184 = vunpack.c.l.b16 %v511
        %v3185 = vunpack.c.h.b16 %v511
        %v3186 = vunpack.c.l.b16 %v512
        %v3187 = vunpack.c.h.b16 %v512
        %v3188 = vunpack.c.l.b16 %v513
        %v3189 = vunpack.c.h.b16 %v513
        %v3190 = vunpack.c.l.b16 %v514
        %v3191 = vunpack.c.h.b16 %v514
        %v3192 = vunpack.c.l.b16 %v515
        %v3193 = vunpack.c.h.b16 %v515
        %v3194 = vunpack.c.l.b16 %v516
        %v3195 = vunpack.c.h.b16 %v516
        %v3196 = vunpack.c.l.b16 %v517
        %v3197 = vunpack.c.h.b16 %v517
        %v3198 = vunpack.c.l.b16 %v518
        %v3199 = vunpack.c.h.b16 %v518
        %v3200 = vunpack.c.l.b16 %v519
        %v3201 = vunpack.c.h.b16 %v519
        %v3202 = vunpack.c.l.b16 %v520
        %v3203 = vunpack.c.h.b16 %v520
        %v3204 = vunpack.c.l.b16 %v521
        %v3205 = vunpack.c.h.b16 %v521
        %v3206 = vunpack.c.l.b16 %v522
        %v3207 = vunpack.c.h.b16 %v522
        %v3208 = vunpack.c.l.b16 %v523
        %v3209 = vunpack.c.h.b16 %v523
        %v3210 = vunpack.c.l.b16 %v524
        %v3211 = vunpack.c.h.b16 %v524
        %v3212 = vunpack.c.l.b16 %v525
        %v3213 = vunpack.c.h.b16 %v525
        %v3214 = vunpack.c.l.b16 %v526
        %v3215 = vunpack.c.h.b16 %v526
        %v3216 = vunpack.c.l.b16 %v527
        %v3217 = vunpack.c.h.b16 %v527
        %v3218 = vunpack.c.l.b16 %v528
        %v3219 = vunpack.c.h.b16 %v528
        %v3220 = vunpack.c.l.b16 %v529
        %v3221 = vunpack.c.h.b16 %v529
        %v3222 = vunpack.c.l.b16 %v530
        %v3223 = vunpack.c.h.b16 %v530
        %v3224 = vunpack.c.l.b16 %v531
        %v3225 = vunpack.c.h.b16 %v531
        %v3226 = vunpack.c.l.b16 %v532
        %v3227 = vunpack.c.h.b16 %v532
        %v3228 = vunpack.c.l.b16 %v533
        %v3229 = vunpack.c.h.b16 %v533
        %v3230 = vunpack.c.l.b16 %v534
        %v3231 = vunpack.c.h.b16 %v534
        %v3232 = vunpack.c.l.b16 %v535
        %v3233 = vunpack.c.h.b16 %v535
        %v3234 = vunpack.c.l.b16 %v536
        %v3235 = vunpack.c.h.b16 %v536
        %v3236 = vunpack.c.l.b16 %v537
        %v3237 = vunpack.c.h.b16 %v537
        %v3238 = vunpack.c.l.b16 %v538
        %v3239 = vunpack.c.h.b16 %v538
        %v3240 = vunpack.c.l.b16 %v539
        %v3241 = vunpack.c.h.b16 %v539
        %v3242 = vunpack.c.l.b16 %v540
        %v3243 = vunpack.c.h.b16 %v540
        %v3244 = vunpack.c.l.b16 %v541
        %v3245 = vunpack.c.h.b16 %v541
        %v3246 = vunpack.c.l.b16 %v542
        %v3247 = vunpack.c.h.b16 %v542
        %v3248 = vunpack.c.l.b16 %v543
        %v3249 = vunpack.c.h.b16 %v543
        %v3250 = vunpack.c.l.b16 %v544
        %v3251 = vunpack.c.h.b16 %v544
        %v3252 = vunpack.c.l.b16 %v545
        %v3253 = vunpack.c.h.b16 %v545
        %v3254 = vunpack.c.l.b16 %v546
        %v3255 = vunpack.c.h.b16 %v546
        %v3256 = vunpack.c.l.b16 %v547
        %v3257 = vunpack.c.h.b16 %v547
        %v3258 = vunpack.c.l.b16 %v548
        %v3259 = vunpack.c.h.b16 %v548
        %v3260 = vunpack.c.l.b16 %v549
        %v3261 = vunpack.c.h.b16 %v549
        %v3262 = vunpack.c.l.b16 %v550
        %v3263 = vunpack.c.h.b16 %v550
        %v3264 = vunpack.c.l.b16 %v551
        %v3265 = vunpack.c.h.b16 %v551
        %v3266 = vunpack.c.l.b16 %v552
        %v3267 = vunpack.c.h.b16 %v552
        %v3268 = vunpack.c.l.b16 %v553
        %v3269 = vunpack.c.h.b16 %v553
        %v3270 = vunpack.c.l.b16 %v554
        %v3271 = vunpack.c.h.b16 %v554
        %v3272 = vunpack.c.l.b16 %v555
        %v3273 = vunpack.c.h.b16 %v555
        %v3274 = vunpack.c.l.b16 %v556
        %v3275 = vunpack.c.h.b16 %v556
        %v3276 = vunpack.c.l.b16 %v557
        %v3277 = vunpack.c.h.b16 %v557
        %v3278 = vunpack.c.l.b16 %v558
        %v3279 = vunpack.c.h.b16 %v558
        %v3280 = vunpack.c.l.b16 %v559
        %v3281 = vunpack.c.h.b16 %v559
        %v3282 = vunpack.c.l.b16 %v560
        %v3283 = vunpack.c.h.b16 %v560
        %v3284 = vunpack.c.l.b16 %v561
        %v3285 = vunpack.c.h.b16 %v561
        %v3286 = vunpack.c.l.b16 %v562
        %v3287 = vunpack.c.h.b16 %v562
        %v3288 = vunpack.c.l.b16 %v563
        %v3289 = vunpack.c.h.b16 %v563
        %v3290 = vunpack.c.l.b16 %v564
        %v3291 = vunpack.c.h.b16 %v564
        %v3292 = vunpack.c.l.b16 %v565
        %v3293 = vunpack.c.h.b16 %v565
        %v3294 = vunpack.c.l.b16 %v566
        %v3295 = vunpack.c.h.b16 %v566
        %v3296 = vunpack.c.l.b16 %v567
        %v3297 = vunpack.c.h.b16 %v567
        %v3298 = vunpack.c.l.b16 %v568
        %v3299 = vunpack.c.h.b16 %v568
        %v3300 = vunpack.c.l.b16 %v569
        %v3301 = vunpack.c.h.b16 %v569
        %v3302 = vunpack.c.l.b16 %v570
        %v3303 = vunpack.c.h.b16 %v570
        %v3304 = vunpack.c.l.b16 %v571
        %v3305 = vunpack.c.h.b16 %v571
        %v3306 = vunpack.c.l.b16 %v572
        %v3307 = vunpack.c.h.b16 %v572
        %v3308 = vunpack.c.l.b16 %v573
        %v3309 = vunpack.c.h.b16 %v573
        %v3310 = vunpack.c.l.b16 %v574
        %v3311 = vunpack.c.h.b16 %v574
        %v3312 = vunpack.c.l.b16 %v575
        %v3313 = vunpack.c.h.b16 %v575
        %v3314 = vunpack.c.l.b16 %v576
        %v3315 = vunpack.c.h.b16 %v576
        %v3316 = vunpack.c.l.b16 %v577
        %v3317 = vunpack.c.h.b16 %v577
        %v3318 = vunpack.c.l.b16 %v578
        %v3319 = vunpack.c.h.b16 %v578
        %v3320 = vunpack.c.l.b16 %v579
        %v3321 = vunpack.c.h.b16 %v579
        %v3322 = vunpack.c.l.b16 %v580
        %v3323 = vunpack.c.h.b16 %v580
        %v3324 = vunpack.c.l.b16 %v581
        %v3325 = vunpack.c.h.b16 %v581
        %v3326 = vunpack.c.l.b16 %v582
        %v3327 = vunpack.c.h.b16 %v582
        %v3328 = vunpack.c.l.b16 %v583
        %v3329 = vunpack.c.h.b16 %v583
        %v3330 = vunpack.c.l.b16 %v584
        %v3331 = vunpack.c.h.b16 %v584
        %v3332 = vunpack.c.l.b16 %v585
        %v3333 = vunpack.c.h.b16 %v585
        %v3334 = vunpack.c.l.b16 %v586
        %v3335 = vunpack.c.h.b16 %v586
        %v3336 = vunpack.c.l.b16 %v587
        %v3337 = vunpack.c.h.b16 %v587
        %v3338 = vunpack.c.l.b16 %v588
        %v3339 = vunpack.c.h.b16 %v588
        %v3340 = vunpack.c.l.b16 %v589
        %v3341 = vunpack.c.h.b16 %v589
        %v3342 = vunpack.c.l.b16 %v590
        %v3343 = vunpack.c.h.b16 %v590
        %v3344 = vunpack.c.l.b16 %v591
        %v3345 = vunpack.c.h.b16 %v591
        %v3346 = vunpack.c.l.b16 %v592
        %v3347 = vunpack.c.h.b16 %v592
        %v3348 = vunpack.c.l.b16 %v593
        %v3349 = vunpack.c.h.b16 %v593
        %v3350 = vunpack.c.l.b16 %v594
        %v3351 = vunpack.c.h.b16 %v594
        %v3352 = vunpack.c.l.b16 %v595
        %v3353 = vunpack.c.h.b16 %v595
        %v3354 = vunpack.c.l.b16 %v596
        %v3355 = vunpack.c.h.b16 %v596
        %v3356 = vunpack.c.l.b16 %v597
        %v3357 = vunpack.c.h.b16 %v597
        %v3358 = vunpack.c.l.b16 %v598
        %v3359 = vunpack.c.h.b16 %v598
        %v3360 = vunpack.c.l.b16 %v599
        %v3361 = vunpack.c.h.b16 %v599
        %v3362 = vunpack.c.l.b16 %v600
        %v3363 = vunpack.c.h.b16 %v600
        %v3364 = vunpack.c.l.b16 %v601
        %v3365 = vunpack.c.h.b16 %v601
        %v3366 = vunpack.c.l.b16 %v602
        %v3367 = vunpack.c.h.b16 %v602
        %v3368 = vunpack.c.l.b16 %v603
        %v3369 = vunpack.c.h.b16 %v603
        %v3370 = vunpack.c.l.b16 %v604
        %v3371 = vunpack.c.h.b16 %v604
        %v3372 = vunpack.c.l.b16 %v605
        %v3373 = vunpack.c.h.b16 %v605
        %v3374 = vunpack.c.l.b16 %v606
        %v3375 = vunpack.c.h.b16 %v606
        %v3376 = vunpack.c.l.b16 %v607
        %v3377 = vunpack.c.h.b16 %v607
        %v3378 = vunpack.c.l.b16 %v608
        %v3379 = vunpack.c.h.b16 %v608
        %v3380 = vunpack.c.l.b16 %v609
        %v3381 = vunpack.c.h.b16 %v609
        %v3382 = vunpack.c.l.b16 %v610
        %v3383 = vunpack.c.h.b16 %v610
        %v3384 = vunpack.c.l.b16 %v611
        %v3385 = vunpack.c.h.b16 %v611
        %v3386 = vunpack.c.l.b16 %v612
        %v3387 = vunpack.c.h.b16 %v612
        %v3388 = vunpack.c.l.b16 %v613
        %v3389 = vunpack.c.h.b16 %v613
        %v3390 = vunpack.c.l.b16 %v614
        %v3391 = vunpack.c.h.b16 %v614
        %v3392 = vunpack.c.l.b16 %v615
        %v3393 = vunpack.c.h.b16 %v615
        %v3394 = vunpack.c.l.b16 %v616
        %v3395 = vunpack.c.h.b16 %v616
        %v3396 = vunpack.c.l.b16 %v617
        %v3397 = vunpack.c.h.b16 %v617
        %v3398 = vunpack.c.l.b16 %v618
        %v3399 = vunpack.c.h.b16 %v618
        %v3400 = vunpack.c.l.b16 %v619
        %v3401 = vunpack.c.h.b16 %v619
        %v3402 = vunpack.c.l.b16 %v620
        %v3403 = vunpack.c.h.b16 %v620
        %v3404 = vunpack.c.l.b16 %v621
        %v3405 = vunpack.c.h.b16 %v621
        %v3406 = vunpack.c.l.b16 %v622
        %v3407 = vunpack.c.h.b16 %v622
        %v3408 = vunpack.c.l.b16 %v623
        %v3409 = vunpack.c.h.b16 %v623
        %v3410 = vunpack.c.l.b16 %v624
        %v3411 = vunpack.c.h.b16 %v624
        %v3412 = vunpack.c.l.b16 %v625
        %v3413 = vunpack.c.h.b16 %v625
        %v3414 = vunpack.c.l.b16 %v626
        %v3415 = vunpack.c.h.b16 %v626
        %v3416 = vunpack.c.l.b16 %v627
        %v3417 = vunpack.c.h.b16 %v627
        %v3418 = vunpack.c.l.b16 %v628
        %v3419 = vunpack.c.h.b16 %v628
        %v3420 = vunpack.c.l.b16 %v629
        %v3421 = vunpack.c.h.b16 %v629
        %v3422 = vunpack.c.l.b16 %v630
        %v3423 = vunpack.c.h.b16 %v630
        %v3424 = vunpack.c.l.b16 %v631
        %v3425 = vunpack.c.h.b16 %v631
        %v3426 = vunpack.c.l.b16 %v632
        %v3427 = vunpack.c.h.b16 %v632
        %v3428 = vunpack.c.l.b16 %v633
        %v3429 = vunpack.c.h.b16 %v633
        %v3430 = vunpack.c.l.b16 %v634
        %v3431 = vunpack.c.h.b16 %v634
        %v3432 = vunpack.c.l.b16 %v635
        %v3433 = vunpack.c.h.b16 %v635
        %v3434 = vunpack.c.l.b16 %v636
        %v3435 = vunpack.c.h.b16 %v636
        %v3436 = vunpack.c.l.b16 %v637
        %v3437 = vunpack.c.h.b16 %v637
        %v3438 = vunpack.c.l.b16 %v638
        %v3439 = vunpack.c.h.b16 %v638
        %v3440 = vunpack.c.l.b16 %v639
        %v3441 = vunpack.c.h.b16 %v639
        %v3442 = vunpack.c.l.b16 %v640
        %v3443 = vunpack.c.h.b16 %v640
        %v3444 = vunpack.c.l.b16 %v641
        %v3445 = vunpack.c.h.b16 %v641
        %v3446 = vunpack.c.l.b16 %v642
        %v3447 = vunpack.c.h.b16 %v642
        %v3448 = vunpack.c.l.b16 %v643
        %v3449 = vunpack.c.h.b16 %v643
        %v3450 = vunpack.c.l.b16 %v644
        %v3451 = vunpack.c.h.b16 %v644
        %v3452 = vunpack.c.l.b16 %v645
        %v3453 = vunpack.c.h.b16 %v645
        %v3454 = vunpack.c.l.b16 %v646
        %v3455 = vunpack.c.h.b16 %v646
        %v3456 = vunpack.c.l.b16 %v647
        %v3457 = vunpack.c.h.b16 %v647
        %v3458 = vunpack.c.l.b16 %v648
        %v3459 = vunpack.c.h.b16 %v648
        %v3460 = vunpack.c.l.b16 %v649
        %v3461 = vunpack.c.h.b16 %v649
        %v3462 = vunpack.c.l.b16 %v650
        %v3463 = vunpack.c.h.b16 %v650
        %v3464 = vunpack.c.l.b16 %v651
        %v3465 = vunpack.c.h.b16 %v651
        %v3466 = vunpack.c.l.b16 %v652
        %v3467 = vunpack.c.h.b16 %v652
        %v3468 = vunpack.c.l.b16 %v653
        %v3469 = vunpack.c.h.b16 %v653
        %v3470 = vunpack.c.l.b16 %v654
        %v3471 = vunpack.c.h.b16 %v654
        %v3472 = vunpack.c.l.b16 %v655
        %v3473 = vunpack.c.h.b16 %v655
        %v3474 = vunpack.c.l.b16 %v656
        %v3475 = vunpack.c.h.b16 %v656
        %v3476 = vunpack.c.l.b16 %v657
        %v3477 = vunpack.c.h.b16 %v657
        %v3478 = vunpack.c.l.b16 %v658
        %v3479 = vunpack.c.h.b16 %v658
        %v3480 = vunpack.c.l.b16 %v659
        %v3481 = vunpack.c.h.b16 %v659
        %v3482 = vunpack.c.l.b16 %v660
        %v3483 = vunpack.c.h.b16 %v660
        %v3484 = vunpack.c.l.b16 %v661
        %v3485 = vunpack.c.h.b16 %v661
        %v3486 = vunpack.c.l.b16 %v662
        %v3487 = vunpack.c.h.b16 %v662
        %v3488 = vunpack.c.l.b16 %v663
        %v3489 = vunpack.c.h.b16 %v663
        %v3490 = vunpack.c.l.b16 %v664
        %v3491 = vunpack.c.h.b16 %v664
        %v3492 = vunpack.c.l.b16 %v665
        %v3493 = vunpack.c.h.b16 %v665
        %v3494 = vunpack.c.l.b16 %v666
        %v3495 = vunpack.c.h.b16 %v666
        %v3496 = vunpack.c.l.b16 %v667
        %v3497 = vunpack.c.h.b16 %v667
        %v3498 = vunpack.c.l.b16 %v668
        %v3499 = vunpack.c.h.b16 %v668
        %v3500 = vunpack.c.l.b16 %v669
        %v3501 = vunpack.c.h.b16 %v669
        %v3502 = vunpack.c.l.b16 %v670
        %v3503 = vunpack.c.h.b16 %v670
        %v3504 = vunpack.c.l.b16 %v671
        %v3505 = vunpack.c.h.b16 %v671
        %v3506 = vunpack.c.l.b16 %v672
        %v3507 = vunpack.c.h.b16 %v672
        %v3508 = vunpack.c.l.b16 %v673
        %v3509 = vunpack.c.h.b16 %v673
        %v3510 = vunpack.c.l.b16 %v674
        %v3511 = vunpack.c.h.b16 %v674
        %v3512 = vunpack.c.l.b16 %v675
        %v3513 = vunpack.c.h.b16 %v675
        %v3514 = vunpack.c.l.b16 %v676
        %v3515 = vunpack.c.h.b16 %v676
        %v3516 = vunpack.c.l.b16 %v677
        %v3517 = vunpack.c.h.b16 %v677
        %v3518 = vunpack.c.l.b16 %v678
        %v3519 = vunpack.c.h.b16 %v678
        %v3520 = vunpack.c.l.b16 %v679
        %v3521 = vunpack.c.h.b16 %v679
        %v3522 = vunpack.c.l.b16 %v680
        %v3523 = vunpack.c.h.b16 %v680
        %v3524 = vunpack.c.l.b16 %v681
        %v3525 = vunpack.c.h.b16 %v681
        %v3526 = vunpack.c.l.b16 %v682
        %v3527 = vunpack.c.h.b16 %v682
        %v3528 = vunpack.c.l.b16 %v683
        %v3529 = vunpack.c.h.b16 %v683
        %v3530 = vunpack.c.l.b16 %v684
        %v3531 = vunpack.c.h.b16 %v684
        %v3532 = vunpack.c.l.b16 %v685
        %v3533 = vunpack.c.h.b16 %v685
        %v3534 = vunpack.c.l.b16 %v686
        %v3535 = vunpack.c.h.b16 %v686
        %v3536 = vunpack.c.l.b16 %v687
        %v3537 = vunpack.c.h.b16 %v687
        %v3538 = vunpack.c.l.b16 %v688
        %v3539 = vunpack.c.h.b16 %v688
        %v3540 = vunpack.c.l.b16 %v689
        %v3541 = vunpack.c.h.b16 %v689
        %v3542 = vunpack.c.l.b16 %v690
        %v3543 = vunpack.c.h.b16 %v690
        %v3544 = vunpack.c.l.b16 %v691
        %v3545 = vunpack.c.h.b16 %v691
        %v3546 = vunpack.c.l.b16 %v692
        %v3547 = vunpack.c.h.b16 %v692
        %v3548 = vunpack.c.l.b16 %v693
        %v3549 = vunpack.c.h.b16 %v693
        %v3550 = vunpack.c.l.b16 %v694
        %v3551 = vunpack.c.h.b16 %v694
        %v3552 = vunpack.c.l.b16 %v695
        %v3553 = vunpack.c.h.b16 %v695
        %v3554 = vunpack.c.l.b16 %v696
        %v3555 = vunpack.c.h.b16 %v696
        %v3556 = vunpack.c.l.b16 %v697
        %v3557 = vunpack.c.h.b16 %v697
        %v3558 = vunpack.c.l.b16 %v698
        %v3559 = vunpack.c.h.b16 %v698
        %v3560 = vunpack.c.l.b16 %v699
        %v3561 = vunpack.c.h.b16 %v699
        %v3562 = vunpack.c.l.b16 %v700
        %v3563 = vunpack.c.h.b16 %v700
        %v3564 = vunpack.c.l.b16 %v701
        %v3565 = vunpack.c.h.b16 %v701
        %v3566 = vunpack.c.l.b16 %v702
        %v3567 = vunpack.c.h.b16 %v702
        %v3568 = vunpack.c.l.b16 %v703
        %v3569 = vunpack.c.h.b16 %v703
        %v3570 = vunpack.c.l.b16 %v704
        %v3571 = vunpack.c.h.b16 %v704
        %v3572 = vunpack.c.l.b16 %v705
        %v3573 = vunpack.c.h.b16 %v705
        %v3574 = vunpack.c.l.b16 %v706
        %v3575 = vunpack.c.h.b16 %v706
        %v3576 = vunpack.c.l.b16 %v707
        %v3577 = vunpack.c.h.b16 %v707
        %v3578 = vunpack.c.l.b16 %v708
        %v3579 = vunpack.c.h.b16 %v708
        %v3580 = vunpack.c.l.b16 %v709
        %v3581 = vunpack.c.h.b16 %v709
        %v3582 = vunpack.c.l.b16 %v710
        %v3583 = vunpack.c.h.b16 %v710
        %v3584 = vunpack.c.l.b16 %v711
        %v3585 = vunpack.c.h.b16 %v711
        %v3586 = vunpack.c.l.b16 %v712
        %v3587 = vunpack.c.h.b16 %v712
        %v3588 = vunpack.c.l.b16 %v713
        %v3589 = vunpack.c.h.b16 %v713
        %v3590 = vunpack.c.l.b16 %v714
        %v3591 = vunpack.c.h.b16 %v714
        %v3592 = vunpack.c.l.b16 %v715
        %v3593 = vunpack.c.h.b16 %v715
        %v3594 = vunpack.c.l.b16 %v716
        %v3595 = vunpack.c.h.b16 %v716
        %v3596 = vunpack.c.l.b16 %v717
        %v3597 = vunpack.c.h.b16 %v717
        %v3598 = vunpack.c.l.b16 %v718
        %v3599 = vunpack.c.h.b16 %v718
        %v3600 = vunpack.c.l.b16 %v719
        %v3601 = vunpack.c.h.b16 %v719
        %v3602 = vunpack.c.l.b16 %v720
        %v3603 = vunpack.c.h.b16 %v720
        %v3604 = vunpack.c.l.b16 %v721
        %v3605 = vunpack.c.h.b16 %v721
        %v3606 = vunpack.c.l.b16 %v722
        %v3607 = vunpack.c.h.b16 %v722
        %v3608 = vunpack.c.l.b16 %v723
        %v3609 = vunpack.c.h.b16 %v723
        %v3610 = vunpack.c.l.b16 %v724
        %v3611 = vunpack.c.h.b16 %v724
        %v3612 = vunpack.c.l.b16 %v725
        %v3613 = vunpack.c.h.b16 %v725
        %v3614 = vunpack.c.l.b16 %v726
        %v3615 = vunpack.c.h.b16 %v726
        %v3616 = vunpack.c.l.b16 %v727
        %v3617 = vunpack.c.h.b16 %v727
        %v3618 = vunpack.c.l.b16 %v728
        %v3619 = vunpack.c.h.b16 %v728
        %v3620 = vunpack.c.l.b16 %v729
        %v3621 = vunpack.c.h.b16 %v729
        %v3622 = vunpack.c.l.b16 %v730
        %v3623 = vunpack.c.h.b16 %v730
        %v3624 = vunpack.c.l.b16 %v731
        %v3625 = vunpack.c.h.b16 %v731
        %v3626 = vunpack.c.l.b16 %v732
        %v3627 = vunpack.c.h.b16 %v732
        %v3628 = vunpack.c.l.b16 %v733
        %v3629 = vunpack.c.h.b16 %v733
        %v3630 = vunpack.c.l.b16 %v734
        %v3631 = vunpack.c.h.b16 %v734
        %v3632 = vunpack.c.l.b16 %v735
        %v3633 = vunpack.c.h.b16 %v735
        %v3634 = vunpack.c.l.b16 %v736
        %v3635 = vunpack.c.h.b16 %v736
        %v3636 = vunpack.c.l.b16 %v737
        %v3637 = vunpack.c.h.b16 %v737
        %v3638 = vunpack.c.l.b16 %v738
        %v3639 = vunpack.c.h.b16 %v738
        %v3640 = vunpack.c.l.b16 %v739
        %v3641 = vunpack.c.h.b16 %v739
        %v3642 = vunpack.c.l.b16 %v740
        %v3643 = vunpack.c.h.b16 %v740
        %v3644 = vunpack.c.l.b16 %v741
        %v3645 = vunpack.c.h.b16 %v741
        %v3646 = vunpack.c.l.b16 %v742
        %v3647 = vunpack.c.h.b16 %v742
        %v3648 = vunpack.c.l.b16 %v743
        %v3649 = vunpack.c.h.b16 %v743
        %v3650 = vunpack.c.l.b16 %v744
        %v3651 = vunpack.c.h.b16 %v744
        %v3652 = vunpack.c.l.b16 %v745
        %v3653 = vunpack.c.h.b16 %v745
        %v3654 = vunpack.c.l.b16 %v746
        %v3655 = vunpack.c.h.b16 %v746
        %v3656 = vunpack.c.l.b16 %v747
        %v3657 = vunpack.c.h.b16 %v747
        %v3658 = vunpack.c.l.b16 %v748
        %v3659 = vunpack.c.h.b16 %v748
        %v3660 = vunpack.c.l.b16 %v749
        %v3661 = vunpack.c.h.b16 %v749
        %v3662 = vunpack.c.l.b16 %v750
        %v3663 = vunpack.c.h.b16 %v750
        %v3664 = vunpack.c.l.b16 %v751
        %v3665 = vunpack.c.h.b16 %v751
        %v3666 = vunpack.c.l.b16 %v752
        %v3667 = vunpack.c.h.b16 %v752
        %v3668 = vunpack.c.l.b16 %v753
        %v3669 = vunpack.c.h.b16 %v753
        %v3670 = vunpack.c.l.b16 %v754
        %v3671 = vunpack.c.h.b16 %v754
        %v3672 = vunpack.c.l.b16 %v755
        %v3673 = vunpack.c.h.b16 %v755
        %v3674 = vunpack.c.l.b16 %v756
        %v3675 = vunpack.c.h.b16 %v756
        %v3676 = vunpack.c.l.b16 %v757
        %v3677 = vunpack.c.h.b16 %v757
        %v3678 = vunpack.c.l.b16 %v758
        %v3679 = vunpack.c.h.b16 %v758
        %v3680 = vunpack.c.l.b16 %v759
        %v3681 = vunpack.c.h.b16 %v759
        %v3682 = vunpack.c.l.b16 %v760
        %v3683 = vunpack.c.h.b16 %v760
        %v3684 = vunpack.c.l.b16 %v761
        %v3685 = vunpack.c.h.b16 %v761
        %v3686 = vunpack.c.l.b16 %v762
        %v3687 = vunpack.c.h.b16 %v762
        %v3688 = vunpack.c.l.b16 %v763
        %v3689 = vunpack.c.h.b16 %v763
        %v3690 = vunpack.c.l.b16 %v764
        %v3691 = vunpack.c.h.b16 %v764
        %v3692 = vunpack.c.l.b16 %v765
        %v3693 = vunpack.c.h.b16 %v765
        %v3694 = vunpack.c.l.b16 %v766
        %v3695 = vunpack.c.h.b16 %v766
        %v3696 = vunpack.c.l.b16 %v767
        %v3697 = vunpack.c.h.b16 %v767
        %v3698 = vunpack.c.l.b16 %v768
        %v3699 = vunpack.c.h.b16 %v768
        %v3700 = vunpack.c.l.b16 %v769
        %v3701 = vunpack.c.h.b16 %v769
        %v3702 = vunpack.c.l.b16 %v770
        %v3703 = vunpack.c.h.b16 %v770
        %v3704 = vunpack.c.l.b16 %v771
        %v3705 = vunpack.c.h.b16 %v771
        %v3706 = vunpack.c.l.b16 %v772
        %v3707 = vunpack.c.h.b16 %v772
        %v3708 = vunpack.c.l.b16 %v773
        %v3709 = vunpack.c.h.b16 %v773
        %v3710 = vunpack.c.l.b16 %v774
        %v3711 = vunpack.c.h.b16 %v774
        %v3712 = vunpack.c.l.b16 %v775
        %v3713 = vunpack.c.h.b16 %v775
        %v3714 = vunpack.c.l.b16 %v776
        %v3715 = vunpack.c.h.b16 %v776
        %v3716 = vunpack.c.l.b16 %v777
        %v3717 = vunpack.c.h.b16 %v777
        %v3718 = vunpack.c.l.b16 %v778
        %v3719 = vunpack.c.h.b16 %v778
        %v3720 = vunpack.c.l.b16 %v779
        %v3721 = vunpack.c.h.b16 %v779
        %v3722 = vunpack.c.l.b16 %v780
        %v3723 = vunpack.c.h.b16 %v780
        %v3724 = vunpack.c.l.b16 %v781
        %v3725 = vunpack.c.h.b16 %v781
        %v3726 = vunpack.c.l.b16 %v782
        %v3727 = vunpack.c.h.b16 %v782
        %v3728 = vunpack.c.l.b16 %v783
        %v3729 = vunpack.c.h.b16 %v783
        %v3730 = vunpack.c.l.b16 %v784
        %v3731 = vunpack.c.h.b16 %v784
        %v3732 = vunpack.c.l.b16 %v785
        %v3733 = vunpack.c.h.b16 %v785
        %v3734 = vunpack.c.l.b16 %v786
        %v3735 = vunpack.c.h.b16 %v786
        %v3736 = vunpack.c.l.b16 %v787
        %v3737 = vunpack.c.h.b16 %v787
        %v3738 = vunpack.c.l.b16 %v788
        %v3739 = vunpack.c.h.b16 %v788
        %v3740 = vunpack.c.l.b16 %v789
        %v3741 = vunpack.c.h.b16 %v789
        %v3742 = vunpack.c.l.b16 %v790
        %v3743 = vunpack.c.h.b16 %v790
        %v3744 = vunpack.c.l.b16 %v791
        %v3745 = vunpack.c.h.b16 %v791
        %v3746 = vunpack.c.l.b16 %v792
        %v3747 = vunpack.c.h.b16 %v792
        %v3748 = vunpack.c.l.b16 %v793
        %v3749 = vunpack.c.h.b16 %v793
        %v3750 = vunpack.c.l.b16 %v794
        %v3751 = vunpack.c.h.b16 %v794
        %v3752 = vunpack.c.l.b16 %v795
        %v3753 = vunpack.c.h.b16 %v795
        %v3754 = vunpack.c.l.b16 %v796
        %v3755 = vunpack.c.h.b16 %v796
        %v3756 = vunpack.c.l.b16 %v797
        %v3757 = vunpack.c.h.b16 %v797
        %v3758 = vunpack.c.l.b16 %v798
        %v3759 = vunpack.c.h.b16 %v798
        %v3760 = vunpack.c.l.b16 %v799
        %v3761 = vunpack.c.h.b16 %v799
        %v3762 = vunpack.c.l.b16 %v800
        %v3763 = vunpack.c.h.b16 %v800
        %v3764 = vunpack.c.l.b16 %v801
        %v3765 = vunpack.c.h.b16 %v801
        %v3766 = vunpack.c.l.b16 %v802
        %v3767 = vunpack.c.h.b16 %v802
        %v3768 = vunpack.c.l.b16 %v803
        %v3769 = vunpack.c.h.b16 %v803
        %v3770 = vunpack.c.l.b16 %v804
        %v3771 = vunpack.c.h.b16 %v804
        %v3772 = vunpack.c.l.b16 %v805
        %v3773 = vunpack.c.h.b16 %v805
        %v3774 = vunpack.c.l.b16 %v806
        %v3775 = vunpack.c.h.b16 %v806
        %v3776 = vunpack.c.l.b16 %v807
        %v3777 = vunpack.c.h.b16 %v807
        %v3778 = vunpack.c.l.b16 %v808
        %v3779 = vunpack.c.h.b16 %v808
        %v3780 = vunpack.c.l.b16 %v809
        %v3781 = vunpack.c.h.b16 %v809
        %v3782 = vunpack.c.l.b16 %v810
        %v3783 = vunpack.c.h.b16 %v810
        %v3784 = vunpack.c.l.b16 %v811
        %v3785 = vunpack.c.h.b16 %v811
        %v3786 = vunpack.c.l.b16 %v812
        %v3787 = vunpack.c.h.b16 %v812
        %v3788 = vunpack.c.l.b16 %v813
        %v3789 = vunpack.c.h.b16 %v813
        %v3790 = vunpack.c.l.b16 %v814
        %v3791 = vunpack.c.h.b16 %v814
        %v3792 = vunpack.c.l.b16 %v815
        %v3793 = vunpack.c.h.b16 %v815
        %v3794 = vunpack.c.l.b16 %v816
        %v3795 = vunpack.c.h.b16 %v816
        %v3796 = vunpack.c.l.b16 %v817
        %v3797 = vunpack.c.h.b16 %v817
        %v3798 = vunpack.c.l.b16 %v818
        %v3799 = vunpack.c.h.b16 %v818
        %v3800 = vunpack.c.l.b16 %v819
        %v3801 = vunpack.c.h.b16 %v819
        %v3802 = vunpack.c.l.b16 %v820
        %v3803 = vunpack.c.h.b16 %v820
        %v3804 = vunpack.c.l.b16 %v821
        %v3805 = vunpack.c.h.b16 %v821
        %v3806 = vunpack.c.l.b16 %v822
        %v3807 = vunpack.c.h.b16 %v822
        %v3808 = vunpack.c.l.b16 %v823
        %v3809 = vunpack.c.h.b16 %v823
        %v3810 = vunpack.c.l.b16 %v824
        %v3811 = vunpack.c.h.b16 %v824
        %v3812 = vunpack.c.l.b16 %v825
        %v3813 = vunpack.c.h.b16 %v825
        %v3814 = vunpack.c.l.b16 %v826
        %v3815 = vunpack.c.h.b16 %v826
        %v3816 = vunpack.c.l.b16 %v827
        %v3817 = vunpack.c.h.b16 %v827
        %v3818 = vunpack.c.l.b16 %v828
        %v3819 = vunpack.c.h.b16 %v828
        %v3820 = vunpack.c.l.b16 %v829
        %v3821 = vunpack.c.h.b16 %v829
        %v3822 = vunpack.c.l.b16 %v830
        %v3823 = vunpack.c.h.b16 %v830
        %v3824 = vunpack.c.l.b16 %v831
        %v3825 = vunpack.c.h.b16 %v831
        %v3826 = vunpack.c.l.b16 %v832
        %v3827 = vunpack.c.h.b16 %v832
        %v3828 = vunpack.c.l.b16 %v833
        %v3829 = vunpack.c.h.b16 %v833
        %v3830 = vunpack.c.l.b16 %v834
        %v3831 = vunpack.c.h.b16 %v834
        %v3832 = vunpack.c.l.b16 %v835
        %v3833 = vunpack.c.h.b16 %v835
        %v3834 = vunpack.c.l.b16 %v836
        %v3835 = vunpack.c.h.b16 %v836
        %v3836 = vunpack.c.l.b16 %v837
        %v3837 = vunpack.c.h.b16 %v837
        %v3838 = vunpack.c.l.b16 %v838
        %v3839 = vunpack.c.h.b16 %v838
        %v3840 = vunpack.c.l.b16 %v839
        %v3841 = vunpack.c.h.b16 %v839
        %v3842 = vunpack.c.l.b16 %v840
        %v3843 = vunpack.c.h.b16 %v840
        %v3844 = vunpack.c.l.b16 %v841
        %v3845 = vunpack.c.h.b16 %v841
        %v3846 = vunpack.c.l.b16 %v842
        %v3847 = vunpack.c.h.b16 %v842
        %v3848 = vunpack.c.l.b16 %v843
        %v3849 = vunpack.c.h.b16 %v843
        %v3850 = vunpack.c.l.b16 %v844
        %v3851 = vunpack.c.h.b16 %v844
        %v3852 = vunpack.c.l.b16 %v845
        %v3853 = vunpack.c.h.b16 %v845
        %v3854 = vunpack.c.l.b16 %v846
        %v3855 = vunpack.c.h.b16 %v846
        %v3856 = vunpack.c.l.b16 %v847
        %v3857 = vunpack.c.h.b16 %v847
        %v3858 = vunpack.c.l.b16 %v848
        %v3859 = vunpack.c.h.b16 %v848
        %v3860 = vunpack.c.l.b16 %v849
        %v3861 = vunpack.c.h.b16 %v849
        %v3862 = vunpack.c.l.b16 %v850
        %v3863 = vunpack.c.h.b16 %v850
        %v3864 = vunpack.c.l.b16 %v851
        %v3865 = vunpack.c.h.b16 %v851
        %v3866 = vunpack.c.l.b16 %v852
        %v3867 = vunpack.c.h.b16 %v852
        %v3868 = vunpack.c.l.b16 %v853
        %v3869 = vunpack.c.h.b16 %v853
        %v3870 = vunpack.c.l.b16 %v854
        %v3871 = vunpack.c.h.b16 %v854
        %v3872 = vunpack.c.l.b16 %v855
        %v3873 = vunpack.c.h.b16 %v855
        %v3874 = vunpack.c.l.b16 %v856
        %v3875 = vunpack.c.h.b16 %v856
        %v3876 = vunpack.c.l.b16 %v857
        %v3877 = vunpack.c.h.b16 %v857
        %v3878 = vunpack.c.l.b16 %v858
        %v3879 = vunpack.c.h.b16 %v858
        %v3880 = vunpack.c.l.b16 %v859
        %v3881 = vunpack.c.h.b16 %v859
        %v3882 = vunpack.c.l.b16 %v860
        %v3883 = vunpack.c.h.b16 %v860
        %v3884 = vunpack.c.l.b16 %v861
        %v3885 = vunpack.c.h.b16 %v861
        %v3886 = vunpack.c.l.b16 %v862
        %v3887 = vunpack.c.h.b16 %v862
        %v3888 = vunpack.c.l.b16 %v863
        %v3889 = vunpack.c.h.b16 %v863
        %v3890 = vunpack.c.l.b16 %v864
        %v3891 = vunpack.c.h.b16 %v864
        %v3892 = vunpack.c.l.b16 %v865
        %v3893 = vunpack.c.h.b16 %v865
        %v3894 = vunpack.c.l.b16 %v866
        %v3895 = vunpack.c.h.b16 %v866
        %v3896 = vunpack.c.l.b16 %v867
        %v3897 = vunpack.c.h.b16 %v867
        %v3898 = vunpack.c.l.b16 %v868
        %v3899 = vunpack.c.h.b16 %v868
        %v3900 = vunpack.c.l.b16 %v869
        %v3901 = vunpack.c.h.b16 %v869
        %v3902 = vunpack.c.l.b16 %v870
        %v3903 = vunpack.c.h.b16 %v870
        %v3904 = vunpack.c.l.b16 %v871
        %v3905 = vunpack.c.h.b16 %v871
        %v3906 = vunpack.c.l.b16 %v872
        %v3907 = vunpack.c.h.b16 %v872
        %v3908 = vunpack.c.l.b16 %v873
        %v3909 = vunpack.c.h.b16 %v873
        %v3910 = vunpack.c.l.b16 %v874
        %v3911 = vunpack.c.h.b16 %v874
        %v3912 = vunpack.c.l.b16 %v875
        %v3913 = vunpack.c.h.b16 %v875
        %v3914 = vunpack.c.l.b16 %v876
        %v3915 = vunpack.c.h.b16 %v876
        %v3916 = vunpack.c.l.b16 %v877
        %v3917 = vunpack.c.h.b16 %v877
        %v3918 = vunpack.c.l.b16 %v878
        %v3919 = vunpack.c.h.b16 %v878
        %v3920 = vunpack.c.l.b16 %v879
        %v3921 = vunpack.c.h.b16 %v879
        %v3922 = vunpack.c.l.b16 %v880
        %v3923 = vunpack.c.h.b16 %v880
        %v3924 = vunpack.c.l.b16 %v881
        %v3925 = vunpack.c.h.b16 %v881
        %v3926 = vunpack.c.l.b16 %v882
        %v3927 = vunpack.c.h.b16 %v882
        %v3928 = vunpack.c.l.b16 %v883
        %v3929 = vunpack.c.h.b16 %v883
        %v3930 = vunpack.c.l.b16 %v884
        %v3931 = vunpack.c.h.b16 %v884
        %v3932 = vunpack.c.l.b16 %v885
        %v3933 = vunpack.c.h.b16 %v885
        %v3934 = vunpack.c.l.b16 %v886
        %v3935 = vunpack.c.h.b16 %v886
        %v3936 = vunpack.c.l.b16 %v887
        %v3937 = vunpack.c.h.b16 %v887
        %v3938 = vunpack.c.l.b16 %v888
        %v3939 = vunpack.c.h.b16 %v888
        %v3940 = vunpack.c.l.b16 %v889
        %v3941 = vunpack.c.h.b16 %v889
        %v3942 = vunpack.c.l.b16 %v890
        %v3943 = vunpack.c.h.b16 %v890
        %v3944 = vunpack.c.l.b16 %v891
        %v3945 = vunpack.c.h.b16 %v891
        %v3946 = vunpack.c.l.b16 %v892
        %v3947 = vunpack.c.h.b16 %v892
        %v3948 = vunpack.c.l.b16 %v893
        %v3949 = vunpack.c.h.b16 %v893
        %v3950 = vunpack.c.l.b16 %v894
        %v3951 = vunpack.c.h.b16 %v894
        %v3952 = vunpack.c.l.b16 %v895
        %v3953 = vunpack.c.h.b16 %v895
        %v3954 = vunpack.c.l.b16 %v896
        %v3955 = vunpack.c.h.b16 %v896
        %v3956 = vunpack.c.l.b16 %v897
        %v3957 = vunpack.c.h.b16 %v897
        %v3958 = vunpack.c.l.b16 %v898
        %v3959 = vunpack.c.h.b16 %v898
        %v3960 = vunpack.c.l.b16 %v899
        %v3961 = vunpack.c.h.b16 %v899
        %v3962 = vunpack.c.l.b16 %v900
        %v3963 = vunpack.c.h.b16 %v900
        %v3964 = vunpack.c.l.b16 %v901
        %v3965 = vunpack.c.h.b16 %v901
        %v3966 = vunpack.c.l.b16 %v902
        %v3967 = vunpack.c.h.b16 %v902
        %v3968 = vunpack.c.l.b16 %v903
        %v3969 = vunpack.c.h.b16 %v903
        %v3970 = vunpack.c.l.b16 %v904
        %v3971 = vunpack.c.h.b16 %v904
        %v3972 = vunpack.c.l.b16 %v905
        %v3973 = vunpack.c.h.b16 %v905
        %v3974 = vunpack.c.l.b16 %v906
        %v3975 = vunpack.c.h.b16 %v906
        %v3976 = vunpack.c.l.b16 %v907
        %v3977 = vunpack.c.h.b16 %v907
        %v3978 = vunpack.c.l.b16 %v908
        %v3979 = vunpack.c.h.b16 %v908
        %v3980 = vunpack.c.l.b16 %v909
        %v3981 = vunpack.c.h.b16 %v909
        %v3982 = vunpack.c.l.b16 %v910
        %v3983 = vunpack.c.h.b16 %v910
        %v3984 = vunpack.c.l.b16 %v911
        %v3985 = vunpack.c.h.b16 %v911
        %v3986 = vunpack.c.l.b16 %v912
        %v3987 = vunpack.c.h.b16 %v912
        %v3988 = vunpack.c.l.b16 %v913
        %v3989 = vunpack.c.h.b16 %v913
        %v3990 = vunpack.c.l.b16 %v914
        %v3991 = vunpack.c.h.b16 %v914
        %v3992 = vunpack.c.l.b16 %v915
        %v3993 = vunpack.c.h.b16 %v915
        %v3994 = vunpack.c.l.b16 %v916
        %v3995 = vunpack.c.h.b16 %v916
        %v3996 = vunpack.c.l.b16 %v917
        %v3997 = vunpack.c.h.b16 %v917
        %v3998 = vunpack.c.l.b16 %v918
        %v3999 = vunpack.c.h.b16 %v918
        %v4000 = vunpack.c.l.b16 %v919
        %v4001 = vunpack.c.h.b16 %v919
        %v4002 = vunpack.c.l.b16 %v920
        %v4003 = vunpack.c.h.b16 %v920
        %v4004 = vunpack.c.l.b16 %v921
        %v4005 = vunpack.c.h.b16 %v921
        %v4006 = vunpack.c.l.b16 %v922
        %v4007 = vunpack.c.h.b16 %v922
        %v4008 = vunpack.c.l.b16 %v923
        %v4009 = vunpack.c.h.b16 %v923
        %v4010 = vunpack.c.l.b16 %v924
        %v4011 = vunpack.c.h.b16 %v924
        %v4012 = vunpack.c.l.b16 %v925
        %v4013 = vunpack.c.h.b16 %v925
        %v4014 = vunpack.c.l.b16 %v926
        %v4015 = vunpack.c.h.b16 %v926
        %v4016 = vunpack.c.l.b16 %v927
        %v4017 = vunpack.c.h.b16 %v927
        %v4018 = vunpack.c.l.b16 %v928
        %v4019 = vunpack.c.h.b16 %v928
        %v4020 = vunpack.c.l.b16 %v929
        %v4021 = vunpack.c.h.b16 %v929
        %v4022 = vunpack.c.l.b16 %v930
        %v4023 = vunpack.c.h.b16 %v930
        %v4024 = vunpack.c.l.b16 %v931
        %v4025 = vunpack.c.h.b16 %v931
        %v4026 = vunpack.c.l.b16 %v932
        %v4027 = vunpack.c.h.b16 %v932
        %v4028 = vunpack.c.l.b16 %v933
        %v4029 = vunpack.c.h.b16 %v933
        %v4030 = vunpack.c.l.b16 %v934
        %v4031 = vunpack.c.h.b16 %v934
        %v4032 = vunpack.c.l.b16 %v935
        %v4033 = vunpack.c.h.b16 %v935
        %v4034 = vunpack.c.l.b16 %v936
        %v4035 = vunpack.c.h.b16 %v936
        %v4036 = vunpack.c.l.b16 %v937
        %v4037 = vunpack.c.h.b16 %v937
        %v4038 = vunpack.c.l.b16 %v938
        %v4039 = vunpack.c.h.b16 %v938
        %v4040 = vunpack.c.l.b16 %v939
        %v4041 = vunpack.c.h.b16 %v939
        %v4042 = vunpack.c.l.b16 %v940
        %v4043 = vunpack.c.h.b16 %v940
        %v4044 = vunpack.c.l.b16 %v941
        %v4045 = vunpack.c.h.b16 %v941
        %v4046 = vunpack.c.l.b16 %v942
        %v4047 = vunpack.c.h.b16 %v942
        %v4048 = vunpack.c.l.b16 %v943
        %v4049 = vunpack.c.h.b16 %v943
        %v4050 = vunpack.c.l.b16 %v944
        %v4051 = vunpack.c.h.b16 %v944
        %v4052 = vunpack.c.l.b16 %v945
        %v4053 = vunpack.c.h.b16 %v945
        %v4054 = vunpack.c.l.b16 %v946
        %v4055 = vunpack.c.h.b16 %v946
        %v4056 = vunpack.c.l.b16 %v947
        %v4057 = vunpack.c.h.b16 %v947
        %v4058 = vunpack.c.l.b16 %v948
        %v4059 = vunpack.c.h.b16 %v948
        %v4060 = vunpack.c.l.b16 %v949
        %v4061 = vunpack.c.h.b16 %v949
        %v4062 = vunpack.c.l.b16 %v950
        %v4063 = vunpack.c.h.b16 %v950
        %v4064 = vunpack.c.l.b16 %v951
        %v4065 = vunpack.c.h.b16 %v951
        %v4066 = vunpack.c.l.b16 %v952
        %v4067 = vunpack.c.h.b16 %v952
        %v4068 = vunpack.c.l.b16 %v953
        %v4069 = vunpack.c.h.b16 %v953
        %v4070 = vunpack.c.l.b16 %v954
        %v4071 = vunpack.c.h.b16 %v954
        %v4072 = vunpack.c.l.b16 %v955
        %v4073 = vunpack.c.h.b16 %v955
        %v4074 = vunpack.c.l.b16 %v956
        %v4075 = vunpack.c.h.b16 %v956
        %v4076 = vunpack.c.l.b16 %v957
        %v4077 = vunpack.c.h.b16 %v957
        %v4078 = vunpack.c.l.b16 %v958
        %v4079 = vunpack.c.h.b16 %v958
        %v4080 = vunpack.c.l.b16 %v959
        %v4081 = vunpack.c.h.b16 %v959
        %v4082 = vunpack.c.l.b16 %v960
        %v4083 = vunpack.c.h.b16 %v960
        %v4084 = vunpack.c.l.b16 %v961
        %v4085 = vunpack.c.h.b16 %v961
        %v4086 = vunpack.c.l.b16 %v962
        %v4087 = vunpack.c.h.b16 %v962
        %v4088 = vunpack.c.l.b16 %v963
        %v4089 = vunpack.c.h.b16 %v963
        %v4090 = vunpack.c.l.b16 %v964
        %v4091 = vunpack.c.h.b16 %v964
        %v4092 = vunpack.c.l.b16 %v965
        %v4093 = vunpack.c.h.b16 %v965
        %v4094 = vunpack.c.l.b16 %v966
        %v4095 = vunpack.c.h.b16 %v966
        %v4096 = vunpack.c.l.b16 %v967
        %v4097 = vunpack.c.h.b16 %v967
        %v4098 = vunpack.c.l.b16 %v968
        %v4099 = vunpack.c.h.b16 %v968
        %v4100 = vunpack.c.l.b16 %v969
        %v4101 = vunpack.c.h.b16 %v969
        %v4102 = vunpack.c.l.b16 %v970
        %v4103 = vunpack.c.h.b16 %v970
        %v4104 = vunpack.c.l.b16 %v971
        %v4105 = vunpack.c.h.b16 %v971
        %v4106 = vunpack.c.l.b16 %v972
        %v4107 = vunpack.c.h.b16 %v972
        %v4108 = vunpack.c.l.b16 %v973
        %v4109 = vunpack.c.h.b16 %v973
        %v4110 = vunpack.c.l.b16 %v974
        %v4111 = vunpack.c.h.b16 %v974
        %v4112 = vunpack.c.l.b16 %v975
        %v4113 = vunpack.c.h.b16 %v975
        %v4114 = vunpack.c.l.b16 %v976
        %v4115 = vunpack.c.h.b16 %v976
        %v4116 = vunpack.c.l.b16 %v977
        %v4117 = vunpack.c.h.b16 %v977
        %v4118 = vunpack.c.l.b16 %v978
        %v4119 = vunpack.c.h.b16 %v978
        %v4120 = vunpack.c.l.b16 %v979
        %v4121 = vunpack.c.h.b16 %v979
        %v4122 = vunpack.c.l.b16 %v980
        %v4123 = vunpack.c.h.b16 %v980
        %v4124 = vunpack.c.l.b16 %v981
        %v4125 = vunpack.c.h.b16 %v981
        %v4126 = vunpack.c.l.b16 %v982
        %v4127 = vunpack.c.h.b16 %v982
        %v4128 = vunpack.c.l.b16 %v983
        %v4129 = vunpack.c.h.b16 %v983
        %v4130 = vunpack.c.l.b16 %v984
        %v4131 = vunpack.c.h.b16 %v984
        %v4132 = vunpack.c.l.b16 %v985
        %v4133 = vunpack.c.h.b16 %v985
        %v4134 = vunpack.c.l.b16 %v986
        %v4135 = vunpack.c.h.b16 %v986
        %v4136 = vunpack.c.l.b16 %v987
        %v4137 = vunpack.c.h.b16 %v987
        %v4138 = vunpack.c.l.b16 %v988
        %v4139 = vunpack.c.h.b16 %v988
        %v4140 = vunpack.c.l.b16 %v989
        %v4141 = vunpack.c.h.b16 %v989
        %v4142 = vunpack.c.l.b16 %v990
        %v4143 = vunpack.c.h.b16 %v990
        %v4144 = vunpack.c.l.b16 %v991
        %v4145 = vunpack.c.h.b16 %v991
        %v4146 = vunpack.c.l.b16 %v992
        %v4147 = vunpack.c.h.b16 %v992
        %v4148 = vunpack.c.l.b16 %v993
        %v4149 = vunpack.c.h.b16 %v993
        %v4150 = vunpack.c.l.b16 %v994
        %v4151 = vunpack.c.h.b16 %v994
        %v4152 = vunpack.c.l.b16 %v995
        %v4153 = vunpack.c.h.b16 %v995
        %v4154 = vunpack.c.l.b16 %v996
        %v4155 = vunpack.c.h.b16 %v996
        %v4156 = vunpack.c.l.b16 %v997
        %v4157 = vunpack.c.h.b16 %v997
        %v4158 = vunpack.c.l.b16 %v998
        %v4159 = vunpack.c.h.b16 %v998
        %v4160 = vunpack.c.l.b16 %v999
        %v4161 = vunpack.c.h.b16 %v999
        %v4162 = vunpack.c.l.b16 %v1000
        %v4163 = vunpack.c.h.b16 %v1000
        %v4164 = vunpack.c.l.b16 %v1001
        %v4165 = vunpack.c.h.b16 %v1001
        %v4166 = vunpack.c.l.b16 %v1002
        %v4167 = vunpack.c.h.b16 %v1002
        %v4168 = vunpack.c.l.b16 %v1003
        %v4169 = vunpack.c.h.b16 %v1003
        %v4170 = vunpack.c.l.b16 %v1004
        %v4171 = vunpack.c.h.b16 %v1004
        %v4172 = vunpack.c.l.b16 %v1005
        %v4173 = vunpack.c.h.b16 %v1005
        %v4174 = vunpack.c.l.b16 %v1006
        %v4175 = vunpack.c.h.b16 %v1006
        %v4176 = vunpack.c.l.b16 %v1007
        %v4177 = vunpack.c.h.b16 %v1007
        %v4178 = vunpack.c.l.b16 %v1008
        %v4179 = vunpack.c.h.b16 %v1008
        %v4180 = vunpack.c.l.b16 %v1009
        %v4181 = vunpack.c.h.b16 %v1009
        %v4182 = vunpack.c.l.b16 %v1010
        %v4183 = vunpack.c.h.b16 %v1010
        %v4184 = vunpack.c.l.b16 %v1011
        %v4185 = vunpack.c.h.b16 %v1011
        %v4186 = vunpack.c.l.b16 %v1012
        %v4187 = vunpack.c.h.b16 %v1012
        %v4188 = vunpack.c.l.b16 %v1013
        %v4189 = vunpack.c.h.b16 %v1013
        %v4190 = vunpack.c.l.b16 %v1014
        %v4191 = vunpack.c.h.b16 %v1014
        %v4192 = vunpack.c.l.b16 %v1015
        %v4193 = vunpack.c.h.b16 %v1015
        %v4194 = vunpack.c.l.b16 %v1016
        %v4195 = vunpack.c.h.b16 %v1016
        %v4196 = vunpack.c.l.b16 %v1017
        %v4197 = vunpack.c.h.b16 %v1017
        %v4198 = vunpack.c.l.b16 %v1018
        %v4199 = vunpack.c.h.b16 %v1018
        %v4200 = vunpack.c.l.b16 %v1019
        %v4201 = vunpack.c.h.b16 %v1019
        %v4202 = vunpack.c.l.b16 %v1020
        %v4203 = vunpack.c.h.b16 %v1020
        %v4204 = vunpack.c.l.b16 %v1021
        %v4205 = vunpack.c.h.b16 %v1021
        %v4206 = vunpack.c.l.b16 %v1022
        %v4207 = vunpack.c.h.b16 %v1022
        %v4208 = vunpack.c.l.b16 %v1023
        %v4209 = vunpack.c.h.b16 %v1023
        %v4210 = vunpack.c.l.b16 %v1024
        %v4211 = vunpack.c.h.b16 %v1024
        %v4212 = vunpack.c.l.b16 %v1025
        %v4213 = vunpack.c.h.b16 %v1025
        %v4214 = vunpack.c.l.b16 %v1026
        %v4215 = vunpack.c.h.b16 %v1026
        %v4216 = vunpack.c.l.b16 %v1027
        %v4217 = vunpack.c.h.b16 %v1027
        %v4218 = vunpack.c.l.b16 %v1028
        %v4219 = vunpack.c.h.b16 %v1028
        %v4220 = vunpack.c.l.b16 %v1029
        %v4221 = vunpack.c.h.b16 %v1029
        %v4222 = vunpack.c.l.b16 %v1030
        %v4223 = vunpack.c.h.b16 %v1030
        %v4224 = vunpack.c.l.b16 %v1031
        %v4225 = vunpack.c.h.b16 %v1031
        %v4226 = vunpack.c.l.b16 %v1032
        %v4227 = vunpack.c.h.b16 %v1032
        %v4228 = vunpack.c.l.b16 %v1033
        %v4229 = vunpack.c.h.b16 %v1033
        %v4230 = vunpack.c.l.b16 %v1034
        %v4231 = vunpack.c.h.b16 %v1034
        %v4232 = vunpack.c.l.b16 %v1035
        %v4233 = vunpack.c.h.b16 %v1035
        %v4234 = vunpack.c.l.b16 %v1036
        %v4235 = vunpack.c.h.b16 %v1036
        %v4236 = vunpack.c.l.b16 %v1037
        %v4237 = vunpack.c.h.b16 %v1037
        %v4238 = vunpack.c.l.b16 %v1038
        %v4239 = vunpack.c.h.b16 %v1038
        %v4240 = vunpack.c.l.b16 %v1039
        %v4241 = vunpack.c.h.b16 %v1039
        %v4242 = vunpack.c.l.b16 %v1040
        %v4243 = vunpack.c.h.b16 %v1040
        %v4244 = vunpack.c.l.b16 %v1041
        %v4245 = vunpack.c.h.b16 %v1041
        %v4246 = vunpack.c.l.b16 %v1042
        %v4247 = vunpack.c.h.b16 %v1042
        %v4248 = vunpack.c.l.b16 %v1043
        %v4249 = vunpack.c.h.b16 %v1043
        %v4250 = vunpack.c.l.b16 %v1044
        %v4251 = vunpack.c.h.b16 %v1044
        %v4252 = vunpack.c.l.b16 %v1045
        %v4253 = vunpack.c.h.b16 %v1045
        %v4254 = vunpack.c.l.b16 %v1046
        %v4255 = vunpack.c.h.b16 %v1046
        %v4256 = vunpack.c.l.b16 %v1047
        %v4257 = vunpack.c.h.b16 %v1047
        %v4258 = vunpack.c.l.b16 %v1048
        %v4259 = vunpack.c.h.b16 %v1048
        %v4260 = vunpack.c.l.b16 %v1049
        %v4261 = vunpack.c.h.b16 %v1049
        %v4262 = vunpack.c.l.b16 %v1050
        %v4263 = vunpack.c.h.b16 %v1050
        %v4264 = vunpack.c.l.b16 %v1051
        %v4265 = vunpack.c.h.b16 %v1051
        %v4266 = vunpack.c.l.b16 %v1052
        %v4267 = vunpack.c.h.b16 %v1052
        %v4268 = vunpack.c.l.b16 %v1053
        %v4269 = vunpack.c.h.b16 %v1053
        %v4270 = vunpack.c.l.b16 %v1054
        %v4271 = vunpack.c.h.b16 %v1054
        %v4272 = vunpack.c.l.b16 %v1055
        %v4273 = vunpack.c.h.b16 %v1055
        %v4274 = vunpack.c.l.b16 %v1056
        %v4275 = vunpack.c.h.b16 %v1056
        %v4276 = vunpack.c.l.b16 %v1057
        %v4277 = vunpack.c.h.b16 %v1057
        %v4278 = vunpack.c.l.b16 %v1058
        %v4279 = vunpack.c.h.b16 %v1058
        %v4280 = vunpack.c.l.b16 %v1059
        %v4281 = vunpack.c.h.b16 %v1059
        %v4282 = vunpack.c.l.b16 %v1060
        %v4283 = vunpack.c.h.b16 %v1060
        %v4284 = vunpack.c.l.b16 %v1061
        %v4285 = vunpack.c.h.b16 %v1061
        %v4286 = vunpack.c.l.b16 %v1062
        %v4287 = vunpack.c.h.b16 %v1062
        %v4288 = vunpack.c.l.b16 %v1063
        %v4289 = vunpack.c.h.b16 %v1063
        %v4290 = vunpack.c.l.b16 %v1064
        %v4291 = vunpack.c.h.b16 %v1064
        %v4292 = vunpack.c.l.b16 %v1065
        %v4293 = vunpack.c.h.b16 %v1065
        %v4294 = vunpack.c.l.b16 %v1066
        %v4295 = vunpack.c.h.b16 %v1066
        %v4296 = vunpack.c.l.b16 %v1067
        %v4297 = vunpack.c.h.b16 %v1067
        %v4298 = vunpack.c.l.b16 %v1068
        %v4299 = vunpack.c.h.b16 %v1068
        %v4300 = vunpack.c.l.b16 %v1069
        %v4301 = vunpack.c.h.b16 %v1069
        %v4302 = vunpack.c.l.b16 %v1070
        %v4303 = vunpack.c.h.b16 %v1070
        %v4304 = vunpack.c.l.b16 %v1071
        %v4305 = vunpack.c.h.b16 %v1071
        %v4306 = vunpack.c.l.b16 %v1072
        %v4307 = vunpack.c.h.b16 %v1072
        %v4308 = vunpack.c.l.b16 %v1073
        %v4309 = vunpack.c.h.b16 %v1073
        %v4310 = vunpack.c.l.b16 %v1074
        %v4311 = vunpack.c.h.b16 %v1074
        %v4312 = vunpack.c.l.b16 %v1075
        %v4313 = vunpack.c.h.b16 %v1075
        %v4314 = vunpack.c.l.b16 %v1076
        %v4315 = vunpack.c.h.b16 %v1076
        %v4316 = vunpack.c.l.b16 %v1077
        %v4317 = vunpack.c.h.b16 %v1077
        %v4318 = vunpack.c.l.b16 %v1078
        %v4319 = vunpack.c.h.b16 %v1078
        %v4320 = vunpack.c.l.b16 %v1079
        %v4321 = vunpack.c.h.b16 %v1079
        %v4322 = vunpack.c.l.b16 %v1080
        %v4323 = vunpack.c.h.b16 %v1080
        %v4324 = vunpack.c.l.b16 %v1081
        %v4325 = vunpack.c.h.b16 %v1081
        %v4326 = vunpack.c.l.b16 %v1082
        %v4327 = vunpack.c.h.b16 %v1082
        %v4328 = vunpack.c.l.b16 %v1083
        %v4329 = vunpack.c.h.b16 %v1083
        %v4330 = vunpack.c.l.b16 %v1084
        %v4331 = vunpack.c.h.b16 %v1084
        %v4332 = vunpack.c.l.b16 %v1085
        %v4333 = vunpack.c.h.b16 %v1085
        %v4334 = vunpack.c.l.b16 %v1086
        %v4335 = vunpack.c.h.b16 %v1086
        %v4336 = vunpack.c.l.b16 %v1087
        %v4337 = vunpack.c.h.b16 %v1087
        %v4338 = vunpack.c.l.b16 %v1088
        %v4339 = vunpack.c.h.b16 %v1088
        %v4340 = vunpack.c.l.b16 %v1089
        %v4341 = vunpack.c.h.b16 %v1089
        %v4342 = vunpack.c.l.b16 %v1090
        %v4343 = vunpack.c.h.b16 %v1090
        %v4344 = vunpack.c.l.b16 %v1091
        %v4345 = vunpack.c.h.b16 %v1091
        %v4346 = vunpack.c.l.b16 %v1092
        %v4347 = vunpack.c.h.b16 %v1092
        %v4348 = vunpack.c.l.b16 %v1093
        %v4349 = vunpack.c.h.b16 %v1093
        %v4350 = vunpack.c.l.b16 %v1094
        %v4351 = vunpack.c.h.b16 %v1094
        %v4352 = vunpack.c.l.b16 %v1095
        %v4353 = vunpack.c.h.b16 %v1095
        %v4354 = vunpack.c.l.b16 %v1096
        %v4355 = vunpack.c.h.b16 %v1096
        %v4356 = vunpack.c.l.b16 %v1097
        %v4357 = vunpack.c.h.b16 %v1097
        %v4358 = vunpack.c.l.b16 %v1098
        %v4359 = vunpack.c.h.b16 %v1098
        %v4360 = vunpack.c.l.b16 %v1099
        %v4361 = vunpack.c.h.b16 %v1099
        %v4362 = vunpack.c.l.b16 %v1100
        %v4363 = vunpack.c.h.b16 %v1100
        %v4364 = vunpack.c.l.b16 %v1101
        %v4365 = vunpack.c.h.b16 %v1101
        %v4366 = vunpack.c.l.b16 %v1102
        %v4367 = vunpack.c.h.b16 %v1102
        %v4368 = vunpack.c.l.b16 %v1103
        %v4369 = vunpack.c.h.b16 %v1103
        %v4370 = vunpack.c.l.b16 %v1104
        %v4371 = vunpack.c.h.b16 %v1104
        %v4372 = vunpack.c.l.b16 %v1105
        %v4373 = vunpack.c.h.b16 %v1105
        %v4374 = vunpack.c.l.b16 %v1106
        %v4375 = vunpack.c.h.b16 %v1106
        %v4376 = vunpack.c.l.b16 %v1107
        %v4377 = vunpack.c.h.b16 %v1107
        %v4378 = vunpack.c.l.b16 %v1108
        %v4379 = vunpack.c.h.b16 %v1108
        %v4380 = vunpack.c.l.b16 %v1109
        %v4381 = vunpack.c.h.b16 %v1109
        %v4382 = vunpack.c.l.b16 %v1110
        %v4383 = vunpack.c.h.b16 %v1110
        %v4384 = vunpack.c.l.b16 %v1111
        %v4385 = vunpack.c.h.b16 %v1111
        %v4386 = vunpack.c.l.b16 %v1112
        %v4387 = vunpack.c.h.b16 %v1112
        %v4388 = vunpack.c.l.b16 %v1113
        %v4389 = vunpack.c.h.b16 %v1113
        %v4390 = vunpack.c.l.b16 %v1114
        %v4391 = vunpack.c.h.b16 %v1114
        %v4392 = vunpack.c.l.b16 %v1115
        %v4393 = vunpack.c.h.b16 %v1115
        %v4394 = vunpack.c.l.b16 %v1116
        %v4395 = vunpack.c.h.b16 %v1116
        %v4396 = vunpack.c.l.b16 %v1117
        %v4397 = vunpack.c.h.b16 %v1117
        %v4398 = vunpack.c.l.b16 %v1118
        %v4399 = vunpack.c.h.b16 %v1118
        %v4400 = vunpack.c.l.b16 %v1119
        %v4401 = vunpack.c.h.b16 %v1119
        %v4402 = vunpack.c.l.b16 %v1120
        %v4403 = vunpack.c.h.b16 %v1120
        %v4404 = vunpack.c.l.b16 %v1121
        %v4405 = vunpack.c.h.b16 %v1121
        %v4406 = vunpack.c.l.b16 %v1122
        %v4407 = vunpack.c.h.b16 %v1122
        %v4408 = vunpack.c.l.b16 %v1123
        %v4409 = vunpack.c.h.b16 %v1123
        %v4410 = vunpack.c.l.b16 %v1124
        %v4411 = vunpack.c.h.b16 %v1124
        %v4412 = vunpack.c.l.b16 %v1125
        %v4413 = vunpack.c.h.b16 %v1125
        %v4414 = vunpack.c.l.b16 %v1126
        %v4415 = vunpack.c.h.b16 %v1126
        %v4416 = vunpack.c.l.b16 %v1127
        %v4417 = vunpack.c.h.b16 %v1127
        %v4418 = vunpack.c.l.b16 %v1128
        %v4419 = vunpack.c.h.b16 %v1128
        %v4420 = vunpack.c.l.b16 %v1129
        %v4421 = vunpack.c.h.b16 %v1129
        %v4422 = vunpack.c.l.b16 %v1130
        %v4423 = vunpack.c.h.b16 %v1130
        %v4424 = vunpack.c.l.b16 %v1131
        %v4425 = vunpack.c.h.b16 %v1131
        %v4426 = vunpack.c.l.b16 %v1132
        %v4427 = vunpack.c.h.b16 %v1132
        %v4428 = vunpack.c.l.b16 %v1133
        %v4429 = vunpack.c.h.b16 %v1133
        %v4430 = vunpack.c.l.b16 %v1134
        %v4431 = vunpack.c.h.b16 %v1134
        %v4432 = vunpack.c.l.b16 %v1135
        %v4433 = vunpack.c.h.b16 %v1135
        %v4434 = vunpack.c.l.b16 %v1136
        %v4435 = vunpack.c.h.b16 %v1136
        %v4436 = vunpack.c.l.b16 %v1137
        %v4437 = vunpack.c.h.b16 %v1137
        %v4438 = vunpack.c.l.b16 %v1138
        %v4439 = vunpack.c.h.b16 %v1138
        %v4440 = vunpack.c.l.b16 %v1139
        %v4441 = vunpack.c.h.b16 %v1139
        %v4442 = vunpack.c.l.b16 %v1140
        %v4443 = vunpack.c.h.b16 %v1140
        %v4444 = vunpack.c.l.b16 %v1141
        %v4445 = vunpack.c.h.b16 %v1141
        %v4446 = vunpack.c.l.b16 %v1142
        %v4447 = vunpack.c.h.b16 %v1142
        %v4448 = vunpack.c.l.b16 %v1143
        %v4449 = vunpack.c.h.b16 %v1143
        %v4450 = vunpack.c.l.b16 %v1144
        %v4451 = vunpack.c.h.b16 %v1144
        %v4452 = vunpack.c.l.b16 %v1145
        %v4453 = vunpack.c.h.b16 %v1145
        %v4454 = vunpack.c.l.b16 %v1146
        %v4455 = vunpack.c.h.b16 %v1146
        %v4456 = vunpack.c.l.b16 %v1147
        %v4457 = vunpack.c.h.b16 %v1147
        %v4458 = vunpack.c.l.b16 %v1148
        %v4459 = vunpack.c.h.b16 %v1148
        %v4460 = vunpack.c.l.b16 %v1149
        %v4461 = vunpack.c.h.b16 %v1149
        %v4462 = vunpack.c.l.b16 %v1150
        %v4463 = vunpack.c.h.b16 %v1150
        %v4464 = vunpack.c.l.b16 %v1151
        %v4465 = vunpack.c.h.b16 %v1151
        %v4466 = vunpack.c.l.b16 %v1152
        %v4467 = vunpack.c.h.b16 %v1152
        %v4468 = vunpack.c.l.b16 %v1153
        %v4469 = vunpack.c.h.b16 %v1153
        %v4470 = vunpack.c.l.b16 %v1154
        %v4471 = vunpack.c.h.b16 %v1154
        %v4472 = vunpack.c.l.b16 %v1155
        %v4473 = vunpack.c.h.b16 %v1155
        %v4474 = vunpack.c.l.b16 %v1156
        %v4475 = vunpack.c.h.b16 %v1156
        %v4476 = vunpack.c.l.b16 %v1157
        %v4477 = vunpack.c.h.b16 %v1157
        %v4478 = vunpack.c.l.b16 %v1158
        %v4479 = vunpack.c.h.b16 %v1158
        %v4480 = vunpack.c.l.b16 %v1159
        %v4481 = vunpack.c.h.b16 %v1159
        %v4482 = vunpack.c.l.b16 %v1160
        %v4483 = vunpack.c.h.b16 %v1160
        %v4484 = vunpack.c.l.b16 %v1161
        %v4485 = vunpack.c.h.b16 %v1161
        %v4486 = vunpack.c.l.b16 %v1162
        %v4487 = vunpack.c.h.b16 %v1162
        %v4488 = vunpack.c.l.b16 %v1163
        %v4489 = vunpack.c.h.b16 %v1163
        %v4490 = vunpack.c.l.b16 %v1164
        %v4491 = vunpack.c.h.b16 %v1164
        %v4492 = vunpack.c.l.b16 %v1165
        %v4493 = vunpack.c.h.b16 %v1165
        %v4494 = vunpack.c.l.b16 %v1166
        %v4495 = vunpack.c.h.b16 %v1166
        %v4496 = vunpack.c.l.b16 %v1167
        %v4497 = vunpack.c.h.b16 %v1167
        %v4498 = vunpack.c.l.b16 %v1168
        %v4499 = vunpack.c.h.b16 %v1168
        %v4500 = vunpack.c.l.b16 %v1169
        %v4501 = vunpack.c.h.b16 %v1169
        %v4502 = vunpack.c.l.b16 %v1170
        %v4503 = vunpack.c.h.b16 %v1170
        %v4504 = vunpack.c.l.b16 %v1171
        %v4505 = vunpack.c.h.b16 %v1171
        %v4506 = vunpack.c.l.b16 %v1172
        %v4507 = vunpack.c.h.b16 %v1172
        %v4508 = vunpack.c.l.b16 %v1173
        %v4509 = vunpack.c.h.b16 %v1173
        %v4510 = vunpack.c.l.b16 %v1174
        %v4511 = vunpack.c.h.b16 %v1174
        %v4512 = vunpack.c.l.b16 %v1175
        %v4513 = vunpack.c.h.b16 %v1175
        %v4514 = vunpack.c.l.b16 %v1176
        %v4515 = vunpack.c.h.b16 %v1176
        %v4516 = vunpack.c.l.b16 %v1177
        %v4517 = vunpack.c.h.b16 %v1177
        %v4518 = vunpack.c.l.b16 %v1178
        %v4519 = vunpack.c.h.b16 %v1178
        %v4520 = vunpack.c.l.b16 %v1179
        %v4521 = vunpack.c.h.b16 %v1179
        %v4522 = vunpack.c.l.b16 %v1180
        %v4523 = vunpack.c.h.b16 %v1180
        %v4524 = vunpack.c.l.b16 %v1181
        %v4525 = vunpack.c.h.b16 %v1181
        %v4526 = vunpack.c.l.b16 %v1182
        %v4527 = vunpack.c.h.b16 %v1182
        %v4528 = vunpack.c.l.b16 %v1183
        %v4529 = vunpack.c.h.b16 %v1183
        %v4530 = vunpack.c.l.b16 %v1184
        %v4531 = vunpack.c.h.b16 %v1184
        %v4532 = vunpack.c.l.b16 %v1185
        %v4533 = vunpack.c.h.b16 %v1185
        %v4534 = vunpack.c.l.b16 %v1186
        %v4535 = vunpack.c.h.b16 %v1186
        %v4536 = vunpack.c.l.b16 %v1187
        %v4537 = vunpack.c.h.b16 %v1187
        %v4538 = vunpack.c.l.b16 %v1188
        %v4539 = vunpack.c.h.b16 %v1188
        %v4540 = vunpack.c.l.b16 %v1189
        %v4541 = vunpack.c.h.b16 %v1189
        %v4542 = vunpack.c.l.b16 %v1190
        %v4543 = vunpack.c.h.b16 %v1190
        %v4544 = vunpack.c.l.b16 %v1191
        %v4545 = vunpack.c.h.b16 %v1191
        %v4546 = vunpack.c.l.b16 %v1192
        %v4547 = vunpack.c.h.b16 %v1192
        %v4548 = vunpack.c.l.b16 %v1193
        %v4549 = vunpack.c.h.b16 %v1193
        %v4550 = vunpack.c.l.b16 %v1194
        %v4551 = vunpack.c.h.b16 %v1194
        %v4552 = vunpack.c.l.b16 %v1195
        %v4553 = vunpack.c.h.b16 %v1195
        %v4554 = vunpack.c.l.b16 %v1196
        %v4555 = vunpack.c.h.b16 %v1196
        %v4556 = vunpack.c.l.b16 %v1197
        %v4557 = vunpack.c.h.b16 %v1197
        %v4558 = vunpack.c.l.b16 %v1198
        %v4559 = vunpack.c.h.b16 %v1198
        %v4560 = vunpack.c.l.b16 %v1199
        %v4561 = vunpack.c.h.b16 %v1199
        %v4562 = vunpack.c.l.b16 %v1200
        %v4563 = vunpack.c.h.b16 %v1200
        %v4564 = vunpack.c.l.b16 %v1201
        %v4565 = vunpack.c.h.b16 %v1201
        %v4566 = vunpack.c.l.b16 %v1202
        %v4567 = vunpack.c.h.b16 %v1202
        %v4568 = vunpack.c.l.b16 %v1203
        %v4569 = vunpack.c.h.b16 %v1203
        %v4570 = vunpack.c.l.b16 %v1204
        %v4571 = vunpack.c.h.b16 %v1204
        %v4572 = vunpack.c.l.b16 %v1205
        %v4573 = vunpack.c.h.b16 %v1205
        %v4574 = vunpack.c.l.b16 %v1206
        %v4575 = vunpack.c.h.b16 %v1206
        %v4576 = vunpack.c.l.b16 %v1207
        %v4577 = vunpack.c.h.b16 %v1207
        %v4578 = vunpack.c.l.b16 %v1208
        %v4579 = vunpack.c.h.b16 %v1208
        %v4580 = vunpack.c.l.b16 %v1209
        %v4581 = vunpack.c.h.b16 %v1209
        %v4582 = vunpack.c.l.b16 %v1210
        %v4583 = vunpack.c.h.b16 %v1210
        %v4584 = vunpack.c.l.b16 %v1211
        %v4585 = vunpack.c.h.b16 %v1211
        %v4586 = vunpack.c.l.b16 %v1212
        %v4587 = vunpack.c.h.b16 %v1212
        %v4588 = vunpack.c.l.b16 %v1213
        %v4589 = vunpack.c.h.b16 %v1213
        %v4590 = vunpack.c.l.b16 %v1214
        %v4591 = vunpack.c.h.b16 %v1214
        %v4592 = vunpack.c.l.b16 %v1215
        %v4593 = vunpack.c.h.b16 %v1215
        %v4594 = vunpack.c.l.b16 %v1216
        %v4595 = vunpack.c.h.b16 %v1216
        %v4596 = vunpack.c.l.b16 %v1217
        %v4597 = vunpack.c.h.b16 %v1217
        %v4598 = vunpack.c.l.b16 %v1218
        %v4599 = vunpack.c.h.b16 %v1218
        %v4600 = vunpack.c.l.b16 %v1219
        %v4601 = vunpack.c.h.b16 %v1219
        %v4602 = vunpack.c.l.b16 %v1220
        %v4603 = vunpack.c.h.b16 %v1220
        %v4604 = vunpack.c.l.b16 %v1221
        %v4605 = vunpack.c.h.b16 %v1221
        %v4606 = vunpack.c.l.b16 %v1222
        %v4607 = vunpack.c.h.b16 %v1222
        %v4608 = vunpack.c.l.b16 %v1223
        %v4609 = vunpack.c.h.b16 %v1223
        %v4610 = vunpack.c.l.b16 %v1224
        %v4611 = vunpack.c.h.b16 %v1224
        %v4612 = vunpack.c.l.b16 %v1225
        %v4613 = vunpack.c.h.b16 %v1225
        %v4614 = vunpack.c.l.b16 %v1226
        %v4615 = vunpack.c.h.b16 %v1226
        %v4616 = vunpack.c.l.b16 %v1227
        %v4617 = vunpack.c.h.b16 %v1227
        %v4618 = vunpack.c.l.b16 %v1228
        %v4619 = vunpack.c.h.b16 %v1228
        %v4620 = vunpack.c.l.b16 %v1229
        %v4621 = vunpack.c.h.b16 %v1229
        %v4622 = vunpack.c.l.b16 %v1230
        %v4623 = vunpack.c.h.b16 %v1230
        %v4624 = vunpack.c.l.b16 %v1231
        %v4625 = vunpack.c.h.b16 %v1231
        %v4626 = vunpack.c.l.b16 %v1232
        %v4627 = vunpack.c.h.b16 %v1232
        %v4628 = vunpack.c.l.b16 %v1233
        %v4629 = vunpack.c.h.b16 %v1233
        %v4630 = vunpack.c.l.b16 %v1234
        %v4631 = vunpack.c.h.b16 %v1234
        %v4632 = vunpack.c.l.b16 %v1235
        %v4633 = vunpack.c.h.b16 %v1235
        %v4634 = vunpack.c.l.b16 %v1236
        %v4635 = vunpack.c.h.b16 %v1236
        %v4636 = vunpack.c.l.b16 %v1237
        %v4637 = vunpack.c.h.b16 %v1237
        %v4638 = vunpack.c.l.b16 %v1238
        %v4639 = vunpack.c.h.b16 %v1238
        %v4640 = vunpack.c.l.b16 %v1239
        %v4641 = vunpack.c.h.b16 %v1239
        %v4642 = vunpack.c.l.b16 %v1240
        %v4643 = vunpack.c.h.b16 %v1240
        %v4644 = vunpack.c.l.b16 %v1241
        %v4645 = vunpack.c.h.b16 %v1241
        %v4646 = vunpack.c.l.b16 %v1242
        %v4647 = vunpack.c.h.b16 %v1242
        %v4648 = vunpack.c.l.b16 %v1243
        %v4649 = vunpack.c.h.b16 %v1243
        %v4650 = vunpack.c.l.b16 %v1244
        %v4651 = vunpack.c.h.b16 %v1244
        %v4652 = vunpack.c.l.b16 %v1245
        %v4653 = vunpack.c.h.b16 %v1245
        %v4654 = vunpack.c.l.b16 %v1246
        %v4655 = vunpack.c.h.b16 %v1246
        %v4656 = vunpack.c.l.b16 %v1247
        %v4657 = vunpack.c.h.b16 %v1247
        %v4658 = vunpack.c.l.b16 %v1248
        %v4659 = vunpack.c.h.b16 %v1248
        %v4660 = vunpack.c.l.b16 %v1249
        %v4661 = vunpack.c.h.b16 %v1249
        %v4662 = vunpack.c.l.b16 %v1250
        %v4663 = vunpack.c.h.b16 %v1250
        %v4664 = vunpack.c.l.b16 %v1251
        %v4665 = vunpack.c.h.b16 %v1251
        %v4666 = vunpack.c.l.b16 %v1252
        %v4667 = vunpack.c.h.b16 %v1252
        %v4668 = vunpack.c.l.b16 %v1253
        %v4669 = vunpack.c.h.b16 %v1253
        %v4670 = vunpack.c.l.b16 %v1254
        %v4671 = vunpack.c.h.b16 %v1254
        %v4672 = vunpack.c.l.b16 %v1255
        %v4673 = vunpack.c.h.b16 %v1255
        %v4674 = vunpack.c.l.b16 %v1256
        %v4675 = vunpack.c.h.b16 %v1256
        %v4676 = vunpack.c.l.b16 %v1257
        %v4677 = vunpack.c.h.b16 %v1257
        %v4678 = vunpack.c.l.b16 %v1258
        %v4679 = vunpack.c.h.b16 %v1258
        %v4680 = vunpack.c.l.b16 %v1259
        %v4681 = vunpack.c.h.b16 %v1259
        %v4682 = vunpack.c.l.b16 %v1260
        %v4683 = vunpack.c.h.b16 %v1260
        %v4684 = vunpack.c.l.b16 %v1261
        %v4685 = vunpack.c.h.b16 %v1261
        %v4686 = vunpack.c.l.b16 %v1262
        %v4687 = vunpack.c.h.b16 %v1262
        %v4688 = vunpack.c.l.b16 %v1263
        %v4689 = vunpack.c.h.b16 %v1263
        %v4690 = vunpack.c.l.b16 %v1264
        %v4691 = vunpack.c.h.b16 %v1264
        %v4692 = vunpack.c.l.b16 %v1265
        %v4693 = vunpack.c.h.b16 %v1265
        %v4694 = vunpack.c.l.b16 %v1266
        %v4695 = vunpack.c.h.b16 %v1266
        %v4696 = vunpack.c.l.b16 %v1267
        %v4697 = vunpack.c.h.b16 %v1267
        %v4698 = vunpack.c.l.b16 %v1268
        %v4699 = vunpack.c.h.b16 %v1268
        %v4700 = vunpack.c.l.b16 %v1269
        %v4701 = vunpack.c.h.b16 %v1269
        %v4702 = vunpack.c.l.b16 %v1270
        %v4703 = vunpack.c.h.b16 %v1270
        %v4704 = vunpack.c.l.b16 %v1271
        %v4705 = vunpack.c.h.b16 %v1271
        %v4706 = vunpack.c.l.b16 %v1272
        %v4707 = vunpack.c.h.b16 %v1272
        %v4708 = vunpack.c.l.b16 %v1273
        %v4709 = vunpack.c.h.b16 %v1273
        %v4710 = vunpack.c.l.b16 %v1274
        %v4711 = vunpack.c.h.b16 %v1274
        %v4712 = vunpack.c.l.b16 %v1275
        %v4713 = vunpack.c.h.b16 %v1275
        %v4714 = vunpack.c.l.b16 %v1276
        %v4715 = vunpack.c.h.b16 %v1276
        %v4716 = vunpack.c.l.b16 %v1277
        %v4717 = vunpack.c.h.b16 %v1277
        %v4718 = vunpack.c.l.b16 %v1278
        %v4719 = vunpack.c.h.b16 %v1278
        %v4720 = vunpack.c.l.b16 %v1279
        %v4721 = vunpack.c.h.b16 %v1279
        %v4722 = vunpack.c.l.b16 %v1280
        %v4723 = vunpack.c.h.b16 %v1280
        %v4724 = vunpack.c.l.b16 %v1281
        %v4725 = vunpack.c.h.b16 %v1281
        %v4726 = vunpack.c.l.b16 %v1282
        %v4727 = vunpack.c.h.b16 %v1282
        %v4728 = vunpack.c.l.b16 %v1283
        %v4729 = vunpack.c.h.b16 %v1283
        %v4730 = vunpack.c.l.b16 %v1284
        %v4731 = vunpack.c.h.b16 %v1284
        %v4732 = vunpack.c.l.b16 %v1285
        %v4733 = vunpack.c.h.b16 %v1285
        %v4734 = vunpack.c.l.b16 %v1286
        %v4735 = vunpack.c.h.b16 %v1286
        %v4736 = vunpack.c.l.b16 %v1287
        %v4737 = vunpack.c.h.b16 %v1287
        %v4738 = vunpack.c.l.b16 %v1288
        %v4739 = vunpack.c.h.b16 %v1288
        %v4740 = vunpack.c.l.b16 %v1289
        %v4741 = vunpack.c.h.b16 %v1289
        %v4742 = vunpack.c.l.b16 %v1290
        %v4743 = vunpack.c.h.b16 %v1290
        %v4744 = vunpack.c.l.b16 %v1291
        %v4745 = vunpack.c.h.b16 %v1291
        %v4746 = vunpack.c.l.b16 %v1292
        %v4747 = vunpack.c.h.b16 %v1292
        %v4748 = vunpack.c.l.b16 %v1293
        %v4749 = vunpack.c.h.b16 %v1293
        %v4750 = vunpack.c.l.b16 %v1294
        %v4751 = vunpack.c.h.b16 %v1294
        %v4752 = vunpack.c.l.b16 %v1295
        %v4753 = vunpack.c.h.b16 %v1295
        %v4754 = vunpack.c.l.b16 %v1296
        %v4755 = vunpack.c.h.b16 %v1296
        %v4756 = vunpack.c.l.b16 %v1297
        %v4757 = vunpack.c.h.b16 %v1297
        %v4758 = vunpack.c.l.b16 %v1298
        %v4759 = vunpack.c.h.b16 %v1298
        %v4760 = vunpack.c.l.b16 %v1299
        %v4761 = vunpack.c.h.b16 %v1299
        %v4762 = vunpack.c.l.b16 %v1300
        %v4763 = vunpack.c.h.b16 %v1300
        %v4764 = vunpack.c.l.b16 %v1301
        %v4765 = vunpack.c.h.b16 %v1301
        %v4766 = vunpack.c.l.b16 %v1302
        %v4767 = vunpack.c.h.b16 %v1302
        %v4768 = vunpack.c.l.b16 %v1303
        %v4769 = vunpack.c.h.b16 %v1303
        %v4770 = vunpack.c.l.b16 %v1304
        %v4771 = vunpack.c.h.b16 %v1304
        %v4772 = vunpack.c.l.b16 %v1305
        %v4773 = vunpack.c.h.b16 %v1305
        %v4774 = vunpack.c.l.b16 %v1306
        %v4775 = vunpack.c.h.b16 %v1306
        %v4776 = vunpack.c.l.b16 %v1307
        %v4777 = vunpack.c.h.b16 %v1307
        %v4778 = vunpack.c.l.b16 %v1308
        %v4779 = vunpack.c.h.b16 %v1308
        %v4780 = vunpack.c.l.b16 %v1309
        %v4781 = vunpack.c.h.b16 %v1309
        %v4782 = vunpack.c.l.b16 %v1310
        %v4783 = vunpack.c.h.b16 %v1310
        %v4784 = vunpack.c.l.b16 %v1311
        %v4785 = vunpack.c.h.b16 %v1311
        %v4786 = vunpack.c.l.b16 %v1312
        %v4787 = vunpack.c.h.b16 %v1312
        %v4788 = vunpack.c.l.b16 %v1313
        %v4789 = vunpack.c.h.b16 %v1313
        %v4790 = vunpack.c.l.b16 %v1314
        %v4791 = vunpack.c.h.b16 %v1314
        %v4792 = vunpack.c.l.b16 %v1315
        %v4793 = vunpack.c.h.b16 %v1315
        %v4794 = vunpack.c.l.b16 %v1316
        %v4795 = vunpack.c.h.b16 %v1316
        %v4796 = vunpack.c.l.b16 %v1317
        %v4797 = vunpack.c.h.b16 %v1317
        %v4798 = vunpack.c.l.b16 %v1318
        %v4799 = vunpack.c.h.b16 %v1318
        %v4800 = vunpack.c.l.b16 %v1319
        %v4801 = vunpack.c.h.b16 %v1319
        %v4802 = vunpack.c.l.b16 %v1320
        %v4803 = vunpack.c.h.b16 %v1320
        %v4804 = vunpack.c.l.b16 %v1321
        %v4805 = vunpack.c.h.b16 %v1321
        %v4806 = vunpack.c.l.b16 %v1322
        %v4807 = vunpack.c.h.b16 %v1322
        %v4808 = vunpack.c.l.b16 %v1323
        %v4809 = vunpack.c.h.b16 %v1323
        %v4810 = vunpack.c.l.b16 %v1324
        %v4811 = vunpack.c.h.b16 %v1324
        %v4812 = vunpack.c.l.b16 %v1325
        %v4813 = vunpack.c.h.b16 %v1325
        %v4814 = vunpack.c.l.b16 %v1326
        %v4815 = vunpack.c.h.b16 %v1326
        %v4816 = vunpack.c.l.b16 %v1327
        %v4817 = vunpack.c.h.b16 %v1327
        %v4818 = vunpack.c.l.b16 %v1328
        %v4819 = vunpack.c.h.b16 %v1328
        %v4820 = vunpack.c.l.b16 %v1329
        %v4821 = vunpack.c.h.b16 %v1329
        %v4822 = vunpack.c.l.b16 %v1330
        %v4823 = vunpack.c.h.b16 %v1330
        %v4824 = vunpack.c.l.b16 %v1331
        %v4825 = vunpack.c.h.b16 %v1331
        %v4826 = vunpack.c.l.b16 %v1332
        %v4827 = vunpack.c.h.b16 %v1332
        %v4828 = vunpack.c.l.b16 %v1333
        %v4829 = vunpack.c.h.b16 %v1333
        %v4830 = vunpack.c.l.b16 %v1334
        %v4831 = vunpack.c.h.b16 %v1334
        %v4832 = vunpack.c.l.b16 %v1335
        %v4833 = vunpack.c.h.b16 %v1335
        %v4834 = vunpack.c.l.b16 %v1336
        %v4835 = vunpack.c.h.b16 %v1336
        %v4836 = vunpack.c.l.b16 %v1337
        %v4837 = vunpack.c.h.b16 %v1337
        %v4838 = vunpack.c.l.b16 %v1338
        %v4839 = vunpack.c.h.b16 %v1338
        %v4840 = vunpack.c.l.b16 %v1339
        %v4841 = vunpack.c.h.b16 %v1339
        %v4842 = vunpack.c.l.b16 %v1340
        %v4843 = vunpack.c.h.b16 %v1340
        %v4844 = vunpack.c.l.b16 %v1341
        %v4845 = vunpack.c.h.b16 %v1341
        %v4846 = vunpack.c.l.b16 %v1342
        %v4847 = vunpack.c.h.b16 %v1342
        %v4848 = vunpack.c.l.b16 %v1343
        %v4849 = vunpack.c.h.b16 %v1343
        %v4850 = vunpack.c.l.b16 %v1344
        %v4851 = vunpack.c.h.b16 %v1344
        %v4852 = vunpack.c.l.b16 %v1345
        %v4853 = vunpack.c.h.b16 %v1345
        %v4854 = vunpack.c.l.b16 %v1346
        %v4855 = vunpack.c.h.b16 %v1346
        %v4856 = vunpack.c.l.b16 %v1347
        %v4857 = vunpack.c.h.b16 %v1347
        %v4858 = vunpack.c.l.b16 %v1348
        %v4859 = vunpack.c.h.b16 %v1348
        %v4860 = vunpack.c.l.b16 %v1349
        %v4861 = vunpack.c.h.b16 %v1349
        %v4862 = vunpack.c.l.b16 %v1350
        %v4863 = vunpack.c.h.b16 %v1350
        %v4864 = vunpack.c.l.b16 %v1351
        %v4865 = vunpack.c.h.b16 %v1351
        %v4866 = vunpack.c.l.b16 %v1352
        %v4867 = vunpack.c.h.b16 %v1352
        %v4868 = vunpack.c.l.b16 %v1353
        %v4869 = vunpack.c.h.b16 %v1353
        %v4870 = vunpack.c.l.b16 %v1354
        %v4871 = vunpack.c.h.b16 %v1354
        %v4872 = vunpack.c.l.b16 %v1355
        %v4873 = vunpack.c.h.b16 %v1355
        %v4874 = vunpack.c.l.b16 %v1356
        %v4875 = vunpack.c.h.b16 %v1356
        %v4876 = vunpack.c.l.b16 %v1357
        %v4877 = vunpack.c.h.b16 %v1357
        %v4878 = vunpack.c.l.b16 %v1358
        %v4879 = vunpack.c.h.b16 %v1358
        %v4880 = vunpack.c.l.b16 %v1359
        %v4881 = vunpack.c.h.b16 %v1359
        %v4882 = vunpack.c.l.b16 %v1360
        %v4883 = vunpack.c.h.b16 %v1360
        %v4884 = vunpack.c.l.b16 %v1361
        %v4885 = vunpack.c.h.b16 %v1361
        %v4886 = vunpack.c.l.b16 %v1362
        %v4887 = vunpack.c.h.b16 %v1362
        %v4888 = vunpack.c.l.b16 %v1363
        %v4889 = vunpack.c.h.b16 %v1363
        %v4890 = vunpack.c.l.b16 %v1364
        %v4891 = vunpack.c.h.b16 %v1364
        %v4892 = vunpack.c.l.b16 %v1365
        %v4893 = vunpack.c.h.b16 %v1365
        %v4894 = vunpack.c.l.b16 %v1366
        %v4895 = vunpack.c.h.b16 %v1366
        %v4896 = vunpack.c.l.b16 %v1367
        %v4897 = vunpack.c.h.b16 %v1367
        %v4898 = vunpack.c.l.b16 %v1368
        %v4899 = vunpack.c.h.b16 %v1368
        %v4900 = vunpack.c.l.b16 %v1369
        %v4901 = vunpack.c.h.b16 %v1369
        %v4902 = vunpack.c.l.b16 %v1370
        %v4903 = vunpack.c.h.b16 %v1370
        %v4904 = vunpack.c.l.b16 %v1371
        %v4905 = vunpack.c.h.b16 %v1371
        %v4906 = vunpack.c.l.b16 %v1372
        %v4907 = vunpack.c.h.b16 %v1372
        %v4908 = vunpack.c.l.b16 %v1373
        %v4909 = vunpack.c.h.b16 %v1373
        %v4910 = vunpack.c.l.b16 %v1374
        %v4911 = vunpack.c.h.b16 %v1374
        %v4912 = vunpack.c.l.b16 %v1375
        %v4913 = vunpack.c.h.b16 %v1375
        %v4914 = vunpack.c.l.b16 %v1376
        %v4915 = vunpack.c.h.b16 %v1376
        %v4916 = vunpack.c.l.b16 %v1377
        %v4917 = vunpack.c.h.b16 %v1377
        %v4918 = vunpack.c.l.b16 %v1378
        %v4919 = vunpack.c.h.b16 %v1378
        %v4920 = vunpack.c.l.b16 %v1379
        %v4921 = vunpack.c.h.b16 %v1379
        %v4922 = vunpack.c.l.b16 %v1380
        %v4923 = vunpack.c.h.b16 %v1380
        %v4924 = vunpack.c.l.b16 %v1381
        %v4925 = vunpack.c.h.b16 %v1381
        %v4926 = vunpack.c.l.b16 %v1382
        %v4927 = vunpack.c.h.b16 %v1382
        %v4928 = vunpack.c.l.b16 %v1383
        %v4929 = vunpack.c.h.b16 %v1383
        %v4930 = vunpack.c.l.b16 %v1384
        %v4931 = vunpack.c.h.b16 %v1384
        %v4932 = vunpack.c.l.b16 %v1385
        %v4933 = vunpack.c.h.b16 %v1385
        %v4934 = vunpack.c.l.b16 %v1386
        %v4935 = vunpack.c.h.b16 %v1386
        %v4936 = vunpack.c.l.b16 %v1387
        %v4937 = vunpack.c.h.b16 %v1387
        %v4938 = vunpack.c.l.b16 %v1388
        %v4939 = vunpack.c.h.b16 %v1388
        %v4940 = vunpack.c.l.b16 %v1389
        %v4941 = vunpack.c.h.b16 %v1389
        %v4942 = vunpack.c.l.b16 %v1390
        %v4943 = vunpack.c.h.b16 %v1390
        %v4944 = vunpack.c.l.b16 %v1391
        %v4945 = vunpack.c.h.b16 %v1391
        %v4946 = vunpack.c.l.b16 %v1392
        %v4947 = vunpack.c.h.b16 %v1392
        %v4948 = vunpack.c.l.b16 %v1393
        %v4949 = vunpack.c.h.b16 %v1393
        %v4950 = vunpack.c.l.b16 %v1394
        %v4951 = vunpack.c.h.b16 %v1394
        %v4952 = vunpack.c.l.b16 %v1395
        %v4953 = vunpack.c.h.b16 %v1395
        %v4954 = vunpack.c.l.b16 %v1396
        %v4955 = vunpack.c.h.b16 %v1396
        %v4956 = vunpack.c.l.b16 %v1397
        %v4957 = vunpack.c.h.b16 %v1397
        %v4958 = vunpack.c.l.b16 %v1398
        %v4959 = vunpack.c.h.b16 %v1398
        %v4960 = vunpack.c.l.b16 %v1399
        %v4961 = vunpack.c.h.b16 %v1399
        %v4962 = vpack.c.b16 %v2670, %v2658
        %v4963 = vpack.c.b16 %v2671, %v2659
        %v4964 = vpack.c.b16 %v2672, %v2660
        %v4965 = vpack.c.b16 %v2673, %v2661
        %v4966 = vpack.c.b16 %v2674, %v2662
        %v4967 = vpack.c.b16 %v2675, %v2663
        %v4968 = vpack.c.b16 %v2676, %v2664
        %v4969 = vpack.c.b16 %v2677, %v2665
        %v4970 = vpack.c.b16 %v2678, %v2666
        %v4971 = vpack.c.b16 %v2679, %v2667
        %v4972 = vpack.c.b16 %v2680, %v2668
        %v4973 = vpack.c.b16 %v2681, %v2669
        %v4974 = vpack.c.b16 %v2694, %v2682
        %v4975 = vpack.c.b16 %v2695, %v2683
        %v4976 = vpack.c.b16 %v2696, %v2684
        %v4977 = vpack.c.b16 %v2697, %v2685
        %v4978 = vpack.c.b16 %v2698, %v2686
        %v4979 = vpack.c.b16 %v2699, %v2687
        %v4980 = vpack.c.b16 %v2700, %v2688
        %v4981 = vpack.c.b16 %v2701, %v2689
        %v4982 = vpack.c.b16 %v2702, %v2690
        %v4983 = vpack.c.b16 %v2703, %v2691
        %v4984 = vpack.c.b16 %v2704, %v2692
        %v4985 = vpack.c.b16 %v2705, %v2693
        %v4986 = vpack.c.b16 %v2718, %v2706
        %v4987 = vpack.c.b16 %v2719, %v2707
        %v4988 = vpack.c.b16 %v2720, %v2708
        %v4989 = vpack.c.b16 %v2721, %v2709
        %v4990 = vpack.c.b16 %v2722, %v2710
        %v4991 = vpack.c.b16 %v2723, %v2711
        %v4992 = vpack.c.b16 %v2724, %v2712
        %v4993 = vpack.c.b16 %v2725, %v2713
        %v4994 = vpack.c.b16 %v2726, %v2714
        %v4995 = vpack.c.b16 %v2727, %v2715
        %v4996 = vpack.c.b16 %v2728, %v2716
        %v4997 = vpack.c.b16 %v2729, %v2717
        %v4998 = vpack.c.b16 %v2742, %v2730
        %v4999 = vpack.c.b16 %v2743, %v2731
        %v5000 = vpack.c.b16 %v2744, %v2732
        %v5001 = vpack.c.b16 %v2745, %v2733
        %v5002 = vpack.c.b16 %v2746, %v2734
        %v5003 = vpack.c.b16 %v2747, %v2735
        %v5004 = vpack.c.b16 %v2748, %v2736
        %v5005 = vpack.c.b16 %v2749, %v2737
        %v5006 = vpack.c.b16 %v2750, %v2738
        %v5007 = vpack.c.b16 %v2751, %v2739
        %v5008 = vpack.c.b16 %v2752, %v2740
        %v5009 = vpack.c.b16 %v2753, %v2741
        %v5010 = vpack.c.b16 %v2766, %v2754
        %v5011 = vpack.c.b16 %v2767, %v2755
        %v5012 = vpack.c.b16 %v2768, %v2756
        %v5013 = vpack.c.b16 %v2769, %v2757
        %v5014 = vpack.c.b16 %v2770, %v2758
        %v5015 = vpack.c.b16 %v2771, %v2759
        %v5016 = vpack.c.b16 %v2772, %v2760
        %v5017 = vpack.c.b16 %v2773, %v2761
        %v5018 = vpack.c.b16 %v2774, %v2762
        %v5019 = vpack.c.b16 %v2775, %v2763
        %v5020 = vpack.c.b16 %v2776, %v2764
        %v5021 = vpack.c.b16 %v2777, %v2765
        %v5022 = vpack.c.b16 %v2790, %v2778
        %v5023 = vpack.c.b16 %v2791, %v2779
        %v5024 = vpack.c.b16 %v2792, %v2780
        %v5025 = vpack.c.b16 %v2793, %v2781
        %v5026 = vpack.c.b16 %v2794, %v2782
        %v5027 = vpack.c.b16 %v2795, %v2783
        %v5028 = vpack.c.b16 %v2796, %v2784
        %v5029 = vpack.c.b16 %v2797, %v2785
        %v5030 = vpack.c.b16 %v2798, %v2786
        %v5031 = vpack.c.b16 %v2799, %v2787
        %v5032 = vpack.c.b16 %v2800, %v2788
        %v5033 = vpack.c.b16 %v2801, %v2789
        %v5034 = vpack.c.b16 %v2814, %v2802
        %v5035 = vpack.c.b16 %v2815, %v2803
        %v5036 = vpack.c.b16 %v2816, %v2804
        %v5037 = vpack.c.b16 %v2817, %v2805
        %v5038 = vpack.c.b16 %v2818, %v2806
        %v5039 = vpack.c.b16 %v2819, %v2807
        %v5040 = vpack.c.b16 %v2820, %v2808
        %v5041 = vpack.c.b16 %v2821, %v2809
        %v5042 = vpack.c.b16 %v2822, %v2810
        %v5043 = vpack.c.b16 %v2823, %v2811
        %v5044 = vpack.c.b16 %v2824, %v2812
        %v5045 = vpack.c.b16 %v2825, %v2813
        %v5046 = vpack.c.b16 %v2838, %v2826
        %v5047 = vpack.c.b16 %v2839, %v2827
        %v5048 = vpack.c.b16 %v2840, %v2828
        %v5049 = vpack.c.b16 %v2841, %v2829
        %v5050 = vpack.c.b16 %v2842, %v2830
        %v5051 = vpack.c.b16 %v2843, %v2831
        %v5052 = vpack.c.b16 %v2844, %v2832
        %v5053 = vpack.c.b16 %v2845, %v2833
        %v5054 = vpack.c.b16 %v2846, %v2834
        %v5055 = vpack.c.b16 %v2847, %v2835
        %v5056 = vpack.c.b16 %v2848, %v2836
        %v5057 = vpack.c.b16 %v2849, %v2837
        %v5058 = vpack.c.b16 %v2862, %v2850
        %v5059 = vpack.c.b16 %v2863, %v2851
        %v5060 = vpack.c.b16 %v2864, %v2852
        %v5061 = vpack.c.b16 %v2865, %v2853
        %v5062 = vpack.c.b16 %v2866, %v2854
        %v5063 = vpack.c.b16 %v2867, %v2855
        %v5064 = vpack.c.b16 %v2868, %v2856
        %v5065 = vpack.c.b16 %v2869, %v2857
        %v5066 = vpack.c.b16 %v2870, %v2858
        %v5067 = vpack.c.b16 %v2871, %v2859
        %v5068 = vpack.c.b16 %v2872, %v2860
        %v5069 = vpack.c.b16 %v2873, %v2861
        %v5070 = vpack.c.b16 %v2886, %v2874
        %v5071 = vpack.c.b16 %v2887, %v2875
        %v5072 = vpack.c.b16 %v2888, %v2876
        %v5073 = vpack.c.b16 %v2889, %v2877
        %v5074 = vpack.c.b16 %v2890, %v2878
        %v5075 = vpack.c.b16 %v2891, %v2879
        %v5076 = vpack.c.b16 %v2892, %v2880
        %v5077 = vpack.c.b16 %v2893, %v2881
        %v5078 = vpack.c.b16 %v2894, %v2882
        %v5079 = vpack.c.b16 %v2895, %v2883
        %v5080 = vpack.c.b16 %v2896, %v2884
        %v5081 = vpack.c.b16 %v2897, %v2885
        %v5082 = vpack.c.b16 %v2910, %v2898
        %v5083 = vpack.c.b16 %v2911, %v2899
        %v5084 = vpack.c.b16 %v2912, %v2900
        %v5085 = vpack.c.b16 %v2913, %v2901
        %v5086 = vpack.c.b16 %v2914, %v2902
        %v5087 = vpack.c.b16 %v2915, %v2903
        %v5088 = vpack.c.b16 %v2916, %v2904
        %v5089 = vpack.c.b16 %v2917, %v2905
        %v5090 = vpack.c.b16 %v2918, %v2906
        %v5091 = vpack.c.b16 %v2919, %v2907
        %v5092 = vpack.c.b16 %v2920, %v2908
        %v5093 = vpack.c.b16 %v2921, %v2909
        %v5094 = vpack.c.b16 %v2934, %v2922
        %v5095 = vpack.c.b16 %v2935, %v2923
        %v5096 = vpack.c.b16 %v2936, %v2924
        %v5097 = vpack.c.b16 %v2937, %v2925
        %v5098 = vpack.c.b16 %v2938, %v2926
        %v5099 = vpack.c.b16 %v2939, %v2927
        %v5100 = vpack.c.b16 %v2940, %v2928
        %v5101 = vpack.c.b16 %v2941, %v2929
        %v5102 = vpack.c.b16 %v2942, %v2930
        %v5103 = vpack.c.b16 %v2943, %v2931
        %v5104 = vpack.c.b16 %v2944, %v2932
        %v5105 = vpack.c.b16 %v2945, %v2933
        %v5106 = vpack.c.b16 %v2958, %v2946
        %v5107 = vpack.c.b16 %v2959, %v2947
        %v5108 = vpack.c.b16 %v2960, %v2948
        %v5109 = vpack.c.b16 %v2961, %v2949
        %v5110 = vpack.c.b16 %v2962, %v2950
        %v5111 = vpack.c.b16 %v2963, %v2951
        %v5112 = vpack.c.b16 %v2964, %v2952
        %v5113 = vpack.c.b16 %v2965, %v2953
        %v5114 = vpack.c.b16 %v2966, %v2954
        %v5115 = vpack.c.b16 %v2967, %v2955
        %v5116 = vpack.c.b16 %v2968, %v2956
        %v5117 = vpack.c.b16 %v2969, %v2957
        %v5118 = vpack.c.b16 %v2982, %v2970
        %v5119 = vpack.c.b16 %v2983, %v2971
        %v5120 = vpack.c.b16 %v2984, %v2972
        %v5121 = vpack.c.b16 %v2985, %v2973
        %v5122 = vpack.c.b16 %v2986, %v2974
        %v5123 = vpack.c.b16 %v2987, %v2975
        %v5124 = vpack.c.b16 %v2988, %v2976
        %v5125 = vpack.c.b16 %v2989, %v2977
        %v5126 = vpack.c.b16 %v2990, %v2978
        %v5127 = vpack.c.b16 %v2991, %v2979
        %v5128 = vpack.c.b16 %v2992, %v2980
        %v5129 = vpack.c.b16 %v2993, %v2981
        %v5130 = vpack.c.b16 %v3006, %v2994
        %v5131 = vpack.c.b16 %v3007, %v2995
        %v5132 = vpack.c.b16 %v3008, %v2996
        %v5133 = vpack.c.b16 %v3009, %v2997
        %v5134 = vpack.c.b16 %v3010, %v2998
        %v5135 = vpack.c.b16 %v3011, %v2999
        %v5136 = vpack.c.b16 %v3012, %v3000
        %v5137 = vpack.c.b16 %v3013, %v3001
        %v5138 = vpack.c.b16 %v3014, %v3002
        %v5139 = vpack.c.b16 %v3015, %v3003
        %v5140 = vpack.c.b16 %v3016, %v3004
        %v5141 = vpack.c.b16 %v3017, %v3005
        %v5142 = vpack.c.b16 %v3030, %v3018
        %v5143 = vpack.c.b16 %v3031, %v3019
        %v5144 = vpack.c.b16 %v3032, %v3020
        %v5145 = vpack.c.b16 %v3033, %v3021
        %v5146 = vpack.c.b16 %v3034, %v3022
        %v5147 = vpack.c.b16 %v3035, %v3023
        %v5148 = vpack.c.b16 %v3036, %v3024
        %v5149 = vpack.c.b16 %v3037, %v3025
        %v5150 = vpack.c.b16 %v3038, %v3026
        %v5151 = vpack.c.b16 %v3039, %v3027
        %v5152 = vpack.c.b16 %v3040, %v3028
        %v5153 = vpack.c.b16 %v3041, %v3029
        %v5154 = vpack.c.b16 %v3054, %v3042
        %v5155 = vpack.c.b16 %v3055, %v3043
        %v5156 = vpack.c.b16 %v3056, %v3044
        %v5157 = vpack.c.b16 %v3057, %v3045
        %v5158 = vpack.c.b16 %v3058, %v3046
        %v5159 = vpack.c.b16 %v3059, %v3047
        %v5160 = vpack.c.b16 %v3060, %v3048
        %v5161 = vpack.c.b16 %v3061, %v3049
        %v5162 = vpack.c.b16 %v3062, %v3050
        %v5163 = vpack.c.b16 %v3063, %v3051
        %v5164 = vpack.c.b16 %v3064, %v3052
        %v5165 = vpack.c.b16 %v3065, %v3053
        %v5166 = vpack.c.b16 %v3078, %v3066
        %v5167 = vpack.c.b16 %v3079, %v3067
        %v5168 = vpack.c.b16 %v3080, %v3068
        %v5169 = vpack.c.b16 %v3081, %v3069
        %v5170 = vpack.c.b16 %v3082, %v3070
        %v5171 = vpack.c.b16 %v3083, %v3071
        %v5172 = vpack.c.b16 %v3084, %v3072
        %v5173 = vpack.c.b16 %v3085, %v3073
        %v5174 = vpack.c.b16 %v3086, %v3074
        %v5175 = vpack.c.b16 %v3087, %v3075
        %v5176 = vpack.c.b16 %v3088, %v3076
        %v5177 = vpack.c.b16 %v3089, %v3077
        %v5178 = vpack.c.b16 %v3102, %v3090
        %v5179 = vpack.c.b16 %v3103, %v3091
        %v5180 = vpack.c.b16 %v3104, %v3092
        %v5181 = vpack.c.b16 %v3105, %v3093
        %v5182 = vpack.c.b16 %v3106, %v3094
        %v5183 = vpack.c.b16 %v3107, %v3095
        %v5184 = vpack.c.b16 %v3108, %v3096
        %v5185 = vpack.c.b16 %v3109, %v3097
        %v5186 = vpack.c.b16 %v3110, %v3098
        %v5187 = vpack.c.b16 %v3111, %v3099
        %v5188 = vpack.c.b16 %v3112, %v3100
        %v5189 = vpack.c.b16 %v3113, %v3101
        %v5190 = vpack.c.b16 %v3126, %v3114
        %v5191 = vpack.c.b16 %v3127, %v3115
        %v5192 = vpack.c.b16 %v3128, %v3116
        %v5193 = vpack.c.b16 %v3129, %v3117
        %v5194 = vpack.c.b16 %v3130, %v3118
        %v5195 = vpack.c.b16 %v3131, %v3119
        %v5196 = vpack.c.b16 %v3132, %v3120
        %v5197 = vpack.c.b16 %v3133, %v3121
        %v5198 = vpack.c.b16 %v3134, %v3122
        %v5199 = vpack.c.b16 %v3135, %v3123
        %v5200 = vpack.c.b16 %v3136, %v3124
        %v5201 = vpack.c.b16 %v3137, %v3125
        %v5202 = vpack.c.b16 %v3150, %v3138
        %v5203 = vpack.c.b16 %v3151, %v3139
        %v5204 = vpack.c.b16 %v3152, %v3140
        %v5205 = vpack.c.b16 %v3153, %v3141
        %v5206 = vpack.c.b16 %v3154, %v3142
        %v5207 = vpack.c.b16 %v3155, %v3143
        %v5208 = vpack.c.b16 %v3156, %v3144
        %v5209 = vpack.c.b16 %v3157, %v3145
        %v5210 = vpack.c.b16 %v3158, %v3146
        %v5211 = vpack.c.b16 %v3159, %v3147
        %v5212 = vpack.c.b16 %v3160, %v3148
        %v5213 = vpack.c.b16 %v3161, %v3149
        %v5214 = vpack.c.b16 %v3174, %v3162
        %v5215 = vpack.c.b16 %v3175, %v3163
        %v5216 = vpack.c.b16 %v3176, %v3164
        %v5217 = vpack.c.b16 %v3177, %v3165
        %v5218 = vpack.c.b16 %v3178, %v3166
        %v5219 = vpack.c.b16 %v3179, %v3167
        %v5220 = vpack.c.b16 %v3180, %v3168
        %v5221 = vpack.c.b16 %v3181, %v3169
        %v5222 = vpack.c.b16 %v3182, %v3170
        %v5223 = vpack.c.b16 %v3183, %v3171
        %v5224 = vpack.c.b16 %v3184, %v3172
        %v5225 = vpack.c.b16 %v3185, %v3173
        %v5226 = vpack.c.b16 %v3198, %v3186
        %v5227 = vpack.c.b16 %v3199, %v3187
        %v5228 = vpack.c.b16 %v3200, %v3188
        %v5229 = vpack.c.b16 %v3201, %v3189
        %v5230 = vpack.c.b16 %v3202, %v3190
        %v5231 = vpack.c.b16 %v3203, %v3191
        %v5232 = vpack.c.b16 %v3204, %v3192
        %v5233 = vpack.c.b16 %v3205, %v3193
        %v5234 = vpack.c.b16 %v3206, %v3194
        %v5235 = vpack.c.b16 %v3207, %v3195
        %v5236 = vpack.c.b16 %v3208, %v3196
        %v5237 = vpack.c.b16 %v3209, %v3197
        %v5238 = vpack.c.b16 %v3222, %v3210
        %v5239 = vpack.c.b16 %v3223, %v3211
        %v5240 = vpack.c.b16 %v3224, %v3212
        %v5241 = vpack.c.b16 %v3225, %v3213
        %v5242 = vpack.c.b16 %v3226, %v3214
        %v5243 = vpack.c.b16 %v3227, %v3215
        %v5244 = vpack.c.b16 %v3228, %v3216
        %v5245 = vpack.c.b16 %v3229, %v3217
        %v5246 = vpack.c.b16 %v3230, %v3218
        %v5247 = vpack.c.b16 %v3231, %v3219
        %v5248 = vpack.c.b16 %v3232, %v3220
        %v5249 = vpack.c.b16 %v3233, %v3221
        %v5250 = vpack.c.b16 %v3246, %v3234
        %v5251 = vpack.c.b16 %v3247, %v3235
        %v5252 = vpack.c.b16 %v3248, %v3236
        %v5253 = vpack.c.b16 %v3249, %v3237
        %v5254 = vpack.c.b16 %v3250, %v3238
        %v5255 = vpack.c.b16 %v3251, %v3239
        %v5256 = vpack.c.b16 %v3252, %v3240
        %v5257 = vpack.c.b16 %v3253, %v3241
        %v5258 = vpack.c.b16 %v3254, %v3242
        %v5259 = vpack.c.b16 %v3255, %v3243
        %v5260 = vpack.c.b16 %v3256, %v3244
        %v5261 = vpack.c.b16 %v3257, %v3245
        %v5262 = vpack.c.b16 %v3270, %v3258
        %v5263 = vpack.c.b16 %v3271, %v3259
        %v5264 = vpack.c.b16 %v3272, %v3260
        %v5265 = vpack.c.b16 %v3273, %v3261
        %v5266 = vpack.c.b16 %v3274, %v3262
        %v5267 = vpack.c.b16 %v3275, %v3263
        %v5268 = vpack.c.b16 %v3276, %v3264
        %v5269 = vpack.c.b16 %v3277, %v3265
        %v5270 = vpack.c.b16 %v3278, %v3266
        %v5271 = vpack.c.b16 %v3279, %v3267
        %v5272 = vpack.c.b16 %v3280, %v3268
        %v5273 = vpack.c.b16 %v3281, %v3269
        %v5274 = vpack.c.b16 %v3294, %v3282
        %v5275 = vpack.c.b16 %v3295, %v3283
        %v5276 = vpack.c.b16 %v3296, %v3284
        %v5277 = vpack.c.b16 %v3297, %v3285
        %v5278 = vpack.c.b16 %v3298, %v3286
        %v5279 = vpack.c.b16 %v3299, %v3287
        %v5280 = vpack.c.b16 %v3300, %v3288
        %v5281 = vpack.c.b16 %v3301, %v3289
        %v5282 = vpack.c.b16 %v3302, %v3290
        %v5283 = vpack.c.b16 %v3303, %v3291
        %v5284 = vpack.c.b16 %v3304, %v3292
        %v5285 = vpack.c.b16 %v3305, %v3293
        %v5286 = vpack.c.b16 %v3318, %v3306
        %v5287 = vpack.c.b16 %v3319, %v3307
        %v5288 = vpack.c.b16 %v3320, %v3308
        %v5289 = vpack.c.b16 %v3321, %v3309
        %v5290 = vpack.c.b16 %v3322, %v3310
        %v5291 = vpack.c.b16 %v3323, %v3311
        %v5292 = vpack.c.b16 %v3324, %v3312
        %v5293 = vpack.c.b16 %v3325, %v3313
        %v5294 = vpack.c.b16 %v3326, %v3314
        %v5295 = vpack.c.b16 %v3327, %v3315
        %v5296 = vpack.c.b16 %v3328, %v3316
        %v5297 = vpack.c.b16 %v3329, %v3317
        %v5298 = vpack.c.b16 %v3342, %v3330
        %v5299 = vpack.c.b16 %v3343, %v3331
        %v5300 = vpack.c.b16 %v3344, %v3332
        %v5301 = vpack.c.b16 %v3345, %v3333
        %v5302 = vpack.c.b16 %v3346, %v3334
        %v5303 = vpack.c.b16 %v3347, %v3335
        %v5304 = vpack.c.b16 %v3348, %v3336
        %v5305 = vpack.c.b16 %v3349, %v3337
        %v5306 = vpack.c.b16 %v3350, %v3338
        %v5307 = vpack.c.b16 %v3351, %v3339
        %v5308 = vpack.c.b16 %v3352, %v3340
        %v5309 = vpack.c.b16 %v3353, %v3341
        %v5310 = vpack.c.b16 %v3366, %v3354
        %v5311 = vpack.c.b16 %v3367, %v3355
        %v5312 = vpack.c.b16 %v3368, %v3356
        %v5313 = vpack.c.b16 %v3369, %v3357
        %v5314 = vpack.c.b16 %v3370, %v3358
        %v5315 = vpack.c.b16 %v3371, %v3359
        %v5316 = vpack.c.b16 %v3372, %v3360
        %v5317 = vpack.c.b16 %v3373, %v3361
        %v5318 = vpack.c.b16 %v3374, %v3362
        %v5319 = vpack.c.b16 %v3375, %v3363
        %v5320 = vpack.c.b16 %v3376, %v3364
        %v5321 = vpack.c.b16 %v3377, %v3365
        %v5322 = vpack.c.b16 %v3390, %v3378
        %v5323 = vpack.c.b16 %v3391, %v3379
        %v5324 = vpack.c.b16 %v3392, %v3380
        %v5325 = vpack.c.b16 %v3393, %v3381
        %v5326 = vpack.c.b16 %v3394, %v3382
        %v5327 = vpack.c.b16 %v3395, %v3383
        %v5328 = vpack.c.b16 %v3396, %v3384
        %v5329 = vpack.c.b16 %v3397, %v3385
        %v5330 = vpack.c.b16 %v3398, %v3386
        %v5331 = vpack.c.b16 %v3399, %v3387
        %v5332 = vpack.c.b16 %v3400, %v3388
        %v5333 = vpack.c.b16 %v3401, %v3389
        %v5334 = vpack.c.b16 %v3414, %v3402
        %v5335 = vpack.c.b16 %v3415, %v3403
        %v5336 = vpack.c.b16 %v3416, %v3404
        %v5337 = vpack.c.b16 %v3417, %v3405
        %v5338 = vpack.c.b16 %v3418, %v3406
        %v5339 = vpack.c.b16 %v3419, %v3407
        %v5340 = vpack.c.b16 %v3420, %v3408
        %v5341 = vpack.c.b16 %v3421, %v3409
        %v5342 = vpack.c.b16 %v3422, %v3410
        %v5343 = vpack.c.b16 %v3423, %v3411
        %v5344 = vpack.c.b16 %v3424, %v3412
        %v5345 = vpack.c.b16 %v3425, %v3413
        %v5346 = vpack.c.b16 %v3438, %v3426
        %v5347 = vpack.c.b16 %v3439, %v3427
        %v5348 = vpack.c.b16 %v3440, %v3428
        %v5349 = vpack.c.b16 %v3441, %v3429
        %v5350 = vpack.c.b16 %v3442, %v3430
        %v5351 = vpack.c.b16 %v3443, %v3431
        %v5352 = vpack.c.b16 %v3444, %v3432
        %v5353 = vpack.c.b16 %v3445, %v3433
        %v5354 = vpack.c.b16 %v3446, %v3434
        %v5355 = vpack.c.b16 %v3447, %v3435
        %v5356 = vpack.c.b16 %v3448, %v3436
        %v5357 = vpack.c.b16 %v3449, %v3437
        %v5358 = vpack.c.b16 %v3462, %v3450
        %v5359 = vpack.c.b16 %v3463, %v3451
        %v5360 = vpack.c.b16 %v3464, %v3452
        %v5361 = vpack.c.b16 %v3465, %v3453
        %v5362 = vpack.c.b16 %v3466, %v3454
        %v5363 = vpack.c.b16 %v3467, %v3455
        %v5364 = vpack.c.b16 %v3468, %v3456
        %v5365 = vpack.c.b16 %v3469, %v3457
        %v5366 = vpack.c.b16 %v3470, %v3458
        %v5367 = vpack.c.b16 %v3471, %v3459
        %v5368 = vpack.c.b16 %v3472, %v3460
        %v5369 = vpack.c.b16 %v3473, %v3461
        %v5370 = vpack.c.b16 %v3486, %v3474
        %v5371 = vpack.c.b16 %v3487, %v3475
        %v5372 = vpack.c.b16 %v3488, %v3476
        %v5373 = vpack.c.b16 %v3489, %v3477
        %v5374 = vpack.c.b16 %v3490, %v3478
        %v5375 = vpack.c.b16 %v3491, %v3479
        %v5376 = vpack.c.b16 %v3492, %v3480
        %v5377 = vpack.c.b16 %v3493, %v3481
        %v5378 = vpack.c.b16 %v3494, %v3482
        %v5379 = vpack.c.b16 %v3495, %v3483
        %v5380 = vpack.c.b16 %v3496, %v3484
        %v5381 = vpack.c.b16 %v3497, %v3485
        %v5382 = vpack.c.b16 %v3510, %v3498
        %v5383 = vpack.c.b16 %v3511, %v3499
        %v5384 = vpack.c.b16 %v3512, %v3500
        %v5385 = vpack.c.b16 %v3513, %v3501
        %v5386 = vpack.c.b16 %v3514, %v3502
        %v5387 = vpack.c.b16 %v3515, %v3503
        %v5388 = vpack.c.b16 %v3516, %v3504
        %v5389 = vpack.c.b16 %v3517, %v3505
        %v5390 = vpack.c.b16 %v3518, %v3506
        %v5391 = vpack.c.b16 %v3519, %v3507
        %v5392 = vpack.c.b16 %v3520, %v3508
        %v5393 = vpack.c.b16 %v3521, %v3509
        %v5394 = vpack.c.b16 %v3534, %v3522
        %v5395 = vpack.c.b16 %v3535, %v3523
        %v5396 = vpack.c.b16 %v3536, %v3524
        %v5397 = vpack.c.b16 %v3537, %v3525
        %v5398 = vpack.c.b16 %v3538, %v3526
        %v5399 = vpack.c.b16 %v3539, %v3527
        %v5400 = vpack.c.b16 %v3540, %v3528
        %v5401 = vpack.c.b16 %v3541, %v3529
        %v5402 = vpack.c.b16 %v3542, %v3530
        %v5403 = vpack.c.b16 %v3543, %v3531
        %v5404 = vpack.c.b16 %v3544, %v3532
        %v5405 = vpack.c.b16 %v3545, %v3533
        %v5406 = vpack.c.b16 %v3558, %v3546
        %v5407 = vpack.c.b16 %v3559, %v3547
        %v5408 = vpack.c.b16 %v3560, %v3548
        %v5409 = vpack.c.b16 %v3561, %v3549
        %v5410 = vpack.c.b16 %v3562, %v3550
        %v5411 = vpack.c.b16 %v3563, %v3551
        %v5412 = vpack.c.b16 %v3564, %v3552
        %v5413 = vpack.c.b16 %v3565, %v3553
        %v5414 = vpack.c.b16 %v3566, %v3554
        %v5415 = vpack.c.b16 %v3567, %v3555
        %v5416 = vpack.c.b16 %v3568, %v3556
        %v5417 = vpack.c.b16 %v3569, %v3557
        %v5418 = vpack.c.b16 %v3582, %v3570
        %v5419 = vpack.c.b16 %v3583, %v3571
        %v5420 = vpack.c.b16 %v3584, %v3572
        %v5421 = vpack.c.b16 %v3585, %v3573
        %v5422 = vpack.c.b16 %v3586, %v3574
        %v5423 = vpack.c.b16 %v3587, %v3575
        %v5424 = vpack.c.b16 %v3588, %v3576
        %v5425 = vpack.c.b16 %v3589, %v3577
        %v5426 = vpack.c.b16 %v3590, %v3578
        %v5427 = vpack.c.b16 %v3591, %v3579
        %v5428 = vpack.c.b16 %v3592, %v3580
        %v5429 = vpack.c.b16 %v3593, %v3581
        %v5430 = vpack.c.b16 %v3606, %v3594
        %v5431 = vpack.c.b16 %v3607, %v3595
        %v5432 = vpack.c.b16 %v3608, %v3596
        %v5433 = vpack.c.b16 %v3609, %v3597
        %v5434 = vpack.c.b16 %v3610, %v3598
        %v5435 = vpack.c.b16 %v3611, %v3599
        %v5436 = vpack.c.b16 %v3612, %v3600
        %v5437 = vpack.c.b16 %v3613, %v3601
        %v5438 = vpack.c.b16 %v3614, %v3602
        %v5439 = vpack.c.b16 %v3615, %v3603
        %v5440 = vpack.c.b16 %v3616, %v3604
        %v5441 = vpack.c.b16 %v3617, %v3605
        %v5442 = vpack.c.b16 %v3630, %v3618
        %v5443 = vpack.c.b16 %v3631, %v3619
        %v5444 = vpack.c.b16 %v3632, %v3620
        %v5445 = vpack.c.b16 %v3633, %v3621
        %v5446 = vpack.c.b16 %v3634, %v3622
        %v5447 = vpack.c.b16 %v3635, %v3623
        %v5448 = vpack.c.b16 %v3636, %v3624
        %v5449 = vpack.c.b16 %v3637, %v3625
        %v5450 = vpack.c.b16 %v3638, %v3626
        %v5451 = vpack.c.b16 %v3639, %v3627
        %v5452 = vpack.c.b16 %v3640, %v3628
        %v5453 = vpack.c.b16 %v3641, %v3629
        %v5454 = vpack.c.b16 %v3654, %v3642
        %v5455 = vpack.c.b16 %v3655, %v3643
        %v5456 = vpack.c.b16 %v3656, %v3644
        %v5457 = vpack.c.b16 %v3657, %v3645
        %v5458 = vpack.c.b16 %v3658, %v3646
        %v5459 = vpack.c.b16 %v3659, %v3647
        %v5460 = vpack.c.b16 %v3660, %v3648
        %v5461 = vpack.c.b16 %v3661, %v3649
        %v5462 = vpack.c.b16 %v3662, %v3650
        %v5463 = vpack.c.b16 %v3663, %v3651
        %v5464 = vpack.c.b16 %v3664, %v3652
        %v5465 = vpack.c.b16 %v3665, %v3653
        %v5466 = vpack.c.b16 %v3678, %v3666
        %v5467 = vpack.c.b16 %v3679, %v3667
        %v5468 = vpack.c.b16 %v3680, %v3668
        %v5469 = vpack.c.b16 %v3681, %v3669
        %v5470 = vpack.c.b16 %v3682, %v3670
        %v5471 = vpack.c.b16 %v3683, %v3671
        %v5472 = vpack.c.b16 %v3684, %v3672
        %v5473 = vpack.c.b16 %v3685, %v3673
        %v5474 = vpack.c.b16 %v3686, %v3674
        %v5475 = vpack.c.b16 %v3687, %v3675
        %v5476 = vpack.c.b16 %v3688, %v3676
        %v5477 = vpack.c.b16 %v3689, %v3677
        %v5478 = vpack.c.b16 %v3702, %v3690
        %v5479 = vpack.c.b16 %v3703, %v3691
        %v5480 = vpack.c.b16 %v3704, %v3692
        %v5481 = vpack.c.b16 %v3705, %v3693
        %v5482 = vpack.c.b16 %v3706, %v3694
        %v5483 = vpack.c.b16 %v3707, %v3695
        %v5484 = vpack.c.b16 %v3708, %v3696
        %v5485 = vpack.c.b16 %v3709, %v3697
        %v5486 = vpack.c.b16 %v3710, %v3698
        %v5487 = vpack.c.b16 %v3711, %v3699
        %v5488 = vpack.c.b16 %v3712, %v3700
        %v5489 = vpack.c.b16 %v3713, %v3701
        %v5490 = vpack.c.b16 %v3726, %v3714
        %v5491 = vpack.c.b16 %v3727, %v3715
        %v5492 = vpack.c.b16 %v3728, %v3716
        %v5493 = vpack.c.b16 %v3729, %v3717
        %v5494 = vpack.c.b16 %v3730, %v3718
        %v5495 = vpack.c.b16 %v3731, %v3719
        %v5496 = vpack.c.b16 %v3732, %v3720
        %v5497 = vpack.c.b16 %v3733, %v3721
        %v5498 = vpack.c.b16 %v3734, %v3722
        %v5499 = vpack.c.b16 %v3735, %v3723
        %v5500 = vpack.c.b16 %v3736, %v3724
        %v5501 = vpack.c.b16 %v3737, %v3725
        %v5502 = vpack.c.b16 %v3750, %v3738
        %v5503 = vpack.c.b16 %v3751, %v3739
        %v5504 = vpack.c.b16 %v3752, %v3740
        %v5505 = vpack.c.b16 %v3753, %v3741
        %v5506 = vpack.c.b16 %v3754, %v3742
        %v5507 = vpack.c.b16 %v3755, %v3743
        %v5508 = vpack.c.b16 %v3756, %v3744
        %v5509 = vpack.c.b16 %v3757, %v3745
        %v5510 = vpack.c.b16 %v3758, %v3746
        %v5511 = vpack.c.b16 %v3759, %v3747
        %v5512 = vpack.c.b16 %v3760, %v3748
        %v5513 = vpack.c.b16 %v3761, %v3749
        %v5514 = vpack.c.b16 %v3774, %v3762
        %v5515 = vpack.c.b16 %v3775, %v3763
        %v5516 = vpack.c.b16 %v3776, %v3764
        %v5517 = vpack.c.b16 %v3777, %v3765
        %v5518 = vpack.c.b16 %v3778, %v3766
        %v5519 = vpack.c.b16 %v3779, %v3767
        %v5520 = vpack.c.b16 %v3780, %v3768
        %v5521 = vpack.c.b16 %v3781, %v3769
        %v5522 = vpack.c.b16 %v3782, %v3770
        %v5523 = vpack.c.b16 %v3783, %v3771
        %v5524 = vpack.c.b16 %v3784, %v3772
        %v5525 = vpack.c.b16 %v3785, %v3773
        %v5526 = vpack.c.b16 %v3798, %v3786
        %v5527 = vpack.c.b16 %v3799, %v3787
        %v5528 = vpack.c.b16 %v3800, %v3788
        %v5529 = vpack.c.b16 %v3801, %v3789
        %v5530 = vpack.c.b16 %v3802, %v3790
        %v5531 = vpack.c.b16 %v3803, %v3791
        %v5532 = vpack.c.b16 %v3804, %v3792
        %v5533 = vpack.c.b16 %v3805, %v3793
        %v5534 = vpack.c.b16 %v3806, %v3794
        %v5535 = vpack.c.b16 %v3807, %v3795
        %v5536 = vpack.c.b16 %v3808, %v3796
        %v5537 = vpack.c.b16 %v3809, %v3797
        %v5538 = vpack.c.b16 %v3822, %v3810
        %v5539 = vpack.c.b16 %v3823, %v3811
        %v5540 = vpack.c.b16 %v3824, %v3812
        %v5541 = vpack.c.b16 %v3825, %v3813
        %v5542 = vpack.c.b16 %v3826, %v3814
        %v5543 = vpack.c.b16 %v3827, %v3815
        %v5544 = vpack.c.b16 %v3828, %v3816
        %v5545 = vpack.c.b16 %v3829, %v3817
        %v5546 = vpack.c.b16 %v3830, %v3818
        %v5547 = vpack.c.b16 %v3831, %v3819
        %v5548 = vpack.c.b16 %v3832, %v3820
        %v5549 = vpack.c.b16 %v3833, %v3821
        %v5550 = vpack.c.b16 %v3846, %v3834
        %v5551 = vpack.c.b16 %v3847, %v3835
        %v5552 = vpack.c.b16 %v3848, %v3836
        %v5553 = vpack.c.b16 %v3849, %v3837
        %v5554 = vpack.c.b16 %v3850, %v3838
        %v5555 = vpack.c.b16 %v3851, %v3839
        %v5556 = vpack.c.b16 %v3852, %v3840
        %v5557 = vpack.c.b16 %v3853, %v3841
        %v5558 = vpack.c.b16 %v3854, %v3842
        %v5559 = vpack.c.b16 %v3855, %v3843
        %v5560 = vpack.c.b16 %v3856, %v3844
        %v5561 = vpack.c.b16 %v3857, %v3845
        %v5562 = vpack.c.b16 %v3870, %v3858
        %v5563 = vpack.c.b16 %v3871, %v3859
        %v5564 = vpack.c.b16 %v3872, %v3860
        %v5565 = vpack.c.b16 %v3873, %v3861
        %v5566 = vpack.c.b16 %v3874, %v3862
        %v5567 = vpack.c.b16 %v3875, %v3863
        %v5568 = vpack.c.b16 %v3876, %v3864
        %v5569 = vpack.c.b16 %v3877, %v3865
        %v5570 = vpack.c.b16 %v3878, %v3866
        %v5571 = vpack.c.b16 %v3879, %v3867
        %v5572 = vpack.c.b16 %v3880, %v3868
        %v5573 = vpack.c.b16 %v3881, %v3869
        %v5574 = vpack.c.b16 %v3894, %v3882
        %v5575 = vpack.c.b16 %v3895, %v3883
        %v5576 = vpack.c.b16 %v3896, %v3884
        %v5577 = vpack.c.b16 %v3897, %v3885
        %v5578 = vpack.c.b16 %v3898, %v3886
        %v5579 = vpack.c.b16 %v3899, %v3887
        %v5580 = vpack.c.b16 %v3900, %v3888
        %v5581 = vpack.c.b16 %v3901, %v3889
        %v5582 = vpack.c.b16 %v3902, %v3890
        %v5583 = vpack.c.b16 %v3903, %v3891
        %v5584 = vpack.c.b16 %v3904, %v3892
        %v5585 = vpack.c.b16 %v3905, %v3893
        %v5586 = vpack.c.b16 %v3918, %v3906
        %v5587 = vpack.c.b16 %v3919, %v3907
        %v5588 = vpack.c.b16 %v3920, %v3908
        %v5589 = vpack.c.b16 %v3921, %v3909
        %v5590 = vpack.c.b16 %v3922, %v3910
        %v5591 = vpack.c.b16 %v3923, %v3911
        %v5592 = vpack.c.b16 %v3924, %v3912
        %v5593 = vpack.c.b16 %v3925, %v3913
        %v5594 = vpack.c.b16 %v3926, %v3914
        %v5595 = vpack.c.b16 %v3927, %v3915
        %v5596 = vpack.c.b16 %v3928, %v3916
        %v5597 = vpack.c.b16 %v3929, %v3917
        %v5598 = vpack.c.b16 %v3942, %v3930
        %v5599 = vpack.c.b16 %v3943, %v3931
        %v5600 = vpack.c.b16 %v3944, %v3932
        %v5601 = vpack.c.b16 %v3945, %v3933
        %v5602 = vpack.c.b16 %v3946, %v3934
        %v5603 = vpack.c.b16 %v3947, %v3935
        %v5604 = vpack.c.b16 %v3948, %v3936
        %v5605 = vpack.c.b16 %v3949, %v3937
        %v5606 = vpack.c.b16 %v3950, %v3938
        %v5607 = vpack.c.b16 %v3951, %v3939
        %v5608 = vpack.c.b16 %v3952, %v3940
        %v5609 = vpack.c.b16 %v3953, %v3941
        %v5610 = vpack.c.b16 %v3966, %v3954
        %v5611 = vpack.c.b16 %v3967, %v3955
        %v5612 = vpack.c.b16 %v3968, %v3956
        %v5613 = vpack.c.b16 %v3969, %v3957
        %v5614 = vpack.c.b16 %v3970, %v3958
        %v5615 = vpack.c.b16 %v3971, %v3959
        %v5616 = vpack.c.b16 %v3972, %v3960
        %v5617 = vpack.c.b16 %v3973, %v3961
        %v5618 = vpack.c.b16 %v3974, %v3962
        %v5619 = vpack.c.b16 %v3975, %v3963
        %v5620 = vpack.c.b16 %v3976, %v3964
        %v5621 = vpack.c.b16 %v3977, %v3965
        %v5622 = vpack.c.b16 %v3990, %v3978
        %v5623 = vpack.c.b16 %v3991, %v3979
        %v5624 = vpack.c.b16 %v3992, %v3980
        %v5625 = vpack.c.b16 %v3993, %v3981
        %v5626 = vpack.c.b16 %v3994, %v3982
        %v5627 = vpack.c.b16 %v3995, %v3983
        %v5628 = vpack.c.b16 %v3996, %v3984
        %v5629 = vpack.c.b16 %v3997, %v3985
        %v5630 = vpack.c.b16 %v3998, %v3986
        %v5631 = vpack.c.b16 %v3999, %v3987
        %v5632 = vpack.c.b16 %v4000, %v3988
        %v5633 = vpack.c.b16 %v4001, %v3989
        %v5634 = vpack.c.b16 %v4014, %v4002
        %v5635 = vpack.c.b16 %v4015, %v4003
        %v5636 = vpack.c.b16 %v4016, %v4004
        %v5637 = vpack.c.b16 %v4017, %v4005
        %v5638 = vpack.c.b16 %v4018, %v4006
        %v5639 = vpack.c.b16 %v4019, %v4007
        %v5640 = vpack.c.b16 %v4020, %v4008
        %v5641 = vpack.c.b16 %v4021, %v4009
        %v5642 = vpack.c.b16 %v4022, %v4010
        %v5643 = vpack.c.b16 %v4023, %v4011
        %v5644 = vpack.c.b16 %v4024, %v4012
        %v5645 = vpack.c.b16 %v4025, %v4013
        %v5646 = vpack.c.b16 %v4038, %v4026
        %v5647 = vpack.c.b16 %v4039, %v4027
        %v5648 = vpack.c.b16 %v4040, %v4028
        %v5649 = vpack.c.b16 %v4041, %v4029
        %v5650 = vpack.c.b16 %v4042, %v4030
        %v5651 = vpack.c.b16 %v4043, %v4031
        %v5652 = vpack.c.b16 %v4044, %v4032
        %v5653 = vpack.c.b16 %v4045, %v4033
        %v5654 = vpack.c.b16 %v4046, %v4034
        %v5655 = vpack.c.b16 %v4047, %v4035
        %v5656 = vpack.c.b16 %v4048, %v4036
        %v5657 = vpack.c.b16 %v4049, %v4037
        %v5658 = vpack.c.b16 %v4062, %v4050
        %v5659 = vpack.c.b16 %v4063, %v4051
        %v5660 = vpack.c.b16 %v4064, %v4052
        %v5661 = vpack.c.b16 %v4065, %v4053
        %v5662 = vpack.c.b16 %v4066, %v4054
        %v5663 = vpack.c.b16 %v4067, %v4055
        %v5664 = vpack.c.b16 %v4068, %v4056
        %v5665 = vpack.c.b16 %v4069, %v4057
        %v5666 = vpack.c.b16 %v4070, %v4058
        %v5667 = vpack.c.b16 %v4071, %v4059
        %v5668 = vpack.c.b16 %v4072, %v4060
        %v5669 = vpack.c.b16 %v4073, %v4061
        %v5670 = vpack.c.b16 %v4086, %v4074
        %v5671 = vpack.c.b16 %v4087, %v4075
        %v5672 = vpack.c.b16 %v4088, %v4076
        %v5673 = vpack.c.b16 %v4089, %v4077
        %v5674 = vpack.c.b16 %v4090, %v4078
        %v5675 = vpack.c.b16 %v4091, %v4079
        %v5676 = vpack.c.b16 %v4092, %v4080
        %v5677 = vpack.c.b16 %v4093, %v4081
        %v5678 = vpack.c.b16 %v4094, %v4082
        %v5679 = vpack.c.b16 %v4095, %v4083
        %v5680 = vpack.c.b16 %v4096, %v4084
        %v5681 = vpack.c.b16 %v4097, %v4085
        %v5682 = vpack.c.b16 %v4110, %v4098
        %v5683 = vpack.c.b16 %v4111, %v4099
        %v5684 = vpack.c.b16 %v4112, %v4100
        %v5685 = vpack.c.b16 %v4113, %v4101
        %v5686 = vpack.c.b16 %v4114, %v4102
        %v5687 = vpack.c.b16 %v4115, %v4103
        %v5688 = vpack.c.b16 %v4116, %v4104
        %v5689 = vpack.c.b16 %v4117, %v4105
        %v5690 = vpack.c.b16 %v4118, %v4106
        %v5691 = vpack.c.b16 %v4119, %v4107
        %v5692 = vpack.c.b16 %v4120, %v4108
        %v5693 = vpack.c.b16 %v4121, %v4109
        %v5694 = vpack.c.b16 %v4134, %v4122
        %v5695 = vpack.c.b16 %v4135, %v4123
        %v5696 = vpack.c.b16 %v4136, %v4124
        %v5697 = vpack.c.b16 %v4137, %v4125
        %v5698 = vpack.c.b16 %v4138, %v4126
        %v5699 = vpack.c.b16 %v4139, %v4127
        %v5700 = vpack.c.b16 %v4140, %v4128
        %v5701 = vpack.c.b16 %v4141, %v4129
        %v5702 = vpack.c.b16 %v4142, %v4130
        %v5703 = vpack.c.b16 %v4143, %v4131
        %v5704 = vpack.c.b16 %v4144, %v4132
        %v5705 = vpack.c.b16 %v4145, %v4133
        %v5706 = vpack.c.b16 %v4158, %v4146
        %v5707 = vpack.c.b16 %v4159, %v4147
        %v5708 = vpack.c.b16 %v4160, %v4148
        %v5709 = vpack.c.b16 %v4161, %v4149
        %v5710 = vpack.c.b16 %v4162, %v4150
        %v5711 = vpack.c.b16 %v4163, %v4151
        %v5712 = vpack.c.b16 %v4164, %v4152
        %v5713 = vpack.c.b16 %v4165, %v4153
        %v5714 = vpack.c.b16 %v4166, %v4154
        %v5715 = vpack.c.b16 %v4167, %v4155
        %v5716 = vpack.c.b16 %v4168, %v4156
        %v5717 = vpack.c.b16 %v4169, %v4157
        %v5718 = vpack.c.b16 %v4182, %v4170
        %v5719 = vpack.c.b16 %v4183, %v4171
        %v5720 = vpack.c.b16 %v4184, %v4172
        %v5721 = vpack.c.b16 %v4185, %v4173
        %v5722 = vpack.c.b16 %v4186, %v4174
        %v5723 = vpack.c.b16 %v4187, %v4175
        %v5724 = vpack.c.b16 %v4188, %v4176
        %v5725 = vpack.c.b16 %v4189, %v4177
        %v5726 = vpack.c.b16 %v4190, %v4178
        %v5727 = vpack.c.b16 %v4191, %v4179
        %v5728 = vpack.c.b16 %v4192, %v4180
        %v5729 = vpack.c.b16 %v4193, %v4181
        %v5730 = vpack.c.b16 %v4206, %v4194
        %v5731 = vpack.c.b16 %v4207, %v4195
        %v5732 = vpack.c.b16 %v4208, %v4196
        %v5733 = vpack.c.b16 %v4209, %v4197
        %v5734 = vpack.c.b16 %v4210, %v4198
        %v5735 = vpack.c.b16 %v4211, %v4199
        %v5736 = vpack.c.b16 %v4212, %v4200
        %v5737 = vpack.c.b16 %v4213, %v4201
        %v5738 = vpack.c.b16 %v4214, %v4202
        %v5739 = vpack.c.b16 %v4215, %v4203
        %v5740 = vpack.c.b16 %v4216, %v4204
        %v5741 = vpack.c.b16 %v4217, %v4205
        %v5742 = vpack.c.b16 %v4230, %v4218
        %v5743 = vpack.c.b16 %v4231, %v4219
        %v5744 = vpack.c.b16 %v4232, %v4220
        %v5745 = vpack.c.b16 %v4233, %v4221
        %v5746 = vpack.c.b16 %v4234, %v4222
        %v5747 = vpack.c.b16 %v4235, %v4223
        %v5748 = vpack.c.b16 %v4236, %v4224
        %v5749 = vpack.c.b16 %v4237, %v4225
        %v5750 = vpack.c.b16 %v4238, %v4226
        %v5751 = vpack.c.b16 %v4239, %v4227
        %v5752 = vpack.c.b16 %v4240, %v4228
        %v5753 = vpack.c.b16 %v4241, %v4229
        %v5754 = vpack.c.b16 %v4254, %v4242
        %v5755 = vpack.c.b16 %v4255, %v4243
        %v5756 = vpack.c.b16 %v4256, %v4244
        %v5757 = vpack.c.b16 %v4257, %v4245
        %v5758 = vpack.c.b16 %v4258, %v4246
        %v5759 = vpack.c.b16 %v4259, %v4247
        %v5760 = vpack.c.b16 %v4260, %v4248
        %v5761 = vpack.c.b16 %v4261, %v4249
        %v5762 = vpack.c.b16 %v4262, %v4250
        %v5763 = vpack.c.b16 %v4263, %v4251
        %v5764 = vpack.c.b16 %v4264, %v4252
        %v5765 = vpack.c.b16 %v4265, %v4253
        %v5766 = vpack.c.b16 %v4278, %v4266
        %v5767 = vpack.c.b16 %v4279, %v4267
        %v5768 = vpack.c.b16 %v4280, %v4268
        %v5769 = vpack.c.b16 %v4281, %v4269
        %v5770 = vpack.c.b16 %v4282, %v4270
        %v5771 = vpack.c.b16 %v4283, %v4271
        %v5772 = vpack.c.b16 %v4284, %v4272
        %v5773 = vpack.c.b16 %v4285, %v4273
        %v5774 = vpack.c.b16 %v4286, %v4274
        %v5775 = vpack.c.b16 %v4287, %v4275
        %v5776 = vpack.c.b16 %v4288, %v4276
        %v5777 = vpack.c.b16 %v4289, %v4277
        %v5778 = vpack.c.b16 %v4302, %v4290
        %v5779 = vpack.c.b16 %v4303, %v4291
        %v5780 = vpack.c.b16 %v4304, %v4292
        %v5781 = vpack.c.b16 %v4305, %v4293
        %v5782 = vpack.c.b16 %v4306, %v4294
        %v5783 = vpack.c.b16 %v4307, %v4295
        %v5784 = vpack.c.b16 %v4308, %v4296
        %v5785 = vpack.c.b16 %v4309, %v4297
        %v5786 = vpack.c.b16 %v4310, %v4298
        %v5787 = vpack.c.b16 %v4311, %v4299
        %v5788 = vpack.c.b16 %v4312, %v4300
        %v5789 = vpack.c.b16 %v4313, %v4301
        %v5790 = vpack.c.b16 %v4326, %v4314
        %v5791 = vpack.c.b16 %v4327, %v4315
        %v5792 = vpack.c.b16 %v4328, %v4316
        %v5793 = vpack.c.b16 %v4329, %v4317
        %v5794 = vpack.c.b16 %v4330, %v4318
        %v5795 = vpack.c.b16 %v4331, %v4319
        %v5796 = vpack.c.b16 %v4332, %v4320
        %v5797 = vpack.c.b16 %v4333, %v4321
        %v5798 = vpack.c.b16 %v4334, %v4322
        %v5799 = vpack.c.b16 %v4335, %v4323
        %v5800 = vpack.c.b16 %v4336, %v4324
        %v5801 = vpack.c.b16 %v4337, %v4325
        %v5802 = vpack.c.b16 %v4350, %v4338
        %v5803 = vpack.c.b16 %v4351, %v4339
        %v5804 = vpack.c.b16 %v4352, %v4340
        %v5805 = vpack.c.b16 %v4353, %v4341
        %v5806 = vpack.c.b16 %v4354, %v4342
        %v5807 = vpack.c.b16 %v4355, %v4343
        %v5808 = vpack.c.b16 %v4356, %v4344
        %v5809 = vpack.c.b16 %v4357, %v4345
        %v5810 = vpack.c.b16 %v4358, %v4346
        %v5811 = vpack.c.b16 %v4359, %v4347
        %v5812 = vpack.c.b16 %v4360, %v4348
        %v5813 = vpack.c.b16 %v4361, %v4349
        %v5814 = vpack.c.b16 %v4374, %v4362
        %v5815 = vpack.c.b16 %v4375, %v4363
        %v5816 = vpack.c.b16 %v4376, %v4364
        %v5817 = vpack.c.b16 %v4377, %v4365
        %v5818 = vpack.c.b16 %v4378, %v4366
        %v5819 = vpack.c.b16 %v4379, %v4367
        %v5820 = vpack.c.b16 %v4380, %v4368
        %v5821 = vpack.c.b16 %v4381, %v4369
        %v5822 = vpack.c.b16 %v4382, %v4370
        %v5823 = vpack.c.b16 %v4383, %v4371
        %v5824 = vpack.c.b16 %v4384, %v4372
        %v5825 = vpack.c.b16 %v4385, %v4373
        %v5826 = vpack.c.b16 %v4398, %v4386
        %v5827 = vpack.c.b16 %v4399, %v4387
        %v5828 = vpack.c.b16 %v4400, %v4388
        %v5829 = vpack.c.b16 %v4401, %v4389
        %v5830 = vpack.c.b16 %v4402, %v4390
        %v5831 = vpack.c.b16 %v4403, %v4391
        %v5832 = vpack.c.b16 %v4404, %v4392
        %v5833 = vpack.c.b16 %v4405, %v4393
        %v5834 = vpack.c.b16 %v4406, %v4394
        %v5835 = vpack.c.b16 %v4407, %v4395
        %v5836 = vpack.c.b16 %v4408, %v4396
        %v5837 = vpack.c.b16 %v4409, %v4397
        %v5838 = vpack.c.b16 %v4422, %v4410
        %v5839 = vpack.c.b16 %v4423, %v4411
        %v5840 = vpack.c.b16 %v4424, %v4412
        %v5841 = vpack.c.b16 %v4425, %v4413
        %v5842 = vpack.c.b16 %v4426, %v4414
        %v5843 = vpack.c.b16 %v4427, %v4415
        %v5844 = vpack.c.b16 %v4428, %v4416
        %v5845 = vpack.c.b16 %v4429, %v4417
        %v5846 = vpack.c.b16 %v4430, %v4418
        %v5847 = vpack.c.b16 %v4431, %v4419
        %v5848 = vpack.c.b16 %v4432, %v4420
        %v5849 = vpack.c.b16 %v4433, %v4421
        %v5850 = vpack.c.b16 %v4446, %v4434
        %v5851 = vpack.c.b16 %v4447, %v4435
        %v5852 = vpack.c.b16 %v4448, %v4436
        %v5853 = vpack.c.b16 %v4449, %v4437
        %v5854 = vpack.c.b16 %v4450, %v4438
        %v5855 = vpack.c.b16 %v4451, %v4439
        %v5856 = vpack.c.b16 %v4452, %v4440
        %v5857 = vpack.c.b16 %v4453, %v4441
        %v5858 = vpack.c.b16 %v4454, %v4442
        %v5859 = vpack.c.b16 %v4455, %v4443
        %v5860 = vpack.c.b16 %v4456, %v4444
        %v5861 = vpack.c.b16 %v4457, %v4445
        %v5862 = vpack.c.b16 %v4470, %v4458
        %v5863 = vpack.c.b16 %v4471, %v4459
        %v5864 = vpack.c.b16 %v4472, %v4460
        %v5865 = vpack.c.b16 %v4473, %v4461
        %v5866 = vpack.c.b16 %v4474, %v4462
        %v5867 = vpack.c.b16 %v4475, %v4463
        %v5868 = vpack.c.b16 %v4476, %v4464
        %v5869 = vpack.c.b16 %v4477, %v4465
        %v5870 = vpack.c.b16 %v4478, %v4466
        %v5871 = vpack.c.b16 %v4479, %v4467
        %v5872 = vpack.c.b16 %v4480, %v4468
        %v5873 = vpack.c.b16 %v4481, %v4469
        %v5874 = vpack.c.b16 %v4494, %v4482
        %v5875 = vpack.c.b16 %v4495, %v4483
        %v5876 = vpack.c.b16 %v4496, %v4484
        %v5877 = vpack.c.b16 %v4497, %v4485
        %v5878 = vpack.c.b16 %v4498, %v4486
        %v5879 = vpack.c.b16 %v4499, %v4487
        %v5880 = vpack.c.b16 %v4500, %v4488
        %v5881 = vpack.c.b16 %v4501, %v4489
        %v5882 = vpack.c.b16 %v4502, %v4490
        %v5883 = vpack.c.b16 %v4503, %v4491
        %v5884 = vpack.c.b16 %v4504, %v4492
        %v5885 = vpack.c.b16 %v4505, %v4493
        %v5886 = vpack.c.b16 %v4518, %v4506
        %v5887 = vpack.c.b16 %v4519, %v4507
        %v5888 = vpack.c.b16 %v4520, %v4508
        %v5889 = vpack.c.b16 %v4521, %v4509
        %v5890 = vpack.c.b16 %v4522, %v4510
        %v5891 = vpack.c.b16 %v4523, %v4511
        %v5892 = vpack.c.b16 %v4524, %v4512
        %v5893 = vpack.c.b16 %v4525, %v4513
        %v5894 = vpack.c.b16 %v4526, %v4514
        %v5895 = vpack.c.b16 %v4527, %v4515
        %v5896 = vpack.c.b16 %v4528, %v4516
        %v5897 = vpack.c.b16 %v4529, %v4517
        %v5898 = vpack.c.b16 %v4542, %v4530
        %v5899 = vpack.c.b16 %v4543, %v4531
        %v5900 = vpack.c.b16 %v4544, %v4532
        %v5901 = vpack.c.b16 %v4545, %v4533
        %v5902 = vpack.c.b16 %v4546, %v4534
        %v5903 = vpack.c.b16 %v4547, %v4535
        %v5904 = vpack.c.b16 %v4548, %v4536
        %v5905 = vpack.c.b16 %v4549, %v4537
        %v5906 = vpack.c.b16 %v4550, %v4538
        %v5907 = vpack.c.b16 %v4551, %v4539
        %v5908 = vpack.c.b16 %v4552, %v4540
        %v5909 = vpack.c.b16 %v4553, %v4541
        %v5910 = vpack.c.b16 %v4566, %v4554
        %v5911 = vpack.c.b16 %v4567, %v4555
        %v5912 = vpack.c.b16 %v4568, %v4556
        %v5913 = vpack.c.b16 %v4569, %v4557
        %v5914 = vpack.c.b16 %v4570, %v4558
        %v5915 = vpack.c.b16 %v4571, %v4559
        %v5916 = vpack.c.b16 %v4572, %v4560
        %v5917 = vpack.c.b16 %v4573, %v4561
        %v5918 = vpack.c.b16 %v4574, %v4562
        %v5919 = vpack.c.b16 %v4575, %v4563
        %v5920 = vpack.c.b16 %v4576, %v4564
        %v5921 = vpack.c.b16 %v4577, %v4565
        %v5922 = vpack.c.b16 %v4590, %v4578
        %v5923 = vpack.c.b16 %v4591, %v4579
        %v5924 = vpack.c.b16 %v4592, %v4580
        %v5925 = vpack.c.b16 %v4593, %v4581
        %v5926 = vpack.c.b16 %v4594, %v4582
        %v5927 = vpack.c.b16 %v4595, %v4583
        %v5928 = vpack.c.b16 %v4596, %v4584
        %v5929 = vpack.c.b16 %v4597, %v4585
        %v5930 = vpack.c.b16 %v4598, %v4586
        %v5931 = vpack.c.b16 %v4599, %v4587
        %v5932 = vpack.c.b16 %v4600, %v4588
        %v5933 = vpack.c.b16 %v4601, %v4589
        %v5934 = vpack.c.b16 %v4614, %v4602
        %v5935 = vpack.c.b16 %v4615, %v4603
        %v5936 = vpack.c.b16 %v4616, %v4604
        %v5937 = vpack.c.b16 %v4617, %v4605
        %v5938 = vpack.c.b16 %v4618, %v4606
        %v5939 = vpack.c.b16 %v4619, %v4607
        %v5940 = vpack.c.b16 %v4620, %v4608
        %v5941 = vpack.c.b16 %v4621, %v4609
        %v5942 = vpack.c.b16 %v4622, %v4610
        %v5943 = vpack.c.b16 %v4623, %v4611
        %v5944 = vpack.c.b16 %v4624, %v4612
        %v5945 = vpack.c.b16 %v4625, %v4613
        %v5946 = vpack.c.b16 %v4638, %v4626
        %v5947 = vpack.c.b16 %v4639, %v4627
        %v5948 = vpack.c.b16 %v4640, %v4628
        %v5949 = vpack.c.b16 %v4641, %v4629
        %v5950 = vpack.c.b16 %v4642, %v4630
        %v5951 = vpack.c.b16 %v4643, %v4631
        %v5952 = vpack.c.b16 %v4644, %v4632
        %v5953 = vpack.c.b16 %v4645, %v4633
        %v5954 = vpack.c.b16 %v4646, %v4634
        %v5955 = vpack.c.b16 %v4647, %v4635
        %v5956 = vpack.c.b16 %v4648, %v4636
        %v5957 = vpack.c.b16 %v4649, %v4637
        %v5958 = vpack.c.b16 %v4662, %v4650
        %v5959 = vpack.c.b16 %v4663, %v4651
        %v5960 = vpack.c.b16 %v4664, %v4652
        %v5961 = vpack.c.b16 %v4665, %v4653
        %v5962 = vpack.c.b16 %v4666, %v4654
        %v5963 = vpack.c.b16 %v4667, %v4655
        %v5964 = vpack.c.b16 %v4668, %v4656
        %v5965 = vpack.c.b16 %v4669, %v4657
        %v5966 = vpack.c.b16 %v4670, %v4658
        %v5967 = vpack.c.b16 %v4671, %v4659
        %v5968 = vpack.c.b16 %v4672, %v4660
        %v5969 = vpack.c.b16 %v4673, %v4661
        %v5970 = vpack.c.b16 %v4686, %v4674
        %v5971 = vpack.c.b16 %v4687, %v4675
        %v5972 = vpack.c.b16 %v4688, %v4676
        %v5973 = vpack.c.b16 %v4689, %v4677
        %v5974 = vpack.c.b16 %v4690, %v4678
        %v5975 = vpack.c.b16 %v4691, %v4679
        %v5976 = vpack.c.b16 %v4692, %v4680
        %v5977 = vpack.c.b16 %v4693, %v4681
        %v5978 = vpack.c.b16 %v4694, %v4682
        %v5979 = vpack.c.b16 %v4695, %v4683
        %v5980 = vpack.c.b16 %v4696, %v4684
        %v5981 = vpack.c.b16 %v4697, %v4685
        %v5982 = vpack.c.b16 %v4710, %v4698
        %v5983 = vpack.c.b16 %v4711, %v4699
        %v5984 = vpack.c.b16 %v4712, %v4700
        %v5985 = vpack.c.b16 %v4713, %v4701
        %v5986 = vpack.c.b16 %v4714, %v4702
        %v5987 = vpack.c.b16 %v4715, %v4703
        %v5988 = vpack.c.b16 %v4716, %v4704
        %v5989 = vpack.c.b16 %v4717, %v4705
        %v5990 = vpack.c.b16 %v4718, %v4706
        %v5991 = vpack.c.b16 %v4719, %v4707
        %v5992 = vpack.c.b16 %v4720, %v4708
        %v5993 = vpack.c.b16 %v4721, %v4709
        %v5994 = vpack.c.b16 %v4734, %v4722
        %v5995 = vpack.c.b16 %v4735, %v4723
        %v5996 = vpack.c.b16 %v4736, %v4724
        %v5997 = vpack.c.b16 %v4737, %v4725
        %v5998 = vpack.c.b16 %v4738, %v4726
        %v5999 = vpack.c.b16 %v4739, %v4727
        %v6000 = vpack.c.b16 %v4740, %v4728
        %v6001 = vpack.c.b16 %v4741, %v4729
        %v6002 = vpack.c.b16 %v4742, %v4730
        %v6003 = vpack.c.b16 %v4743, %v4731
        %v6004 = vpack.c.b16 %v4744, %v4732
        %v6005 = vpack.c.b16 %v4745, %v4733
        %v6006 = vpack.c.b16 %v4758, %v4746
        %v6007 = vpack.c.b16 %v4759, %v4747
        %v6008 = vpack.c.b16 %v4760, %v4748
        %v6009 = vpack.c.b16 %v4761, %v4749
        %v6010 = vpack.c.b16 %v4762, %v4750
        %v6011 = vpack.c.b16 %v4763, %v4751
        %v6012 = vpack.c.b16 %v4764, %v4752
        %v6013 = vpack.c.b16 %v4765, %v4753
        %v6014 = vpack.c.b16 %v4766, %v4754
        %v6015 = vpack.c.b16 %v4767, %v4755
        %v6016 = vpack.c.b16 %v4768, %v4756
        %v6017 = vpack.c.b16 %v4769, %v4757
        %v6018 = vpack.c.b16 %v4782, %v4770
        %v6019 = vpack.c.b16 %v4783, %v4771
        %v6020 = vpack.c.b16 %v4784, %v4772
        %v6021 = vpack.c.b16 %v4785, %v4773
        %v6022 = vpack.c.b16 %v4786, %v4774
        %v6023 = vpack.c.b16 %v4787, %v4775
        %v6024 = vpack.c.b16 %v4788, %v4776
        %v6025 = vpack.c.b16 %v4789, %v4777
        %v6026 = vpack.c.b16 %v4790, %v4778
        %v6027 = vpack.c.b16 %v4791, %v4779
        %v6028 = vpack.c.b16 %v4792, %v4780
        %v6029 = vpack.c.b16 %v4793, %v4781
        %v6030 = vpack.c.b16 %v4806, %v4794
        %v6031 = vpack.c.b16 %v4807, %v4795
        %v6032 = vpack.c.b16 %v4808, %v4796
        %v6033 = vpack.c.b16 %v4809, %v4797
        %v6034 = vpack.c.b16 %v4810, %v4798
        %v6035 = vpack.c.b16 %v4811, %v4799
        %v6036 = vpack.c.b16 %v4812, %v4800
        %v6037 = vpack.c.b16 %v4813, %v4801
        %v6038 = vpack.c.b16 %v4814, %v4802
        %v6039 = vpack.c.b16 %v4815, %v4803
        %v6040 = vpack.c.b16 %v4816, %v4804
        %v6041 = vpack.c.b16 %v4817, %v4805
        %v6042 = vpack.c.b16 %v4830, %v4818
        %v6043 = vpack.c.b16 %v4831, %v4819
        %v6044 = vpack.c.b16 %v4832, %v4820
        %v6045 = vpack.c.b16 %v4833, %v4821
        %v6046 = vpack.c.b16 %v4834, %v4822
        %v6047 = vpack.c.b16 %v4835, %v4823
        %v6048 = vpack.c.b16 %v4836, %v4824
        %v6049 = vpack.c.b16 %v4837, %v4825
        %v6050 = vpack.c.b16 %v4838, %v4826
        %v6051 = vpack.c.b16 %v4839, %v4827
        %v6052 = vpack.c.b16 %v4840, %v4828
        %v6053 = vpack.c.b16 %v4841, %v4829
        %v6054 = vpack.c.b16 %v4854, %v4842
        %v6055 = vpack.c.b16 %v4855, %v4843
        %v6056 = vpack.c.b16 %v4856, %v4844
        %v6057 = vpack.c.b16 %v4857, %v4845
        %v6058 = vpack.c.b16 %v4858, %v4846
        %v6059 = vpack.c.b16 %v4859, %v4847
        %v6060 = vpack.c.b16 %v4860, %v4848
        %v6061 = vpack.c.b16 %v4861, %v4849
        %v6062 = vpack.c.b16 %v4862, %v4850
        %v6063 = vpack.c.b16 %v4863, %v4851
        %v6064 = vpack.c.b16 %v4864, %v4852
        %v6065 = vpack.c.b16 %v4865, %v4853
        %v6066 = vpack.c.b16 %v4878, %v4866
        %v6067 = vpack.c.b16 %v4879, %v4867
        %v6068 = vpack.c.b16 %v4880, %v4868
        %v6069 = vpack.c.b16 %v4881, %v4869
        %v6070 = vpack.c.b16 %v4882, %v4870
        %v6071 = vpack.c.b16 %v4883, %v4871
        %v6072 = vpack.c.b16 %v4884, %v4872
        %v6073 = vpack.c.b16 %v4885, %v4873
        %v6074 = vpack.c.b16 %v4886, %v4874
        %v6075 = vpack.c.b16 %v4887, %v4875
        %v6076 = vpack.c.b16 %v4888, %v4876
        %v6077 = vpack.c.b16 %v4889, %v4877
        %v6078 = vpack.c.b16 %v4902, %v4890
        %v6079 = vpack.c.b16 %v4903, %v4891
        %v6080 = vpack.c.b16 %v4904, %v4892
        %v6081 = vpack.c.b16 %v4905, %v4893
        %v6082 = vpack.c.b16 %v4906, %v4894
        %v6083 = vpack.c.b16 %v4907, %v4895
        %v6084 = vpack.c.b16 %v4908, %v4896
        %v6085 = vpack.c.b16 %v4909, %v4897
        %v6086 = vpack.c.b16 %v4910, %v4898
        %v6087 = vpack.c.b16 %v4911, %v4899
        %v6088 = vpack.c.b16 %v4912, %v4900
        %v6089 = vpack.c.b16 %v4913, %v4901
        %v6090 = vpack.c.b16 %v4926, %v4914
        %v6091 = vpack.c.b16 %v4927, %v4915
        %v6092 = vpack.c.b16 %v4928, %v4916
        %v6093 = vpack.c.b16 %v4929, %v4917
        %v6094 = vpack.c.b16 %v4930, %v4918
        %v6095 = vpack.c.b16 %v4931, %v4919
        %v6096 = vpack.c.b16 %v4932, %v4920
        %v6097 = vpack.c.b16 %v4933, %v4921
        %v6098 = vpack.c.b16 %v4934, %v4922
        %v6099 = vpack.c.b16 %v4935, %v4923
        %v6100 = vpack.c.b16 %v4936, %v4924
        %v6101 = vpack.c.b16 %v4937, %v4925
        %v6102 = vpack.c.b16 %v4950, %v4938
        %v6103 = vpack.c.b16 %v4951, %v4939
        %v6104 = vpack.c.b16 %v4952, %v4940
        %v6105 = vpack.c.b16 %v4953, %v4941
        %v6106 = vpack.c.b16 %v4954, %v4942
        %v6107 = vpack.c.b16 %v4955, %v4943
        %v6108 = vpack.c.b16 %v4956, %v4944
        %v6109 = vpack.c.b16 %v4957, %v4945
        %v6110 = vpack.c.b16 %v4958, %v4946
        %v6111 = vpack.c.b16 %v4959, %v4947
        %v6112 = vpack.c.b16 %v4960, %v4948
        %v6113 = vpack.c.b16 %v4961, %v4949
        %7266 = vmatprep.subr.bf16.mxu0 %v4963
        %7267 = vmatpush1.bf16.msra.mxu0 %v4962
        %7268 = vmatprep.subr.bf16.mxu0 %v4975
        %7269 = vmatpush1.bf16.msra.mxu0 %v4974
        %7270 = vmatprep.subr.bf16.mxu0 %v4987
        %7271 = vmatpush1.bf16.msra.mxu0 %v4986
        %7272 = vmatprep.subr.bf16.mxu0 %v4999
        %7273 = vmatpush1.bf16.msra.mxu0 %v4998
        %7274 = vmatprep.subr.bf16.mxu0 %v5011
        %7275 = vmatpush1.bf16.msra.mxu0 %v5010
        %7276 = vmatprep.subr.bf16.mxu0 %v5023
        %7277 = vmatpush1.bf16.msra.mxu0 %v5022
        %7278 = vmatprep.subr.bf16.mxu0 %v5035
        %7279 = vmatpush1.bf16.msra.mxu0 %v5034
        %7280 = vmatprep.subr.bf16.mxu0 %v5047
        %7281 = vmatpush1.bf16.msra.mxu0 %v5046
        %7282 = vmatprep.subr.bf16.mxu0 %v5059
        %7283 = vmatpush1.bf16.msra.mxu0 %v5058
        %7284 = vmatprep.subr.bf16.mxu0 %v5071
        %7285 = vmatpush1.bf16.msra.mxu0 %v5070
        %7286 = vmatprep.subr.bf16.mxu0 %v5083
        %7287 = vmatpush1.bf16.msra.mxu0 %v5082
        %7288 = vmatprep.subr.bf16.mxu0 %v5095
        %7289 = vmatpush1.bf16.msra.mxu0 %v5094
        %7290 = vmatprep.subr.bf16.mxu0 %v5107
        %7291 = vmatpush1.bf16.msra.mxu0 %v5106
        %7292 = vmatprep.subr.bf16.mxu0 %v5119
        %7293 = vmatpush1.bf16.msra.mxu0 %v5118
        %7294 = vmatprep.subr.bf16.mxu0 %v5131
        %7295 = vmatpush1.bf16.msra.mxu0 %v5130
        %7296 = vmatprep.subr.bf16.mxu0 %v5143
        %7297 = vmatpush1.bf16.msra.mxu0 %v5142
        %7298 = vmatprep.mubr.bf16.mxu0 %v1483
        %7299 = vmatmul.mubr.bf16.gmra.mrb[0].mxu0 %v1482
        %v7300 = vpop.f32.mrb[0].mxu0
        %v7301 = vadd.f32 %v1407, %v7300
        %v7302 = vpop.f32.mrb[0].mxu0
        %v7303 = vadd.f32 %v1411, %v7302
        %v7304 = vpop.f32.mrb[0].mxu0
        %v7305 = vpop.f32.mrb[0].mxu0
        %7306 = vdwg.mxu0
        %7307 = vmatprep.subr.bf16.mxu0 %v5155
        %7308 = vmatpush1.bf16.msra.mxu0 %v5154
        %7309 = vmatprep.subr.bf16.mxu0 %v5167
        %7310 = vmatpush1.bf16.msra.mxu0 %v5166
        %7311 = vmatprep.subr.bf16.mxu0 %v5179
        %7312 = vmatpush1.bf16.msra.mxu0 %v5178
        %7313 = vmatprep.subr.bf16.mxu0 %v5191
        %7314 = vmatpush1.bf16.msra.mxu0 %v5190
        %7315 = vmatprep.subr.bf16.mxu0 %v5203
        %7316 = vmatpush1.bf16.msra.mxu0 %v5202
        %7317 = vmatprep.subr.bf16.mxu0 %v5215
        %7318 = vmatpush1.bf16.msra.mxu0 %v5214
        %7319 = vmatprep.subr.bf16.mxu0 %v5227
        %7320 = vmatpush1.bf16.msra.mxu0 %v5226
        %7321 = vmatprep.subr.bf16.mxu0 %v5239
        %7322 = vmatpush1.bf16.msra.mxu0 %v5238
        %7323 = vmatprep.subr.bf16.mxu0 %v5251
        %7324 = vmatpush1.bf16.msra.mxu0 %v5250
        %7325 = vmatprep.subr.bf16.mxu0 %v5263
        %7326 = vmatpush1.bf16.msra.mxu0 %v5262
        %7327 = vmatprep.subr.bf16.mxu0 %v5275
        %7328 = vmatpush1.bf16.msra.mxu0 %v5274
        %7329 = vmatprep.subr.bf16.mxu0 %v5287
        %7330 = vmatpush1.bf16.msra.mxu0 %v5286
        %7331 = vmatprep.subr.bf16.mxu0 %v5299
        %7332 = vmatpush1.bf16.msra.mxu0 %v5298
        %7333 = vmatprep.subr.bf16.mxu0 %v5311
        %7334 = vmatpush1.bf16.msra.mxu0 %v5310
        %7335 = vmatprep.subr.bf16.mxu0 %v5323
        %7336 = vmatpush1.bf16.msra.mxu0 %v5322
        %7337 = vmatprep.subr.bf16.mxu0 %v5335
        %7338 = vmatpush1.bf16.msra.mxu0 %v5334
        %7339 = vmatprep.mubr.bf16.mxu0 %v1485
        %7340 = vmatmul.mubr.bf16.gmra.mrb[0].mxu0 %v1484
        %v7341 = vpop.f32.mrb[0].mxu0
        %v7342 = vadd.f32 %v7301, %v7341
        %v7343 = vpop.f32.mrb[0].mxu0
        %v7344 = vadd.f32 %v7303, %v7343
        %v7345 = vpop.f32.mrb[0].mxu0
        %v7346 = vpop.f32.mrb[0].mxu0
        %7347 = vdwg.mxu0
        %7348 = vmatprep.subr.bf16.mxu0 %v5347
        %7349 = vmatpush1.bf16.msra.mxu0 %v5346
        %7350 = vmatprep.subr.bf16.mxu0 %v5359
        %7351 = vmatpush1.bf16.msra.mxu0 %v5358
        %7352 = vmatprep.subr.bf16.mxu0 %v5371
        %7353 = vmatpush1.bf16.msra.mxu0 %v5370
        %7354 = vmatprep.subr.bf16.mxu0 %v5383
        %7355 = vmatpush1.bf16.msra.mxu0 %v5382
        %7356 = vmatprep.subr.bf16.mxu0 %v5395
        %7357 = vmatpush1.bf16.msra.mxu0 %v5394
        %7358 = vmatprep.subr.bf16.mxu0 %v5407
        %7359 = vmatpush1.bf16.msra.mxu0 %v5406
        %7360 = vmatprep.subr.bf16.mxu0 %v5419
        %7361 = vmatpush1.bf16.msra.mxu0 %v5418
        %7362 = vmatprep.subr.bf16.mxu0 %v5431
        %7363 = vmatpush1.bf16.msra.mxu0 %v5430
        %7364 = vmatprep.subr.bf16.mxu0 %v5443
        %7365 = vmatpush1.bf16.msra.mxu0 %v5442
        %7366 = vmatprep.subr.bf16.mxu0 %v5455
        %7367 = vmatpush1.bf16.msra.mxu0 %v5454
        %7368 = vmatprep.subr.bf16.mxu0 %v5467
        %7369 = vmatpush1.bf16.msra.mxu0 %v5466
        %7370 = vmatprep.subr.bf16.mxu0 %v5479
        %7371 = vmatpush1.bf16.msra.mxu0 %v5478
        %7372 = vmatprep.subr.bf16.mxu0 %v5491
        %7373 = vmatpush1.bf16.msra.mxu0 %v5490
        %7374 = vmatprep.subr.bf16.mxu0 %v5503
        %7375 = vmatpush1.bf16.msra.mxu0 %v5502
        %7376 = vmatprep.subr.bf16.mxu0 %v5515
        %7377 = vmatpush1.bf16.msra.mxu0 %v5514
        %7378 = vmatprep.subr.bf16.mxu0 %v5527
        %7379 = vmatpush1.bf16.msra.mxu0 %v5526
        %7380 = vmatprep.mubr.bf16.mxu0 %v1487
        %7381 = vmatmul.mubr.bf16.gmra.mrb[0].mxu0 %v1486
        %v7382 = vpop.f32.mrb[0].mxu0
        %v7383 = vadd.f32 %v7342, %v7382
        %v7384 = vpop.f32.mrb[0].mxu0
        %v7385 = vadd.f32 %v7344, %v7384
        %v7386 = vpop.f32.mrb[0].mxu0
        %v7387 = vpop.f32.mrb[0].mxu0
        %7388 = vdwg.mxu0
        %7389 = vmatprep.subr.bf16.mxu0 %v5539
        %7390 = vmatpush1.bf16.msra.mxu0 %v5538
        %7391 = vmatprep.subr.bf16.mxu0 %v5551
        %7392 = vmatpush1.bf16.msra.mxu0 %v5550
        %7393 = vmatprep.subr.bf16.mxu0 %v5563
        %7394 = vmatpush1.bf16.msra.mxu0 %v5562
        %7395 = vmatprep.subr.bf16.mxu0 %v5575
        %7396 = vmatpush1.bf16.msra.mxu0 %v5574
        %7397 = vmatprep.subr.bf16.mxu0 %v5587
        %7398 = vmatpush1.bf16.msra.mxu0 %v5586
        %7399 = vmatprep.subr.bf16.mxu0 %v5599
        %7400 = vmatpush1.bf16.msra.mxu0 %v5598
        %7401 = vmatprep.subr.bf16.mxu0 %v5611
        %7402 = vmatpush1.bf16.msra.mxu0 %v5610
        %7403 = vmatprep.subr.bf16.mxu0 %v5623
        %7404 = vmatpush1.bf16.msra.mxu0 %v5622
        %7405 = vmatprep.subr.bf16.mxu0 %v5635
        %7406 = vmatpush1.bf16.msra.mxu0 %v5634
        %7407 = vmatprep.subr.bf16.mxu0 %v5647
        %7408 = vmatpush1.bf16.msra.mxu0 %v5646
        %7409 = vmatprep.subr.bf16.mxu0 %v5659
        %7410 = vmatpush1.bf16.msra.mxu0 %v5658
        %7411 = vmatprep.subr.bf16.mxu0 %v5671
        %7412 = vmatpush1.bf16.msra.mxu0 %v5670
        %7413 = vmatprep.subr.bf16.mxu0 %v5683
        %7414 = vmatpush1.bf16.msra.mxu0 %v5682
        %7415 = vmatprep.subr.bf16.mxu0 %v5695
        %7416 = vmatpush1.bf16.msra.mxu0 %v5694
        %7417 = vmatprep.subr.bf16.mxu0 %v5707
        %7418 = vmatpush1.bf16.msra.mxu0 %v5706
        %7419 = vmatprep.subr.bf16.mxu0 %v5719
        %7420 = vmatpush1.bf16.msra.mxu0 %v5718
        %7421 = vmatprep.mubr.bf16.mxu0 %v1489
        %7422 = vmatmul.mubr.bf16.gmra.mrb[0].mxu0 %v1488
        %v7423 = vpop.f32.mrb[0].mxu0
        %v7424 = vadd.f32 %v7383, %v7423
        %v7425 = vpop.f32.mrb[0].mxu0
        %v7426 = vadd.f32 %v7385, %v7425
        %v7427 = vpop.f32.mrb[0].mxu0
        %v7428 = vpop.f32.mrb[0].mxu0
        %7429 = vdwg.mxu0
        %7430 = vmatprep.subr.bf16.mxu0 %v5731
        %7431 = vmatpush1.bf16.msra.mxu0 %v5730
        %7432 = vmatprep.subr.bf16.mxu0 %v5743
        %7433 = vmatpush1.bf16.msra.mxu0 %v5742
        %7434 = vmatprep.subr.bf16.mxu0 %v5755
        %7435 = vmatpush1.bf16.msra.mxu0 %v5754
        %7436 = vmatprep.subr.bf16.mxu0 %v5767
        %7437 = vmatpush1.bf16.msra.mxu0 %v5766
        %7438 = vmatprep.subr.bf16.mxu0 %v5779
        %7439 = vmatpush1.bf16.msra.mxu0 %v5778
        %7440 = vmatprep.subr.bf16.mxu0 %v5791
        %7441 = vmatpush1.bf16.msra.mxu0 %v5790
        %7442 = vmatprep.subr.bf16.mxu0 %v5803
        %7443 = vmatpush1.bf16.msra.mxu0 %v5802
        %7444 = vmatprep.subr.bf16.mxu0 %v5815
        %7445 = vmatpush1.bf16.msra.mxu0 %v5814
        %7446 = vmatprep.subr.bf16.mxu0 %v5827
        %7447 = vmatpush1.bf16.msra.mxu0 %v5826
        %7448 = vmatprep.subr.bf16.mxu0 %v5839
        %7449 = vmatpush1.bf16.msra.mxu0 %v5838
        %7450 = vmatprep.subr.bf16.mxu0 %v5851
        %7451 = vmatpush1.bf16.msra.mxu0 %v5850
        %7452 = vmatprep.subr.bf16.mxu0 %v5863
        %7453 = vmatpush1.bf16.msra.mxu0 %v5862
        %7454 = vmatprep.subr.bf16.mxu0 %v5875
        %7455 = vmatpush1.bf16.msra.mxu0 %v5874
        %7456 = vmatprep.subr.bf16.mxu0 %v5887
        %7457 = vmatpush1.bf16.msra.mxu0 %v5886
        %7458 = vmatprep.subr.bf16.mxu0 %v5899
        %7459 = vmatpush1.bf16.msra.mxu0 %v5898
        %7460 = vmatprep.subr.bf16.mxu0 %v5911
        %7461 = vmatpush1.bf16.msra.mxu0 %v5910
        %7462 = vmatprep.mubr.bf16.mxu0 %v1491
        %7463 = vmatmul.mubr.bf16.gmra.mrb[0].mxu0 %v1490
        %v7464 = vpop.f32.mrb[0].mxu0
        %v7465 = vadd.f32 %v7424, %v7464
        %v7466 = vpop.f32.mrb[0].mxu0
        %v7467 = vadd.f32 %v7426, %v7466
        %v7468 = vpop.f32.mrb[0].mxu0
        %v7469 = vpop.f32.mrb[0].mxu0
        %7470 = vdwg.mxu0
        %7471 = vmatprep.subr.bf16.mxu0 %v5923
        %7472 = vmatpush1.bf16.msra.mxu0 %v5922
        %7473 = vmatprep.subr.bf16.mxu0 %v5935
        %7474 = vmatpush1.bf16.msra.mxu0 %v5934
        %7475 = vmatprep.subr.bf16.mxu0 %v5947
        %7476 = vmatpush1.bf16.msra.mxu0 %v5946
        %7477 = vmatprep.subr.bf16.mxu0 %v5959
        %7478 = vmatpush1.bf16.msra.mxu0 %v5958
        %7479 = vmatprep.subr.bf16.mxu0 %v5971
        %7480 = vmatpush1.bf16.msra.mxu0 %v5970
        %7481 = vmatprep.subr.bf16.mxu0 %v5983
        %7482 = vmatpush1.bf16.msra.mxu0 %v5982
        %7483 = vmatprep.subr.bf16.mxu0 %v5995
        %7484 = vmatpush1.bf16.msra.mxu0 %v5994
        %7485 = vmatprep.subr.bf16.mxu0 %v6007
        %7486 = vmatpush1.bf16.msra.mxu0 %v6006
        %7487 = vmatprep.subr.bf16.mxu0 %v6019
        %7488 = vmatpush1.bf16.msra.mxu0 %v6018
        %7489 = vmatprep.subr.bf16.mxu0 %v6031
        %7490 = vmatpush1.bf16.msra.mxu0 %v6030
        %7491 = vmatprep.subr.bf16.mxu0 %v6043
        %7492 = vmatpush1.bf16.msra.mxu0 %v6042
        %7493 = vmatprep.subr.bf16.mxu0 %v6055
        %7494 = vmatpush1.bf16.msra.mxu0 %v6054
        %7495 = vmatprep.subr.bf16.mxu0 %v6067
        %7496 = vmatpush1.bf16.msra.mxu0 %v6066
        %7497 = vmatprep.subr.bf16.mxu0 %v6079
        %7498 = vmatpush1.bf16.msra.mxu0 %v6078
        %7499 = vmatprep.subr.bf16.mxu0 %v6091
        %7500 = vmatpush1.bf16.msra.mxu0 %v6090
        %7501 = vmatprep.subr.bf16.mxu0 %v6103
        %7502 = vmatpush1.bf16.msra.mxu0 %v6102
        %7503 = vmatprep.mubr.bf16.mxu0 %v1493
        %7504 = vmatmul.mubr.bf16.gmra.mrb[0].mxu0 %v1492
        %v7505 = vpop.f32.mrb[0].mxu0
        %v7506 = vadd.f32 %v7465, %v7505
        %v7507 = vpop.f32.mrb[0].mxu0
        %v7508 = vadd.f32 %v7467, %v7507
        %v7509 = vpop.f32.mrb[0].mxu0
        %v7510 = vpop.f32.mrb[0].mxu0
        %7511 = vdwg.mxu0
        %7512 = vmatprep.subr.bf16.mxu0 %v4965
        %7513 = vmatpush1.bf16.msra.mxu0 %v4964
        %7514 = vmatprep.subr.bf16.mxu0 %v4977
        %7515 = vmatpush1.bf16.msra.mxu0 %v4976
        %7516 = vmatprep.subr.bf16.mxu0 %v4989
        %7517 = vmatpush1.bf16.msra.mxu0 %v4988
        %7518 = vmatprep.subr.bf16.mxu0 %v5001
        %7519 = vmatpush1.bf16.msra.mxu0 %v5000
        %7520 = vmatprep.subr.bf16.mxu0 %v5013
        %7521 = vmatpush1.bf16.msra.mxu0 %v5012
        %7522 = vmatprep.subr.bf16.mxu0 %v5025
        %7523 = vmatpush1.bf16.msra.mxu0 %v5024
        %7524 = vmatprep.subr.bf16.mxu0 %v5037
        %7525 = vmatpush1.bf16.msra.mxu0 %v5036
        %7526 = vmatprep.subr.bf16.mxu0 %v5049
        %7527 = vmatpush1.bf16.msra.mxu0 %v5048
        %7528 = vmatprep.subr.bf16.mxu0 %v5061
        %7529 = vmatpush1.bf16.msra.mxu0 %v5060
        %7530 = vmatprep.subr.bf16.mxu0 %v5073
        %7531 = vmatpush1.bf16.msra.mxu0 %v5072
        %7532 = vmatprep.subr.bf16.mxu0 %v5085
        %7533 = vmatpush1.bf16.msra.mxu0 %v5084
        %7534 = vmatprep.subr.bf16.mxu0 %v5097
        %7535 = vmatpush1.bf16.msra.mxu0 %v5096
        %7536 = vmatprep.subr.bf16.mxu0 %v5109
        %7537 = vmatpush1.bf16.msra.mxu0 %v5108
        %7538 = vmatprep.subr.bf16.mxu0 %v5121
        %7539 = vmatpush1.bf16.msra.mxu0 %v5120
        %7540 = vmatprep.subr.bf16.mxu0 %v5133
        %7541 = vmatpush1.bf16.msra.mxu0 %v5132
        %7542 = vmatprep.subr.bf16.mxu0 %v5145
        %7543 = vmatpush1.bf16.msra.mxu0 %v5144
        %7544 = vmatprep.mubr.bf16.mxu0 %v1483
        %7545 = vmatmul.mubr.bf16.gmra.mrb[0].mxu0 %v1482
        %v7546 = vpop.f32.mrb[0].mxu0
        %v7547 = vadd.f32 %v1415, %v7546
        %v7548 = vpop.f32.mrb[0].mxu0
        %v7549 = vadd.f32 %v1419, %v7548
        %v7550 = vpop.f32.mrb[0].mxu0
        %v7551 = vpop.f32.mrb[0].mxu0
        %7552 = vdwg.mxu0
        %7553 = vmatprep.subr.bf16.mxu0 %v5157
        %7554 = vmatpush1.bf16.msra.mxu0 %v5156
        %7555 = vmatprep.subr.bf16.mxu0 %v5169
        %7556 = vmatpush1.bf16.msra.mxu0 %v5168
        %7557 = vmatprep.subr.bf16.mxu0 %v5181
        %7558 = vmatpush1.bf16.msra.mxu0 %v5180
        %7559 = vmatprep.subr.bf16.mxu0 %v5193
        %7560 = vmatpush1.bf16.msra.mxu0 %v5192
        %7561 = vmatprep.subr.bf16.mxu0 %v5205
        %7562 = vmatpush1.bf16.msra.mxu0 %v5204
        %7563 = vmatprep.subr.bf16.mxu0 %v5217
        %7564 = vmatpush1.bf16.msra.mxu0 %v5216
        %7565 = vmatprep.subr.bf16.mxu0 %v5229
        %7566 = vmatpush1.bf16.msra.mxu0 %v5228
        %7567 = vmatprep.subr.bf16.mxu0 %v5241
        %7568 = vmatpush1.bf16.msra.mxu0 %v5240
        %7569 = vmatprep.subr.bf16.mxu0 %v5253
        %7570 = vmatpush1.bf16.msra.mxu0 %v5252
        %7571 = vmatprep.subr.bf16.mxu0 %v5265
        %7572 = vmatpush1.bf16.msra.mxu0 %v5264
        %7573 = vmatprep.subr.bf16.mxu0 %v5277
        %7574 = vmatpush1.bf16.msra.mxu0 %v5276
        %7575 = vmatprep.subr.bf16.mxu0 %v5289
        %7576 = vmatpush1.bf16.msra.mxu0 %v5288
        %7577 = vmatprep.subr.bf16.mxu0 %v5301
        %7578 = vmatpush1.bf16.msra.mxu0 %v5300
        %7579 = vmatprep.subr.bf16.mxu0 %v5313
        %7580 = vmatpush1.bf16.msra.mxu0 %v5312
        %7581 = vmatprep.subr.bf16.mxu0 %v5325
        %7582 = vmatpush1.bf16.msra.mxu0 %v5324
        %7583 = vmatprep.subr.bf16.mxu0 %v5337
        %7584 = vmatpush1.bf16.msra.mxu0 %v5336
        %7585 = vmatprep.mubr.bf16.mxu0 %v1485
        %7586 = vmatmul.mubr.bf16.gmra.mrb[0].mxu0 %v1484
        %v7587 = vpop.f32.mrb[0].mxu0
        %v7588 = vadd.f32 %v7547, %v7587
        %v7589 = vpop.f32.mrb[0].mxu0
        %v7590 = vadd.f32 %v7549, %v7589
        %v7591 = vpop.f32.mrb[0].mxu0
        %v7592 = vpop.f32.mrb[0].mxu0
        %7593 = vdwg.mxu0
        %7594 = vmatprep.subr.bf16.mxu0 %v5349
        %7595 = vmatpush1.bf16.msra.mxu0 %v5348
        %7596 = vmatprep.subr.bf16.mxu0 %v5361
        %7597 = vmatpush1.bf16.msra.mxu0 %v5360
        %7598 = vmatprep.subr.bf16.mxu0 %v5373
        %7599 = vmatpush1.bf16.msra.mxu0 %v5372
        %7600 = vmatprep.subr.bf16.mxu0 %v5385
        %7601 = vmatpush1.bf16.msra.mxu0 %v5384
        %7602 = vmatprep.subr.bf16.mxu0 %v5397
        %7603 = vmatpush1.bf16.msra.mxu0 %v5396
        %7604 = vmatprep.subr.bf16.mxu0 %v5409
        %7605 = vmatpush1.bf16.msra.mxu0 %v5408
        %7606 = vmatprep.subr.bf16.mxu0 %v5421
        %7607 = vmatpush1.bf16.msra.mxu0 %v5420
        %7608 = vmatprep.subr.bf16.mxu0 %v5433
        %7609 = vmatpush1.bf16.msra.mxu0 %v5432
        %7610 = vmatprep.subr.bf16.mxu0 %v5445
        %7611 = vmatpush1.bf16.msra.mxu0 %v5444
        %7612 = vmatprep.subr.bf16.mxu0 %v5457
        %7613 = vmatpush1.bf16.msra.mxu0 %v5456
        %7614 = vmatprep.subr.bf16.mxu0 %v5469
        %7615 = vmatpush1.bf16.msra.mxu0 %v5468
        %7616 = vmatprep.subr.bf16.mxu0 %v5481
        %7617 = vmatpush1.bf16.msra.mxu0 %v5480
        %7618 = vmatprep.subr.bf16.mxu0 %v5493
        %7619 = vmatpush1.bf16.msra.mxu0 %v5492
        %7620 = vmatprep.subr.bf16.mxu0 %v5505
        %7621 = vmatpush1.bf16.msra.mxu0 %v5504
        %7622 = vmatprep.subr.bf16.mxu0 %v5517
        %7623 = vmatpush1.bf16.msra.mxu0 %v5516
        %7624 = vmatprep.subr.bf16.mxu0 %v5529
        %7625 = vmatpush1.bf16.msra.mxu0 %v5528
        %7626 = vmatprep.mubr.bf16.mxu0 %v1487
        %7627 = vmatmul.mubr.bf16.gmra.mrb[0].mxu0 %v1486
        %v7628 = vpop.f32.mrb[0].mxu0
        %v7629 = vadd.f32 %v7588, %v7628
        %v7630 = vpop.f32.mrb[0].mxu0
        %v7631 = vadd.f32 %v7590, %v7630
        %v7632 = vpop.f32.mrb[0].mxu0
        %v7633 = vpop.f32.mrb[0].mxu0
        %7634 = vdwg.mxu0
        %7635 = vmatprep.subr.bf16.mxu0 %v5541
        %7636 = vmatpush1.bf16.msra.mxu0 %v5540
        %7637 = vmatprep.subr.bf16.mxu0 %v5553
        %7638 = vmatpush1.bf16.msra.mxu0 %v5552
        %7639 = vmatprep.subr.bf16.mxu0 %v5565
        %7640 = vmatpush1.bf16.msra.mxu0 %v5564
        %7641 = vmatprep.subr.bf16.mxu0 %v5577
        %7642 = vmatpush1.bf16.msra.mxu0 %v5576
        %7643 = vmatprep.subr.bf16.mxu0 %v5589
        %7644 = vmatpush1.bf16.msra.mxu0 %v5588
        %7645 = vmatprep.subr.bf16.mxu0 %v5601
        %7646 = vmatpush1.bf16.msra.mxu0 %v5600
        %7647 = vmatprep.subr.bf16.mxu0 %v5613
        %7648 = vmatpush1.bf16.msra.mxu0 %v5612
        %7649 = vmatprep.subr.bf16.mxu0 %v5625
        %7650 = vmatpush1.bf16.msra.mxu0 %v5624
        %7651 = vmatprep.subr.bf16.mxu0 %v5637
        %7652 = vmatpush1.bf16.msra.mxu0 %v5636
        %7653 = vmatprep.subr.bf16.mxu0 %v5649
        %7654 = vmatpush1.bf16.msra.mxu0 %v5648
        %7655 = vmatprep.subr.bf16.mxu0 %v5661
        %7656 = vmatpush1.bf16.msra.mxu0 %v5660
        %7657 = vmatprep.subr.bf16.mxu0 %v5673
        %7658 = vmatpush1.bf16.msra.mxu0 %v5672
        %7659 = vmatprep.subr.bf16.mxu0 %v5685
        %7660 = vmatpush1.bf16.msra.mxu0 %v5684
        %7661 = vmatprep.subr.bf16.mxu0 %v5697
        %7662 = vmatpush1.bf16.msra.mxu0 %v5696
        %7663 = vmatprep.subr.bf16.mxu0 %v5709
        %7664 = vmatpush1.bf16.msra.mxu0 %v5708
        %7665 = vmatprep.subr.bf16.mxu0 %v5721
        %7666 = vmatpush1.bf16.msra.mxu0 %v5720
        %7667 = vmatprep.mubr.bf16.mxu0 %v1489
        %7668 = vmatmul.mubr.bf16.gmra.mrb[0].mxu0 %v1488
        %v7669 = vpop.f32.mrb[0].mxu0
        %v7670 = vadd.f32 %v7629, %v7669
        %v7671 = vpop.f32.mrb[0].mxu0
        %v7672 = vadd.f32 %v7631, %v7671
        %v7673 = vpop.f32.mrb[0].mxu0
        %v7674 = vpop.f32.mrb[0].mxu0
        %7675 = vdwg.mxu0
        %7676 = vmatprep.subr.bf16.mxu0 %v5733
        %7677 = vmatpush1.bf16.msra.mxu0 %v5732
        %7678 = vmatprep.subr.bf16.mxu0 %v5745
        %7679 = vmatpush1.bf16.msra.mxu0 %v5744
        %7680 = vmatprep.subr.bf16.mxu0 %v5757
        %7681 = vmatpush1.bf16.msra.mxu0 %v5756
        %7682 = vmatprep.subr.bf16.mxu0 %v5769
        %7683 = vmatpush1.bf16.msra.mxu0 %v5768
        %7684 = vmatprep.subr.bf16.mxu0 %v5781
        %7685 = vmatpush1.bf16.msra.mxu0 %v5780
        %7686 = vmatprep.subr.bf16.mxu0 %v5793
        %7687 = vmatpush1.bf16.msra.mxu0 %v5792
        %7688 = vmatprep.subr.bf16.mxu0 %v5805
        %7689 = vmatpush1.bf16.msra.mxu0 %v5804
        %7690 = vmatprep.subr.bf16.mxu0 %v5817
        %7691 = vmatpush1.bf16.msra.mxu0 %v5816
        %7692 = vmatprep.subr.bf16.mxu0 %v5829
        %7693 = vmatpush1.bf16.msra.mxu0 %v5828
        %7694 = vmatprep.subr.bf16.mxu0 %v5841
        %7695 = vmatpush1.bf16.msra.mxu0 %v5840
        %7696 = vmatprep.subr.bf16.mxu0 %v5853
        %7697 = vmatpush1.bf16.msra.mxu0 %v5852
        %7698 = vmatprep.subr.bf16.mxu0 %v5865
        %7699 = vmatpush1.bf16.msra.mxu0 %v5864
        %7700 = vmatprep.subr.bf16.mxu0 %v5877
        %7701 = vmatpush1.bf16.msra.mxu0 %v5876
        %7702 = vmatprep.subr.bf16.mxu0 %v5889
        %7703 = vmatpush1.bf16.msra.mxu0 %v5888
        %7704 = vmatprep.subr.bf16.mxu0 %v5901
        %7705 = vmatpush1.bf16.msra.mxu0 %v5900
        %7706 = vmatprep.subr.bf16.mxu0 %v5913
        %7707 = vmatpush1.bf16.msra.mxu0 %v5912
        %7708 = vmatprep.mubr.bf16.mxu0 %v1491
        %7709 = vmatmul.mubr.bf16.gmra.mrb[0].mxu0 %v1490
        %v7710 = vpop.f32.mrb[0].mxu0
        %v7711 = vadd.f32 %v7670, %v7710
        %v7712 = vpop.f32.mrb[0].mxu0
        %v7713 = vadd.f32 %v7672, %v7712
        %v7714 = vpop.f32.mrb[0].mxu0
        %v7715 = vpop.f32.mrb[0].mxu0
        %7716 = vdwg.mxu0
        %7717 = vmatprep.subr.bf16.mxu0 %v5925
        %7718 = vmatpush1.bf16.msra.mxu0 %v5924
        %7719 = vmatprep.subr.bf16.mxu0 %v5937
        %7720 = vmatpush1.bf16.msra.mxu0 %v5936
        %7721 = vmatprep.subr.bf16.mxu0 %v5949
        %7722 = vmatpush1.bf16.msra.mxu0 %v5948
        %7723 = vmatprep.subr.bf16.mxu0 %v5961
        %7724 = vmatpush1.bf16.msra.mxu0 %v5960
        %7725 = vmatprep.subr.bf16.mxu0 %v5973
        %7726 = vmatpush1.bf16.msra.mxu0 %v5972
        %7727 = vmatprep.subr.bf16.mxu0 %v5985
        %7728 = vmatpush1.bf16.msra.mxu0 %v5984
        %7729 = vmatprep.subr.bf16.mxu0 %v5997
        %7730 = vmatpush1.bf16.msra.mxu0 %v5996
        %7731 = vmatprep.subr.bf16.mxu0 %v6009
        %7732 = vmatpush1.bf16.msra.mxu0 %v6008
        %7733 = vmatprep.subr.bf16.mxu0 %v6021
        %7734 = vmatpush1.bf16.msra.mxu0 %v6020
        %7735 = vmatprep.subr.bf16.mxu0 %v6033
        %7736 = vmatpush1.bf16.msra.mxu0 %v6032
        %7737 = vmatprep.subr.bf16.mxu0 %v6045
        %7738 = vmatpush1.bf16.msra.mxu0 %v6044
        %7739 = vmatprep.subr.bf16.mxu0 %v6057
        %7740 = vmatpush1.bf16.msra.mxu0 %v6056
        %7741 = vmatprep.subr.bf16.mxu0 %v6069
        %7742 = vmatpush1.bf16.msra.mxu0 %v6068
        %7743 = vmatprep.subr.bf16.mxu0 %v6081
        %7744 = vmatpush1.bf16.msra.mxu0 %v6080
        %7745 = vmatprep.subr.bf16.mxu0 %v6093
        %7746 = vmatpush1.bf16.msra.mxu0 %v6092
        %7747 = vmatprep.subr.bf16.mxu0 %v6105
        %7748 = vmatpush1.bf16.msra.mxu0 %v6104
        %7749 = vmatprep.mubr.bf16.mxu0 %v1493
        %7750 = vmatmul.mubr.bf16.gmra.mrb[0].mxu0 %v1492
        %v7751 = vpop.f32.mrb[0].mxu0
        %v7752 = vadd.f32 %v7711, %v7751
        %v7753 = vpop.f32.mrb[0].mxu0
        %v7754 = vadd.f32 %v7713, %v7753
        %v7755 = vpop.f32.mrb[0].mxu0
        %v7756 = vpop.f32.mrb[0].mxu0
        %7757 = vdwg.mxu0
        %7758 = vmatprep.subr.bf16.mxu0 %v4967
        %7759 = vmatpush1.bf16.msra.mxu0 %v4966
        %7760 = vmatprep.subr.bf16.mxu0 %v4979
        %7761 = vmatpush1.bf16.msra.mxu0 %v4978
        %7762 = vmatprep.subr.bf16.mxu0 %v4991
        %7763 = vmatpush1.bf16.msra.mxu0 %v4990
        %7764 = vmatprep.subr.bf16.mxu0 %v5003
        %7765 = vmatpush1.bf16.msra.mxu0 %v5002
        %7766 = vmatprep.subr.bf16.mxu0 %v5015
        %7767 = vmatpush1.bf16.msra.mxu0 %v5014
        %7768 = vmatprep.subr.bf16.mxu0 %v5027
        %7769 = vmatpush1.bf16.msra.mxu0 %v5026
        %7770 = vmatprep.subr.bf16.mxu0 %v5039
        %7771 = vmatpush1.bf16.msra.mxu0 %v5038
        %7772 = vmatprep.subr.bf16.mxu0 %v5051
        %7773 = vmatpush1.bf16.msra.mxu0 %v5050
        %7774 = vmatprep.subr.bf16.mxu0 %v5063
        %7775 = vmatpush1.bf16.msra.mxu0 %v5062
        %7776 = vmatprep.subr.bf16.mxu0 %v5075
        %7777 = vmatpush1.bf16.msra.mxu0 %v5074
        %7778 = vmatprep.subr.bf16.mxu0 %v5087
        %7779 = vmatpush1.bf16.msra.mxu0 %v5086
        %7780 = vmatprep.subr.bf16.mxu0 %v5099
        %7781 = vmatpush1.bf16.msra.mxu0 %v5098
        %7782 = vmatprep.subr.bf16.mxu0 %v5111
        %7783 = vmatpush1.bf16.msra.mxu0 %v5110
        %7784 = vmatprep.subr.bf16.mxu0 %v5123
        %7785 = vmatpush1.bf16.msra.mxu0 %v5122
        %7786 = vmatprep.subr.bf16.mxu0 %v5135
        %7787 = vmatpush1.bf16.msra.mxu0 %v5134
        %7788 = vmatprep.subr.bf16.mxu0 %v5147
        %7789 = vmatpush1.bf16.msra.mxu0 %v5146
        %7790 = vmatprep.mubr.bf16.mxu0 %v1483
        %7791 = vmatmul.mubr.bf16.gmra.mrb[0].mxu0 %v1482
        %v7792 = vpop.f32.mrb[0].mxu0
        %v7793 = vadd.f32 %v1423, %v7792
        %v7794 = vpop.f32.mrb[0].mxu0
        %v7795 = vadd.f32 %v1427, %v7794
        %v7796 = vpop.f32.mrb[0].mxu0
        %v7797 = vpop.f32.mrb[0].mxu0
        %7798 = vdwg.mxu0
        %7799 = vmatprep.subr.bf16.mxu0 %v5159
        %7800 = vmatpush1.bf16.msra.mxu0 %v5158
        %7801 = vmatprep.subr.bf16.mxu0 %v5171
        %7802 = vmatpush1.bf16.msra.mxu0 %v5170
        %7803 = vmatprep.subr.bf16.mxu0 %v5183
        %7804 = vmatpush1.bf16.msra.mxu0 %v5182
        %7805 = vmatprep.subr.bf16.mxu0 %v5195
        %7806 = vmatpush1.bf16.msra.mxu0 %v5194
        %7807 = vmatprep.subr.bf16.mxu0 %v5207
        %7808 = vmatpush1.bf16.msra.mxu0 %v5206
        %7809 = vmatprep.subr.bf16.mxu0 %v5219
        %7810 = vmatpush1.bf16.msra.mxu0 %v5218
        %7811 = vmatprep.subr.bf16.mxu0 %v5231
        %7812 = vmatpush1.bf16.msra.mxu0 %v5230
        %7813 = vmatprep.subr.bf16.mxu0 %v5243
        %7814 = vmatpush1.bf16.msra.mxu0 %v5242
        %7815 = vmatprep.subr.bf16.mxu0 %v5255
        %7816 = vmatpush1.bf16.msra.mxu0 %v5254
        %7817 = vmatprep.subr.bf16.mxu0 %v5267
        %7818 = vmatpush1.bf16.msra.mxu0 %v5266
        %7819 = vmatprep.subr.bf16.mxu0 %v5279
        %7820 = vmatpush1.bf16.msra.mxu0 %v5278
        %7821 = vmatprep.subr.bf16.mxu0 %v5291
        %7822 = vmatpush1.bf16.msra.mxu0 %v5290
        %7823 = vmatprep.subr.bf16.mxu0 %v5303
        %7824 = vmatpush1.bf16.msra.mxu0 %v5302
        %7825 = vmatprep.subr.bf16.mxu0 %v5315
        %7826 = vmatpush1.bf16.msra.mxu0 %v5314
        %7827 = vmatprep.subr.bf16.mxu0 %v5327
        %7828 = vmatpush1.bf16.msra.mxu0 %v5326
        %7829 = vmatprep.subr.bf16.mxu0 %v5339
        %7830 = vmatpush1.bf16.msra.mxu0 %v5338
        %7831 = vmatprep.mubr.bf16.mxu0 %v1485
        %7832 = vmatmul.mubr.bf16.gmra.mrb[0].mxu0 %v1484
        %v7833 = vpop.f32.mrb[0].mxu0
        %v7834 = vadd.f32 %v7793, %v7833
        %v7835 = vpop.f32.mrb[0].mxu0
        %v7836 = vadd.f32 %v7795, %v7835
        %v7837 = vpop.f32.mrb[0].mxu0
        %v7838 = vpop.f32.mrb[0].mxu0
        %7839 = vdwg.mxu0
        %7840 = vmatprep.subr.bf16.mxu0 %v5351
        %7841 = vmatpush1.bf16.msra.mxu0 %v5350
        %7842 = vmatprep.subr.bf16.mxu0 %v5363
        %7843 = vmatpush1.bf16.msra.mxu0 %v5362
        %7844 = vmatprep.subr.bf16.mxu0 %v5375
        %7845 = vmatpush1.bf16.msra.mxu0 %v5374
        %7846 = vmatprep.subr.bf16.mxu0 %v5387
        %7847 = vmatpush1.bf16.msra.mxu0 %v5386
        %7848 = vmatprep.subr.bf16.mxu0 %v5399
        %7849 = vmatpush1.bf16.msra.mxu0 %v5398
        %7850 = vmatprep.subr.bf16.mxu0 %v5411
        %7851 = vmatpush1.bf16.msra.mxu0 %v5410
        %7852 = vmatprep.subr.bf16.mxu0 %v5423
        %7853 = vmatpush1.bf16.msra.mxu0 %v5422
        %7854 = vmatprep.subr.bf16.mxu0 %v5435
        %7855 = vmatpush1.bf16.msra.mxu0 %v5434
        %7856 = vmatprep.subr.bf16.mxu0 %v5447
        %7857 = vmatpush1.bf16.msra.mxu0 %v5446
        %7858 = vmatprep.subr.bf16.mxu0 %v5459
        %7859 = vmatpush1.bf16.msra.mxu0 %v5458
        %7860 = vmatprep.subr.bf16.mxu0 %v5471
        %7861 = vmatpush1.bf16.msra.mxu0 %v5470
        %7862 = vmatprep.subr.bf16.mxu0 %v5483
        %7863 = vmatpush1.bf16.msra.mxu0 %v5482
        %7864 = vmatprep.subr.bf16.mxu0 %v5495
        %7865 = vmatpush1.bf16.msra.mxu0 %v5494
        %7866 = vmatprep.subr.bf16.mxu0 %v5507
        %7867 = vmatpush1.bf16.msra.mxu0 %v5506
        %7868 = vmatprep.subr.bf16.mxu0 %v5519
        %7869 = vmatpush1.bf16.msra.mxu0 %v5518
        %7870 = vmatprep.subr.bf16.mxu0 %v5531
        %7871 = vmatpush1.bf16.msra.mxu0 %v5530
        %7872 = vmatprep.mubr.bf16.mxu0 %v1487
        %7873 = vmatmul.mubr.bf16.gmra.mrb[0].mxu0 %v1486
        %v7874 = vpop.f32.mrb[0].mxu0
        %v7875 = vadd.f32 %v7834, %v7874
        %v7876 = vpop.f32.mrb[0].mxu0
        %v7877 = vadd.f32 %v7836, %v7876
        %v7878 = vpop.f32.mrb[0].mxu0
        %v7879 = vpop.f32.mrb[0].mxu0
        %7880 = vdwg.mxu0
        %7881 = vmatprep.subr.bf16.mxu0 %v5543
        %7882 = vmatpush1.bf16.msra.mxu0 %v5542
        %7883 = vmatprep.subr.bf16.mxu0 %v5555
        %7884 = vmatpush1.bf16.msra.mxu0 %v5554
        %7885 = vmatprep.subr.bf16.mxu0 %v5567
        %7886 = vmatpush1.bf16.msra.mxu0 %v5566
        %7887 = vmatprep.subr.bf16.mxu0 %v5579
        %7888 = vmatpush1.bf16.msra.mxu0 %v5578
        %7889 = vmatprep.subr.bf16.mxu0 %v5591
        %7890 = vmatpush1.bf16.msra.mxu0 %v5590
        %7891 = vmatprep.subr.bf16.mxu0 %v5603
        %7892 = vmatpush1.bf16.msra.mxu0 %v5602
        %7893 = vmatprep.subr.bf16.mxu0 %v5615
        %7894 = vmatpush1.bf16.msra.mxu0 %v5614
        %7895 = vmatprep.subr.bf16.mxu0 %v5627
        %7896 = vmatpush1.bf16.msra.mxu0 %v5626
        %7897 = vmatprep.subr.bf16.mxu0 %v5639
        %7898 = vmatpush1.bf16.msra.mxu0 %v5638
        %7899 = vmatprep.subr.bf16.mxu0 %v5651
        %7900 = vmatpush1.bf16.msra.mxu0 %v5650
        %7901 = vmatprep.subr.bf16.mxu0 %v5663
        %7902 = vmatpush1.bf16.msra.mxu0 %v5662
        %7903 = vmatprep.subr.bf16.mxu0 %v5675
        %7904 = vmatpush1.bf16.msra.mxu0 %v5674
        %7905 = vmatprep.subr.bf16.mxu0 %v5687
        %7906 = vmatpush1.bf16.msra.mxu0 %v5686
        %7907 = vmatprep.subr.bf16.mxu0 %v5699
        %7908 = vmatpush1.bf16.msra.mxu0 %v5698
        %7909 = vmatprep.subr.bf16.mxu0 %v5711
        %7910 = vmatpush1.bf16.msra.mxu0 %v5710
        %7911 = vmatprep.subr.bf16.mxu0 %v5723
        %7912 = vmatpush1.bf16.msra.mxu0 %v5722
        %7913 = vmatprep.mubr.bf16.mxu0 %v1489
        %7914 = vmatmul.mubr.bf16.gmra.mrb[0].mxu0 %v1488
        %v7915 = vpop.f32.mrb[0].mxu0
        %v7916 = vadd.f32 %v7875, %v7915
        %v7917 = vpop.f32.mrb[0].mxu0
        %v7918 = vadd.f32 %v7877, %v7917
        %v7919 = vpop.f32.mrb[0].mxu0
        %v7920 = vpop.f32.mrb[0].mxu0
        %7921 = vdwg.mxu0
        %7922 = vmatprep.subr.bf16.mxu0 %v5735
        %7923 = vmatpush1.bf16.msra.mxu0 %v5734
        %7924 = vmatprep.subr.bf16.mxu0 %v5747
        %7925 = vmatpush1.bf16.msra.mxu0 %v5746
        %7926 = vmatprep.subr.bf16.mxu0 %v5759
        %7927 = vmatpush1.bf16.msra.mxu0 %v5758
        %7928 = vmatprep.subr.bf16.mxu0 %v5771
        %7929 = vmatpush1.bf16.msra.mxu0 %v5770
        %7930 = vmatprep.subr.bf16.mxu0 %v5783
        %7931 = vmatpush1.bf16.msra.mxu0 %v5782
        %7932 = vmatprep.subr.bf16.mxu0 %v5795
        %7933 = vmatpush1.bf16.msra.mxu0 %v5794
        %7934 = vmatprep.subr.bf16.mxu0 %v5807
        %7935 = vmatpush1.bf16.msra.mxu0 %v5806
        %7936 = vmatprep.subr.bf16.mxu0 %v5819
        %7937 = vmatpush1.bf16.msra.mxu0 %v5818
        %7938 = vmatprep.subr.bf16.mxu0 %v5831
        %7939 = vmatpush1.bf16.msra.mxu0 %v5830
        %7940 = vmatprep.subr.bf16.mxu0 %v5843
        %7941 = vmatpush1.bf16.msra.mxu0 %v5842
        %7942 = vmatprep.subr.bf16.mxu0 %v5855
        %7943 = vmatpush1.bf16.msra.mxu0 %v5854
        %7944 = vmatprep.subr.bf16.mxu0 %v5867
        %7945 = vmatpush1.bf16.msra.mxu0 %v5866
        %7946 = vmatprep.subr.bf16.mxu0 %v5879
        %7947 = vmatpush1.bf16.msra.mxu0 %v5878
        %7948 = vmatprep.subr.bf16.mxu0 %v5891
        %7949 = vmatpush1.bf16.msra.mxu0 %v5890
        %7950 = vmatprep.subr.bf16.mxu0 %v5903
        %7951 = vmatpush1.bf16.msra.mxu0 %v5902
        %7952 = vmatprep.subr.bf16.mxu0 %v5915
        %7953 = vmatpush1.bf16.msra.mxu0 %v5914
        %7954 = vmatprep.mubr.bf16.mxu0 %v1491
        %7955 = vmatmul.mubr.bf16.gmra.mrb[0].mxu0 %v1490
        %v7956 = vpop.f32.mrb[0].mxu0
        %v7957 = vadd.f32 %v7916, %v7956
        %v7958 = vpop.f32.mrb[0].mxu0
        %v7959 = vadd.f32 %v7918, %v7958
        %v7960 = vpop.f32.mrb[0].mxu0
        %v7961 = vpop.f32.mrb[0].mxu0
        %7962 = vdwg.mxu0
        %7963 = vmatprep.subr.bf16.mxu0 %v5927
        %7964 = vmatpush1.bf16.msra.mxu0 %v5926
        %7965 = vmatprep.subr.bf16.mxu0 %v5939
        %7966 = vmatpush1.bf16.msra.mxu0 %v5938
        %7967 = vmatprep.subr.bf16.mxu0 %v5951
        %7968 = vmatpush1.bf16.msra.mxu0 %v5950
        %7969 = vmatprep.subr.bf16.mxu0 %v5963
        %7970 = vmatpush1.bf16.msra.mxu0 %v5962
        %7971 = vmatprep.subr.bf16.mxu0 %v5975
        %7972 = vmatpush1.bf16.msra.mxu0 %v5974
        %7973 = vmatprep.subr.bf16.mxu0 %v5987
        %7974 = vmatpush1.bf16.msra.mxu0 %v5986
        %7975 = vmatprep.subr.bf16.mxu0 %v5999
        %7976 = vmatpush1.bf16.msra.mxu0 %v5998
        %7977 = vmatprep.subr.bf16.mxu0 %v6011
        %7978 = vmatpush1.bf16.msra.mxu0 %v6010
        %7979 = vmatprep.subr.bf16.mxu0 %v6023
        %7980 = vmatpush1.bf16.msra.mxu0 %v6022
        %7981 = vmatprep.subr.bf16.mxu0 %v6035
        %7982 = vmatpush1.bf16.msra.mxu0 %v6034
        %7983 = vmatprep.subr.bf16.mxu0 %v6047
        %7984 = vmatpush1.bf16.msra.mxu0 %v6046
        %7985 = vmatprep.subr.bf16.mxu0 %v6059
        %7986 = vmatpush1.bf16.msra.mxu0 %v6058
        %7987 = vmatprep.subr.bf16.mxu0 %v6071
        %7988 = vmatpush1.bf16.msra.mxu0 %v6070
        %7989 = vmatprep.subr.bf16.mxu0 %v6083
        %7990 = vmatpush1.bf16.msra.mxu0 %v6082
        %7991 = vmatprep.subr.bf16.mxu0 %v6095
        %7992 = vmatpush1.bf16.msra.mxu0 %v6094
        %7993 = vmatprep.subr.bf16.mxu0 %v6107
        %7994 = vmatpush1.bf16.msra.mxu0 %v6106
        %7995 = vmatprep.mubr.bf16.mxu0 %v1493
        %7996 = vmatmul.mubr.bf16.gmra.mrb[0].mxu0 %v1492
        %v7997 = vpop.f32.mrb[0].mxu0
        %v7998 = vadd.f32 %v7957, %v7997
        %v7999 = vpop.f32.mrb[0].mxu0
        %v8000 = vadd.f32 %v7959, %v7999
        %v8001 = vpop.f32.mrb[0].mxu0
        %v8002 = vpop.f32.mrb[0].mxu0
        %8003 = vdwg.mxu0
        %8004 = vmatprep.subr.bf16.mxu0 %v4969
        %8005 = vmatpush1.bf16.msra.mxu0 %v4968
        %8006 = vmatprep.subr.bf16.mxu0 %v4981
        %8007 = vmatpush1.bf16.msra.mxu0 %v4980
        %8008 = vmatprep.subr.bf16.mxu0 %v4993
        %8009 = vmatpush1.bf16.msra.mxu0 %v4992
        %8010 = vmatprep.subr.bf16.mxu0 %v5005
        %8011 = vmatpush1.bf16.msra.mxu0 %v5004
        %8012 = vmatprep.subr.bf16.mxu0 %v5017
        %8013 = vmatpush1.bf16.msra.mxu0 %v5016
        %8014 = vmatprep.subr.bf16.mxu0 %v5029
        %8015 = vmatpush1.bf16.msra.mxu0 %v5028
        %8016 = vmatprep.subr.bf16.mxu0 %v5041
        %8017 = vmatpush1.bf16.msra.mxu0 %v5040
        %8018 = vmatprep.subr.bf16.mxu0 %v5053
        %8019 = vmatpush1.bf16.msra.mxu0 %v5052
        %8020 = vmatprep.subr.bf16.mxu0 %v5065
        %8021 = vmatpush1.bf16.msra.mxu0 %v5064
        %8022 = vmatprep.subr.bf16.mxu0 %v5077
        %8023 = vmatpush1.bf16.msra.mxu0 %v5076
        %8024 = vmatprep.subr.bf16.mxu0 %v5089
        %8025 = vmatpush1.bf16.msra.mxu0 %v5088
        %8026 = vmatprep.subr.bf16.mxu0 %v5101
        %8027 = vmatpush1.bf16.msra.mxu0 %v5100
        %8028 = vmatprep.subr.bf16.mxu0 %v5113
        %8029 = vmatpush1.bf16.msra.mxu0 %v5112
        %8030 = vmatprep.subr.bf16.mxu0 %v5125
        %8031 = vmatpush1.bf16.msra.mxu0 %v5124
        %8032 = vmatprep.subr.bf16.mxu0 %v5137
        %8033 = vmatpush1.bf16.msra.mxu0 %v5136
        %8034 = vmatprep.subr.bf16.mxu0 %v5149
        %8035 = vmatpush1.bf16.msra.mxu0 %v5148
        %8036 = vmatprep.mubr.bf16.mxu0 %v1483
        %8037 = vmatmul.mubr.bf16.gmra.mrb[0].mxu0 %v1482
        %v8038 = vpop.f32.mrb[0].mxu0
        %v8039 = vadd.f32 %v1431, %v8038
        %v8040 = vpop.f32.mrb[0].mxu0
        %v8041 = vadd.f32 %v1435, %v8040
        %v8042 = vpop.f32.mrb[0].mxu0
        %v8043 = vpop.f32.mrb[0].mxu0
        %8044 = vdwg.mxu0
        %8045 = vmatprep.subr.bf16.mxu0 %v5161
        %8046 = vmatpush1.bf16.msra.mxu0 %v5160
        %8047 = vmatprep.subr.bf16.mxu0 %v5173
        %8048 = vmatpush1.bf16.msra.mxu0 %v5172
        %8049 = vmatprep.subr.bf16.mxu0 %v5185
        %8050 = vmatpush1.bf16.msra.mxu0 %v5184
        %8051 = vmatprep.subr.bf16.mxu0 %v5197
        %8052 = vmatpush1.bf16.msra.mxu0 %v5196
        %8053 = vmatprep.subr.bf16.mxu0 %v5209
        %8054 = vmatpush1.bf16.msra.mxu0 %v5208
        %8055 = vmatprep.subr.bf16.mxu0 %v5221
        %8056 = vmatpush1.bf16.msra.mxu0 %v5220
        %8057 = vmatprep.subr.bf16.mxu0 %v5233
        %8058 = vmatpush1.bf16.msra.mxu0 %v5232
        %8059 = vmatprep.subr.bf16.mxu0 %v5245
        %8060 = vmatpush1.bf16.msra.mxu0 %v5244
        %8061 = vmatprep.subr.bf16.mxu0 %v5257
        %8062 = vmatpush1.bf16.msra.mxu0 %v5256
        %8063 = vmatprep.subr.bf16.mxu0 %v5269
        %8064 = vmatpush1.bf16.msra.mxu0 %v5268
        %8065 = vmatprep.subr.bf16.mxu0 %v5281
        %8066 = vmatpush1.bf16.msra.mxu0 %v5280
        %8067 = vmatprep.subr.bf16.mxu0 %v5293
        %8068 = vmatpush1.bf16.msra.mxu0 %v5292
        %8069 = vmatprep.subr.bf16.mxu0 %v5305
        %8070 = vmatpush1.bf16.msra.mxu0 %v5304
        %8071 = vmatprep.subr.bf16.mxu0 %v5317
        %8072 = vmatpush1.bf16.msra.mxu0 %v5316
        %8073 = vmatprep.subr.bf16.mxu0 %v5329
        %8074 = vmatpush1.bf16.msra.mxu0 %v5328
        %8075 = vmatprep.subr.bf16.mxu0 %v5341
        %8076 = vmatpush1.bf16.msra.mxu0 %v5340
        %8077 = vmatprep.mubr.bf16.mxu0 %v1485
        %8078 = vmatmul.mubr.bf16.gmra.mrb[0].mxu0 %v1484
        %v8079 = vpop.f32.mrb[0].mxu0
        %v8080 = vadd.f32 %v8039, %v8079
        %v8081 = vpop.f32.mrb[0].mxu0
        %v8082 = vadd.f32 %v8041, %v8081
        %v8083 = vpop.f32.mrb[0].mxu0
        %v8084 = vpop.f32.mrb[0].mxu0
        %8085 = vdwg.mxu0
        %8086 = vmatprep.subr.bf16.mxu0 %v5353
        %8087 = vmatpush1.bf16.msra.mxu0 %v5352
        %8088 = vmatprep.subr.bf16.mxu0 %v5365
        %8089 = vmatpush1.bf16.msra.mxu0 %v5364
        %8090 = vmatprep.subr.bf16.mxu0 %v5377
        %8091 = vmatpush1.bf16.msra.mxu0 %v5376
        %8092 = vmatprep.subr.bf16.mxu0 %v5389
        %8093 = vmatpush1.bf16.msra.mxu0 %v5388
        %8094 = vmatprep.subr.bf16.mxu0 %v5401
        %8095 = vmatpush1.bf16.msra.mxu0 %v5400
        %8096 = vmatprep.subr.bf16.mxu0 %v5413
        %8097 = vmatpush1.bf16.msra.mxu0 %v5412
        %8098 = vmatprep.subr.bf16.mxu0 %v5425
        %8099 = vmatpush1.bf16.msra.mxu0 %v5424
        %8100 = vmatprep.subr.bf16.mxu0 %v5437
        %8101 = vmatpush1.bf16.msra.mxu0 %v5436
        %8102 = vmatprep.subr.bf16.mxu0 %v5449
        %8103 = vmatpush1.bf16.msra.mxu0 %v5448
        %8104 = vmatprep.subr.bf16.mxu0 %v5461
        %8105 = vmatpush1.bf16.msra.mxu0 %v5460
        %8106 = vmatprep.subr.bf16.mxu0 %v5473
        %8107 = vmatpush1.bf16.msra.mxu0 %v5472
        %8108 = vmatprep.subr.bf16.mxu0 %v5485
        %8109 = vmatpush1.bf16.msra.mxu0 %v5484
        %8110 = vmatprep.subr.bf16.mxu0 %v5497
        %8111 = vmatpush1.bf16.msra.mxu0 %v5496
        %8112 = vmatprep.subr.bf16.mxu0 %v5509
        %8113 = vmatpush1.bf16.msra.mxu0 %v5508
        %8114 = vmatprep.subr.bf16.mxu0 %v5521
        %8115 = vmatpush1.bf16.msra.mxu0 %v5520
        %8116 = vmatprep.subr.bf16.mxu0 %v5533
        %8117 = vmatpush1.bf16.msra.mxu0 %v5532
        %8118 = vmatprep.mubr.bf16.mxu0 %v1487
        %8119 = vmatmul.mubr.bf16.gmra.mrb[0].mxu0 %v1486
        %v8120 = vpop.f32.mrb[0].mxu0
        %v8121 = vadd.f32 %v8080, %v8120
        %v8122 = vpop.f32.mrb[0].mxu0
        %v8123 = vadd.f32 %v8082, %v8122
        %v8124 = vpop.f32.mrb[0].mxu0
        %v8125 = vpop.f32.mrb[0].mxu0
        %8126 = vdwg.mxu0
        %8127 = vmatprep.subr.bf16.mxu0 %v5545
        %8128 = vmatpush1.bf16.msra.mxu0 %v5544
        %8129 = vmatprep.subr.bf16.mxu0 %v5557
        %8130 = vmatpush1.bf16.msra.mxu0 %v5556
        %8131 = vmatprep.subr.bf16.mxu0 %v5569
        %8132 = vmatpush1.bf16.msra.mxu0 %v5568
        %8133 = vmatprep.subr.bf16.mxu0 %v5581
        %8134 = vmatpush1.bf16.msra.mxu0 %v5580
        %8135 = vmatprep.subr.bf16.mxu0 %v5593
        %8136 = vmatpush1.bf16.msra.mxu0 %v5592
        %8137 = vmatprep.subr.bf16.mxu0 %v5605
        %8138 = vmatpush1.bf16.msra.mxu0 %v5604
        %8139 = vmatprep.subr.bf16.mxu0 %v5617
        %8140 = vmatpush1.bf16.msra.mxu0 %v5616
        %8141 = vmatprep.subr.bf16.mxu0 %v5629
        %8142 = vmatpush1.bf16.msra.mxu0 %v5628
        %8143 = vmatprep.subr.bf16.mxu0 %v5641
        %8144 = vmatpush1.bf16.msra.mxu0 %v5640
        %8145 = vmatprep.subr.bf16.mxu0 %v5653
        %8146 = vmatpush1.bf16.msra.mxu0 %v5652
        %8147 = vmatprep.subr.bf16.mxu0 %v5665
        %8148 = vmatpush1.bf16.msra.mxu0 %v5664
        %8149 = vmatprep.subr.bf16.mxu0 %v5677
        %8150 = vmatpush1.bf16.msra.mxu0 %v5676
        %8151 = vmatprep.subr.bf16.mxu0 %v5689
        %8152 = vmatpush1.bf16.msra.mxu0 %v5688
        %8153 = vmatprep.subr.bf16.mxu0 %v5701
        %8154 = vmatpush1.bf16.msra.mxu0 %v5700
        %8155 = vmatprep.subr.bf16.mxu0 %v5713
        %8156 = vmatpush1.bf16.msra.mxu0 %v5712
        %8157 = vmatprep.subr.bf16.mxu0 %v5725
        %8158 = vmatpush1.bf16.msra.mxu0 %v5724
        %8159 = vmatprep.mubr.bf16.mxu0 %v1489
        %8160 = vmatmul.mubr.bf16.gmra.mrb[0].mxu0 %v1488
        %v8161 = vpop.f32.mrb[0].mxu0
        %v8162 = vadd.f32 %v8121, %v8161
        %v8163 = vpop.f32.mrb[0].mxu0
        %v8164 = vadd.f32 %v8123, %v8163
        %v8165 = vpop.f32.mrb[0].mxu0
        %v8166 = vpop.f32.mrb[0].mxu0
        %8167 = vdwg.mxu0
        %8168 = vmatprep.subr.bf16.mxu0 %v5737
        %8169 = vmatpush1.bf16.msra.mxu0 %v5736
        %8170 = vmatprep.subr.bf16.mxu0 %v5749
        %8171 = vmatpush1.bf16.msra.mxu0 %v5748
        %8172 = vmatprep.subr.bf16.mxu0 %v5761
        %8173 = vmatpush1.bf16.msra.mxu0 %v5760
        %8174 = vmatprep.subr.bf16.mxu0 %v5773
        %8175 = vmatpush1.bf16.msra.mxu0 %v5772
        %8176 = vmatprep.subr.bf16.mxu0 %v5785
        %8177 = vmatpush1.bf16.msra.mxu0 %v5784
        %8178 = vmatprep.subr.bf16.mxu0 %v5797
        %8179 = vmatpush1.bf16.msra.mxu0 %v5796
        %8180 = vmatprep.subr.bf16.mxu0 %v5809
        %8181 = vmatpush1.bf16.msra.mxu0 %v5808
        %8182 = vmatprep.subr.bf16.mxu0 %v5821
        %8183 = vmatpush1.bf16.msra.mxu0 %v5820
        %8184 = vmatprep.subr.bf16.mxu0 %v5833
        %8185 = vmatpush1.bf16.msra.mxu0 %v5832
        %8186 = vmatprep.subr.bf16.mxu0 %v5845
        %8187 = vmatpush1.bf16.msra.mxu0 %v5844
        %8188 = vmatprep.subr.bf16.mxu0 %v5857
        %8189 = vmatpush1.bf16.msra.mxu0 %v5856
        %8190 = vmatprep.subr.bf16.mxu0 %v5869
        %8191 = vmatpush1.bf16.msra.mxu0 %v5868
        %8192 = vmatprep.subr.bf16.mxu0 %v5881
        %8193 = vmatpush1.bf16.msra.mxu0 %v5880
        %8194 = vmatprep.subr.bf16.mxu0 %v5893
        %8195 = vmatpush1.bf16.msra.mxu0 %v5892
        %8196 = vmatprep.subr.bf16.mxu0 %v5905
        %8197 = vmatpush1.bf16.msra.mxu0 %v5904
        %8198 = vmatprep.subr.bf16.mxu0 %v5917
        %8199 = vmatpush1.bf16.msra.mxu0 %v5916
        %8200 = vmatprep.mubr.bf16.mxu0 %v1491
        %8201 = vmatmul.mubr.bf16.gmra.mrb[0].mxu0 %v1490
        %v8202 = vpop.f32.mrb[0].mxu0
        %v8203 = vadd.f32 %v8162, %v8202
        %v8204 = vpop.f32.mrb[0].mxu0
        %v8205 = vadd.f32 %v8164, %v8204
        %v8206 = vpop.f32.mrb[0].mxu0
        %v8207 = vpop.f32.mrb[0].mxu0
        %8208 = vdwg.mxu0
        %8209 = vmatprep.subr.bf16.mxu0 %v5929
        %8210 = vmatpush1.bf16.msra.mxu0 %v5928
        %8211 = vmatprep.subr.bf16.mxu0 %v5941
        %8212 = vmatpush1.bf16.msra.mxu0 %v5940
        %8213 = vmatprep.subr.bf16.mxu0 %v5953
        %8214 = vmatpush1.bf16.msra.mxu0 %v5952
        %8215 = vmatprep.subr.bf16.mxu0 %v5965
        %8216 = vmatpush1.bf16.msra.mxu0 %v5964
        %8217 = vmatprep.subr.bf16.mxu0 %v5977
        %8218 = vmatpush1.bf16.msra.mxu0 %v5976
        %8219 = vmatprep.subr.bf16.mxu0 %v5989
        %8220 = vmatpush1.bf16.msra.mxu0 %v5988
        %8221 = vmatprep.subr.bf16.mxu0 %v6001
        %8222 = vmatpush1.bf16.msra.mxu0 %v6000
        %8223 = vmatprep.subr.bf16.mxu0 %v6013
        %8224 = vmatpush1.bf16.msra.mxu0 %v6012
        %8225 = vmatprep.subr.bf16.mxu0 %v6025
        %8226 = vmatpush1.bf16.msra.mxu0 %v6024
        %8227 = vmatprep.subr.bf16.mxu0 %v6037
        %8228 = vmatpush1.bf16.msra.mxu0 %v6036
        %8229 = vmatprep.subr.bf16.mxu0 %v6049
        %8230 = vmatpush1.bf16.msra.mxu0 %v6048
        %8231 = vmatprep.subr.bf16.mxu0 %v6061
        %8232 = vmatpush1.bf16.msra.mxu0 %v6060
        %8233 = vmatprep.subr.bf16.mxu0 %v6073
        %8234 = vmatpush1.bf16.msra.mxu0 %v6072
        %8235 = vmatprep.subr.bf16.mxu0 %v6085
        %8236 = vmatpush1.bf16.msra.mxu0 %v6084
        %8237 = vmatprep.subr.bf16.mxu0 %v6097
        %8238 = vmatpush1.bf16.msra.mxu0 %v6096
        %8239 = vmatprep.subr.bf16.mxu0 %v6109
        %8240 = vmatpush1.bf16.msra.mxu0 %v6108
        %8241 = vmatprep.mubr.bf16.mxu0 %v1493
        %8242 = vmatmul.mubr.bf16.gmra.mrb[0].mxu0 %v1492
        %v8243 = vpop.f32.mrb[0].mxu0
        %v8244 = vadd.f32 %v8203, %v8243
        %v8245 = vpop.f32.mrb[0].mxu0
        %v8246 = vadd.f32 %v8205, %v8245
        %v8247 = vpop.f32.mrb[0].mxu0
        %v8248 = vpop.f32.mrb[0].mxu0
        %8249 = vdwg.mxu0
        %8250 = vmatprep.subr.bf16.mxu0 %v4971
        %8251 = vmatpush1.bf16.msra.mxu0 %v4970
        %8252 = vmatprep.subr.bf16.mxu0 %v4983
        %8253 = vmatpush1.bf16.msra.mxu0 %v4982
        %8254 = vmatprep.subr.bf16.mxu0 %v4995
        %8255 = vmatpush1.bf16.msra.mxu0 %v4994
        %8256 = vmatprep.subr.bf16.mxu0 %v5007
        %8257 = vmatpush1.bf16.msra.mxu0 %v5006
        %8258 = vmatprep.subr.bf16.mxu0 %v5019
        %8259 = vmatpush1.bf16.msra.mxu0 %v5018
        %8260 = vmatprep.subr.bf16.mxu0 %v5031
        %8261 = vmatpush1.bf16.msra.mxu0 %v5030
        %8262 = vmatprep.subr.bf16.mxu0 %v5043
        %8263 = vmatpush1.bf16.msra.mxu0 %v5042
        %8264 = vmatprep.subr.bf16.mxu0 %v5055
        %8265 = vmatpush1.bf16.msra.mxu0 %v5054
        %8266 = vmatprep.subr.bf16.mxu0 %v5067
        %8267 = vmatpush1.bf16.msra.mxu0 %v5066
        %8268 = vmatprep.subr.bf16.mxu0 %v5079
        %8269 = vmatpush1.bf16.msra.mxu0 %v5078
        %8270 = vmatprep.subr.bf16.mxu0 %v5091
        %8271 = vmatpush1.bf16.msra.mxu0 %v5090
        %8272 = vmatprep.subr.bf16.mxu0 %v5103
        %8273 = vmatpush1.bf16.msra.mxu0 %v5102
        %8274 = vmatprep.subr.bf16.mxu0 %v5115
        %8275 = vmatpush1.bf16.msra.mxu0 %v5114
        %8276 = vmatprep.subr.bf16.mxu0 %v5127
        %8277 = vmatpush1.bf16.msra.mxu0 %v5126
        %8278 = vmatprep.subr.bf16.mxu0 %v5139
        %8279 = vmatpush1.bf16.msra.mxu0 %v5138
        %8280 = vmatprep.subr.bf16.mxu0 %v5151
        %8281 = vmatpush1.bf16.msra.mxu0 %v5150
        %8282 = vmatprep.mubr.bf16.mxu0 %v1483
        %8283 = vmatmul.mubr.bf16.gmra.mrb[0].mxu0 %v1482
        %v8284 = vpop.f32.mrb[0].mxu0
        %v8285 = vadd.f32 %v1439, %v8284
        %v8286 = vpop.f32.mrb[0].mxu0
        %v8287 = vadd.f32 %v1443, %v8286
        %v8288 = vpop.f32.mrb[0].mxu0
        %v8289 = vpop.f32.mrb[0].mxu0
        %8290 = vdwg.mxu0
        %8291 = vmatprep.subr.bf16.mxu0 %v5163
        %8292 = vmatpush1.bf16.msra.mxu0 %v5162
        %8293 = vmatprep.subr.bf16.mxu0 %v5175
        %8294 = vmatpush1.bf16.msra.mxu0 %v5174
        %8295 = vmatprep.subr.bf16.mxu0 %v5187
        %8296 = vmatpush1.bf16.msra.mxu0 %v5186
        %8297 = vmatprep.subr.bf16.mxu0 %v5199
        %8298 = vmatpush1.bf16.msra.mxu0 %v5198
        %8299 = vmatprep.subr.bf16.mxu0 %v5211
        %8300 = vmatpush1.bf16.msra.mxu0 %v5210
        %8301 = vmatprep.subr.bf16.mxu0 %v5223
        %8302 = vmatpush1.bf16.msra.mxu0 %v5222
        %8303 = vmatprep.subr.bf16.mxu0 %v5235
        %8304 = vmatpush1.bf16.msra.mxu0 %v5234
        %8305 = vmatprep.subr.bf16.mxu0 %v5247
        %8306 = vmatpush1.bf16.msra.mxu0 %v5246
        %8307 = vmatprep.subr.bf16.mxu0 %v5259
        %8308 = vmatpush1.bf16.msra.mxu0 %v5258
        %8309 = vmatprep.subr.bf16.mxu0 %v5271
        %8310 = vmatpush1.bf16.msra.mxu0 %v5270
        %8311 = vmatprep.subr.bf16.mxu0 %v5283
        %8312 = vmatpush1.bf16.msra.mxu0 %v5282
        %8313 = vmatprep.subr.bf16.mxu0 %v5295
        %8314 = vmatpush1.bf16.msra.mxu0 %v5294
        %8315 = vmatprep.subr.bf16.mxu0 %v5307
        %8316 = vmatpush1.bf16.msra.mxu0 %v5306
        %8317 = vmatprep.subr.bf16.mxu0 %v5319
        %8318 = vmatpush1.bf16.msra.mxu0 %v5318
        %8319 = vmatprep.subr.bf16.mxu0 %v5331
        %8320 = vmatpush1.bf16.msra.mxu0 %v5330
        %8321 = vmatprep.subr.bf16.mxu0 %v5343
        %8322 = vmatpush1.bf16.msra.mxu0 %v5342
        %8323 = vmatprep.mubr.bf16.mxu0 %v1485
        %8324 = vmatmul.mubr.bf16.gmra.mrb[0].mxu0 %v1484
        %v8325 = vpop.f32.mrb[0].mxu0
        %v8326 = vadd.f32 %v8285, %v8325
        %v8327 = vpop.f32.mrb[0].mxu0
        %v8328 = vadd.f32 %v8287, %v8327
        %v8329 = vpop.f32.mrb[0].mxu0
        %v8330 = vpop.f32.mrb[0].mxu0
        %8331 = vdwg.mxu0
        %8332 = vmatprep.subr.bf16.mxu0 %v5355
        %8333 = vmatpush1.bf16.msra.mxu0 %v5354
        %8334 = vmatprep.subr.bf16.mxu0 %v5367
        %8335 = vmatpush1.bf16.msra.mxu0 %v5366
        %8336 = vmatprep.subr.bf16.mxu0 %v5379
        %8337 = vmatpush1.bf16.msra.mxu0 %v5378
        %8338 = vmatprep.subr.bf16.mxu0 %v5391
        %8339 = vmatpush1.bf16.msra.mxu0 %v5390
        %8340 = vmatprep.subr.bf16.mxu0 %v5403
        %8341 = vmatpush1.bf16.msra.mxu0 %v5402
        %8342 = vmatprep.subr.bf16.mxu0 %v5415
        %8343 = vmatpush1.bf16.msra.mxu0 %v5414
        %8344 = vmatprep.subr.bf16.mxu0 %v5427
        %8345 = vmatpush1.bf16.msra.mxu0 %v5426
        %8346 = vmatprep.subr.bf16.mxu0 %v5439
        %8347 = vmatpush1.bf16.msra.mxu0 %v5438
        %8348 = vmatprep.subr.bf16.mxu0 %v5451
        %8349 = vmatpush1.bf16.msra.mxu0 %v5450
        %8350 = vmatprep.subr.bf16.mxu0 %v5463
        %8351 = vmatpush1.bf16.msra.mxu0 %v5462
        %8352 = vmatprep.subr.bf16.mxu0 %v5475
        %8353 = vmatpush1.bf16.msra.mxu0 %v5474
        %8354 = vmatprep.subr.bf16.mxu0 %v5487
        %8355 = vmatpush1.bf16.msra.mxu0 %v5486
        %8356 = vmatprep.subr.bf16.mxu0 %v5499
        %8357 = vmatpush1.bf16.msra.mxu0 %v5498
        %8358 = vmatprep.subr.bf16.mxu0 %v5511
        %8359 = vmatpush1.bf16.msra.mxu0 %v5510
        %8360 = vmatprep.subr.bf16.mxu0 %v5523
        %8361 = vmatpush1.bf16.msra.mxu0 %v5522
        %8362 = vmatprep.subr.bf16.mxu0 %v5535
        %8363 = vmatpush1.bf16.msra.mxu0 %v5534
        %8364 = vmatprep.mubr.bf16.mxu0 %v1487
        %8365 = vmatmul.mubr.bf16.gmra.mrb[0].mxu0 %v1486
        %v8366 = vpop.f32.mrb[0].mxu0
        %v8367 = vadd.f32 %v8326, %v8366
        %v8368 = vpop.f32.mrb[0].mxu0
        %v8369 = vadd.f32 %v8328, %v8368
        %v8370 = vpop.f32.mrb[0].mxu0
        %v8371 = vpop.f32.mrb[0].mxu0
        %8372 = vdwg.mxu0
        %8373 = vmatprep.subr.bf16.mxu0 %v5547
        %8374 = vmatpush1.bf16.msra.mxu0 %v5546
        %8375 = vmatprep.subr.bf16.mxu0 %v5559
        %8376 = vmatpush1.bf16.msra.mxu0 %v5558
        %8377 = vmatprep.subr.bf16.mxu0 %v5571
        %8378 = vmatpush1.bf16.msra.mxu0 %v5570
        %8379 = vmatprep.subr.bf16.mxu0 %v5583
        %8380 = vmatpush1.bf16.msra.mxu0 %v5582
        %8381 = vmatprep.subr.bf16.mxu0 %v5595
        %8382 = vmatpush1.bf16.msra.mxu0 %v5594
        %8383 = vmatprep.subr.bf16.mxu0 %v5607
        %8384 = vmatpush1.bf16.msra.mxu0 %v5606
        %8385 = vmatprep.subr.bf16.mxu0 %v5619
        %8386 = vmatpush1.bf16.msra.mxu0 %v5618
        %8387 = vmatprep.subr.bf16.mxu0 %v5631
        %8388 = vmatpush1.bf16.msra.mxu0 %v5630
        %8389 = vmatprep.subr.bf16.mxu0 %v5643
        %8390 = vmatpush1.bf16.msra.mxu0 %v5642
        %8391 = vmatprep.subr.bf16.mxu0 %v5655
        %8392 = vmatpush1.bf16.msra.mxu0 %v5654
        %8393 = vmatprep.subr.bf16.mxu0 %v5667
        %8394 = vmatpush1.bf16.msra.mxu0 %v5666
        %8395 = vmatprep.subr.bf16.mxu0 %v5679
        %8396 = vmatpush1.bf16.msra.mxu0 %v5678
        %8397 = vmatprep.subr.bf16.mxu0 %v5691
        %8398 = vmatpush1.bf16.msra.mxu0 %v5690
        %8399 = vmatprep.subr.bf16.mxu0 %v5703
        %8400 = vmatpush1.bf16.msra.mxu0 %v5702
        %8401 = vmatprep.subr.bf16.mxu0 %v5715
        %8402 = vmatpush1.bf16.msra.mxu0 %v5714
        %8403 = vmatprep.subr.bf16.mxu0 %v5727
        %8404 = vmatpush1.bf16.msra.mxu0 %v5726
        %8405 = vmatprep.mubr.bf16.mxu0 %v1489
        %8406 = vmatmul.mubr.bf16.gmra.mrb[0].mxu0 %v1488
        %v8407 = vpop.f32.mrb[0].mxu0
        %v8408 = vadd.f32 %v8367, %v8407
        %v8409 = vpop.f32.mrb[0].mxu0
        %v8410 = vadd.f32 %v8369, %v8409
        %v8411 = vpop.f32.mrb[0].mxu0
        %v8412 = vpop.f32.mrb[0].mxu0
        %8413 = vdwg.mxu0
        %8414 = vmatprep.subr.bf16.mxu0 %v5739
        %8415 = vmatpush1.bf16.msra.mxu0 %v5738
        %8416 = vmatprep.subr.bf16.mxu0 %v5751
        %8417 = vmatpush1.bf16.msra.mxu0 %v5750
        %8418 = vmatprep.subr.bf16.mxu0 %v5763
        %8419 = vmatpush1.bf16.msra.mxu0 %v5762
        %8420 = vmatprep.subr.bf16.mxu0 %v5775
        %8421 = vmatpush1.bf16.msra.mxu0 %v5774
        %8422 = vmatprep.subr.bf16.mxu0 %v5787
        %8423 = vmatpush1.bf16.msra.mxu0 %v5786
        %8424 = vmatprep.subr.bf16.mxu0 %v5799
        %8425 = vmatpush1.bf16.msra.mxu0 %v5798
        %8426 = vmatprep.subr.bf16.mxu0 %v5811
        %8427 = vmatpush1.bf16.msra.mxu0 %v5810
        %8428 = vmatprep.subr.bf16.mxu0 %v5823
        %8429 = vmatpush1.bf16.msra.mxu0 %v5822
        %8430 = vmatprep.subr.bf16.mxu0 %v5835
        %8431 = vmatpush1.bf16.msra.mxu0 %v5834
        %8432 = vmatprep.subr.bf16.mxu0 %v5847
        %8433 = vmatpush1.bf16.msra.mxu0 %v5846
        %8434 = vmatprep.subr.bf16.mxu0 %v5859
        %8435 = vmatpush1.bf16.msra.mxu0 %v5858
        %8436 = vmatprep.subr.bf16.mxu0 %v5871
        %8437 = vmatpush1.bf16.msra.mxu0 %v5870
        %8438 = vmatprep.subr.bf16.mxu0 %v5883
        %8439 = vmatpush1.bf16.msra.mxu0 %v5882
        %8440 = vmatprep.subr.bf16.mxu0 %v5895
        %8441 = vmatpush1.bf16.msra.mxu0 %v5894
        %8442 = vmatprep.subr.bf16.mxu0 %v5907
        %8443 = vmatpush1.bf16.msra.mxu0 %v5906
        %8444 = vmatprep.subr.bf16.mxu0 %v5919
        %8445 = vmatpush1.bf16.msra.mxu0 %v5918
        %8446 = vmatprep.mubr.bf16.mxu0 %v1491
        %8447 = vmatmul.mubr.bf16.gmra.mrb[0].mxu0 %v1490
        %v8448 = vpop.f32.mrb[0].mxu0
        %v8449 = vadd.f32 %v8408, %v8448
        %v8450 = vpop.f32.mrb[0].mxu0
        %v8451 = vadd.f32 %v8410, %v8450
        %v8452 = vpop.f32.mrb[0].mxu0
        %v8453 = vpop.f32.mrb[0].mxu0
        %8454 = vdwg.mxu0
        %8455 = vmatprep.subr.bf16.mxu0 %v5931
        %8456 = vmatpush1.bf16.msra.mxu0 %v5930
        %8457 = vmatprep.subr.bf16.mxu0 %v5943
        %8458 = vmatpush1.bf16.msra.mxu0 %v5942
        %8459 = vmatprep.subr.bf16.mxu0 %v5955
        %8460 = vmatpush1.bf16.msra.mxu0 %v5954
        %8461 = vmatprep.subr.bf16.mxu0 %v5967
        %8462 = vmatpush1.bf16.msra.mxu0 %v5966
        %8463 = vmatprep.subr.bf16.mxu0 %v5979
        %8464 = vmatpush1.bf16.msra.mxu0 %v5978
        %8465 = vmatprep.subr.bf16.mxu0 %v5991
        %8466 = vmatpush1.bf16.msra.mxu0 %v5990
        %8467 = vmatprep.subr.bf16.mxu0 %v6003
        %8468 = vmatpush1.bf16.msra.mxu0 %v6002
        %8469 = vmatprep.subr.bf16.mxu0 %v6015
        %8470 = vmatpush1.bf16.msra.mxu0 %v6014
        %8471 = vmatprep.subr.bf16.mxu0 %v6027
        %8472 = vmatpush1.bf16.msra.mxu0 %v6026
        %8473 = vmatprep.subr.bf16.mxu0 %v6039
        %8474 = vmatpush1.bf16.msra.mxu0 %v6038
        %8475 = vmatprep.subr.bf16.mxu0 %v6051
        %8476 = vmatpush1.bf16.msra.mxu0 %v6050
        %8477 = vmatprep.subr.bf16.mxu0 %v6063
        %8478 = vmatpush1.bf16.msra.mxu0 %v6062
        %8479 = vmatprep.subr.bf16.mxu0 %v6075
        %8480 = vmatpush1.bf16.msra.mxu0 %v6074
        %8481 = vmatprep.subr.bf16.mxu0 %v6087
        %8482 = vmatpush1.bf16.msra.mxu0 %v6086
        %8483 = vmatprep.subr.bf16.mxu0 %v6099
        %8484 = vmatpush1.bf16.msra.mxu0 %v6098
        %8485 = vmatprep.subr.bf16.mxu0 %v6111
        %8486 = vmatpush1.bf16.msra.mxu0 %v6110
        %8487 = vmatprep.mubr.bf16.mxu0 %v1493
        %8488 = vmatmul.mubr.bf16.gmra.mrb[0].mxu0 %v1492
        %v8489 = vpop.f32.mrb[0].mxu0
        %v8490 = vadd.f32 %v8449, %v8489
        %v8491 = vpop.f32.mrb[0].mxu0
        %v8492 = vadd.f32 %v8451, %v8491
        %v8493 = vpop.f32.mrb[0].mxu0
        %v8494 = vpop.f32.mrb[0].mxu0
        %8495 = vdwg.mxu0
        %8496 = vmatprep.subr.bf16.mxu0 %v4973
        %8497 = vmatpush1.bf16.msra.mxu0 %v4972
        %8498 = vmatprep.subr.bf16.mxu0 %v4985
        %8499 = vmatpush1.bf16.msra.mxu0 %v4984
        %8500 = vmatprep.subr.bf16.mxu0 %v4997
        %8501 = vmatpush1.bf16.msra.mxu0 %v4996
        %8502 = vmatprep.subr.bf16.mxu0 %v5009
        %8503 = vmatpush1.bf16.msra.mxu0 %v5008
        %8504 = vmatprep.subr.bf16.mxu0 %v5021
        %8505 = vmatpush1.bf16.msra.mxu0 %v5020
        %8506 = vmatprep.subr.bf16.mxu0 %v5033
        %8507 = vmatpush1.bf16.msra.mxu0 %v5032
        %8508 = vmatprep.subr.bf16.mxu0 %v5045
        %8509 = vmatpush1.bf16.msra.mxu0 %v5044
        %8510 = vmatprep.subr.bf16.mxu0 %v5057
        %8511 = vmatpush1.bf16.msra.mxu0 %v5056
        %8512 = vmatprep.subr.bf16.mxu0 %v5069
        %8513 = vmatpush1.bf16.msra.mxu0 %v5068
        %8514 = vmatprep.subr.bf16.mxu0 %v5081
        %8515 = vmatpush1.bf16.msra.mxu0 %v5080
        %8516 = vmatprep.subr.bf16.mxu0 %v5093
        %8517 = vmatpush1.bf16.msra.mxu0 %v5092
        %8518 = vmatprep.subr.bf16.mxu0 %v5105
        %8519 = vmatpush1.bf16.msra.mxu0 %v5104
        %8520 = vmatprep.subr.bf16.mxu0 %v5117
        %8521 = vmatpush1.bf16.msra.mxu0 %v5116
        %8522 = vmatprep.subr.bf16.mxu0 %v5129
        %8523 = vmatpush1.bf16.msra.mxu0 %v5128
        %8524 = vmatprep.subr.bf16.mxu0 %v5141
        %8525 = vmatpush1.bf16.msra.mxu0 %v5140
        %8526 = vmatprep.subr.bf16.mxu0 %v5153
        %8527 = vmatpush1.bf16.msra.mxu0 %v5152
        %8528 = vmatprep.mubr.bf16.mxu0 %v1483
        %8529 = vmatmul.mubr.bf16.gmra.mrb[0].mxu0 %v1482
        %v8530 = vpop.f32.mrb[0].mxu0
        %v8531 = vadd.f32 %v1447, %v8530
        %v8532 = vpop.f32.mrb[0].mxu0
        %v8533 = vadd.f32 %v1451, %v8532
        %v8534 = vpop.f32.mrb[0].mxu0
        %v8535 = vpop.f32.mrb[0].mxu0
        %8536 = vdwg.mxu0
        %8537 = vmatprep.subr.bf16.mxu0 %v5165
        %8538 = vmatpush1.bf16.msra.mxu0 %v5164
        %8539 = vmatprep.subr.bf16.mxu0 %v5177
        %8540 = vmatpush1.bf16.msra.mxu0 %v5176
        %8541 = vmatprep.subr.bf16.mxu0 %v5189
        %8542 = vmatpush1.bf16.msra.mxu0 %v5188
        %8543 = vmatprep.subr.bf16.mxu0 %v5201
        %8544 = vmatpush1.bf16.msra.mxu0 %v5200
        %8545 = vmatprep.subr.bf16.mxu0 %v5213
        %8546 = vmatpush1.bf16.msra.mxu0 %v5212
        %8547 = vmatprep.subr.bf16.mxu0 %v5225
        %8548 = vmatpush1.bf16.msra.mxu0 %v5224
        %8549 = vmatprep.subr.bf16.mxu0 %v5237
        %8550 = vmatpush1.bf16.msra.mxu0 %v5236
        %8551 = vmatprep.subr.bf16.mxu0 %v5249
        %8552 = vmatpush1.bf16.msra.mxu0 %v5248
        %8553 = vmatprep.subr.bf16.mxu0 %v5261
        %8554 = vmatpush1.bf16.msra.mxu0 %v5260
        %8555 = vmatprep.subr.bf16.mxu0 %v5273
        %8556 = vmatpush1.bf16.msra.mxu0 %v5272
        %8557 = vmatprep.subr.bf16.mxu0 %v5285
        %8558 = vmatpush1.bf16.msra.mxu0 %v5284
        %8559 = vmatprep.subr.bf16.mxu0 %v5297
        %8560 = vmatpush1.bf16.msra.mxu0 %v5296
        %8561 = vmatprep.subr.bf16.mxu0 %v5309
        %8562 = vmatpush1.bf16.msra.mxu0 %v5308
        %8563 = vmatprep.subr.bf16.mxu0 %v5321
        %8564 = vmatpush1.bf16.msra.mxu0 %v5320
        %8565 = vmatprep.subr.bf16.mxu0 %v5333
        %8566 = vmatpush1.bf16.msra.mxu0 %v5332
        %8567 = vmatprep.subr.bf16.mxu0 %v5345
        %8568 = vmatpush1.bf16.msra.mxu0 %v5344
        %8569 = vmatprep.mubr.bf16.mxu0 %v1485
        %8570 = vmatmul.mubr.bf16.gmra.mrb[0].mxu0 %v1484
        %v8571 = vpop.f32.mrb[0].mxu0
        %v8572 = vadd.f32 %v8531, %v8571
        %v8573 = vpop.f32.mrb[0].mxu0
        %v8574 = vadd.f32 %v8533, %v8573
        %v8575 = vpop.f32.mrb[0].mxu0
        %v8576 = vpop.f32.mrb[0].mxu0
        %8577 = vdwg.mxu0
        %8578 = vmatprep.subr.bf16.mxu0 %v5357
        %8579 = vmatpush1.bf16.msra.mxu0 %v5356
        %8580 = vmatprep.subr.bf16.mxu0 %v5369
        %8581 = vmatpush1.bf16.msra.mxu0 %v5368
        %8582 = vmatprep.subr.bf16.mxu0 %v5381
        %8583 = vmatpush1.bf16.msra.mxu0 %v5380
        %8584 = vmatprep.subr.bf16.mxu0 %v5393
        %8585 = vmatpush1.bf16.msra.mxu0 %v5392
        %8586 = vmatprep.subr.bf16.mxu0 %v5405
        %8587 = vmatpush1.bf16.msra.mxu0 %v5404
        %8588 = vmatprep.subr.bf16.mxu0 %v5417
        %8589 = vmatpush1.bf16.msra.mxu0 %v5416
        %8590 = vmatprep.subr.bf16.mxu0 %v5429
        %8591 = vmatpush1.bf16.msra.mxu0 %v5428
        %8592 = vmatprep.subr.bf16.mxu0 %v5441
        %8593 = vmatpush1.bf16.msra.mxu0 %v5440
        %8594 = vmatprep.subr.bf16.mxu0 %v5453
        %8595 = vmatpush1.bf16.msra.mxu0 %v5452
        %8596 = vmatprep.subr.bf16.mxu0 %v5465
        %8597 = vmatpush1.bf16.msra.mxu0 %v5464
        %8598 = vmatprep.subr.bf16.mxu0 %v5477
        %8599 = vmatpush1.bf16.msra.mxu0 %v5476
        %8600 = vmatprep.subr.bf16.mxu0 %v5489
        %8601 = vmatpush1.bf16.msra.mxu0 %v5488
        %8602 = vmatprep.subr.bf16.mxu0 %v5501
        %8603 = vmatpush1.bf16.msra.mxu0 %v5500
        %8604 = vmatprep.subr.bf16.mxu0 %v5513
        %8605 = vmatpush1.bf16.msra.mxu0 %v5512
        %8606 = vmatprep.subr.bf16.mxu0 %v5525
        %8607 = vmatpush1.bf16.msra.mxu0 %v5524
        %8608 = vmatprep.subr.bf16.mxu0 %v5537
        %8609 = vmatpush1.bf16.msra.mxu0 %v5536
        %8610 = vmatprep.mubr.bf16.mxu0 %v1487
        %8611 = vmatmul.mubr.bf16.gmra.mrb[0].mxu0 %v1486
        %v8612 = vpop.f32.mrb[0].mxu0
        %v8613 = vadd.f32 %v8572, %v8612
        %v8614 = vpop.f32.mrb[0].mxu0
        %v8615 = vadd.f32 %v8574, %v8614
        %v8616 = vpop.f32.mrb[0].mxu0
        %v8617 = vpop.f32.mrb[0].mxu0
        %8618 = vdwg.mxu0
        %8619 = vmatprep.subr.bf16.mxu0 %v5549
        %8620 = vmatpush1.bf16.msra.mxu0 %v5548
        %8621 = vmatprep.subr.bf16.mxu0 %v5561
        %8622 = vmatpush1.bf16.msra.mxu0 %v5560
        %8623 = vmatprep.subr.bf16.mxu0 %v5573
        %8624 = vmatpush1.bf16.msra.mxu0 %v5572
        %8625 = vmatprep.subr.bf16.mxu0 %v5585
        %8626 = vmatpush1.bf16.msra.mxu0 %v5584
        %8627 = vmatprep.subr.bf16.mxu0 %v5597
        %8628 = vmatpush1.bf16.msra.mxu0 %v5596
        %8629 = vmatprep.subr.bf16.mxu0 %v5609
        %8630 = vmatpush1.bf16.msra.mxu0 %v5608
        %8631 = vmatprep.subr.bf16.mxu0 %v5621
        %8632 = vmatpush1.bf16.msra.mxu0 %v5620
        %8633 = vmatprep.subr.bf16.mxu0 %v5633
        %8634 = vmatpush1.bf16.msra.mxu0 %v5632
        %8635 = vmatprep.subr.bf16.mxu0 %v5645
        %8636 = vmatpush1.bf16.msra.mxu0 %v5644
        %8637 = vmatprep.subr.bf16.mxu0 %v5657
        %8638 = vmatpush1.bf16.msra.mxu0 %v5656
        %8639 = vmatprep.subr.bf16.mxu0 %v5669
        %8640 = vmatpush1.bf16.msra.mxu0 %v5668
        %8641 = vmatprep.subr.bf16.mxu0 %v5681
        %8642 = vmatpush1.bf16.msra.mxu0 %v5680
        %8643 = vmatprep.subr.bf16.mxu0 %v5693
        %8644 = vmatpush1.bf16.msra.mxu0 %v5692
        %8645 = vmatprep.subr.bf16.mxu0 %v5705
        %8646 = vmatpush1.bf16.msra.mxu0 %v5704
        %8647 = vmatprep.subr.bf16.mxu0 %v5717
        %8648 = vmatpush1.bf16.msra.mxu0 %v5716
        %8649 = vmatprep.subr.bf16.mxu0 %v5729
        %8650 = vmatpush1.bf16.msra.mxu0 %v5728
        %8651 = vmatprep.mubr.bf16.mxu0 %v1489
        %8652 = vmatmul.mubr.bf16.gmra.mrb[0].mxu0 %v1488
        %v8653 = vpop.f32.mrb[0].mxu0
        %v8654 = vadd.f32 %v8613, %v8653
        %v8655 = vpop.f32.mrb[0].mxu0
        %v8656 = vadd.f32 %v8615, %v8655
        %v8657 = vpop.f32.mrb[0].mxu0
        %v8658 = vpop.f32.mrb[0].mxu0
        %8659 = vdwg.mxu0
        %8660 = vmatprep.subr.bf16.mxu0 %v5741
        %8661 = vmatpush1.bf16.msra.mxu0 %v5740
        %8662 = vmatprep.subr.bf16.mxu0 %v5753
        %8663 = vmatpush1.bf16.msra.mxu0 %v5752
        %8664 = vmatprep.subr.bf16.mxu0 %v5765
        %8665 = vmatpush1.bf16.msra.mxu0 %v5764
        %8666 = vmatprep.subr.bf16.mxu0 %v5777
        %8667 = vmatpush1.bf16.msra.mxu0 %v5776
        %8668 = vmatprep.subr.bf16.mxu0 %v5789
        %8669 = vmatpush1.bf16.msra.mxu0 %v5788
        %8670 = vmatprep.subr.bf16.mxu0 %v5801
        %8671 = vmatpush1.bf16.msra.mxu0 %v5800
        %8672 = vmatprep.subr.bf16.mxu0 %v5813
        %8673 = vmatpush1.bf16.msra.mxu0 %v5812
        %8674 = vmatprep.subr.bf16.mxu0 %v5825
        %8675 = vmatpush1.bf16.msra.mxu0 %v5824
        %8676 = vmatprep.subr.bf16.mxu0 %v5837
        %8677 = vmatpush1.bf16.msra.mxu0 %v5836
        %8678 = vmatprep.subr.bf16.mxu0 %v5849
        %8679 = vmatpush1.bf16.msra.mxu0 %v5848
        %8680 = vmatprep.subr.bf16.mxu0 %v5861
        %8681 = vmatpush1.bf16.msra.mxu0 %v5860
        %8682 = vmatprep.subr.bf16.mxu0 %v5873
        %8683 = vmatpush1.bf16.msra.mxu0 %v5872
        %8684 = vmatprep.subr.bf16.mxu0 %v5885
        %8685 = vmatpush1.bf16.msra.mxu0 %v5884
        %8686 = vmatprep.subr.bf16.mxu0 %v5897
        %8687 = vmatpush1.bf16.msra.mxu0 %v5896
        %8688 = vmatprep.subr.bf16.mxu0 %v5909
        %8689 = vmatpush1.bf16.msra.mxu0 %v5908
        %8690 = vmatprep.subr.bf16.mxu0 %v5921
        %8691 = vmatpush1.bf16.msra.mxu0 %v5920
        %8692 = vmatprep.mubr.bf16.mxu0 %v1491
        %8693 = vmatmul.mubr.bf16.gmra.mrb[0].mxu0 %v1490
        %v8694 = vpop.f32.mrb[0].mxu0
        %v8695 = vadd.f32 %v8654, %v8694
        %v8696 = vpop.f32.mrb[0].mxu0
        %v8697 = vadd.f32 %v8656, %v8696
        %v8698 = vpop.f32.mrb[0].mxu0
        %v8699 = vpop.f32.mrb[0].mxu0
        %8700 = vdwg.mxu0
        %8701 = vmatprep.subr.bf16.mxu0 %v5933
        %8702 = vmatpush1.bf16.msra.mxu0 %v5932
        %8703 = vmatprep.subr.bf16.mxu0 %v5945
        %8704 = vmatpush1.bf16.msra.mxu0 %v5944
        %8705 = vmatprep.subr.bf16.mxu0 %v5957
        %8706 = vmatpush1.bf16.msra.mxu0 %v5956
        %8707 = vmatprep.subr.bf16.mxu0 %v5969
        %8708 = vmatpush1.bf16.msra.mxu0 %v5968
        %8709 = vmatprep.subr.bf16.mxu0 %v5981
        %8710 = vmatpush1.bf16.msra.mxu0 %v5980
        %8711 = vmatprep.subr.bf16.mxu0 %v5993
        %8712 = vmatpush1.bf16.msra.mxu0 %v5992
        %8713 = vmatprep.subr.bf16.mxu0 %v6005
        %8714 = vmatpush1.bf16.msra.mxu0 %v6004
        %8715 = vmatprep.subr.bf16.mxu0 %v6017
        %8716 = vmatpush1.bf16.msra.mxu0 %v6016
        %8717 = vmatprep.subr.bf16.mxu0 %v6029
        %8718 = vmatpush1.bf16.msra.mxu0 %v6028
        %8719 = vmatprep.subr.bf16.mxu0 %v6041
        %8720 = vmatpush1.bf16.msra.mxu0 %v6040
        %8721 = vmatprep.subr.bf16.mxu0 %v6053
        %8722 = vmatpush1.bf16.msra.mxu0 %v6052
        %8723 = vmatprep.subr.bf16.mxu0 %v6065
        %8724 = vmatpush1.bf16.msra.mxu0 %v6064
        %8725 = vmatprep.subr.bf16.mxu0 %v6077
        %8726 = vmatpush1.bf16.msra.mxu0 %v6076
        %8727 = vmatprep.subr.bf16.mxu0 %v6089
        %8728 = vmatpush1.bf16.msra.mxu0 %v6088
        %8729 = vmatprep.subr.bf16.mxu0 %v6101
        %8730 = vmatpush1.bf16.msra.mxu0 %v6100
        %8731 = vmatprep.subr.bf16.mxu0 %v6113
        %8732 = vmatpush1.bf16.msra.mxu0 %v6112
        %8733 = vmatprep.mubr.bf16.mxu0 %v1493
        %8734 = vmatmul.mubr.bf16.gmra.mrb[0].mxu0 %v1492
        %v8735 = vpop.f32.mrb[0].mxu0
        %v8736 = vadd.f32 %v8695, %v8735
        %v8737 = vpop.f32.mrb[0].mxu0
        %v8738 = vadd.f32 %v8697, %v8737
        %v8739 = vpop.f32.mrb[0].mxu0
        %v8740 = vpop.f32.mrb[0].mxu0
        %8741 = vdwg.mxu0
        %v8742 = vmul.f32 %v7506, %v7506
        %v8743 = vmul.f32 %v7508, %v7508
        %v8744 = vmul.f32 %v7752, %v7752
        %v8745 = vmul.f32 %v7754, %v7754
        %v8746 = vmul.f32 %v7998, %v7998
        %v8747 = vmul.f32 %v8000, %v8000
        %v8748 = vmul.f32 %v8244, %v8244
        %v8749 = vmul.f32 %v8246, %v8246
        %v8750 = vmul.f32 %v8490, %v8490
        %v8751 = vmul.f32 %v8492, %v8492
        %v8752 = vmul.f32 %v8736, %v8736
        %v8753 = vmul.f32 %v8738, %v8738
        %v8754 = vadd.f32 %v8742, %v8743
        %v8755 = vadd.f32 %v8754, %v8744
        %v8756 = vadd.f32 %v8755, %v8745
        %v8757 = vadd.f32 %v8756, %v8746
        %v8758 = vadd.f32 %v8757, %v8747
        %v8759 = vadd.f32 %v8758, %v8748
        %v8760 = vadd.f32 %v8759, %v8749
        %v8761 = vadd.f32 %v8760, %v8750
        %v8762 = vadd.f32 %v8761, %v8751
        %v8763 = vadd.f32 %v8762, %v8752
        %v8764 = vadd.f32 %v8763, %v8753
        %8765 = vadd.xlane.f32.xlu0 %v8764
        %v8766 = vpop.xlane.xlu0 %8765
        %v8767 = vadd.f32 %v8766, 1e-24
        %v8768 = vrsqrt.pop %v8767
        %v8769 = vmul.f32 %v7506, %v8768
        %v8770 = vmul.f32 %v7508, %v8768
        %v8771 = vmul.f32 %v7752, %v8768
        %v8772 = vmul.f32 %v7754, %v8768
        %v8773 = vmul.f32 %v7998, %v8768
        %v8774 = vmul.f32 %v8000, %v8768
        %v8775 = vmul.f32 %v8244, %v8768
        %v8776 = vmul.f32 %v8246, %v8768
        %v8777 = vmul.f32 %v8490, %v8768
        %v8778 = vmul.f32 %v8492, %v8768
        %v8779 = vmul.f32 %v8736, %v8768
        %v8780 = vmul.f32 %v8738, %v8768
        %p8781 = scmp.eq.s32.totalorder %s28, 0
        // Predicated region
        $region41: #{infonce_emb_loss_2.1} parent=31 // pred_check
          %p8782 = pneg %p8781
        $region42: #{infonce_emb_loss_2.1} parent=31 // pred_check_branch
          %8784 = sbr.rel (%p8782) target = $region44
        $region43: #{infonce_emb_loss_2.1} parent=31 // pred_region
          %v8797 = vcombine.low %v8769, %v8770
          %v8798 = vcombine.low %v8771, %v8772
          %v8799 = vcombine.low %v8773, %v8774
          %v8800 = vcombine.low %v8775, %v8776
          %v8801 = vcombine.low %v8777, %v8778
          %v8802 = vcombine.low %v8779, %v8780
          %8809 = vst [vmem:[#allocation2] sm:$0xff] %v8797
          %8810 = vst [vmem:[#allocation2 + $0x8] sm:$0xff] %v8798
          %8811 = vst [vmem:[#allocation2 + $0x10] sm:$0xff] %v8799
          %8812 = vst [vmem:[#allocation2 + $0x18] sm:$0xff] %v8800
          %8813 = vst [vmem:[#allocation2 + $0x20] sm:$0xff] %v8801
          %8814 = vst [vmem:[#allocation2 + $0x28] sm:$0xff] %v8802
          %v8815 = vcombine.high %v8769, %v8770
          %v8816 = vcombine.high %v8771, %v8772
          %v8817 = vcombine.high %v8773, %v8774
          %v8818 = vcombine.high %v8775, %v8776
          %v8819 = vcombine.high %v8777, %v8778
          %v8820 = vcombine.high %v8779, %v8780
          %s8827 = scalar_lea.vmem [#allocation2], 48
          %8828 = vst [vmem:[%s8827] sm:$0xff] %v8815
          %8829 = vst [vmem:[%s8827 + $0x8] sm:$0xff] %v8816
          %8830 = vst [vmem:[%s8827 + $0x10] sm:$0xff] %v8817
          %8831 = vst [vmem:[%s8827 + $0x18] sm:$0xff] %v8818
          %8832 = vst [vmem:[%s8827 + $0x20] sm:$0xff] %v8819
          %8833 = vst [vmem:[%s8827 + $0x28] sm:$0xff] %v8820
          %8834 = vst [vmem:[%s5] sm:$0x1] 0.0
        $region44: #{infonce_emb_loss_2.1} parent=31 // pred_fallthru
          _
        %p8835 = scmp.eq.s32.totalorder %s28, 1
        // Predicated region
        $region45: #{infonce_emb_loss_2.1} parent=31 // pred_check
          %p8836 = pneg %p8835
        $region46: #{infonce_emb_loss_2.1} parent=31 // pred_check_branch
          %8838 = sbr.rel (%p8836) target = $region48
        $region47: #{infonce_emb_loss_2.1} parent=31 // pred_region
          %v8851 = vcombine.low %v8769, %v8770
          %v8852 = vcombine.low %v8771, %v8772
          %v8853 = vcombine.low %v8773, %v8774
          %v8854 = vcombine.low %v8775, %v8776
          %v8855 = vcombine.low %v8777, %v8778
          %v8856 = vcombine.low %v8779, %v8780
          %8863 = vst [vmem:[#allocation3] sm:$0xff] %v8851
          %8864 = vst [vmem:[#allocation3 + $0x8] sm:$0xff] %v8852
          %8865 = vst [vmem:[#allocation3 + $0x10] sm:$0xff] %v8853
          %8866 = vst [vmem:[#allocation3 + $0x18] sm:$0xff] %v8854
          %8867 = vst [vmem:[#allocation3 + $0x20] sm:$0xff] %v8855
          %8868 = vst [vmem:[#allocation3 + $0x28] sm:$0xff] %v8856
          %v8869 = vcombine.high %v8769, %v8770
          %v8870 = vcombine.high %v8771, %v8772
          %v8871 = vcombine.high %v8773, %v8774
          %v8872 = vcombine.high %v8775, %v8776
          %v8873 = vcombine.high %v8777, %v8778
          %v8874 = vcombine.high %v8779, %v8780
          %s8881 = scalar_lea.vmem [#allocation3], 48
          %8882 = vst [vmem:[%s8881] sm:$0xff] %v8869
          %8883 = vst [vmem:[%s8881 + $0x8] sm:$0xff] %v8870
          %8884 = vst [vmem:[%s8881 + $0x10] sm:$0xff] %v8871
          %8885 = vst [vmem:[%s8881 + $0x18] sm:$0xff] %v8872
          %8886 = vst [vmem:[%s8881 + $0x20] sm:$0xff] %v8873
          %8887 = vst [vmem:[%s8881 + $0x28] sm:$0xff] %v8874
          %v8888 = vld [vmem:[#allocation2] sm:$0xff]
          %v8889 = vld [vmem:[#allocation2 + $0x8] sm:$0xff]
          %v8890 = vld [vmem:[#allocation2 + $0x10] sm:$0xff]
          %v8891 = vld [vmem:[#allocation2 + $0x18] sm:$0xff]
          %v8892 = vld [vmem:[#allocation2 + $0x20] sm:$0xff]
          %v8893 = vld [vmem:[#allocation2 + $0x28] sm:$0xff]
          %v8894 = vld [vmem:[#allocation2 + $0x30] sm:$0xff]
          %v8895 = vld [vmem:[#allocation2 + $0x38] sm:$0xff]
          %v8896 = vld [vmem:[#allocation2 + $0x40] sm:$0xff]
          %v8897 = vld [vmem:[#allocation2 + $0x48] sm:$0xff]
          %v8898 = vld [vmem:[#allocation2 + $0x50] sm:$0xff]
          %v8899 = vld [vmem:[#allocation2 + $0x58] sm:$0xff]
          %v8900 = vld [vmem:[#allocation3] sm:$0xff]
          %v8901 = vld [vmem:[#allocation3 + $0x8] sm:$0xff]
          %v8902 = vld [vmem:[#allocation3 + $0x10] sm:$0xff]
          %v8903 = vld [vmem:[#allocation3 + $0x18] sm:$0xff]
          %v8904 = vld [vmem:[#allocation3 + $0x20] sm:$0xff]
          %v8905 = vld [vmem:[#allocation3 + $0x28] sm:$0xff]
          %v8906 = vld [vmem:[#allocation3 + $0x30] sm:$0xff]
          %v8907 = vld [vmem:[#allocation3 + $0x38] sm:$0xff]
          %v8908 = vld [vmem:[#allocation3 + $0x40] sm:$0xff]
          %v8909 = vld [vmem:[#allocation3 + $0x48] sm:$0xff]
          %v8910 = vld [vmem:[#allocation3 + $0x50] sm:$0xff]
          %v8911 = vld [vmem:[#allocation3 + $0x58] sm:$0xff]
          %v8912 = vlaneseq
          %v8913 = vand.u32 %v8912, 127
          %v8914 = vlaneseq
          %v8915 = vshrl.u32 %v8914, 7
          %vm8916 = vcmp.eq.s32.totalorder %v8915, 0
          %s8917 = sld [smem:[#allocation5]]
          %v8918 = vstv %s8917
          %v8919 = vsel %vm8916, %v8918, 0
          %s8920 = sld [smem:[#allocation6]]
          %v8921 = vstv %s8920
          %v8922 = vsel %vm8916, %v8921, 0
          %vm8923 = vcmp.eq.s32.totalorder %v8915, 1
          %s8924 = sld [smem:[#allocation5 + $0x1]]
          %v8925 = vstv %s8924
          %v8926 = vsel %vm8923, %v8925, 0
          %v8927 = vadd.s32 %v8919, %v8926
          %s8928 = sld [smem:[#allocation6 + $0x1]]
          %v8929 = vstv %s8928
          %v8930 = vsel %vm8923, %v8929, 0
          %v8931 = vadd.s32 %v8922, %v8930
          %vm8932 = vcmp.eq.s32.totalorder %v8913, %v8927
          %v8933 = vsel %vm8932, 1, 0
          %v8934 = vcvt.s32.f32 %v8933
          %vm8935 = vcmp.eq.s32.totalorder %v8913, %v8931
          %v8936 = vsel %vm8935, 1, 0
          %v8937 = vcvt.s32.f32 %v8936
          %v8938 = vlaneseq
          %v8939 = vshrl.u32 %v8938, 7
          %v8940 = vsub.s32 0, %v8939
          %v8941 = vrot.slane %v8937, %v8940
          %8943 = vbcast.lane.b32.xlu0 %v8941, 256
          %v8944 = vpop.permute.xlu0 %8943
          %v8945 = vlaneseq
          %v8946 = vshrl.u32 %v8945, 7
          %v8947 = vsub.s32 1, %v8946
          %v8948 = vrot.slane %v8937, %v8947
          %8950 = vbcast.lane.b32.xlu0 %v8948, 256
          %v8951 = vpop.permute.xlu0 %8950
          %v8964 = vcombine.high %v8900, %v8900
          %v8965 = vcombine.high %v8901, %v8901
          %v8966 = vcombine.high %v8902, %v8902
          %v8967 = vcombine.high %v8903, %v8903
          %v8968 = vcombine.high %v8904, %v8904
          %v8969 = vcombine.high %v8905, %v8905
          %v8970 = vcombine.high %v8906, %v8906
          %v8971 = vcombine.high %v8907, %v8907
          %v8972 = vcombine.high %v8908, %v8908
          %v8973 = vcombine.high %v8909, %v8909
          %v8974 = vcombine.high %v8910, %v8910
          %v8975 = vcombine.high %v8911, %v8911
          %v8988 = vmul.f32 %v8944, %v8900
          %v8989 = vmul.f32 %v8944, %v8964
          %v8990 = vmul.f32 %v8944, %v8901
          %v8991 = vmul.f32 %v8944, %v8965
          %v8992 = vmul.f32 %v8944, %v8902
          %v8993 = vmul.f32 %v8944, %v8966
          %v8994 = vmul.f32 %v8944, %v8903
          %v8995 = vmul.f32 %v8944, %v8967
          %v8996 = vmul.f32 %v8944, %v8904
          %v8997 = vmul.f32 %v8944, %v8968
          %v8998 = vmul.f32 %v8944, %v8905
          %v8999 = vmul.f32 %v8944, %v8969
          %v9000 = vmul.f32 %v8951, %v8906
          %v9001 = vmul.f32 %v8951, %v8970
          %v9002 = vmul.f32 %v8951, %v8907
          %v9003 = vmul.f32 %v8951, %v8971
          %v9004 = vmul.f32 %v8951, %v8908
          %v9005 = vmul.f32 %v8951, %v8972
          %v9006 = vmul.f32 %v8951, %v8909
          %v9007 = vmul.f32 %v8951, %v8973
          %v9008 = vmul.f32 %v8951, %v8910
          %v9009 = vmul.f32 %v8951, %v8974
          %v9010 = vmul.f32 %v8951, %v8911
          %v9011 = vmul.f32 %v8951, %v8975
          %vm9012 = vcmask 1043456
          %v9013 = vsel %vm9012, %v8988, 0.0
          %v9014 = vrot.slane %v9013, 4
          %v9015 = vadd.f32 %v9013, %v9014
          %v9016 = vrot.slane %v9015, 2
          %v9017 = vadd.f32 %v9015, %v9016
          %v9018 = vrot.slane %v9017, 1
          %v9019 = vadd.f32 %v9017, %v9018
          %v9020 = vsel %vm9012, %v8989, 0.0
          %v9021 = vrot.slane %v9020, 4
          %v9022 = vadd.f32 %v9020, %v9021
          %v9023 = vrot.slane %v9022, 2
          %v9024 = vadd.f32 %v9022, %v9023
          %v9025 = vrot.slane %v9024, 1
          %v9026 = vadd.f32 %v9024, %v9025
          %v9027 = vsel %vm9012, %v8990, 0.0
          %v9028 = vrot.slane %v9027, 4
          %v9029 = vadd.f32 %v9027, %v9028
          %v9030 = vrot.slane %v9029, 2
          %v9031 = vadd.f32 %v9029, %v9030
          %v9032 = vrot.slane %v9031, 1
          %v9033 = vadd.f32 %v9031, %v9032
          %v9034 = vsel %vm9012, %v8991, 0.0
          %v9035 = vrot.slane %v9034, 4
          %v9036 = vadd.f32 %v9034, %v9035
          %v9037 = vrot.slane %v9036, 2
          %v9038 = vadd.f32 %v9036, %v9037
          %v9039 = vrot.slane %v9038, 1
          %v9040 = vadd.f32 %v9038, %v9039
          %v9041 = vsel %vm9012, %v8992, 0.0
          %v9042 = vrot.slane %v9041, 4
          %v9043 = vadd.f32 %v9041, %v9042
          %v9044 = vrot.slane %v9043, 2
          %v9045 = vadd.f32 %v9043, %v9044
          %v9046 = vrot.slane %v9045, 1
          %v9047 = vadd.f32 %v9045, %v9046
          %v9048 = vsel %vm9012, %v8993, 0.0
          %v9049 = vrot.slane %v9048, 4
          %v9050 = vadd.f32 %v9048, %v9049
          %v9051 = vrot.slane %v9050, 2
          %v9052 = vadd.f32 %v9050, %v9051
          %v9053 = vrot.slane %v9052, 1
          %v9054 = vadd.f32 %v9052, %v9053
          %v9055 = vsel %vm9012, %v8994, 0.0
          %v9056 = vrot.slane %v9055, 4
          %v9057 = vadd.f32 %v9055, %v9056
          %v9058 = vrot.slane %v9057, 2
          %v9059 = vadd.f32 %v9057, %v9058
          %v9060 = vrot.slane %v9059, 1
          %v9061 = vadd.f32 %v9059, %v9060
          %v9062 = vsel %vm9012, %v8995, 0.0
          %v9063 = vrot.slane %v9062, 4
          %v9064 = vadd.f32 %v9062, %v9063
          %v9065 = vrot.slane %v9064, 2
          %v9066 = vadd.f32 %v9064, %v9065
          %v9067 = vrot.slane %v9066, 1
          %v9068 = vadd.f32 %v9066, %v9067
          %v9069 = vsel %vm9012, %v8996, 0.0
          %v9070 = vrot.slane %v9069, 4
          %v9071 = vadd.f32 %v9069, %v9070
          %v9072 = vrot.slane %v9071, 2
          %v9073 = vadd.f32 %v9071, %v9072
          %v9074 = vrot.slane %v9073, 1
          %v9075 = vadd.f32 %v9073, %v9074
          %v9076 = vsel %vm9012, %v8997, 0.0
          %v9077 = vrot.slane %v9076, 4
          %v9078 = vadd.f32 %v9076, %v9077
          %v9079 = vrot.slane %v9078, 2
          %v9080 = vadd.f32 %v9078, %v9079
          %v9081 = vrot.slane %v9080, 1
          %v9082 = vadd.f32 %v9080, %v9081
          %v9083 = vsel %vm9012, %v8998, 0.0
          %v9084 = vrot.slane %v9083, 4
          %v9085 = vadd.f32 %v9083, %v9084
          %v9086 = vrot.slane %v9085, 2
          %v9087 = vadd.f32 %v9085, %v9086
          %v9088 = vrot.slane %v9087, 1
          %v9089 = vadd.f32 %v9087, %v9088
          %v9090 = vsel %vm9012, %v8999, 0.0
          %v9091 = vrot.slane %v9090, 4
          %v9092 = vadd.f32 %v9090, %v9091
          %v9093 = vrot.slane %v9092, 2
          %v9094 = vadd.f32 %v9092, %v9093
          %v9095 = vrot.slane %v9094, 1
          %v9096 = vadd.f32 %v9094, %v9095
          %v9097 = vsel %vm9012, %v9000, 0.0
          %v9098 = vrot.slane %v9097, 4
          %v9099 = vadd.f32 %v9097, %v9098
          %v9100 = vrot.slane %v9099, 2
          %v9101 = vadd.f32 %v9099, %v9100
          %v9102 = vrot.slane %v9101, 1
          %v9103 = vadd.f32 %v9101, %v9102
          %v9104 = vsel %vm9012, %v9001, 0.0
          %v9105 = vrot.slane %v9104, 4
          %v9106 = vadd.f32 %v9104, %v9105
          %v9107 = vrot.slane %v9106, 2
          %v9108 = vadd.f32 %v9106, %v9107
          %v9109 = vrot.slane %v9108, 1
          %v9110 = vadd.f32 %v9108, %v9109
          %v9111 = vsel %vm9012, %v9002, 0.0
          %v9112 = vrot.slane %v9111, 4
          %v9113 = vadd.f32 %v9111, %v9112
          %v9114 = vrot.slane %v9113, 2
          %v9115 = vadd.f32 %v9113, %v9114
          %v9116 = vrot.slane %v9115, 1
          %v9117 = vadd.f32 %v9115, %v9116
          %v9118 = vsel %vm9012, %v9003, 0.0
          %v9119 = vrot.slane %v9118, 4
          %v9120 = vadd.f32 %v9118, %v9119
          %v9121 = vrot.slane %v9120, 2
          %v9122 = vadd.f32 %v9120, %v9121
          %v9123 = vrot.slane %v9122, 1
          %v9124 = vadd.f32 %v9122, %v9123
          %v9125 = vsel %vm9012, %v9004, 0.0
          %v9126 = vrot.slane %v9125, 4
          %v9127 = vadd.f32 %v9125, %v9126
          %v9128 = vrot.slane %v9127, 2
          %v9129 = vadd.f32 %v9127, %v9128
          %v9130 = vrot.slane %v9129, 1
          %v9131 = vadd.f32 %v9129, %v9130
          %v9132 = vsel %vm9012, %v9005, 0.0
          %v9133 = vrot.slane %v9132, 4
          %v9134 = vadd.f32 %v9132, %v9133
          %v9135 = vrot.slane %v9134, 2
          %v9136 = vadd.f32 %v9134, %v9135
          %v9137 = vrot.slane %v9136, 1
          %v9138 = vadd.f32 %v9136, %v9137
          %v9139 = vsel %vm9012, %v9006, 0.0
          %v9140 = vrot.slane %v9139, 4
          %v9141 = vadd.f32 %v9139, %v9140
          %v9142 = vrot.slane %v9141, 2
          %v9143 = vadd.f32 %v9141, %v9142
          %v9144 = vrot.slane %v9143, 1
          %v9145 = vadd.f32 %v9143, %v9144
          %v9146 = vsel %vm9012, %v9007, 0.0
          %v9147 = vrot.slane %v9146, 4
          %v9148 = vadd.f32 %v9146, %v9147
          %v9149 = vrot.slane %v9148, 2
          %v9150 = vadd.f32 %v9148, %v9149
          %v9151 = vrot.slane %v9150, 1
          %v9152 = vadd.f32 %v9150, %v9151
          %v9153 = vsel %vm9012, %v9008, 0.0
          %v9154 = vrot.slane %v9153, 4
          %v9155 = vadd.f32 %v9153, %v9154
          %v9156 = vrot.slane %v9155, 2
          %v9157 = vadd.f32 %v9155, %v9156
          %v9158 = vrot.slane %v9157, 1
          %v9159 = vadd.f32 %v9157, %v9158
          %v9160 = vsel %vm9012, %v9009, 0.0
          %v9161 = vrot.slane %v9160, 4
          %v9162 = vadd.f32 %v9160, %v9161
          %v9163 = vrot.slane %v9162, 2
          %v9164 = vadd.f32 %v9162, %v9163
          %v9165 = vrot.slane %v9164, 1
          %v9166 = vadd.f32 %v9164, %v9165
          %v9167 = vsel %vm9012, %v9010, 0.0
          %v9168 = vrot.slane %v9167, 4
          %v9169 = vadd.f32 %v9167, %v9168
          %v9170 = vrot.slane %v9169, 2
          %v9171 = vadd.f32 %v9169, %v9170
          %v9172 = vrot.slane %v9171, 1
          %v9173 = vadd.f32 %v9171, %v9172
          %v9174 = vsel %vm9012, %v9011, 0.0
          %v9175 = vrot.slane %v9174, 4
          %v9176 = vadd.f32 %v9174, %v9175
          %v9177 = vrot.slane %v9176, 2
          %v9178 = vadd.f32 %v9176, %v9177
          %v9179 = vrot.slane %v9178, 1
          %v9180 = vadd.f32 %v9178, %v9179
          %v9181 = vlaneseq
          %v9182 = vshrl.u32 %v9181, 7
          %v9183 = vsub.s32 0, %v9182
          %v9184 = vrot.slane %v8934, %v9183
          %9186 = vbcast.lane.b32.xlu0 %v9184, 256
          %v9187 = vpop.permute.xlu0 %9186
          %v9188 = vlaneseq
          %v9189 = vshrl.u32 %v9188, 7
          %v9190 = vsub.s32 1, %v9189
          %v9191 = vrot.slane %v8934, %v9190
          %9193 = vbcast.lane.b32.xlu0 %v9191, 256
          %v9194 = vpop.permute.xlu0 %9193
          %v9207 = vcombine.high %v8888, %v8888
          %v9208 = vcombine.high %v8889, %v8889
          %v9209 = vcombine.high %v8890, %v8890
          %v9210 = vcombine.high %v8891, %v8891
          %v9211 = vcombine.high %v8892, %v8892
          %v9212 = vcombine.high %v8893, %v8893
          %v9213 = vcombine.high %v8894, %v8894
          %v9214 = vcombine.high %v8895, %v8895
          %v9215 = vcombine.high %v8896, %v8896
          %v9216 = vcombine.high %v8897, %v8897
          %v9217 = vcombine.high %v8898, %v8898
          %v9218 = vcombine.high %v8899, %v8899
          %v9231 = vmul.f32 %v9187, %v8888
          %v9232 = vmul.f32 %v9187, %v9207
          %v9233 = vmul.f32 %v9187, %v8889
          %v9234 = vmul.f32 %v9187, %v9208
          %v9235 = vmul.f32 %v9187, %v8890
          %v9236 = vmul.f32 %v9187, %v9209
          %v9237 = vmul.f32 %v9187, %v8891
          %v9238 = vmul.f32 %v9187, %v9210
          %v9239 = vmul.f32 %v9187, %v8892
          %v9240 = vmul.f32 %v9187, %v9211
          %v9241 = vmul.f32 %v9187, %v8893
          %v9242 = vmul.f32 %v9187, %v9212
          %v9243 = vmul.f32 %v9194, %v8894
          %v9244 = vmul.f32 %v9194, %v9213
          %v9245 = vmul.f32 %v9194, %v8895
          %v9246 = vmul.f32 %v9194, %v9214
          %v9247 = vmul.f32 %v9194, %v8896
          %v9248 = vmul.f32 %v9194, %v9215
          %v9249 = vmul.f32 %v9194, %v8897
          %v9250 = vmul.f32 %v9194, %v9216
          %v9251 = vmul.f32 %v9194, %v8898
          %v9252 = vmul.f32 %v9194, %v9217
          %v9253 = vmul.f32 %v9194, %v8899
          %v9254 = vmul.f32 %v9194, %v9218
          %v9255 = vsel %vm9012, %v9231, 0.0
          %v9256 = vrot.slane %v9255, 4
          %v9257 = vadd.f32 %v9255, %v9256
          %v9258 = vrot.slane %v9257, 2
          %v9259 = vadd.f32 %v9257, %v9258
          %v9260 = vrot.slane %v9259, 1
          %v9261 = vadd.f32 %v9259, %v9260
          %v9262 = vsel %vm9012, %v9232, 0.0
          %v9263 = vrot.slane %v9262, 4
          %v9264 = vadd.f32 %v9262, %v9263
          %v9265 = vrot.slane %v9264, 2
          %v9266 = vadd.f32 %v9264, %v9265
          %v9267 = vrot.slane %v9266, 1
          %v9268 = vadd.f32 %v9266, %v9267
          %v9269 = vsel %vm9012, %v9233, 0.0
          %v9270 = vrot.slane %v9269, 4
          %v9271 = vadd.f32 %v9269, %v9270
          %v9272 = vrot.slane %v9271, 2
          %v9273 = vadd.f32 %v9271, %v9272
          %v9274 = vrot.slane %v9273, 1
          %v9275 = vadd.f32 %v9273, %v9274
          %v9276 = vsel %vm9012, %v9234, 0.0
          %v9277 = vrot.slane %v9276, 4
          %v9278 = vadd.f32 %v9276, %v9277
          %v9279 = vrot.slane %v9278, 2
          %v9280 = vadd.f32 %v9278, %v9279
          %v9281 = vrot.slane %v9280, 1
          %v9282 = vadd.f32 %v9280, %v9281
          %v9283 = vsel %vm9012, %v9235, 0.0
          %v9284 = vrot.slane %v9283, 4
          %v9285 = vadd.f32 %v9283, %v9284
          %v9286 = vrot.slane %v9285, 2
          %v9287 = vadd.f32 %v9285, %v9286
          %v9288 = vrot.slane %v9287, 1
          %v9289 = vadd.f32 %v9287, %v9288
          %v9290 = vsel %vm9012, %v9236, 0.0
          %v9291 = vrot.slane %v9290, 4
          %v9292 = vadd.f32 %v9290, %v9291
          %v9293 = vrot.slane %v9292, 2
          %v9294 = vadd.f32 %v9292, %v9293
          %v9295 = vrot.slane %v9294, 1
          %v9296 = vadd.f32 %v9294, %v9295
          %v9297 = vsel %vm9012, %v9237, 0.0
          %v9298 = vrot.slane %v9297, 4
          %v9299 = vadd.f32 %v9297, %v9298
          %v9300 = vrot.slane %v9299, 2
          %v9301 = vadd.f32 %v9299, %v9300
          %v9302 = vrot.slane %v9301, 1
          %v9303 = vadd.f32 %v9301, %v9302
          %v9304 = vsel %vm9012, %v9238, 0.0
          %v9305 = vrot.slane %v9304, 4
          %v9306 = vadd.f32 %v9304, %v9305
          %v9307 = vrot.slane %v9306, 2
          %v9308 = vadd.f32 %v9306, %v9307
          %v9309 = vrot.slane %v9308, 1
          %v9310 = vadd.f32 %v9308, %v9309
          %v9311 = vsel %vm9012, %v9239, 0.0
          %v9312 = vrot.slane %v9311, 4
          %v9313 = vadd.f32 %v9311, %v9312
          %v9314 = vrot.slane %v9313, 2
          %v9315 = vadd.f32 %v9313, %v9314
          %v9316 = vrot.slane %v9315, 1
          %v9317 = vadd.f32 %v9315, %v9316
          %v9318 = vsel %vm9012, %v9240, 0.0
          %v9319 = vrot.slane %v9318, 4
          %v9320 = vadd.f32 %v9318, %v9319
          %v9321 = vrot.slane %v9320, 2
          %v9322 = vadd.f32 %v9320, %v9321
          %v9323 = vrot.slane %v9322, 1
          %v9324 = vadd.f32 %v9322, %v9323
          %v9325 = vsel %vm9012, %v9241, 0.0
          %v9326 = vrot.slane %v9325, 4
          %v9327 = vadd.f32 %v9325, %v9326
          %v9328 = vrot.slane %v9327, 2
          %v9329 = vadd.f32 %v9327, %v9328
          %v9330 = vrot.slane %v9329, 1
          %v9331 = vadd.f32 %v9329, %v9330
          %v9332 = vsel %vm9012, %v9242, 0.0
          %v9333 = vrot.slane %v9332, 4
          %v9334 = vadd.f32 %v9332, %v9333
          %v9335 = vrot.slane %v9334, 2
          %v9336 = vadd.f32 %v9334, %v9335
          %v9337 = vrot.slane %v9336, 1
          %v9338 = vadd.f32 %v9336, %v9337
          %v9339 = vsel %vm9012, %v9243, 0.0
          %v9340 = vrot.slane %v9339, 4
          %v9341 = vadd.f32 %v9339, %v9340
          %v9342 = vrot.slane %v9341, 2
          %v9343 = vadd.f32 %v9341, %v9342
          %v9344 = vrot.slane %v9343, 1
          %v9345 = vadd.f32 %v9343, %v9344
          %v9346 = vsel %vm9012, %v9244, 0.0
          %v9347 = vrot.slane %v9346, 4
          %v9348 = vadd.f32 %v9346, %v9347
          %v9349 = vrot.slane %v9348, 2
          %v9350 = vadd.f32 %v9348, %v9349
          %v9351 = vrot.slane %v9350, 1
          %v9352 = vadd.f32 %v9350, %v9351
          %v9353 = vsel %vm9012, %v9245, 0.0
          %v9354 = vrot.slane %v9353, 4
          %v9355 = vadd.f32 %v9353, %v9354
          %v9356 = vrot.slane %v9355, 2
          %v9357 = vadd.f32 %v9355, %v9356
          %v9358 = vrot.slane %v9357, 1
          %v9359 = vadd.f32 %v9357, %v9358
          %v9360 = vsel %vm9012, %v9246, 0.0
          %v9361 = vrot.slane %v9360, 4
          %v9362 = vadd.f32 %v9360, %v9361
          %v9363 = vrot.slane %v9362, 2
          %v9364 = vadd.f32 %v9362, %v9363
          %v9365 = vrot.slane %v9364, 1
          %v9366 = vadd.f32 %v9364, %v9365
          %v9367 = vsel %vm9012, %v9247, 0.0
          %v9368 = vrot.slane %v9367, 4
          %v9369 = vadd.f32 %v9367, %v9368
          %v9370 = vrot.slane %v9369, 2
          %v9371 = vadd.f32 %v9369, %v9370
          %v9372 = vrot.slane %v9371, 1
          %v9373 = vadd.f32 %v9371, %v9372
          %v9374 = vsel %vm9012, %v9248, 0.0
          %v9375 = vrot.slane %v9374, 4
          %v9376 = vadd.f32 %v9374, %v9375
          %v9377 = vrot.slane %v9376, 2
          %v9378 = vadd.f32 %v9376, %v9377
          %v9379 = vrot.slane %v9378, 1
          %v9380 = vadd.f32 %v9378, %v9379
          %v9381 = vsel %vm9012, %v9249, 0.0
          %v9382 = vrot.slane %v9381, 4
          %v9383 = vadd.f32 %v9381, %v9382
          %v9384 = vrot.slane %v9383, 2
          %v9385 = vadd.f32 %v9383, %v9384
          %v9386 = vrot.slane %v9385, 1
          %v9387 = vadd.f32 %v9385, %v9386
          %v9388 = vsel %vm9012, %v9250, 0.0
          %v9389 = vrot.slane %v9388, 4
          %v9390 = vadd.f32 %v9388, %v9389
          %v9391 = vrot.slane %v9390, 2
          %v9392 = vadd.f32 %v9390, %v9391
          %v9393 = vrot.slane %v9392, 1
          %v9394 = vadd.f32 %v9392, %v9393
          %v9395 = vsel %vm9012, %v9251, 0.0
          %v9396 = vrot.slane %v9395, 4
          %v9397 = vadd.f32 %v9395, %v9396
          %v9398 = vrot.slane %v9397, 2
          %v9399 = vadd.f32 %v9397, %v9398
          %v9400 = vrot.slane %v9399, 1
          %v9401 = vadd.f32 %v9399, %v9400
          %v9402 = vsel %vm9012, %v9252, 0.0
          %v9403 = vrot.slane %v9402, 4
          %v9404 = vadd.f32 %v9402, %v9403
          %v9405 = vrot.slane %v9404, 2
          %v9406 = vadd.f32 %v9404, %v9405
          %v9407 = vrot.slane %v9406, 1
          %v9408 = vadd.f32 %v9406, %v9407
          %v9409 = vsel %vm9012, %v9253, 0.0
          %v9410 = vrot.slane %v9409, 4
          %v9411 = vadd.f32 %v9409, %v9410
          %v9412 = vrot.slane %v9411, 2
          %v9413 = vadd.f32 %v9411, %v9412
          %v9414 = vrot.slane %v9413, 1
          %v9415 = vadd.f32 %v9413, %v9414
          %v9416 = vsel %vm9012, %v9254, 0.0
          %v9417 = vrot.slane %v9416, 4
          %v9418 = vadd.f32 %v9416, %v9417
          %v9419 = vrot.slane %v9418, 2
          %v9420 = vadd.f32 %v9418, %v9419
          %v9421 = vrot.slane %v9420, 1
          %v9422 = vadd.f32 %v9420, %v9421
          %v9447 = vcombine.low %v9019, %v9026
          %v9448 = vcombine.low %v9033, %v9040
          %v9449 = vcombine.low %v9047, %v9054
          %v9450 = vcombine.low %v9061, %v9068
          %v9451 = vcombine.low %v9075, %v9082
          %v9452 = vcombine.low %v9089, %v9096
          %v9453 = vcombine.low %v9103, %v9110
          %v9454 = vcombine.low %v9117, %v9124
          %v9455 = vcombine.low %v9131, %v9138
          %v9456 = vcombine.low %v9145, %v9152
          %v9457 = vcombine.low %v9159, %v9166
          %v9458 = vcombine.low %v9173, %v9180
          %v9471 = vmul.f32 %v8888, %v9447
          %v9472 = vmul.f32 %v8889, %v9448
          %v9473 = vmul.f32 %v8890, %v9449
          %v9474 = vmul.f32 %v8891, %v9450
          %v9475 = vmul.f32 %v8892, %v9451
          %v9476 = vmul.f32 %v8893, %v9452
          %v9477 = vmul.f32 %v8894, %v9453
          %v9478 = vmul.f32 %v8895, %v9454
          %v9479 = vmul.f32 %v8896, %v9455
          %v9480 = vmul.f32 %v8897, %v9456
          %v9481 = vmul.f32 %v8898, %v9457
          %v9482 = vmul.f32 %v8899, %v9458
          %v9495 = vcombine.high %v9471, %v9471
          %v9496 = vcombine.high %v9472, %v9472
          %v9497 = vcombine.high %v9473, %v9473
          %v9498 = vcombine.high %v9474, %v9474
          %v9499 = vcombine.high %v9475, %v9475
          %v9500 = vcombine.high %v9476, %v9476
          %v9501 = vcombine.high %v9477, %v9477
          %v9502 = vcombine.high %v9478, %v9478
          %v9503 = vcombine.high %v9479, %v9479
          %v9504 = vcombine.high %v9480, %v9480
          %v9505 = vcombine.high %v9481, %v9481
          %v9506 = vcombine.high %v9482, %v9482
          %v9519 = vsel %vm9012, %v9471, 0.0
          %v9520 = vsel %vm9012, %v9495, 0.0
          %v9521 = vadd.f32 %v9519, %v9520
          %v9522 = vsel %vm9012, %v9472, 0.0
          %v9523 = vadd.f32 %v9521, %v9522
          %v9524 = vsel %vm9012, %v9496, 0.0
          %v9525 = vadd.f32 %v9523, %v9524
          %v9526 = vsel %vm9012, %v9473, 0.0
          %v9527 = vadd.f32 %v9525, %v9526
          %v9528 = vsel %vm9012, %v9497, 0.0
          %v9529 = vadd.f32 %v9527, %v9528
          %v9530 = vsel %vm9012, %v9474, 0.0
          %v9531 = vadd.f32 %v9529, %v9530
          %v9532 = vsel %vm9012, %v9498, 0.0
          %v9533 = vadd.f32 %v9531, %v9532
          %v9534 = vsel %vm9012, %v9475, 0.0
          %v9535 = vadd.f32 %v9533, %v9534
          %v9536 = vsel %vm9012, %v9499, 0.0
          %v9537 = vadd.f32 %v9535, %v9536
          %v9538 = vsel %vm9012, %v9476, 0.0
          %v9539 = vadd.f32 %v9537, %v9538
          %v9540 = vsel %vm9012, %v9500, 0.0
          %v9541 = vadd.f32 %v9539, %v9540
          %9542 = vadd.xlane.f32.xlu0 %v9541
          %v9543 = vpop.xlane.xlu0 %9542
          %v9544 = vsel %vm9012, %v9477, 0.0
          %v9545 = vsel %vm9012, %v9501, 0.0
          %v9546 = vadd.f32 %v9544, %v9545
          %v9547 = vsel %vm9012, %v9478, 0.0
          %v9548 = vadd.f32 %v9546, %v9547
          %v9549 = vsel %vm9012, %v9502, 0.0
          %v9550 = vadd.f32 %v9548, %v9549
          %v9551 = vsel %vm9012, %v9479, 0.0
          %v9552 = vadd.f32 %v9550, %v9551
          %v9553 = vsel %vm9012, %v9503, 0.0
          %v9554 = vadd.f32 %v9552, %v9553
          %v9555 = vsel %vm9012, %v9480, 0.0
          %v9556 = vadd.f32 %v9554, %v9555
          %v9557 = vsel %vm9012, %v9504, 0.0
          %v9558 = vadd.f32 %v9556, %v9557
          %v9559 = vsel %vm9012, %v9481, 0.0
          %v9560 = vadd.f32 %v9558, %v9559
          %v9561 = vsel %vm9012, %v9505, 0.0
          %v9562 = vadd.f32 %v9560, %v9561
          %v9563 = vsel %vm9012, %v9482, 0.0
          %v9564 = vadd.f32 %v9562, %v9563
          %v9565 = vsel %vm9012, %v9506, 0.0
          %v9566 = vadd.f32 %v9564, %v9565
          %9567 = vadd.xlane.f32.xlu0 %v9566
          %v9568 = vpop.xlane.xlu0 %9567
          %v9593 = vcombine.low %v9261, %v9268
          %v9594 = vcombine.low %v9275, %v9282
          %v9595 = vcombine.low %v9289, %v9296
          %v9596 = vcombine.low %v9303, %v9310
          %v9597 = vcombine.low %v9317, %v9324
          %v9598 = vcombine.low %v9331, %v9338
          %v9599 = vcombine.low %v9345, %v9352
          %v9600 = vcombine.low %v9359, %v9366
          %v9601 = vcombine.low %v9373, %v9380
          %v9602 = vcombine.low %v9387, %v9394
          %v9603 = vcombine.low %v9401, %v9408
          %v9604 = vcombine.low %v9415, %v9422
          %v9617 = vmul.f32 %v8900, %v9593
          %v9618 = vmul.f32 %v8901, %v9594
          %v9619 = vmul.f32 %v8902, %v9595
          %v9620 = vmul.f32 %v8903, %v9596
          %v9621 = vmul.f32 %v8904, %v9597
          %v9622 = vmul.f32 %v8905, %v9598
          %v9623 = vmul.f32 %v8906, %v9599
          %v9624 = vmul.f32 %v8907, %v9600
          %v9625 = vmul.f32 %v8908, %v9601
          %v9626 = vmul.f32 %v8909, %v9602
          %v9627 = vmul.f32 %v8910, %v9603
          %v9628 = vmul.f32 %v8911, %v9604
          %v9641 = vcombine.high %v9617, %v9617
          %v9642 = vcombine.high %v9618, %v9618
          %v9643 = vcombine.high %v9619, %v9619
          %v9644 = vcombine.high %v9620, %v9620
          %v9645 = vcombine.high %v9621, %v9621
          %v9646 = vcombine.high %v9622, %v9622
          %v9647 = vcombine.high %v9623, %v9623
          %v9648 = vcombine.high %v9624, %v9624
          %v9649 = vcombine.high %v9625, %v9625
          %v9650 = vcombine.high %v9626, %v9626
          %v9651 = vcombine.high %v9627, %v9627
          %v9652 = vcombine.high %v9628, %v9628
          %v9665 = vsel %vm9012, %v9617, 0.0
          %v9666 = vsel %vm9012, %v9641, 0.0
          %v9667 = vadd.f32 %v9665, %v9666
          %v9668 = vsel %vm9012, %v9618, 0.0
          %v9669 = vadd.f32 %v9667, %v9668
          %v9670 = vsel %vm9012, %v9642, 0.0
          %v9671 = vadd.f32 %v9669, %v9670
          %v9672 = vsel %vm9012, %v9619, 0.0
          %v9673 = vadd.f32 %v9671, %v9672
          %v9674 = vsel %vm9012, %v9643, 0.0
          %v9675 = vadd.f32 %v9673, %v9674
          %v9676 = vsel %vm9012, %v9620, 0.0
          %v9677 = vadd.f32 %v9675, %v9676
          %v9678 = vsel %vm9012, %v9644, 0.0
          %v9679 = vadd.f32 %v9677, %v9678
          %v9680 = vsel %vm9012, %v9621, 0.0
          %v9681 = vadd.f32 %v9679, %v9680
          %v9682 = vsel %vm9012, %v9645, 0.0
          %v9683 = vadd.f32 %v9681, %v9682
          %v9684 = vsel %vm9012, %v9622, 0.0
          %v9685 = vadd.f32 %v9683, %v9684
          %v9686 = vsel %vm9012, %v9646, 0.0
          %v9687 = vadd.f32 %v9685, %v9686
          %9688 = vadd.xlane.f32.xlu0 %v9687
          %v9689 = vpop.xlane.xlu0 %9688
          %v9690 = vsel %vm9012, %v9623, 0.0
          %v9691 = vsel %vm9012, %v9647, 0.0
          %v9692 = vadd.f32 %v9690, %v9691
          %v9693 = vsel %vm9012, %v9624, 0.0
          %v9694 = vadd.f32 %v9692, %v9693
          %v9695 = vsel %vm9012, %v9648, 0.0
          %v9696 = vadd.f32 %v9694, %v9695
          %v9697 = vsel %vm9012, %v9625, 0.0
          %v9698 = vadd.f32 %v9696, %v9697
          %v9699 = vsel %vm9012, %v9649, 0.0
          %v9700 = vadd.f32 %v9698, %v9699
          %v9701 = vsel %vm9012, %v9626, 0.0
          %v9702 = vadd.f32 %v9700, %v9701
          %v9703 = vsel %vm9012, %v9650, 0.0
          %v9704 = vadd.f32 %v9702, %v9703
          %v9705 = vsel %vm9012, %v9627, 0.0
          %v9706 = vadd.f32 %v9704, %v9705
          %v9707 = vsel %vm9012, %v9651, 0.0
          %v9708 = vadd.f32 %v9706, %v9707
          %v9709 = vsel %vm9012, %v9628, 0.0
          %v9710 = vadd.f32 %v9708, %v9709
          %v9711 = vsel %vm9012, %v9652, 0.0
          %v9712 = vadd.f32 %v9710, %v9711
          %9713 = vadd.xlane.f32.xlu0 %v9712
          %v9714 = vpop.xlane.xlu0 %9713
          %v9715 = vmul.f32 %v9543, 14.285714
          %v9716 = vmul.f32 %v9568, 14.285714
          %v9719 = vlaneseq
          %v9720 = vshrl.u32 %v9719, 7
          %v9721 = vsub.s32 %v8913, %v9720
          %v9722 = vrot.slane %v9715, %v9721
          %v9723 = vlaneseq
          %v9724 = vshrl.u32 %v9723, 7
          %v9725 = vsub.s32 %v8913, %v9724
          %v9726 = vrot.slane %v9716, %v9725
          %vm9727 = vcmask 1041409
          %v9728 = vsel %vm9727, %v9726, %v9722
          %vm9730 = vcmask 25600
          %v9731 = vsel %vm9730, %v9728, -inf
          %9732 = vmax.xlane.f32.xlu0 %v9731
          %v9733 = vpop.xlane.xlu0 %9732
          %v9735 = vlaneseq
          %v9736 = vshrl.u32 %v9735, 7
          %v9737 = vsub.s32 0, %v9736
          %v9738 = vrot.slane %v9733, %v9737
          %v9739 = vlaneseq
          %v9740 = vshrl.u32 %v9739, 7
          %v9741 = vsub.s32 1, %v9740
          %v9742 = vrot.slane %v9733, %v9741
          %v9745 = vsub.f32 %v9715, %v9738
          %v9746 = vsub.f32 %v9716, %v9742
          %v9747 = vmul.f32 %v9745, 1.442695
          %v9748 = vpow.pop %v9747
          %v9749 = vmul.f32 %v9746, 1.442695
          %v9750 = vpow.pop %v9749
          %9753 = vset.pattern.permute.xlu0 0
          %9754 = vperm.xlu0 %9753, %v9748
          %v9755 = vpop.permute.xlu0 %9754
          %9756 = vset.pattern.permute.xlu0 0
          %9757 = vperm.xlu0 %9756, %v9750
          %v9758 = vpop.permute.xlu0 %9757
          %v9759 = vlaneseq
          %v9760 = vshrl.u32 %v9759, 7
          %v9761 = vsub.s32 %v8913, %v9760
          %v9762 = vrot.slane %v9755, %v9761
          %v9763 = vlaneseq
          %v9764 = vshrl.u32 %v9763, 7
          %v9765 = vsub.s32 %v8913, %v9764
          %v9766 = vrot.slane %v9758, %v9765
          %v9767 = vsel %vm9727, %v9766, %v9762
          %v9769 = vsel %vm9730, %v9767, 0.0
          %9770 = vadd.xlane.f32.xlu0 %v9769
          %v9771 = vpop.xlane.xlu0 %9770
          %v9772 = vlog2.pop %v9771
          %v9773 = vmul.f32 %v9772, 0.6931472
          %v9774 = vadd.f32 %v9733, %v9773
          %v9775 = vmul.f32 %v8934, %v9728
          %v9776 = vsel %vm9730, %v9775, 0.0
          %9777 = vadd.xlane.f32.xlu0 %v9776
          %v9778 = vpop.xlane.xlu0 %9777
          %v9779 = vsub.f32 %v9774, %v9778
          %v9781 = vlaneseq
          %v9782 = vshrl.u32 %v9781, 7
          %v9783 = vsub.s32 0, %v9782
          %v9784 = vrot.slane %v9771, %v9783
          %v9785 = vlaneseq
          %v9786 = vshrl.u32 %v9785, 7
          %v9787 = vsub.s32 1, %v9786
          %v9788 = vrot.slane %v9771, %v9787
          %v9791 = vrcp.pop %v9784
          %v9792 = vmul.f32 %v9748, %v9791
          %v9793 = vrcp.pop %v9788
          %v9794 = vmul.f32 %v9750, %v9793
          %9797 = vset.pattern.permute.xlu0 0
          %9798 = vperm.xlu0 %9797, %v9792
          %v9799 = vpop.permute.xlu0 %9798
          %9800 = vset.pattern.permute.xlu0 0
          %9801 = vperm.xlu0 %9800, %v9794
          %v9802 = vpop.permute.xlu0 %9801
          %v9803 = vlaneseq
          %v9804 = vshrl.u32 %v9803, 7
          %v9805 = vsub.s32 %v8913, %v9804
          %v9806 = vrot.slane %v9799, %v9805
          %v9807 = vlaneseq
          %v9808 = vshrl.u32 %v9807, 7
          %v9809 = vsub.s32 %v8913, %v9808
          %v9810 = vrot.slane %v9802, %v9809
          %v9811 = vsel %vm9727, %v9810, %v9806
          %v9813 = vsel %vm9730, %v9811, -inf
          %9814 = vmax.xlane.f32.xlu0 %v9813
          %v9815 = vpop.xlane.xlu0 %9814
          %v9817 = vlaneseq
          %v9818 = vshrl.u32 %v9817, 7
          %v9819 = vsub.s32 0, %v9818
          %v9820 = vrot.slane %v9815, %v9819
          %v9821 = vlaneseq
          %v9822 = vshrl.u32 %v9821, 7
          %v9823 = vsub.s32 1, %v9822
          %v9824 = vrot.slane %v9815, %v9823
          %vm9827 = vcmp.ge.f32.partialorder %v9792, %v9820
          %vm9828 = vcmp.ge.f32.partialorder %v9794, %v9824
          %9830 = vbcast.lane.b32.xlu0 %v8913, 256
          %v9831 = vpop.permute.xlu0 %9830
          %v9832 = vsel %vm9827, %v9831, 4
          %v9833 = vsel %vm9828, %v9831, 4
          %9834 = vset.pattern.permute.xlu0 0
          %9835 = vperm.xlu0 %9834, %v9832
          %v9836 = vpop.permute.xlu0 %9835
          %9837 = vset.pattern.permute.xlu0 0
          %9838 = vperm.xlu0 %9837, %v9833
          %v9839 = vpop.permute.xlu0 %9838
          %v9840 = vlaneseq
          %v9841 = vshrl.u32 %v9840, 7
          %v9842 = vsub.s32 %v8913, %v9841
          %v9843 = vrot.slane %v9836, %v9842
          %v9844 = vlaneseq
          %v9845 = vshrl.u32 %v9844, 7
          %v9846 = vsub.s32 %v8913, %v9845
          %v9847 = vrot.slane %v9839, %v9846
          %v9848 = vsel %vm9727, %v9847, %v9843
          %v9849 = vsel %vm9730, %v9848, 2147483647
          %v9850 = vand.u32 %v9849, 65535
          %v9851 = vshra.s32 %v9849, 16
          %v9852 = vcvt.s32.f32 %v9850
          %v9853 = vcvt.s32.f32 %v9851
          %9854 = vmin.xlane.f32.xlu0 %v9853
          %v9855 = vpop.xlane.xlu0 %9854
          %vm9856 = vcmp.eq.f32.partialorder %v9853, %v9855
          %v9857 = vsel %vm9856, %v9852, inf
          %9858 = vmin.xlane.f32.xlu0 %v9857
          %v9859 = vpop.xlane.xlu0 %9858
          %v9860 = vcvt.f32.s32 %v9859
          %v9861 = vcvt.f32.s32 %v9855
          %v9862 = vshll.u32 %v9861, 16
          %v9863 = vadd.s32 %v9862, %v9860
          %vm9864 = vcmp.eq.s32.totalorder %v9863, %v8927
          %v9865 = vsel %vm9864, 1, 0
          %v9866 = vcvt.s32.f32 %v9865
          %v9867 = vmul.f32 %v9689, 14.285714
          %v9868 = vmul.f32 %v9714, 14.285714
          %v9871 = vlaneseq
          %v9872 = vshrl.u32 %v9871, 7
          %v9873 = vsub.s32 %v8913, %v9872
          %v9874 = vrot.slane %v9867, %v9873
          %v9875 = vlaneseq
          %v9876 = vshrl.u32 %v9875, 7
          %v9877 = vsub.s32 %v8913, %v9876
          %v9878 = vrot.slane %v9868, %v9877
          %v9879 = vsel %vm9727, %v9878, %v9874
          %v9881 = vsel %vm9730, %v9879, -inf
          %9882 = vmax.xlane.f32.xlu0 %v9881
          %v9883 = vpop.xlane.xlu0 %9882
          %v9885 = vlaneseq
          %v9886 = vshrl.u32 %v9885, 7
          %v9887 = vsub.s32 0, %v9886
          %v9888 = vrot.slane %v9883, %v9887
          %v9889 = vlaneseq
          %v9890 = vshrl.u32 %v9889, 7
          %v9891 = vsub.s32 1, %v9890
          %v9892 = vrot.slane %v9883, %v9891
          %v9895 = vsub.f32 %v9867, %v9888
          %v9896 = vsub.f32 %v9868, %v9892
          %v9897 = vmul.f32 %v9895, 1.442695
          %v9898 = vpow.pop %v9897
          %v9899 = vmul.f32 %v9896, 1.442695
          %v9900 = vpow.pop %v9899
          %9903 = vset.pattern.permute.xlu0 0
          %9904 = vperm.xlu0 %9903, %v9898
          %v9905 = vpop.permute.xlu0 %9904
          %9906 = vset.pattern.permute.xlu0 0
          %9907 = vperm.xlu0 %9906, %v9900
          %v9908 = vpop.permute.xlu0 %9907
          %v9909 = vlaneseq
          %v9910 = vshrl.u32 %v9909, 7
          %v9911 = vsub.s32 %v8913, %v9910
          %v9912 = vrot.slane %v9905, %v9911
          %v9913 = vlaneseq
          %v9914 = vshrl.u32 %v9913, 7
          %v9915 = vsub.s32 %v8913, %v9914
          %v9916 = vrot.slane %v9908, %v9915
          %v9917 = vsel %vm9727, %v9916, %v9912
          %v9919 = vsel %vm9730, %v9917, 0.0
          %9920 = vadd.xlane.f32.xlu0 %v9919
          %v9921 = vpop.xlane.xlu0 %9920
          %v9922 = vlog2.pop %v9921
          %v9923 = vmul.f32 %v9922, 0.6931472
          %v9924 = vadd.f32 %v9883, %v9923
          %v9925 = vmul.f32 %v8937, %v9879
          %v9926 = vsel %vm9730, %v9925, 0.0
          %9927 = vadd.xlane.f32.xlu0 %v9926
          %v9928 = vpop.xlane.xlu0 %9927
          %v9929 = vsub.f32 %v9924, %v9928
          %v9931 = vlaneseq
          %v9932 = vshrl.u32 %v9931, 7
          %v9933 = vsub.s32 0, %v9932
          %v9934 = vrot.slane %v9921, %v9933
          %v9935 = vlaneseq
          %v9936 = vshrl.u32 %v9935, 7
          %v9937 = vsub.s32 1, %v9936
          %v9938 = vrot.slane %v9921, %v9937
          %v9941 = vrcp.pop %v9934
          %v9942 = vmul.f32 %v9898, %v9941
          %v9943 = vrcp.pop %v9938
          %v9944 = vmul.f32 %v9900, %v9943
          %9947 = vset.pattern.permute.xlu0 0
          %9948 = vperm.xlu0 %9947, %v9942
          %v9949 = vpop.permute.xlu0 %9948
          %9950 = vset.pattern.permute.xlu0 0
          %9951 = vperm.xlu0 %9950, %v9944
          %v9952 = vpop.permute.xlu0 %9951
          %v9953 = vlaneseq
          %v9954 = vshrl.u32 %v9953, 7
          %v9955 = vsub.s32 %v8913, %v9954
          %v9956 = vrot.slane %v9949, %v9955
          %v9957 = vlaneseq
          %v9958 = vshrl.u32 %v9957, 7
          %v9959 = vsub.s32 %v8913, %v9958
          %v9960 = vrot.slane %v9952, %v9959
          %v9961 = vsel %vm9727, %v9960, %v9956
          %v9963 = vsel %vm9730, %v9961, -inf
          %9964 = vmax.xlane.f32.xlu0 %v9963
          %v9965 = vpop.xlane.xlu0 %9964
          %v9967 = vlaneseq
          %v9968 = vshrl.u32 %v9967, 7
          %v9969 = vsub.s32 0, %v9968
          %v9970 = vrot.slane %v9965, %v9969
          %v9971 = vlaneseq
          %v9972 = vshrl.u32 %v9971, 7
          %v9973 = vsub.s32 1, %v9972
          %v9974 = vrot.slane %v9965, %v9973
          %vm9977 = vcmp.ge.f32.partialorder %v9942, %v9970
          %vm9978 = vcmp.ge.f32.partialorder %v9944, %v9974
          %v9979 = vsel %vm9977, %v9831, 4
          %v9980 = vsel %vm9978, %v9831, 4
          %9981 = vset.pattern.permute.xlu0 0
          %9982 = vperm.xlu0 %9981, %v9979
          %v9983 = vpop.permute.xlu0 %9982
          %9984 = vset.pattern.permute.xlu0 0
          %9985 = vperm.xlu0 %9984, %v9980
          %v9986 = vpop.permute.xlu0 %9985
          %v9987 = vlaneseq
          %v9988 = vshrl.u32 %v9987, 7
          %v9989 = vsub.s32 %v8913, %v9988
          %v9990 = vrot.slane %v9983, %v9989
          %v9991 = vlaneseq
          %v9992 = vshrl.u32 %v9991, 7
          %v9993 = vsub.s32 %v8913, %v9992
          %v9994 = vrot.slane %v9986, %v9993
          %v9995 = vsel %vm9727, %v9994, %v9990
          %v9996 = vsel %vm9730, %v9995, 2147483647
          %v9997 = vand.u32 %v9996, 65535
          %v9998 = vshra.s32 %v9996, 16
          %v9999 = vcvt.s32.f32 %v9997
          %v10000 = vcvt.s32.f32 %v9998
          %10001 = vmin.xlane.f32.xlu0 %v10000
          %v10002 = vpop.xlane.xlu0 %10001
          %vm10003 = vcmp.eq.f32.partialorder %v10000, %v10002
          %v10004 = vsel %vm10003, %v9999, inf
          %10005 = vmin.xlane.f32.xlu0 %v10004
          %v10006 = vpop.xlane.xlu0 %10005
          %v10007 = vcvt.f32.s32 %v10006
          %v10008 = vcvt.f32.s32 %v10002
          %v10009 = vshll.u32 %v10008, 16
          %v10010 = vadd.s32 %v10009, %v10007
          %vm10011 = vcmp.eq.s32.totalorder %v10010, %v8931
          %v10012 = vsel %vm10011, 1, 0
          %v10013 = vcvt.s32.f32 %v10012
          %v10014 = vadd.f32 %v9779, %v9929
          %vm10015 = vcmask 1041408
          %v10016 = vsel %vm10015, %v10014, 0.0
          %v10017 = vrot.slane %v10016, 4
          %v10018 = vadd.f32 %v10016, %v10017
          %v10019 = vrot.slane %v10018, 2
          %v10020 = vadd.f32 %v10018, %v10019
          %v10021 = vrot.slane %v10020, 1
          %v10022 = vadd.f32 %v10020, %v10021
          %v10023 = vrcp.pop 2.0
          %v10024 = vmul.f32 %v10022, %v10023
          %v10025 = vsel %vm10015, %v9929, 0.0
          %v10026 = vrot.slane %v10025, 4
          %v10027 = vadd.f32 %v10025, %v10026
          %v10028 = vrot.slane %v10027, 2
          %v10029 = vadd.f32 %v10027, %v10028
          %v10030 = vrot.slane %v10029, 1
          %v10031 = vadd.f32 %v10029, %v10030
          %v10032 = vmul.f32 %v10031, %v10023
          %v10033 = vsel %vm10015, %v9965, 0.0
          %v10034 = vrot.slane %v10033, 4
          %v10035 = vadd.f32 %v10033, %v10034
          %v10036 = vrot.slane %v10035, 2
          %v10037 = vadd.f32 %v10035, %v10036
          %v10038 = vrot.slane %v10037, 1
          %v10039 = vadd.f32 %v10037, %v10038
          %v10040 = vmul.f32 %v10039, %v10023
          %v10041 = vsel %vm10015, %v10013, 0.0
          %v10042 = vrot.slane %v10041, 4
          %v10043 = vadd.f32 %v10041, %v10042
          %v10044 = vrot.slane %v10043, 2
          %v10045 = vadd.f32 %v10043, %v10044
          %v10046 = vrot.slane %v10045, 1
          %v10047 = vadd.f32 %v10045, %v10046
          %v10048 = vmul.f32 %v10047, %v10023
          %v10049 = vsel %vm10015, %v9779, 0.0
          %v10050 = vrot.slane %v10049, 4
          %v10051 = vadd.f32 %v10049, %v10050
          %v10052 = vrot.slane %v10051, 2
          %v10053 = vadd.f32 %v10051, %v10052
          %v10054 = vrot.slane %v10053, 1
          %v10055 = vadd.f32 %v10053, %v10054
          %v10056 = vmul.f32 %v10055, %v10023
          %v10057 = vsel %vm10015, %v9815, 0.0
          %v10058 = vrot.slane %v10057, 4
          %v10059 = vadd.f32 %v10057, %v10058
          %v10060 = vrot.slane %v10059, 2
          %v10061 = vadd.f32 %v10059, %v10060
          %v10062 = vrot.slane %v10061, 1
          %v10063 = vadd.f32 %v10061, %v10062
          %v10064 = vmul.f32 %v10063, %v10023
          %v10065 = vsel %vm10015, %v9866, 0.0
          %v10066 = vrot.slane %v10065, 4
          %v10067 = vadd.f32 %v10065, %v10066
          %v10068 = vrot.slane %v10067, 2
          %v10069 = vadd.f32 %v10067, %v10068
          %v10070 = vrot.slane %v10069, 1
          %v10071 = vadd.f32 %v10069, %v10070
          %v10072 = vmul.f32 %v10071, %v10023
          %vm10073 = vcmp.eq.s32.totalorder %v8913, 0
          %v10074 = vsel %vm10073, %v10024, 0.0
          %v10075 = vadd.f32 %v10074, 0.0
          %vm10076 = vcmp.eq.s32.totalorder %v8913, 1
          %v10077 = vsel %vm10076, %v10032, 0.0
          %v10078 = vadd.f32 %v10075, %v10077
          %vm10079 = vcmp.eq.s32.totalorder %v8913, 2
          %v10080 = vsel %vm10079, %v10040, 0.0
          %v10081 = vadd.f32 %v10078, %v10080
          %vm10082 = vcmp.eq.s32.totalorder %v8913, 3
          %v10083 = vsel %vm10082, %v10048, 0.0
          %v10084 = vadd.f32 %v10081, %v10083
          %vm10085 = vcmp.eq.s32.totalorder %v8913, 4
          %v10086 = vsel %vm10085, %v10056, 0.0
          %v10087 = vadd.f32 %v10084, %v10086
          %vm10088 = vcmp.eq.s32.totalorder %v8913, 5
          %v10089 = vsel %vm10088, %v10064, 0.0
          %v10090 = vadd.f32 %v10087, %v10089
          %vm10091 = vcmp.eq.s32.totalorder %v8913, 6
          %v10092 = vsel %vm10091, %v10072, 0.0
          %v10093 = vadd.f32 %v10090, %v10092
          %10094 = vst [vmem:[%s5] sm:$0x1] %v10093
        $region48: #{infonce_emb_loss_2.1} parent=31 // pred_fallthru
          _
        // Predicated region
        $region49: #{infonce_emb_loss_2.1} parent=31 // pred_check
          %p10095 = pneg %p119
        $region50: #{infonce_emb_loss_2.1} parent=31 // pred_check_branch
          %10097 = sbr.rel (%p10095) target = $region52
        $region51: #{infonce_emb_loss_2.1} parent=31 // pred_region
          _
        $region52: #{infonce_emb_loss_2.1} parent=31 // pred_fallthru
          _
        // Predicated region
        $region53: #{infonce_emb_loss_2.1} parent=31 // pred_check
          %p10098 = pneg %p119
        $region54: #{infonce_emb_loss_2.1} parent=31 // pred_check_branch
          %10100 = sbr.rel (%p10098) target = $region56
        $region55: #{infonce_emb_loss_2.1} parent=31 // pred_region
          _
        $region56: #{infonce_emb_loss_2.1} parent=31 // pred_fallthru
          _
      $region32: #{infonce_emb_loss_2.1} parent=5 // pred_fallthru
        _
      %p10101 = scmp.le.s32.totalorder 2, %s23
      // Predicated region
      $region57: #{infonce_emb_loss_2.1} parent=5 // pred_check
        %p10102 = pneg %p10101
      $region58: #{infonce_emb_loss_2.1} parent=5 // pred_check_branch
        %10104 = sbr.rel (%p10102) target = $region60
      $region59: #{infonce_emb_loss_2.1} parent=5 // pred_region
        %s10105 = ssub.s32 %s23, 2
      $region60: #{infonce_emb_loss_2.1} parent=5 // pred_fallthru
        _
    $region6: #{infonce_emb_loss_2.1} parent=1 // loop_footer
      %s27 = sadd.s32 1, %s23
    $region7: #{infonce_emb_loss_2.1} parent=1 // loop_footer_branch
      %22 = sbr.rel target = $region3
    $region8: #{infonce_emb_loss_2.1} parent=1 // loop_exit
      _
    %10106 = vsyncpa [#allocation8], 1
    %s10107 = scalar_lea.sflag [#allocation8], 1
    %10108 = vsyncpa %s10107, 1
    %10109 = vsyncpa [#allocation10], 1
    %s10110 = scalar_lea.sflag [#allocation10], 1
    %10111 = vsyncpa %s10110, 1

</llo_original>
